<compile_context>
chip_gen: v6e
topology: v6e:2x2x1
jax: 0.10.0
libtpu: 0.0.40
codegen_flags: <defaults>
</compile_context>

<pallas_src>
import functools

import jax
import jax.numpy as jnp
from jax.experimental import pallas as pl
from jax.experimental.pallas import tpu as pltpu


_VMEM_LIMIT = 64 * 1024 * 1024  # <= v7x physical VMEM; plenty of headroom on v5e/v6e


# ----------------------------------------------------------------------------
# Bilinear 2x upsample (align_corners=False): pure VPU lerp, no interp matrix.
# ----------------------------------------------------------------------------
def _upsample_kernel(x_ref, o_ref, *, h, w, c):
    x = x_ref[0]                                          # (h, w, c), f32
    # Rows: out[2i] = .25*x[i-1] + .75*x[i]; out[2i+1] = .75*x[i] + .25*x[i+1]
    # with border indices clamped (exactly PyTorch align_corners=False).
    rp = jnp.concatenate([x[:1], x, x[-1:]], axis=0)      # edge-replicated rows
    ev_r = 0.75 * x + 0.25 * rp[:h]
    od_r = 0.75 * x + 0.25 * rp[2:]

    def col_lerp(t):                                      # same stencil along W
        cp = jnp.concatenate([t[:, :1], t, t[:, -1:]], axis=1)
        return 0.75 * t + 0.25 * cp[:, :w], 0.75 * t + 0.25 * cp[:, 2:]

    ee, eo = col_lerp(ev_r)
    oe, oo = col_lerp(od_r)

    # Even/odd output columns interleave on the lane axis ((.., w, 2c) is
    # row-major-identical to (.., 2w, c)); even/odd output rows interleave on a
    # leading axis (layout-free stack + reshape).  One dense store.
    even_rows = jnp.concatenate([ee, eo], axis=-1)        # (h, w, 2c)
    odd_rows = jnp.concatenate([oe, oo], axis=-1)         # (h, w, 2c)
    o_ref[0] = jnp.stack([even_rows, odd_rows], axis=1).reshape(2 * h, w, 2 * c)


def upsample2x_bilinear(x):
    n, h, w, c = x.shape
    kernel = functools.partial(_upsample_kernel, h=h, w=w, c=c)
    out = pl.pallas_call(
        kernel,
        grid=(n,),
        in_specs=[pl.BlockSpec((1, h, w, c), lambda i: (i, 0, 0, 0))],
        out_specs=pl.BlockSpec((1, 2 * h, w, 2 * c), lambda i: (i, 0, 0, 0)),
        out_shape=jax.ShapeDtypeStruct((n, 2 * h, w, 2 * c), jnp.float32),
        compiler_params=pltpu.CompilerParams(
            dimension_semantics=("parallel",),
            vmem_limit_bytes=_VMEM_LIMIT),
    )(x)
    # (n, 2h, w, 2c) and (n, 2h, 2w, c) share the same row-major layout: free.
    return out.reshape(n, 2 * h, 2 * w, c)


# ----------------------------------------------------------------------------
# ResidualBlock pass 1: global BatchNorm batch statistics -> [scale; shift]
# ----------------------------------------------------------------------------
def _bn_stats_kernel(y_ref, s_ref, gy_ref, by_ref, gs_ref, bs_ref,
                     ay_ref, as_ref, *, h, w, cy, cs, inv_count, eps):
    """One-pass stats: accumulate per-channel [sum; sum-of-squares] over the
    whole batch in the resident output blocks, then fold mean / biased var with
    gamma/beta into [scale; shift] on the last grid step."""
    i = pl.program_id(0)

    @pl.when(i == 0)
    def _init():
        ay_ref[...] = jnp.zeros_like(ay_ref)
        as_ref[...] = jnp.zeros_like(as_ref)

    yf = y_ref[...].reshape(h * w, cy)
    sf = s_ref[...].reshape(h * w, cs)
    ay_ref[...] += jnp.concatenate(
        [jnp.sum(yf, axis=0, keepdims=True),
         jnp.sum(yf * yf, axis=0, keepdims=True)], axis=0)
    as_ref[...] += jnp.concatenate(
        [jnp.sum(sf, axis=0, keepdims=True),
         jnp.sum(sf * sf, axis=0, keepdims=True)], axis=0)

    @pl.when(i == pl.num_programs(0) - 1)
    def _finalize():
        def fold(acc_ref, g_ref, b_ref):
            mean = acc_ref[0:1, :] * inv_count
            var = acc_ref[1:2, :] * inv_count - mean * mean   # biased variance
            scale = g_ref[...] * jax.lax.rsqrt(var + eps)
            acc_ref[0:1, :] = scale
            acc_ref[1:2, :] = b_ref[...] - mean * scale
        fold(ay_ref, gy_ref, by_ref)
        fold(as_ref, gs_ref, bs_ref)


# ----------------------------------------------------------------------------
# ResidualBlock pass 2: fused concat + BN affine + convs + SiLU + residual add
# ----------------------------------------------------------------------------
def _conv3x3_im2col(x_flat, w_flat, h, w, cin):
    """3x3 'same' convolution (bias=False) as ONE im2col matmul with K = 9*cin.
    x_flat: (h*w, cin) f32;  w_flat: (9*cin, cout) bf16.  Returns (h*w, cout) f32."""
    x = x_flat.reshape(h, w, cin)
    zr = jnp.zeros((1, w, cin), x.dtype)
    x = jnp.concatenate([zr, x, zr], axis=0)              # zero-pad rows
    zc = jnp.zeros((h + 2, 1, cin), x.dtype)
    x = jnp.concatenate([zc, x, zc], axis=1)              # zero-pad cols
    cols = [x[dy:dy + h, dx:dx + w, :].reshape(h * w, cin)
            for dy in range(3) for dx in range(3)]
    slab = jnp.concatenate(cols, axis=1).astype(jnp.bfloat16)   # (h*w, 9*cin)
    return jnp.dot(slab, w_flat, preferred_element_type=jnp.float32)


def _resblock_kernel(y_ref, s_ref, ay_ref, as_ref, wry_ref, wrs_ref,
                     w1_ref, w2_ref, o_ref, *, h, w, cy, cs, cout):
    hw = h * w
    yf = y_ref[...].reshape(hw, cy)                       # f32
    sf = s_ref[...].reshape(hw, cs)

    # Residual 1x1 conv (bias=False).  Channel concat fused by splitting the
    # contraction:  cat([y, s], -1) @ W  ==  y @ W[:cy]  +  s @ W[cy:].
    res = jnp.dot(yf.astype(jnp.bfloat16), wry_ref[...],
                  preferred_element_type=jnp.float32)
    res = res + jnp.dot(sf.astype(jnp.bfloat16), wrs_ref[...],
                        preferred_element_type=jnp.float32)

    # BatchNorm with precomputed global batch stats: x * scale + shift (f32 VPU).
    bn = jnp.concatenate([yf * ay_ref[0:1, :] + ay_ref[1:2, :],
                          sf * as_ref[0:1, :] + as_ref[1:2, :]], axis=1)

    h1 = _conv3x3_im2col(bn, w1_ref[...], h, w, cy + cs)        # 3x3 conv #1
    h1 = h1 * jax.nn.sigmoid(h1)                                # SiLU (f32)
    h2 = _conv3x3_im2col(h1, w2_ref[...], h, w, h1.shape[-1])   # 3x3 conv #2

    # At realistic channel counts (cout multiple of 128) this store is lane-dense.
    o_ref[...] = (h2 + res).reshape(1, h, w, cout)


def residual_block_apply(p, y, skip, *, eps=1e-5):
    """ResidualBlock(residual=True) applied to the (virtual) concat of y, skip."""
    n, h, w, cy = y.shape
    cs = skip.shape[-1]
    cin = cy + cs
    cout = p["w_res_y"].shape[1]
    cmid = p["w1"].shape[1]

    # ---- pass 1: global batch-norm statistics -> per-channel [scale; shift] ----
    stats_kernel = functools.partial(
        _bn_stats_kernel, h=h, w=w, cy=cy, cs=cs,
        inv_count=1.0 / float(n * h * w), eps=eps)
    affine_y, affine_s = pl.pallas_call(
        stats_kernel,
        grid=(n,),
        in_specs=[
            pl.BlockSpec((1, h, w, cy), lambda i: (i, 0, 0, 0)),
            pl.BlockSpec((1, h, w, cs), lambda i: (i, 0, 0, 0)),
            pl.BlockSpec((1, cy), lambda i: (0, 0)),
            pl.BlockSpec((1, cy), lambda i: (0, 0)),
            pl.BlockSpec((1, cs), lambda i: (0, 0)),
            pl.BlockSpec((1, cs), lambda i: (0, 0)),
        ],
        out_specs=(
            pl.BlockSpec((2, cy), lambda i: (0, 0)),
            pl.BlockSpec((2, cs), lambda i: (0, 0)),
        ),
        out_shape=(
            jax.ShapeDtypeStruct((2, cy), jnp.float32),
            jax.ShapeDtypeStruct((2, cs), jnp.float32),
        ),
        compiler_params=pltpu.CompilerParams(
            dimension_semantics=("arbitrary",),   # global reduction over the batch
            vmem_limit_bytes=_VMEM_LIMIT),
    )(y, skip, p["gamma_y"], p["beta_y"], p["gamma_s"], p["beta_s"])

    # ---- pass 2: fused concat + BN + 1x1 res conv + two 3x3 convs + SiLU + add ----
    main_kernel = functools.partial(
        _resblock_kernel, h=h, w=w, cy=cy, cs=cs, cout=cout)
    return pl.pallas_call(
        main_kernel,
        grid=(n,),
        in_specs=[
            pl.BlockSpec((1, h, w, cy), lambda i: (i, 0, 0, 0)),
            pl.BlockSpec((1, h, w, cs), lambda i: (i, 0, 0, 0)),
            pl.BlockSpec((2, cy), lambda i: (0, 0)),
            pl.BlockSpec((2, cs), lambda i: (0, 0)),
            pl.BlockSpec((cy, cout), lambda i: (0, 0)),
            pl.BlockSpec((cs, cout), lambda i: (0, 0)),
            pl.BlockSpec((9 * cin, cmid), lambda i: (0, 0)),
            pl.BlockSpec((9 * cmid, cout), lambda i: (0, 0)),
        ],
        out_specs=pl.BlockSpec((1, h, w, cout), lambda i: (i, 0, 0, 0)),
        out_shape=jax.ShapeDtypeStruct((n, h, w, cout), jnp.float32),
        compiler_params=pltpu.CompilerParams(
            dimension_semantics=("parallel",),    # megacore-shardable over N
            vmem_limit_bytes=_VMEM_LIMIT),
    )(y, skip, affine_y, affine_s,
      p["w_res_y"], p["w_res_s"], p["w1"], p["w2"])


# ----------------------------------------------------------------------------
# UpBlock wrapper + deterministic parameter init
# ----------------------------------------------------------------------------
def init_upblock_params(key, in_channels, out_channels, skip_channels, block_depth):
    """Weights in matmul-friendly layouts (bf16 for all MXU operands):
       w_res_y/w_res_s : (Cy,Cout)/(Cs,Cout)  -- the (Cin,Cout) 1x1-conv weight,
                         split along K to fuse the channel concat.
       gamma_*/beta_*  : (1, C) f32 BatchNorm affine params, split the same way.
       w1, w2          : (9*Cin, Cmid), (9*Cmid, Cout) im2col weights,
                         tap-major (dy, dx), channel-minor."""
    blocks = []
    for i in range(block_depth):
        cy = in_channels if i == 0 else out_channels
        cs = skip_channels
        cin = cy + cs
        cmid = cout = out_channels
        key, k0, k1, k2, k3, k4 = jax.random.split(key, 6)
        w_res = 0.1 * jax.random.normal(k0, (cin, cout), jnp.float32)
        gamma = 1.0 + 0.1 * jax.random.normal(k1, (1, cin), jnp.float32)
        beta = 0.1 * jax.random.normal(k2, (1, cin), jnp.float32)
        w1 = 0.1 * jax.random.normal(k3, (3, 3, cin, cmid), jnp.float32)
        w2 = 0.1 * jax.random.normal(k4, (3, 3, cmid, cout), jnp.float32)
        blocks.append(dict(
            w_res_y=w_res[:cy].astype(jnp.bfloat16),
            w_res_s=w_res[cy:].astype(jnp.bfloat16),
            gamma_y=gamma[:, :cy], beta_y=beta[:, :cy],
            gamma_s=gamma[:, cy:], beta_s=beta[:, cy:],
            w1=w1.reshape(9 * cin, cmid).astype(jnp.bfloat16),
            w2=w2.reshape(9 * cmid, cout).astype(jnp.bfloat16),
        ))
    return blocks


def up_block_apply(params, x, skip_inputs):
    """x: (N, H, W, in_channels); skip_inputs: list of (N, 2H, 2W, skip_channels)."""
    y = upsample2x_bilinear(x)
    skips = list(skip_inputs)
    for bp in params:
        y = residual_block_apply(bp, y, skips.pop())   # pop() matches torch
    return y


if __name__ == "__main__":
    key = jax.random.PRNGKey(0)
    N, H, W = 2, 8, 8
    in_channels, out_channels, skip_channels, block_depth = 16, 16, 8, 2

    kx, ks, kp = jax.random.split(key, 3)
    x = jax.random.normal(kx, (N, H, W, in_channels), jnp.float32)
    skip_inputs = [
        jax.random.normal(k, (N, 2 * H, 2 * W, skip_channels), jnp.float32)
        for k in jax.random.split(ks, block_depth)
    ]
    params = init_upblock_params(kp, in_channels, out_channels, skip_channels,
                                 block_depth)

    apply_fn = jax.jit(up_block_apply)
    out = apply_fn(params, x, skip_inputs)
    jax.block_until_ready(out)
    assert out.shape == (N, 2 * H, 2 * W, out_channels)
    print("KERNEL_OK")
</pallas_src>

<mosaic_0001>
module attributes {stable_mosaic.version = 11 : i64} {
  func.func @_bn_stats_kernel(%arg0: i32, %arg1: memref<1x16x16x16xf32, #tpu.memory_space<vmem>>, %arg2: memref<1x16x16x8xf32, #tpu.memory_space<vmem>>, %arg3: memref<1x16xf32, #tpu.memory_space<vmem>>, %arg4: memref<1x16xf32, #tpu.memory_space<vmem>>, %arg5: memref<1x8xf32, #tpu.memory_space<vmem>>, %arg6: memref<1x8xf32, #tpu.memory_space<vmem>>, %arg7: memref<2x16xf32, #tpu.memory_space<vmem>>, %arg8: memref<2x8xf32, #tpu.memory_space<vmem>>) attributes {dimension_semantics = [#tpu.dimension_semantics<arbitrary>], iteration_bounds = array<i64: 2>, scalar_prefetch = 0 : i64, scratch_operands = 0 : i64, tpu.core_type = #tpu.core_type<tc>, window_params = [{transform_indices = @transform_0, window_bounds = array<i64: 1, 16, 16, 16>}, {transform_indices = @transform_1, window_bounds = array<i64: 1, 16, 16, 8>}, {pipeline_mode = #tpu.pipeline_mode<synchronous>, transform_indices = @transform_2, window_bounds = array<i64: 1, 16>}, {pipeline_mode = #tpu.pipeline_mode<synchronous>, transform_indices = @transform_3, window_bounds = array<i64: 1, 16>}, {pipeline_mode = #tpu.pipeline_mode<synchronous>, transform_indices = @transform_4, window_bounds = array<i64: 1, 8>}, {pipeline_mode = #tpu.pipeline_mode<synchronous>, transform_indices = @transform_5, window_bounds = array<i64: 1, 8>}, {pipeline_mode = #tpu.pipeline_mode<synchronous>, transform_indices = @transform_6, window_bounds = array<i64: 2, 16>}, {pipeline_mode = #tpu.pipeline_mode<synchronous>, transform_indices = @transform_7, window_bounds = array<i64: 2, 8>}]} {
    %c0_i32 = arith.constant 0 : i32
    %0 = arith.cmpi eq, %arg0, %c0_i32 : i32
    %1 = arith.extui %0 : i1 to i32
    %c0_i32_0 = arith.constant 0 : i32
    %2 = arith.cmpi ne, %1, %c0_i32_0 : i32
    scf.if %2 {
      %cst_20 = arith.constant 0.000000e+00 : f32
      %28 = vector.broadcast %cst_20 : f32 to vector<2x16xf32>
      %c0_21 = arith.constant 0 : index
      %c0_22 = arith.constant 0 : index
      %29 = vector.load %arg7[%c0_21, %c0_22] : memref<2x16xf32, #tpu.memory_space<vmem>>, vector<2x16xf32>
      tpu.vector_store %arg7[%c0_21, %c0_22], %28 {strides = array<i32>} : memref<2x16xf32, #tpu.memory_space<vmem>>, vector<2x16xf32>,
      %cst_23 = arith.constant 0.000000e+00 : f32
      %30 = vector.broadcast %cst_23 : f32 to vector<2x8xf32>
      %c0_24 = arith.constant 0 : index
      %c0_25 = arith.constant 0 : index
      %31 = vector.load %arg8[%c0_24, %c0_25] : memref<2x8xf32, #tpu.memory_space<vmem>>, vector<2x8xf32>
      tpu.vector_store %arg8[%c0_24, %c0_25], %30 {strides = array<i32>} : memref<2x8xf32, #tpu.memory_space<vmem>>, vector<2x8xf32>,
    } else {
    }
    %c0 = arith.constant 0 : index
    %c0_1 = arith.constant 0 : index
    %c0_2 = arith.constant 0 : index
    %c0_3 = arith.constant 0 : index
    %3 = vector.load %arg1[%c0, %c0_1, %c0_2, %c0_3] : memref<1x16x16x16xf32, #tpu.memory_space<vmem>>, vector<1x16x16x16xf32>
    %4 = vector.shape_cast %3 : vector<1x16x16x16xf32> to vector<256x16xf32>
    %c0_4 = arith.constant 0 : index
    %c0_5 = arith.constant 0 : index
    %c0_6 = arith.constant 0 : index
    %c0_7 = arith.constant 0 : index
    %5 = vector.load %arg2[%c0_4, %c0_5, %c0_6, %c0_7] : memref<1x16x16x8xf32, #tpu.memory_space<vmem>>, vector<1x16x16x8xf32>
    %6 = vector.shape_cast %5 : vector<1x16x16x8xf32> to vector<256x8xf32>
    %c0_8 = arith.constant 0 : index
    %c0_9 = arith.constant 0 : index
    %7 = vector.load %arg7[%c0_8, %c0_9] : memref<2x16xf32, #tpu.memory_space<vmem>>, vector<2x16xf32>
    %cst = arith.constant dense<0.000000e+00> : vector<16xf32>
    %8 = vector.multi_reduction <add>, %4, %cst [0] : vector<256x16xf32> to vector<16xf32>
    %9 = vector.shape_cast %8 : vector<16xf32> to vector<1x16xf32>
    %10 = arith.mulf %4, %4 : vector<256x16xf32>
    %cst_10 = arith.constant dense<0.000000e+00> : vector<16xf32>
    %11 = vector.multi_reduction <add>, %10, %cst_10 [0] : vector<256x16xf32> to vector<16xf32>
    %12 = vector.shape_cast %11 : vector<16xf32> to vector<1x16xf32>
    %13 = tpu.concatenate %9, %12 in 0 : vector<1x16xf32>, vector<1x16xf32> -> vector<2x16xf32>
    %14 = arith.addf %7, %13 : vector<2x16xf32>
    %c0_11 = arith.constant 0 : index
    %c0_12 = arith.constant 0 : index
    %15 = vector.load %arg7[%c0_11, %c0_12] : memref<2x16xf32, #tpu.memory_space<vmem>>, vector<2x16xf32>
    tpu.vector_store %arg7[%c0_11, %c0_12], %14 {strides = array<i32>} : memref<2x16xf32, #tpu.memory_space<vmem>>, vector<2x16xf32>,
    %c0_13 = arith.constant 0 : index
    %c0_14 = arith.constant 0 : index
    %16 = vector.load %arg8[%c0_13, %c0_14] : memref<2x8xf32, #tpu.memory_space<vmem>>, vector<2x8xf32>
    %cst_15 = arith.constant dense<0.000000e+00> : vector<8xf32>
    %17 = vector.multi_reduction <add>, %6, %cst_15 [0] : vector<256x8xf32> to vector<8xf32>
    %18 = vector.shape_cast %17 : vector<8xf32> to vector<1x8xf32>
    %19 = arith.mulf %6, %6 : vector<256x8xf32>
    %cst_16 = arith.constant dense<0.000000e+00> : vector<8xf32>
    %20 = vector.multi_reduction <add>, %19, %cst_16 [0] : vector<256x8xf32> to vector<8xf32>
    %21 = vector.shape_cast %20 : vector<8xf32> to vector<1x8xf32>
    %22 = tpu.concatenate %18, %21 in 0 : vector<1x8xf32>, vector<1x8xf32> -> vector<2x8xf32>
    %23 = arith.addf %16, %22 : vector<2x8xf32>
    %c0_17 = arith.constant 0 : index
    %c0_18 = arith.constant 0 : index
    %24 = vector.load %arg8[%c0_17, %c0_18] : memref<2x8xf32, #tpu.memory_space<vmem>>, vector<2x8xf32>
    tpu.vector_store %arg8[%c0_17, %c0_18], %23 {strides = array<i32>} : memref<2x8xf32, #tpu.memory_space<vmem>>, vector<2x8xf32>,
    %c1_i32 = arith.constant 1 : i32
    %25 = arith.cmpi eq, %arg0, %c1_i32 : i32
    %26 = arith.extui %25 : i1 to i32
    %c0_i32_19 = arith.constant 0 : i32
    %27 = arith.cmpi ne, %26, %c0_i32_19 : i32
    scf.if %27 {
      %c0_20 = arith.constant 0 : index
      %c0_21 = arith.constant 0 : index
      %28 = vector.load %arg7[%c0_20, %c0_21] : memref<2x16xf32, #tpu.memory_space<vmem>>, vector<1x16xf32>
      %cst_22 = arith.constant 0.001953125 : f32
      %29 = vector.broadcast %cst_22 : f32 to vector<1x16xf32>
      %30 = arith.mulf %28, %29 : vector<1x16xf32>
      %c1 = arith.constant 1 : index
      %c0_23 = arith.constant 0 : index
      %31 = vector.load %arg7[%c1, %c0_23] : memref<2x16xf32, #tpu.memory_space<vmem>>, vector<1x16xf32>
      %cst_24 = arith.constant 0.001953125 : f32
      %32 = vector.broadcast %cst_24 : f32 to vector<1x16xf32>
      %33 = arith.mulf %31, %32 : vector<1x16xf32>
      %34 = arith.mulf %30, %30 : vector<1x16xf32>
      %35 = arith.subf %33, %34 : vector<1x16xf32>
      %c0_25 = arith.constant 0 : index
      %c0_26 = arith.constant 0 : index
      %36 = vector.load %arg3[%c0_25, %c0_26] : memref<1x16xf32, #tpu.memory_space<vmem>>, vector<1x16xf32>
      %cst_27 = arith.constant 9.99999974E-6 : f32
      %37 = vector.broadcast %cst_27 : f32 to vector<1x16xf32>
      %38 = arith.addf %35, %37 : vector<1x16xf32>
      %39 = math.rsqrt %38 : vector<1x16xf32>
      %40 = arith.mulf %36, %39 : vector<1x16xf32>
      %c0_28 = arith.constant 0 : index
      %c0_29 = arith.constant 0 : index
      %41 = vector.load %arg7[%c0_28, %c0_29] : memref<2x16xf32, #tpu.memory_space<vmem>>, vector<1x16xf32>
      tpu.vector_store %arg7[%c0_28, %c0_29], %40 {strides = array<i32>} : memref<2x16xf32, #tpu.memory_space<vmem>>, vector<1x16xf32>,
      %c0_30 = arith.constant 0 : index
      %c0_31 = arith.constant 0 : index
      %42 = vector.load %arg4[%c0_30, %c0_31] : memref<1x16xf32, #tpu.memory_space<vmem>>, vector<1x16xf32>
      %43 = arith.mulf %30, %40 : vector<1x16xf32>
      %44 = arith.subf %42, %43 : vector<1x16xf32>
      %c1_32 = arith.constant 1 : index
      %c0_33 = arith.constant 0 : index
      %45 = vector.load %arg7[%c1_32, %c0_33] : memref<2x16xf32, #tpu.memory_space<vmem>>, vector<1x16xf32>
      tpu.vector_store %arg7[%c1_32, %c0_33], %44 {strides = array<i32>} : memref<2x16xf32, #tpu.memory_space<vmem>>, vector<1x16xf32>,
      %c0_34 = arith.constant 0 : index
      %c0_35 = arith.constant 0 : index
      %46 = vector.load %arg8[%c0_34, %c0_35] : memref<2x8xf32, #tpu.memory_space<vmem>>, vector<1x8xf32>
      %cst_36 = arith.constant 0.001953125 : f32
      %47 = vector.broadcast %cst_36 : f32 to vector<1x8xf32>
      %48 = arith.mulf %46, %47 : vector<1x8xf32>
      %c1_37 = arith.constant 1 : index
      %c0_38 = arith.constant 0 : index
      %49 = vector.load %arg8[%c1_37, %c0_38] : memref<2x8xf32, #tpu.memory_space<vmem>>, vector<1x8xf32>
      %cst_39 = arith.constant 0.001953125 : f32
      %50 = vector.broadcast %cst_39 : f32 to vector<1x8xf32>
      %51 = arith.mulf %49, %50 : vector<1x8xf32>
      %52 = arith.mulf %48, %48 : vector<1x8xf32>
      %53 = arith.subf %51, %52 : vector<1x8xf32>
      %c0_40 = arith.constant 0 : index
      %c0_41 = arith.constant 0 : index
      %54 = vector.load %arg5[%c0_40, %c0_41] : memref<1x8xf32, #tpu.memory_space<vmem>>, vector<1x8xf32>
      %cst_42 = arith.constant 9.99999974E-6 : f32
      %55 = vector.broadcast %cst_42 : f32 to vector<1x8xf32>
      %56 = arith.addf %53, %55 : vector<1x8xf32>
      %57 = math.rsqrt %56 : vector<1x8xf32>
      %58 = arith.mulf %54, %57 : vector<1x8xf32>
      %c0_43 = arith.constant 0 : index
      %c0_44 = arith.constant 0 : index
      %59 = vector.load %arg8[%c0_43, %c0_44] : memref<2x8xf32, #tpu.memory_space<vmem>>, vector<1x8xf32>
      tpu.vector_store %arg8[%c0_43, %c0_44], %58 {strides = array<i32>} : memref<2x8xf32, #tpu.memory_space<vmem>>, vector<1x8xf32>,
      %c0_45 = arith.constant 0 : index
      %c0_46 = arith.constant 0 : index
      %60 = vector.load %arg6[%c0_45, %c0_46] : memref<1x8xf32, #tpu.memory_space<vmem>>, vector<1x8xf32>
      %61 = arith.mulf %48, %58 : vector<1x8xf32>
      %62 = arith.subf %60, %61 : vector<1x8xf32>
      %c1_47 = arith.constant 1 : index
      %c0_48 = arith.constant 0 : index
      %63 = vector.load %arg8[%c1_47, %c0_48] : memref<2x8xf32, #tpu.memory_space<vmem>>, vector<1x8xf32>
      tpu.vector_store %arg8[%c1_47, %c0_48], %62 {strides = array<i32>} : memref<2x8xf32, #tpu.memory_space<vmem>>, vector<1x8xf32>,
    } else {
    }
    return
  }
  func.func @transform_0(%arg0: i32) -> (i32, i32, i32, i32) {
    %c0_i32 = arith.constant 0 : i32
    %c0_i32_0 = arith.constant 0 : i32
    %c0_i32_1 = arith.constant 0 : i32
    %c0_i32_2 = arith.constant 0 : i32
    return %arg0, %c0_i32, %c0_i32_0, %c0_i32_1 : i32, i32, i32, i32
  }
  func.func @transform_1(%arg0: i32) -> (i32, i32, i32, i32) {
    %c0_i32 = arith.constant 0 : i32
    %c0_i32_0 = arith.constant 0 : i32
    %c0_i32_1 = arith.constant 0 : i32
    %c0_i32_2 = arith.constant 0 : i32
    return %arg0, %c0_i32, %c0_i32_0, %c0_i32_1 : i32, i32, i32, i32
  }
  func.func @transform_2(%arg0: i32) -> (i32, i32) {
    %c0_i32 = arith.constant 0 : i32
    %c0_i32_0 = arith.constant 0 : i32
    %c0_i32_1 = arith.constant 0 : i32
    return %c0_i32, %c0_i32_0 : i32, i32
  }
  func.func @transform_3(%arg0: i32) -> (i32, i32) {
    %c0_i32 = arith.constant 0 : i32
    %c0_i32_0 = arith.constant 0 : i32
    %c0_i32_1 = arith.constant 0 : i32
    return %c0_i32, %c0_i32_0 : i32, i32
  }
  func.func @transform_4(%arg0: i32) -> (i32, i32) {
    %c0_i32 = arith.constant 0 : i32
    %c0_i32_0 = arith.constant 0 : i32
    %c0_i32_1 = arith.constant 0 : i32
    return %c0_i32, %c0_i32_0 : i32, i32
  }
  func.func @transform_5(%arg0: i32) -> (i32, i32) {
    %c0_i32 = arith.constant 0 : i32
    %c0_i32_0 = arith.constant 0 : i32
    %c0_i32_1 = arith.constant 0 : i32
    return %c0_i32, %c0_i32_0 : i32, i32
  }
  func.func @transform_6(%arg0: i32) -> (i32, i32) {
    %c0_i32 = arith.constant 0 : i32
    %c0_i32_0 = arith.constant 0 : i32
    %c0_i32_1 = arith.constant 0 : i32
    return %c0_i32, %c0_i32_0 : i32, i32
  }
  func.func @transform_7(%arg0: i32) -> (i32, i32) {
    %c0_i32 = arith.constant 0 : i32
    %c0_i32_0 = arith.constant 0 : i32
    %c0_i32_1 = arith.constant 0 : i32
    return %c0_i32, %c0_i32_0 : i32, i32
  }
}

module attributes {stable_mosaic.version = 11 : i64} {
  func.func @_upsample_kernel(%arg0: i32, %arg1: memref<1x8x8x16xf32, #tpu.memory_space<vmem>>, %arg2: memref<1x16x8x32xf32, #tpu.memory_space<vmem>>) attributes {dimension_semantics = [#tpu.dimension_semantics<parallel>], iteration_bounds = array<i64: 2>, scalar_prefetch = 0 : i64, scratch_operands = 0 : i64, tpu.core_type = #tpu.core_type<tc>, window_params = [{transform_indices = @transform_0, window_bounds = array<i64: 1, 8, 8, 16>}, {transform_indices = @transform_1, window_bounds = array<i64: 1, 16, 8, 32>}]} {
    %c0 = arith.constant 0 : index
    %c0_0 = arith.constant 0 : index
    %c0_1 = arith.constant 0 : index
    %c0_2 = arith.constant 0 : index
    %0 = vector.load %arg1[%c0, %c0_0, %c0_1, %c0_2] : memref<1x8x8x16xf32, #tpu.memory_space<vmem>>, vector<1x8x8x16xf32>
    %1 = vector.shape_cast %0 : vector<1x8x8x16xf32> to vector<8x8x16xf32>
    %2 = vector.extract_strided_slice %1 {offsets = [0, 0, 0], sizes = [1, 8, 16], strides = [1, 1, 1]} : vector<8x8x16xf32> to vector<1x8x16xf32>
    %3 = vector.extract_strided_slice %1 {offsets = [7, 0, 0], sizes = [1, 8, 16], strides = [1, 1, 1]} : vector<8x8x16xf32> to vector<1x8x16xf32>
    %4 = tpu.concatenate %2, %1, %3 in 0 : vector<1x8x16xf32>, vector<8x8x16xf32>, vector<1x8x16xf32> -> vector<10x8x16xf32>
    %cst = arith.constant 7.500000e-01 : f32
    %5 = vector.broadcast %cst : f32 to vector<8x8x16xf32>
    %6 = arith.mulf %5, %1 : vector<8x8x16xf32>
    %7 = vector.extract_strided_slice %4 {offsets = [0, 0, 0], sizes = [8, 8, 16], strides = [1, 1, 1]} : vector<10x8x16xf32> to vector<8x8x16xf32>
    %cst_3 = arith.constant 2.500000e-01 : f32
    %8 = vector.broadcast %cst_3 : f32 to vector<8x8x16xf32>
    %9 = arith.mulf %8, %7 : vector<8x8x16xf32>
    %10 = arith.addf %6, %9 : vector<8x8x16xf32>
    %cst_4 = arith.constant 7.500000e-01 : f32
    %11 = vector.broadcast %cst_4 : f32 to vector<8x8x16xf32>
    %12 = arith.mulf %11, %1 : vector<8x8x16xf32>
    %13 = vector.extract_strided_slice %4 {offsets = [2, 0, 0], sizes = [8, 8, 16], strides = [1, 1, 1]} : vector<10x8x16xf32> to vector<8x8x16xf32>
    %cst_5 = arith.constant 2.500000e-01 : f32
    %14 = vector.broadcast %cst_5 : f32 to vector<8x8x16xf32>
    %15 = arith.mulf %14, %13 : vector<8x8x16xf32>
    %16 = arith.addf %12, %15 : vector<8x8x16xf32>
    %17 = vector.extract_strided_slice %10 {offsets = [0, 0, 0], sizes = [8, 1, 16], strides = [1, 1, 1]} : vector<8x8x16xf32> to vector<8x1x16xf32>
    %18 = vector.extract_strided_slice %10 {offsets = [0, 7, 0], sizes = [8, 1, 16], strides = [1, 1, 1]} : vector<8x8x16xf32> to vector<8x1x16xf32>
    %19 = tpu.concatenate %17, %10, %18 in 1 : vector<8x1x16xf32>, vector<8x8x16xf32>, vector<8x1x16xf32> -> vector<8x10x16xf32>
    %cst_6 = arith.constant 7.500000e-01 : f32
    %20 = vector.broadcast %cst_6 : f32 to vector<8x8x16xf32>
    %21 = arith.mulf %20, %10 : vector<8x8x16xf32>
    %22 = vector.extract_strided_slice %19 {offsets = [0, 0, 0], sizes = [8, 8, 16], strides = [1, 1, 1]} : vector<8x10x16xf32> to vector<8x8x16xf32>
    %cst_7 = arith.constant 2.500000e-01 : f32
    %23 = vector.broadcast %cst_7 : f32 to vector<8x8x16xf32>
    %24 = arith.mulf %23, %22 : vector<8x8x16xf32>
    %25 = arith.addf %21, %24 : vector<8x8x16xf32>
    %cst_8 = arith.constant 7.500000e-01 : f32
    %26 = vector.broadcast %cst_8 : f32 to vector<8x8x16xf32>
    %27 = arith.mulf %26, %10 : vector<8x8x16xf32>
    %28 = vector.extract_strided_slice %19 {offsets = [0, 2, 0], sizes = [8, 8, 16], strides = [1, 1, 1]} : vector<8x10x16xf32> to vector<8x8x16xf32>
    %cst_9 = arith.constant 2.500000e-01 : f32
    %29 = vector.broadcast %cst_9 : f32 to vector<8x8x16xf32>
    %30 = arith.mulf %29, %28 : vector<8x8x16xf32>
    %31 = arith.addf %27, %30 : vector<8x8x16xf32>
    %32 = vector.extract_strided_slice %16 {offsets = [0, 0, 0], sizes = [8, 1, 16], strides = [1, 1, 1]} : vector<8x8x16xf32> to vector<8x1x16xf32>
    %33 = vector.extract_strided_slice %16 {offsets = [0, 7, 0], sizes = [8, 1, 16], strides = [1, 1, 1]} : vector<8x8x16xf32> to vector<8x1x16xf32>
    %34 = tpu.concatenate %32, %16, %33 in 1 : vector<8x1x16xf32>, vector<8x8x16xf32>, vector<8x1x16xf32> -> vector<8x10x16xf32>
    %cst_10 = arith.constant 7.500000e-01 : f32
    %35 = vector.broadcast %cst_10 : f32 to vector<8x8x16xf32>
    %36 = arith.mulf %35, %16 : vector<8x8x16xf32>
    %37 = vector.extract_strided_slice %34 {offsets = [0, 0, 0], sizes = [8, 8, 16], strides = [1, 1, 1]} : vector<8x10x16xf32> to vector<8x8x16xf32>
    %cst_11 = arith.constant 2.500000e-01 : f32
    %38 = vector.broadcast %cst_11 : f32 to vector<8x8x16xf32>
    %39 = arith.mulf %38, %37 : vector<8x8x16xf32>
    %40 = arith.addf %36, %39 : vector<8x8x16xf32>
    %cst_12 = arith.constant 7.500000e-01 : f32
    %41 = vector.broadcast %cst_12 : f32 to vector<8x8x16xf32>
    %42 = arith.mulf %41, %16 : vector<8x8x16xf32>
    %43 = vector.extract_strided_slice %34 {offsets = [0, 2, 0], sizes = [8, 8, 16], strides = [1, 1, 1]} : vector<8x10x16xf32> to vector<8x8x16xf32>
    %cst_13 = arith.constant 2.500000e-01 : f32
    %44 = vector.broadcast %cst_13 : f32 to vector<8x8x16xf32>
    %45 = arith.mulf %44, %43 : vector<8x8x16xf32>
    %46 = arith.addf %42, %45 : vector<8x8x16xf32>
    %47 = tpu.concatenate %25, %31 in 2 : vector<8x8x16xf32>, vector<8x8x16xf32> -> vector<8x8x32xf32>
    %48 = tpu.concatenate %40, %46 in 2 : vector<8x8x16xf32>, vector<8x8x16xf32> -> vector<8x8x32xf32>
    %49 = vector.shape_cast %47 : vector<8x8x32xf32> to vector<8x1x8x32xf32>
    %50 = vector.shape_cast %48 : vector<8x8x32xf32> to vector<8x1x8x32xf32>
    %51 = tpu.concatenate %49, %50 in 1 : vector<8x1x8x32xf32>, vector<8x1x8x32xf32> -> vector<8x2x8x32xf32>
    %52 = vector.shape_cast %51 : vector<8x2x8x32xf32> to vector<16x8x32xf32>
    %c0_14 = arith.constant 0 : index
    %c0_15 = arith.constant 0 : index
    %c0_16 = arith.constant 0 : index
    %c0_17 = arith.constant 0 : index
    %53 = vector.load %arg2[%c0_14, %c0_15, %c0_16, %c0_17] : memref<1x16x8x32xf32, #tpu.memory_space<vmem>>, vector<1x16x8x32xf32>
    %54 = vector.shape_cast %53 : vector<1x16x8x32xf32> to vector<16x8x32xf32>
    %55 = vector.shape_cast %52 : vector<16x8x32xf32> to vector<1x16x8x32xf32>
    tpu.vector_store %arg2[%c0_14, %c0_15, %c0_16, %c0_17], %55 {strides = array<i32>} : memref<1x16x8x32xf32, #tpu.memory_space<vmem>>, vector<1x16x8x32xf32>,
    return
  }
  func.func @transform_0(%arg0: i32) -> (i32, i32, i32, i32) {
    %c0_i32 = arith.constant 0 : i32
    %c0_i32_0 = arith.constant 0 : i32
    %c0_i32_1 = arith.constant 0 : i32
    %c0_i32_2 = arith.constant 0 : i32
    return %arg0, %c0_i32, %c0_i32_0, %c0_i32_1 : i32, i32, i32, i32
  }
  func.func @transform_1(%arg0: i32) -> (i32, i32, i32, i32) {
    %c0_i32 = arith.constant 0 : i32
    %c0_i32_0 = arith.constant 0 : i32
    %c0_i32_1 = arith.constant 0 : i32
    %c0_i32_2 = arith.constant 0 : i32
    return %arg0, %c0_i32, %c0_i32_0, %c0_i32_1 : i32, i32, i32, i32
  }
}

module attributes {stable_mosaic.version = 11 : i64} {
  func.func @_resblock_kernel(%arg0: i32, %arg1: memref<1x16x16x16xf32, #tpu.memory_space<vmem>>, %arg2: memref<1x16x16x8xf32, #tpu.memory_space<vmem>>, %arg3: memref<2x16xf32, #tpu.memory_space<vmem>>, %arg4: memref<2x8xf32, #tpu.memory_space<vmem>>, %arg5: memref<16x16xbf16, #tpu.memory_space<vmem>>, %arg6: memref<8x16xbf16, #tpu.memory_space<vmem>>, %arg7: memref<216x16xbf16, #tpu.memory_space<vmem>>, %arg8: memref<144x16xbf16, #tpu.memory_space<vmem>>, %arg9: memref<1x16x16x16xf32, #tpu.memory_space<vmem>>) attributes {dimension_semantics = [#tpu.dimension_semantics<parallel>], iteration_bounds = array<i64: 2>, scalar_prefetch = 0 : i64, scratch_operands = 0 : i64, tpu.core_type = #tpu.core_type<tc>, window_params = [{transform_indices = @transform_0, window_bounds = array<i64: 1, 16, 16, 16>}, {transform_indices = @transform_1, window_bounds = array<i64: 1, 16, 16, 8>}, {pipeline_mode = #tpu.pipeline_mode<synchronous>, transform_indices = @transform_2, window_bounds = array<i64: 2, 16>}, {pipeline_mode = #tpu.pipeline_mode<synchronous>, transform_indices = @transform_3, window_bounds = array<i64: 2, 8>}, {pipeline_mode = #tpu.pipeline_mode<synchronous>, transform_indices = @transform_4, window_bounds = array<i64: 16, 16>}, {pipeline_mode = #tpu.pipeline_mode<synchronous>, transform_indices = @transform_5, window_bounds = array<i64: 8, 16>}, {pipeline_mode = #tpu.pipeline_mode<synchronous>, transform_indices = @transform_6, window_bounds = array<i64: 216, 16>}, {pipeline_mode = #tpu.pipeline_mode<synchronous>, transform_indices = @transform_7, window_bounds = array<i64: 144, 16>}, {transform_indices = @transform_8, window_bounds = array<i64: 1, 16, 16, 16>}]} {
    %c0 = arith.constant 0 : index
    %c0_0 = arith.constant 0 : index
    %c0_1 = arith.constant 0 : index
    %c0_2 = arith.constant 0 : index
    %0 = vector.load %arg1[%c0, %c0_0, %c0_1, %c0_2] : memref<1x16x16x16xf32, #tpu.memory_space<vmem>>, vector<1x16x16x16xf32>
    %1 = vector.shape_cast %0 : vector<1x16x16x16xf32> to vector<256x16xf32>
    %c0_3 = arith.constant 0 : index
    %c0_4 = arith.constant 0 : index
    %c0_5 = arith.constant 0 : index
    %c0_6 = arith.constant 0 : index
    %2 = vector.load %arg2[%c0_3, %c0_4, %c0_5, %c0_6] : memref<1x16x16x8xf32, #tpu.memory_space<vmem>>, vector<1x16x16x8xf32>
    %3 = vector.shape_cast %2 : vector<1x16x16x8xf32> to vector<256x8xf32>
    %4 = arith.truncf %1 : vector<256x16xf32> to vector<256x16xbf16>
    %c0_7 = arith.constant 0 : index
    %c0_8 = arith.constant 0 : index
    %5 = vector.load %arg5[%c0_7, %c0_8] : memref<16x16xbf16, #tpu.memory_space<vmem>>, vector<16x16xbf16>
    %cst = arith.constant dense<0.000000e+00> : vector<256x16xf32>
    %6 = tpu.matmul %4, %5, %cst {dimension_numbers = #tpu.dot_dimension_numbers<[1], [0], [0], [1], [0, 0, 1, 1], [], []>} : vector<256x16xbf16>, vector<16x16xbf16>, vector<256x16xf32> -> vector<256x16xf32>
    %7 = arith.truncf %3 : vector<256x8xf32> to vector<256x8xbf16>
    %c0_9 = arith.constant 0 : index
    %c0_10 = arith.constant 0 : index
    %8 = vector.load %arg6[%c0_9, %c0_10] : memref<8x16xbf16, #tpu.memory_space<vmem>>, vector<8x16xbf16>
    %cst_11 = arith.constant dense<0.000000e+00> : vector<256x16xf32>
    %9 = tpu.matmul %7, %8, %cst_11 {dimension_numbers = #tpu.dot_dimension_numbers<[1], [0], [0], [1], [0, 0, 1, 1], [], []>} : vector<256x8xbf16>, vector<8x16xbf16>, vector<256x16xf32> -> vector<256x16xf32>
    %10 = arith.addf %6, %9 : vector<256x16xf32>
    %c0_12 = arith.constant 0 : index
    %c0_13 = arith.constant 0 : index
    %11 = vector.load %arg3[%c0_12, %c0_13] : memref<2x16xf32, #tpu.memory_space<vmem>>, vector<1x16xf32>
    %12 = vector.broadcast %11 : vector<1x16xf32> to vector<256x16xf32>
    %13 = arith.mulf %1, %12 : vector<256x16xf32>
    %c1 = arith.constant 1 : index
    %c0_14 = arith.constant 0 : index
    %14 = vector.load %arg3[%c1, %c0_14] : memref<2x16xf32, #tpu.memory_space<vmem>>, vector<1x16xf32>
    %15 = vector.broadcast %14 : vector<1x16xf32> to vector<256x16xf32>
    %16 = arith.addf %13, %15 : vector<256x16xf32>
    %c0_15 = arith.constant 0 : index
    %c0_16 = arith.constant 0 : index
    %17 = vector.load %arg4[%c0_15, %c0_16] : memref<2x8xf32, #tpu.memory_space<vmem>>, vector<1x8xf32>
    %18 = vector.broadcast %17 : vector<1x8xf32> to vector<256x8xf32>
    %19 = arith.mulf %3, %18 : vector<256x8xf32>
    %c1_17 = arith.constant 1 : index
    %c0_18 = arith.constant 0 : index
    %20 = vector.load %arg4[%c1_17, %c0_18] : memref<2x8xf32, #tpu.memory_space<vmem>>, vector<1x8xf32>
    %21 = vector.broadcast %20 : vector<1x8xf32> to vector<256x8xf32>
    %22 = arith.addf %19, %21 : vector<256x8xf32>
    %23 = tpu.concatenate %16, %22 in 1 : vector<256x16xf32>, vector<256x8xf32> -> vector<256x24xf32>
    %c0_19 = arith.constant 0 : index
    %c0_20 = arith.constant 0 : index
    %24 = vector.load %arg7[%c0_19, %c0_20] : memref<216x16xbf16, #tpu.memory_space<vmem>>, vector<216x16xbf16>
    %25 = vector.shape_cast %23 : vector<256x24xf32> to vector<16x16x24xf32>
    %cst_21 = arith.constant 0.000000e+00 : f32
    %26 = vector.broadcast %cst_21 : f32 to vector<1x16x24xf32>
    %27 = tpu.concatenate %26, %25, %26 in 0 : vector<1x16x24xf32>, vector<16x16x24xf32>, vector<1x16x24xf32> -> vector<18x16x24xf32>
    %cst_22 = arith.constant 0.000000e+00 : f32
    %28 = vector.broadcast %cst_22 : f32 to vector<18x1x24xf32>
    %29 = tpu.concatenate %28, %27, %28 in 1 : vector<18x1x24xf32>, vector<18x16x24xf32>, vector<18x1x24xf32> -> vector<18x18x24xf32>
    %30 = vector.extract_strided_slice %29 {offsets = [0, 0, 0], sizes = [16, 16, 24], strides = [1, 1, 1]} : vector<18x18x24xf32> to vector<16x16x24xf32>
    %31 = vector.shape_cast %30 : vector<16x16x24xf32> to vector<256x24xf32>
    %32 = vector.extract_strided_slice %29 {offsets = [0, 1, 0], sizes = [16, 16, 24], strides = [1, 1, 1]} : vector<18x18x24xf32> to vector<16x16x24xf32>
    %33 = vector.shape_cast %32 : vector<16x16x24xf32> to vector<256x24xf32>
    %34 = vector.extract_strided_slice %29 {offsets = [0, 2, 0], sizes = [16, 16, 24], strides = [1, 1, 1]} : vector<18x18x24xf32> to vector<16x16x24xf32>
    %35 = vector.shape_cast %34 : vector<16x16x24xf32> to vector<256x24xf32>
    %36 = vector.extract_strided_slice %29 {offsets = [1, 0, 0], sizes = [16, 16, 24], strides = [1, 1, 1]} : vector<18x18x24xf32> to vector<16x16x24xf32>
    %37 = vector.shape_cast %36 : vector<16x16x24xf32> to vector<256x24xf32>
    %38 = vector.extract_strided_slice %29 {offsets = [1, 1, 0], sizes = [16, 16, 24], strides = [1, 1, 1]} : vector<18x18x24xf32> to vector<16x16x24xf32>
    %39 = vector.shape_cast %38 : vector<16x16x24xf32> to vector<256x24xf32>
    %40 = vector.extract_strided_slice %29 {offsets = [1, 2, 0], sizes = [16, 16, 24], strides = [1, 1, 1]} : vector<18x18x24xf32> to vector<16x16x24xf32>
    %41 = vector.shape_cast %40 : vector<16x16x24xf32> to vector<256x24xf32>
    %42 = vector.extract_strided_slice %29 {offsets = [2, 0, 0], sizes = [16, 16, 24], strides = [1, 1, 1]} : vector<18x18x24xf32> to vector<16x16x24xf32>
    %43 = vector.shape_cast %42 : vector<16x16x24xf32> to vector<256x24xf32>
    %44 = vector.extract_strided_slice %29 {offsets = [2, 1, 0], sizes = [16, 16, 24], strides = [1, 1, 1]} : vector<18x18x24xf32> to vector<16x16x24xf32>
    %45 = vector.shape_cast %44 : vector<16x16x24xf32> to vector<256x24xf32>
    %46 = vector.extract_strided_slice %29 {offsets = [2, 2, 0], sizes = [16, 16, 24], strides = [1, 1, 1]} : vector<18x18x24xf32> to vector<16x16x24xf32>
    %47 = vector.shape_cast %46 : vector<16x16x24xf32> to vector<256x24xf32>
    %48 = tpu.concatenate %31, %33, %35, %37, %39, %41, %43, %45, %47 in 1 : vector<256x24xf32>, vector<256x24xf32>, vector<256x24xf32>, vector<256x24xf32>, vector<256x24xf32>, vector<256x24xf32>, vector<256x24xf32>, vector<256x24xf32>, vector<256x24xf32> -> vector<256x216xf32>
    %49 = arith.truncf %48 : vector<256x216xf32> to vector<256x216xbf16>
    %cst_23 = arith.constant dense<0.000000e+00> : vector<256x16xf32>
    %50 = tpu.matmul %49, %24, %cst_23 {dimension_numbers = #tpu.dot_dimension_numbers<[1], [0], [0], [1], [0, 0, 1, 1], [], []>} : vector<256x216xbf16>, vector<216x16xbf16>, vector<256x16xf32> -> vector<256x16xf32>
    %51 = arith.negf %50 : vector<256x16xf32>
    %52 = math.exp %51 : vector<256x16xf32>
    %cst_24 = arith.constant 1.000000e+00 : f32
    %53 = vector.broadcast %cst_24 : f32 to vector<256x16xf32>
    %54 = arith.addf %53, %52 : vector<256x16xf32>
    %55 = arith.divf %53, %54 : vector<256x16xf32>
    %56 = arith.mulf %50, %55 : vector<256x16xf32>
    %c0_25 = arith.constant 0 : index
    %c0_26 = arith.constant 0 : index
    %57 = vector.load %arg8[%c0_25, %c0_26] : memref<144x16xbf16, #tpu.memory_space<vmem>>, vector<144x16xbf16>
    %58 = vector.shape_cast %56 : vector<256x16xf32> to vector<16x16x16xf32>
    %cst_27 = arith.constant 0.000000e+00 : f32
    %59 = vector.broadcast %cst_27 : f32 to vector<1x16x16xf32>
    %60 = tpu.concatenate %59, %58, %59 in 0 : vector<1x16x16xf32>, vector<16x16x16xf32>, vector<1x16x16xf32> -> vector<18x16x16xf32>
    %cst_28 = arith.constant 0.000000e+00 : f32
    %61 = vector.broadcast %cst_28 : f32 to vector<18x1x16xf32>
    %62 = tpu.concatenate %61, %60, %61 in 1 : vector<18x1x16xf32>, vector<18x16x16xf32>, vector<18x1x16xf32> -> vector<18x18x16xf32>
    %63 = vector.extract_strided_slice %62 {offsets = [0, 0, 0], sizes = [16, 16, 16], strides = [1, 1, 1]} : vector<18x18x16xf32> to vector<16x16x16xf32>
    %64 = vector.shape_cast %63 : vector<16x16x16xf32> to vector<256x16xf32>
    %65 = vector.extract_strided_slice %62 {offsets = [0, 1, 0], sizes = [16, 16, 16], strides = [1, 1, 1]} : vector<18x18x16xf32> to vector<16x16x16xf32>
    %66 = vector.shape_cast %65 : vector<16x16x16xf32> to vector<256x16xf32>
    %67 = vector.extract_strided_slice %62 {offsets = [0, 2, 0], sizes = [16, 16, 16], strides = [1, 1, 1]} : vector<18x18x16xf32> to vector<16x16x16xf32>
    %68 = vector.shape_cast %67 : vector<16x16x16xf32> to vector<256x16xf32>
    %69 = vector.extract_strided_slice %62 {offsets = [1, 0, 0], sizes = [16, 16, 16], strides = [1, 1, 1]} : vector<18x18x16xf32> to vector<16x16x16xf32>
    %70 = vector.shape_cast %69 : vector<16x16x16xf32> to vector<256x16xf32>
    %71 = vector.extract_strided_slice %62 {offsets = [1, 1, 0], sizes = [16, 16, 16], strides = [1, 1, 1]} : vector<18x18x16xf32> to vector<16x16x16xf32>
    %72 = vector.shape_cast %71 : vector<16x16x16xf32> to vector<256x16xf32>
    %73 = vector.extract_strided_slice %62 {offsets = [1, 2, 0], sizes = [16, 16, 16], strides = [1, 1, 1]} : vector<18x18x16xf32> to vector<16x16x16xf32>
    %74 = vector.shape_cast %73 : vector<16x16x16xf32> to vector<256x16xf32>
    %75 = vector.extract_strided_slice %62 {offsets = [2, 0, 0], sizes = [16, 16, 16], strides = [1, 1, 1]} : vector<18x18x16xf32> to vector<16x16x16xf32>
    %76 = vector.shape_cast %75 : vector<16x16x16xf32> to vector<256x16xf32>
    %77 = vector.extract_strided_slice %62 {offsets = [2, 1, 0], sizes = [16, 16, 16], strides = [1, 1, 1]} : vector<18x18x16xf32> to vector<16x16x16xf32>
    %78 = vector.shape_cast %77 : vector<16x16x16xf32> to vector<256x16xf32>
    %79 = vector.extract_strided_slice %62 {offsets = [2, 2, 0], sizes = [16, 16, 16], strides = [1, 1, 1]} : vector<18x18x16xf32> to vector<16x16x16xf32>
    %80 = vector.shape_cast %79 : vector<16x16x16xf32> to vector<256x16xf32>
    %81 = tpu.concatenate %64, %66, %68, %70, %72, %74, %76, %78, %80 in 1 : vector<256x16xf32>, vector<256x16xf32>, vector<256x16xf32>, vector<256x16xf32>, vector<256x16xf32>, vector<256x16xf32>, vector<256x16xf32>, vector<256x16xf32>, vector<256x16xf32> -> vector<256x144xf32>
    %82 = arith.truncf %81 : vector<256x144xf32> to vector<256x144xbf16>
    %cst_29 = arith.constant dense<0.000000e+00> : vector<256x16xf32>
    %83 = tpu.matmul %82, %57, %cst_29 {dimension_numbers = #tpu.dot_dimension_numbers<[1], [0], [0], [1], [0, 0, 1, 1], [], []>} : vector<256x144xbf16>, vector<144x16xbf16>, vector<256x16xf32> -> vector<256x16xf32>
    %84 = arith.addf %83, %10 : vector<256x16xf32>
    %85 = vector.shape_cast %84 : vector<256x16xf32> to vector<1x16x16x16xf32>
    %c0_30 = arith.constant 0 : index
    %c0_31 = arith.constant 0 : index
    %c0_32 = arith.constant 0 : index
    %c0_33 = arith.constant 0 : index
    %86 = vector.load %arg9[%c0_30, %c0_31, %c0_32, %c0_33] : memref<1x16x16x16xf32, #tpu.memory_space<vmem>>, vector<1x16x16x16xf32>
    tpu.vector_store %arg9[%c0_30, %c0_31, %c0_32, %c0_33], %85 {strides = array<i32>} : memref<1x16x16x16xf32, #tpu.memory_space<vmem>>, vector<1x16x16x16xf32>,
    return
  }
  func.func @transform_0(%arg0: i32) -> (i32, i32, i32, i32) {
    %c0_i32 = arith.constant 0 : i32
    %c0_i32_0 = arith.constant 0 : i32
    %c0_i32_1 = arith.constant 0 : i32
    %c0_i32_2 = arith.constant 0 : i32
    return %arg0, %c0_i32, %c0_i32_0, %c0_i32_1 : i32, i32, i32, i32
  }
  func.func @transform_1(%arg0: i32) -> (i32, i32, i32, i32) {
    %c0_i32 = arith.constant 0 : i32
    %c0_i32_0 = arith.constant 0 : i32
    %c0_i32_1 = arith.constant 0 : i32
    %c0_i32_2 = arith.constant 0 : i32
    return %arg0, %c0_i32, %c0_i32_0, %c0_i32_1 : i32, i32, i32, i32
  }
  func.func @transform_2(%arg0: i32) -> (i32, i32) {
    %c0_i32 = arith.constant 0 : i32
    %c0_i32_0 = arith.constant 0 : i32
    %c0_i32_1 = arith.constant 0 : i32
    return %c0_i32, %c0_i32_0 : i32, i32
  }
  func.func @transform_3(%arg0: i32) -> (i32, i32) {
    %c0_i32 = arith.constant 0 : i32
    %c0_i32_0 = arith.constant 0 : i32
    %c0_i32_1 = arith.constant 0 : i32
    return %c0_i32, %c0_i32_0 : i32, i32
  }
  func.func @transform_4(%arg0: i32) -> (i32, i32) {
    %c0_i32 = arith.constant 0 : i32
    %c0_i32_0 = arith.constant 0 : i32
    %c0_i32_1 = arith.constant 0 : i32
    return %c0_i32, %c0_i32_0 : i32, i32
  }
  func.func @transform_5(%arg0: i32) -> (i32, i32) {
    %c0_i32 = arith.constant 0 : i32
    %c0_i32_0 = arith.constant 0 : i32
    %c0_i32_1 = arith.constant 0 : i32
    return %c0_i32, %c0_i32_0 : i32, i32
  }
  func.func @transform_6(%arg0: i32) -> (i32, i32) {
    %c0_i32 = arith.constant 0 : i32
    %c0_i32_0 = arith.constant 0 : i32
    %c0_i32_1 = arith.constant 0 : i32
    return %c0_i32, %c0_i32_0 : i32, i32
  }
  func.func @transform_7(%arg0: i32) -> (i32, i32) {
    %c0_i32 = arith.constant 0 : i32
    %c0_i32_0 = arith.constant 0 : i32
    %c0_i32_1 = arith.constant 0 : i32
    return %c0_i32, %c0_i32_0 : i32, i32
  }
  func.func @transform_8(%arg0: i32) -> (i32, i32, i32, i32) {
    %c0_i32 = arith.constant 0 : i32
    %c0_i32_0 = arith.constant 0 : i32
    %c0_i32_1 = arith.constant 0 : i32
    %c0_i32_2 = arith.constant 0 : i32
    return %arg0, %c0_i32, %c0_i32_0, %c0_i32_1 : i32, i32, i32, i32
  }
}

module attributes {stable_mosaic.version = 11 : i64} {
  func.func @_resblock_kernel(%arg0: i32, %arg1: memref<1x16x16x16xf32, #tpu.memory_space<vmem>>, %arg2: memref<1x16x16x8xf32, #tpu.memory_space<vmem>>, %arg3: memref<2x16xf32, #tpu.memory_space<vmem>>, %arg4: memref<2x8xf32, #tpu.memory_space<vmem>>, %arg5: memref<16x16xbf16, #tpu.memory_space<vmem>>, %arg6: memref<8x16xbf16, #tpu.memory_space<vmem>>, %arg7: memref<216x16xbf16, #tpu.memory_space<vmem>>, %arg8: memref<144x16xbf16, #tpu.memory_space<vmem>>, %arg9: memref<1x16x16x16xf32, #tpu.memory_space<vmem>>) attributes {dimension_semantics = [#tpu.dimension_semantics<parallel>], iteration_bounds = array<i64: 2>, scalar_prefetch = 0 : i64, scratch_operands = 0 : i64, tpu.core_type = #tpu.core_type<tc>, window_params = [{transform_indices = @transform_0, window_bounds = array<i64: 1, 16, 16, 16>}, {transform_indices = @transform_1, window_bounds = array<i64: 1, 16, 16, 8>}, {pipeline_mode = #tpu.pipeline_mode<synchronous>, transform_indices = @transform_2, window_bounds = array<i64: 2, 16>}, {pipeline_mode = #tpu.pipeline_mode<synchronous>, transform_indices = @transform_3, window_bounds = array<i64: 2, 8>}, {pipeline_mode = #tpu.pipeline_mode<synchronous>, transform_indices = @transform_4, window_bounds = array<i64: 16, 16>}, {pipeline_mode = #tpu.pipeline_mode<synchronous>, transform_indices = @transform_5, window_bounds = array<i64: 8, 16>}, {pipeline_mode = #tpu.pipeline_mode<synchronous>, transform_indices = @transform_6, window_bounds = array<i64: 216, 16>}, {pipeline_mode = #tpu.pipeline_mode<synchronous>, transform_indices = @transform_7, window_bounds = array<i64: 144, 16>}, {transform_indices = @transform_8, window_bounds = array<i64: 1, 16, 16, 16>}]} {
    %c0 = arith.constant 0 : index
    %c0_0 = arith.constant 0 : index
    %c0_1 = arith.constant 0 : index
    %c0_2 = arith.constant 0 : index
    %0 = vector.load %arg1[%c0, %c0_0, %c0_1, %c0_2] : memref<1x16x16x16xf32, #tpu.memory_space<vmem>>, vector<1x16x16x16xf32>
    %1 = vector.shape_cast %0 : vector<1x16x16x16xf32> to vector<256x16xf32>
    %c0_3 = arith.constant 0 : index
    %c0_4 = arith.constant 0 : index
    %c0_5 = arith.constant 0 : index
    %c0_6 = arith.constant 0 : index
    %2 = vector.load %arg2[%c0_3, %c0_4, %c0_5, %c0_6] : memref<1x16x16x8xf32, #tpu.memory_space<vmem>>, vector<1x16x16x8xf32>
    %3 = vector.shape_cast %2 : vector<1x16x16x8xf32> to vector<256x8xf32>
    %4 = arith.truncf %1 : vector<256x16xf32> to vector<256x16xbf16>
    %c0_7 = arith.constant 0 : index
    %c0_8 = arith.constant 0 : index
    %5 = vector.load %arg5[%c0_7, %c0_8] : memref<16x16xbf16, #tpu.memory_space<vmem>>, vector<16x16xbf16>
    %cst = arith.constant dense<0.000000e+00> : vector<256x16xf32>
    %6 = tpu.matmul %4, %5, %cst {dimension_numbers = #tpu.dot_dimension_numbers<[1], [0], [0], [1], [0, 0, 1, 1], [], []>} : vector<256x16xbf16>, vector<16x16xbf16>, vector<256x16xf32> -> vector<256x16xf32>
    %7 = arith.truncf %3 : vector<256x8xf32> to vector<256x8xbf16>
    %c0_9 = arith.constant 0 : index
    %c0_10 = arith.constant 0 : index
    %8 = vector.load %arg6[%c0_9, %c0_10] : memref<8x16xbf16, #tpu.memory_space<vmem>>, vector<8x16xbf16>
    %cst_11 = arith.constant dense<0.000000e+00> : vector<256x16xf32>
    %9 = tpu.matmul %7, %8, %cst_11 {dimension_numbers = #tpu.dot_dimension_numbers<[1], [0], [0], [1], [0, 0, 1, 1], [], []>} : vector<256x8xbf16>, vector<8x16xbf16>, vector<256x16xf32> -> vector<256x16xf32>
    %10 = arith.addf %6, %9 : vector<256x16xf32>
    %c0_12 = arith.constant 0 : index
    %c0_13 = arith.constant 0 : index
    %11 = vector.load %arg3[%c0_12, %c0_13] : memref<2x16xf32, #tpu.memory_space<vmem>>, vector<1x16xf32>
    %12 = vector.broadcast %11 : vector<1x16xf32> to vector<256x16xf32>
    %13 = arith.mulf %1, %12 : vector<256x16xf32>
    %c1 = arith.constant 1 : index
    %c0_14 = arith.constant 0 : index
    %14 = vector.load %arg3[%c1, %c0_14] : memref<2x16xf32, #tpu.memory_space<vmem>>, vector<1x16xf32>
    %15 = vector.broadcast %14 : vector<1x16xf32> to vector<256x16xf32>
    %16 = arith.addf %13, %15 : vector<256x16xf32>
    %c0_15 = arith.constant 0 : index
    %c0_16 = arith.constant 0 : index
    %17 = vector.load %arg4[%c0_15, %c0_16] : memref<2x8xf32, #tpu.memory_space<vmem>>, vector<1x8xf32>
    %18 = vector.broadcast %17 : vector<1x8xf32> to vector<256x8xf32>
    %19 = arith.mulf %3, %18 : vector<256x8xf32>
    %c1_17 = arith.constant 1 : index
    %c0_18 = arith.constant 0 : index
    %20 = vector.load %arg4[%c1_17, %c0_18] : memref<2x8xf32, #tpu.memory_space<vmem>>, vector<1x8xf32>
    %21 = vector.broadcast %20 : vector<1x8xf32> to vector<256x8xf32>
    %22 = arith.addf %19, %21 : vector<256x8xf32>
    %23 = tpu.concatenate %16, %22 in 1 : vector<256x16xf32>, vector<256x8xf32> -> vector<256x24xf32>
    %c0_19 = arith.constant 0 : index
    %c0_20 = arith.constant 0 : index
    %24 = vector.load %arg7[%c0_19, %c0_20] : memref<216x16xbf16, #tpu.memory_space<vmem>>, vector<216x16xbf16>
    %25 = vector.shape_cast %23 : vector<256x24xf32> to vector<16x16x24xf32>
    %cst_21 = arith.constant 0.000000e+00 : f32
    %26 = vector.broadcast %cst_21 : f32 to vector<1x16x24xf32>
    %27 = tpu.concatenate %26, %25, %26 in 0 : vector<1x16x24xf32>, vector<16x16x24xf32>, vector<1x16x24xf32> -> vector<18x16x24xf32>
    %cst_22 = arith.constant 0.000000e+00 : f32
    %28 = vector.broadcast %cst_22 : f32 to vector<18x1x24xf32>
    %29 = tpu.concatenate %28, %27, %28 in 1 : vector<18x1x24xf32>, vector<18x16x24xf32>, vector<18x1x24xf32> -> vector<18x18x24xf32>
    %30 = vector.extract_strided_slice %29 {offsets = [0, 0, 0], sizes = [16, 16, 24], strides = [1, 1, 1]} : vector<18x18x24xf32> to vector<16x16x24xf32>
    %31 = vector.shape_cast %30 : vector<16x16x24xf32> to vector<256x24xf32>
    %32 = vector.extract_strided_slice %29 {offsets = [0, 1, 0], sizes = [16, 16, 24], strides = [1, 1, 1]} : vector<18x18x24xf32> to vector<16x16x24xf32>
    %33 = vector.shape_cast %32 : vector<16x16x24xf32> to vector<256x24xf32>
    %34 = vector.extract_strided_slice %29 {offsets = [0, 2, 0], sizes = [16, 16, 24], strides = [1, 1, 1]} : vector<18x18x24xf32> to vector<16x16x24xf32>
    %35 = vector.shape_cast %34 : vector<16x16x24xf32> to vector<256x24xf32>
    %36 = vector.extract_strided_slice %29 {offsets = [1, 0, 0], sizes = [16, 16, 24], strides = [1, 1, 1]} : vector<18x18x24xf32> to vector<16x16x24xf32>
    %37 = vector.shape_cast %36 : vector<16x16x24xf32> to vector<256x24xf32>
    %38 = vector.extract_strided_slice %29 {offsets = [1, 1, 0], sizes = [16, 16, 24], strides = [1, 1, 1]} : vector<18x18x24xf32> to vector<16x16x24xf32>
    %39 = vector.shape_cast %38 : vector<16x16x24xf32> to vector<256x24xf32>
    %40 = vector.extract_strided_slice %29 {offsets = [1, 2, 0], sizes = [16, 16, 24], strides = [1, 1, 1]} : vector<18x18x24xf32> to vector<16x16x24xf32>
    %41 = vector.shape_cast %40 : vector<16x16x24xf32> to vector<256x24xf32>
    %42 = vector.extract_strided_slice %29 {offsets = [2, 0, 0], sizes = [16, 16, 24], strides = [1, 1, 1]} : vector<18x18x24xf32> to vector<16x16x24xf32>
    %43 = vector.shape_cast %42 : vector<16x16x24xf32> to vector<256x24xf32>
    %44 = vector.extract_strided_slice %29 {offsets = [2, 1, 0], sizes = [16, 16, 24], strides = [1, 1, 1]} : vector<18x18x24xf32> to vector<16x16x24xf32>
    %45 = vector.shape_cast %44 : vector<16x16x24xf32> to vector<256x24xf32>
    %46 = vector.extract_strided_slice %29 {offsets = [2, 2, 0], sizes = [16, 16, 24], strides = [1, 1, 1]} : vector<18x18x24xf32> to vector<16x16x24xf32>
    %47 = vector.shape_cast %46 : vector<16x16x24xf32> to vector<256x24xf32>
    %48 = tpu.concatenate %31, %33, %35, %37, %39, %41, %43, %45, %47 in 1 : vector<256x24xf32>, vector<256x24xf32>, vector<256x24xf32>, vector<256x24xf32>, vector<256x24xf32>, vector<256x24xf32>, vector<256x24xf32>, vector<256x24xf32>, vector<256x24xf32> -> vector<256x216xf32>
    %49 = arith.truncf %48 : vector<256x216xf32> to vector<256x216xbf16>
    %cst_23 = arith.constant dense<0.000000e+00> : vector<256x16xf32>
    %50 = tpu.matmul %49, %24, %cst_23 {dimension_numbers = #tpu.dot_dimension_numbers<[1], [0], [0], [1], [0, 0, 1, 1], [], []>} : vector<256x216xbf16>, vector<216x16xbf16>, vector<256x16xf32> -> vector<256x16xf32>
    %51 = arith.negf %50 : vector<256x16xf32>
    %52 = math.exp %51 : vector<256x16xf32>
    %cst_24 = arith.constant 1.000000e+00 : f32
    %53 = vector.broadcast %cst_24 : f32 to vector<256x16xf32>
    %54 = arith.addf %53, %52 : vector<256x16xf32>
    %55 = arith.divf %53, %54 : vector<256x16xf32>
    %56 = arith.mulf %50, %55 : vector<256x16xf32>
    %c0_25 = arith.constant 0 : index
    %c0_26 = arith.constant 0 : index
    %57 = vector.load %arg8[%c0_25, %c0_26] : memref<144x16xbf16, #tpu.memory_space<vmem>>, vector<144x16xbf16>
    %58 = vector.shape_cast %56 : vector<256x16xf32> to vector<16x16x16xf32>
    %cst_27 = arith.constant 0.000000e+00 : f32
    %59 = vector.broadcast %cst_27 : f32 to vector<1x16x16xf32>
    %60 = tpu.concatenate %59, %58, %59 in 0 : vector<1x16x16xf32>, vector<16x16x16xf32>, vector<1x16x16xf32> -> vector<18x16x16xf32>
    %cst_28 = arith.constant 0.000000e+00 : f32
    %61 = vector.broadcast %cst_28 : f32 to vector<18x1x16xf32>
    %62 = tpu.concatenate %61, %60, %61 in 1 : vector<18x1x16xf32>, vector<18x16x16xf32>, vector<18x1x16xf32> -> vector<18x18x16xf32>
    %63 = vector.extract_strided_slice %62 {offsets = [0, 0, 0], sizes = [16, 16, 16], strides = [1, 1, 1]} : vector<18x18x16xf32> to vector<16x16x16xf32>
    %64 = vector.shape_cast %63 : vector<16x16x16xf32> to vector<256x16xf32>
    %65 = vector.extract_strided_slice %62 {offsets = [0, 1, 0], sizes = [16, 16, 16], strides = [1, 1, 1]} : vector<18x18x16xf32> to vector<16x16x16xf32>
    %66 = vector.shape_cast %65 : vector<16x16x16xf32> to vector<256x16xf32>
    %67 = vector.extract_strided_slice %62 {offsets = [0, 2, 0], sizes = [16, 16, 16], strides = [1, 1, 1]} : vector<18x18x16xf32> to vector<16x16x16xf32>
    %68 = vector.shape_cast %67 : vector<16x16x16xf32> to vector<256x16xf32>
    %69 = vector.extract_strided_slice %62 {offsets = [1, 0, 0], sizes = [16, 16, 16], strides = [1, 1, 1]} : vector<18x18x16xf32> to vector<16x16x16xf32>
    %70 = vector.shape_cast %69 : vector<16x16x16xf32> to vector<256x16xf32>
    %71 = vector.extract_strided_slice %62 {offsets = [1, 1, 0], sizes = [16, 16, 16], strides = [1, 1, 1]} : vector<18x18x16xf32> to vector<16x16x16xf32>
    %72 = vector.shape_cast %71 : vector<16x16x16xf32> to vector<256x16xf32>
    %73 = vector.extract_strided_slice %62 {offsets = [1, 2, 0], sizes = [16, 16, 16], strides = [1, 1, 1]} : vector<18x18x16xf32> to vector<16x16x16xf32>
    %74 = vector.shape_cast %73 : vector<16x16x16xf32> to vector<256x16xf32>
    %75 = vector.extract_strided_slice %62 {offsets = [2, 0, 0], sizes = [16, 16, 16], strides = [1, 1, 1]} : vector<18x18x16xf32> to vector<16x16x16xf32>
    %76 = vector.shape_cast %75 : vector<16x16x16xf32> to vector<256x16xf32>
    %77 = vector.extract_strided_slice %62 {offsets = [2, 1, 0], sizes = [16, 16, 16], strides = [1, 1, 1]} : vector<18x18x16xf32> to vector<16x16x16xf32>
    %78 = vector.shape_cast %77 : vector<16x16x16xf32> to vector<256x16xf32>
    %79 = vector.extract_strided_slice %62 {offsets = [2, 2, 0], sizes = [16, 16, 16], strides = [1, 1, 1]} : vector<18x18x16xf32> to vector<16x16x16xf32>
    %80 = vector.shape_cast %79 : vector<16x16x16xf32> to vector<256x16xf32>
    %81 = tpu.concatenate %64, %66, %68, %70, %72, %74, %76, %78, %80 in 1 : vector<256x16xf32>, vector<256x16xf32>, vector<256x16xf32>, vector<256x16xf32>, vector<256x16xf32>, vector<256x16xf32>, vector<256x16xf32>, vector<256x16xf32>, vector<256x16xf32> -> vector<256x144xf32>
    %82 = arith.truncf %81 : vector<256x144xf32> to vector<256x144xbf16>
    %cst_29 = arith.constant dense<0.000000e+00> : vector<256x16xf32>
    %83 = tpu.matmul %82, %57, %cst_29 {dimension_numbers = #tpu.dot_dimension_numbers<[1], [0], [0], [1], [0, 0, 1, 1], [], []>} : vector<256x144xbf16>, vector<144x16xbf16>, vector<256x16xf32> -> vector<256x16xf32>
    %84 = arith.addf %83, %10 : vector<256x16xf32>
    %85 = vector.shape_cast %84 : vector<256x16xf32> to vector<1x16x16x16xf32>
    %c0_30 = arith.constant 0 : index
    %c0_31 = arith.constant 0 : index
    %c0_32 = arith.constant 0 : index
    %c0_33 = arith.constant 0 : index
    %86 = vector.load %arg9[%c0_30, %c0_31, %c0_32, %c0_33] : memref<1x16x16x16xf32, #tpu.memory_space<vmem>>, vector<1x16x16x16xf32>
    tpu.vector_store %arg9[%c0_30, %c0_31, %c0_32, %c0_33], %85 {strides = array<i32>} : memref<1x16x16x16xf32, #tpu.memory_space<vmem>>, vector<1x16x16x16xf32>,
    return
  }
  func.func @transform_0(%arg0: i32) -> (i32, i32, i32, i32) {
    %c0_i32 = arith.constant 0 : i32
    %c0_i32_0 = arith.constant 0 : i32
    %c0_i32_1 = arith.constant 0 : i32
    %c0_i32_2 = arith.constant 0 : i32
    return %arg0, %c0_i32, %c0_i32_0, %c0_i32_1 : i32, i32, i32, i32
  }
  func.func @transform_1(%arg0: i32) -> (i32, i32, i32, i32) {
    %c0_i32 = arith.constant 0 : i32
    %c0_i32_0 = arith.constant 0 : i32
    %c0_i32_1 = arith.constant 0 : i32
    %c0_i32_2 = arith.constant 0 : i32
    return %arg0, %c0_i32, %c0_i32_0, %c0_i32_1 : i32, i32, i32, i32
  }
  func.func @transform_2(%arg0: i32) -> (i32, i32) {
    %c0_i32 = arith.constant 0 : i32
    %c0_i32_0 = arith.constant 0 : i32
    %c0_i32_1 = arith.constant 0 : i32
    return %c0_i32, %c0_i32_0 : i32, i32
  }
  func.func @transform_3(%arg0: i32) -> (i32, i32) {
    %c0_i32 = arith.constant 0 : i32
    %c0_i32_0 = arith.constant 0 : i32
    %c0_i32_1 = arith.constant 0 : i32
    return %c0_i32, %c0_i32_0 : i32, i32
  }
  func.func @transform_4(%arg0: i32) -> (i32, i32) {
    %c0_i32 = arith.constant 0 : i32
    %c0_i32_0 = arith.constant 0 : i32
    %c0_i32_1 = arith.constant 0 : i32
    return %c0_i32, %c0_i32_0 : i32, i32
  }
  func.func @transform_5(%arg0: i32) -> (i32, i32) {
    %c0_i32 = arith.constant 0 : i32
    %c0_i32_0 = arith.constant 0 : i32
    %c0_i32_1 = arith.constant 0 : i32
    return %c0_i32, %c0_i32_0 : i32, i32
  }
  func.func @transform_6(%arg0: i32) -> (i32, i32) {
    %c0_i32 = arith.constant 0 : i32
    %c0_i32_0 = arith.constant 0 : i32
    %c0_i32_1 = arith.constant 0 : i32
    return %c0_i32, %c0_i32_0 : i32, i32
  }
  func.func @transform_7(%arg0: i32) -> (i32, i32) {
    %c0_i32 = arith.constant 0 : i32
    %c0_i32_0 = arith.constant 0 : i32
    %c0_i32_1 = arith.constant 0 : i32
    return %c0_i32, %c0_i32_0 : i32, i32
  }
  func.func @transform_8(%arg0: i32) -> (i32, i32, i32, i32) {
    %c0_i32 = arith.constant 0 : i32
    %c0_i32_0 = arith.constant 0 : i32
    %c0_i32_1 = arith.constant 0 : i32
    %c0_i32_2 = arith.constant 0 : i32
    return %arg0, %c0_i32, %c0_i32_0, %c0_i32_1 : i32, i32, i32, i32
  }
}

</mosaic_0001>

<llo_original>
// kernel: up_block_apply.6
$region0: #{up_block_apply.6}
  #allocation0 [shape = 'u32[]', space=smem, size = 0x4, offset = 0x4, fixed_abs, tag = 'smem constant byte address 0x4 - core index']
  #allocation1 [shape = 'u32[144,128]{1,0:T(1,128)}', space=vmem, size = 0x12000, scoped, tag = 'internal scratch']
  %s0 = inlined_call_operand.vmem [shape: f32[2,16,16,16], index: 0, kind: input, shape index: {}]
  %s1 = inlined_call_operand.vmem [shape: f32[2,16,16,8], index: 1, kind: input, shape index: {}]
  %s2 = inlined_call_operand.vmem [shape: f32[1,16], index: 2, kind: input, shape index: {}]
  %s3 = inlined_call_operand.vmem [shape: f32[1,16], index: 3, kind: input, shape index: {}]
  %s4 = inlined_call_operand.vmem [shape: f32[1,8], index: 4, kind: input, shape index: {}]
  %s5 = inlined_call_operand.vmem [shape: f32[1,8], index: 5, kind: input, shape index: {}]
  %s6 = inlined_call_operand.vmem [shape: f32[2,16], index: 6, kind: output, shape index: {0}]
  %s7 = inlined_call_operand.vmem [shape: f32[2,8], index: 7, kind: output, shape index: {1}]
  %8 = xla_tuple %s6, %s7
  %s9 = sld [smem:[#allocation0]]
  $region73: #{up_block_apply.6} parent=0
    _
  %s11 = ssub.s32 1, %s9
  %s12 = scalar_select 0, %s11, %s9
  loop: start=0, step=1, limit=4
  $region2: #{up_block_apply.6} parent=0 // loop_pre_header
    _
  $region3: #{up_block_apply.6} parent=0 // loop_header
    %s14 = sphi 0, %s18
    %p15 = scmp.ge.s32.totalorder %s14, 4
    %s24 = sphi 0, %s26
    %s27 = sphi 0, %s24
    %s28 = sphi 0, %s27
    %s44 = sphi 0, %s28
    %s50 = sphi 0, %s52
    %s53 = sphi 0, %s50
    %s54 = sphi 0, %s53
    %s70 = sphi 0, %s54
    %s74 = sphi 0, %s74
    %s76 = sphi 0, %s74
    %s77 = sphi 0, %s76
    %s91 = sphi 0, %s77
    %s95 = sphi 0, %s95
    %s97 = sphi 0, %s95
    %s98 = sphi 0, %s97
    %s112 = sphi 0, %s98
    %s116 = sphi 0, %s116
    %s118 = sphi 0, %s116
    %s119 = sphi 0, %s118
    %s133 = sphi 0, %s119
    %s137 = sphi 0, %s137
    %s139 = sphi 0, %s137
    %s140 = sphi 0, %s139
    %s154 = sphi 0, %s140
    %s158 = sphi 0, %s158
    %s160 = sphi 0, %s158
    %s161 = sphi 0, %s160
    %s175 = sphi 0, %s161
    %s179 = sphi 0, %s179
    %s181 = sphi 0, %s179
    %s182 = sphi 0, %s181
    %s196 = sphi 0, %s182
  $region4: #{up_block_apply.6} parent=0 // loop_header_branch
    %17 = sbr.rel (%p15) target = $region8
  $region5: #{up_block_apply.6} parent=0 // loop_body
    %s19 = ssub.s32 %s14, 1
    %s20 = ssub.s32 %s14, 2
    %s21 = sadd.s32 %s14, 1
    %s22 = ssub.s32 %s14, %s21
    %p23 = scmp.eq.s32.totalorder %s22, 0
    %s25 = sadd.s32 %s24, 1
    %s26 = scalar_select %p23, %s24, %s25
    %p29 = pneg %p23
    %p30 = scmp.eq.s32.totalorder %s14, 1
    %p31 = por %p29, %p30
    %p32 = scmp.ne.s32.totalorder %s24, %s27
    %p33 = scmp.eq.s32.totalorder %s14, 0
    %p34 = por %p32, %p33
    %p35 = scmp.ne.s32.totalorder %s24, %s27
    %p36 = scmp.eq.s32.totalorder %s19, 1
    %p37 = por %p35, %p36
    %p38 = scmp.ne.s32.totalorder %s27, %s28
    %p39 = scmp.eq.s32.totalorder %s19, 0
    %p40 = por %p38, %p39
    %p41 = scmp.ne.s32.totalorder %s27, %s28
    %p42 = scmp.eq.s32.totalorder %s20, 1
    %p43 = por %p41, %p42
    %p45 = scmp.ne.s32.totalorder %s28, %s44
    %p46 = scmp.eq.s32.totalorder %s20, 0
    %p47 = por %p45, %p46
    %s48 = ssub.s32 %s14, %s21
    %p49 = scmp.eq.s32.totalorder %s48, 0
    %s51 = sadd.s32 %s50, 1
    %s52 = scalar_select %p49, %s50, %s51
    %p55 = pneg %p49
    %p56 = scmp.eq.s32.totalorder %s14, 1
    %p57 = por %p55, %p56
    %p58 = scmp.ne.s32.totalorder %s50, %s53
    %p59 = scmp.eq.s32.totalorder %s14, 0
    %p60 = por %p58, %p59
    %p61 = scmp.ne.s32.totalorder %s50, %s53
    %p62 = scmp.eq.s32.totalorder %s19, 1
    %p63 = por %p61, %p62
    %p64 = scmp.ne.s32.totalorder %s53, %s54
    %p65 = scmp.eq.s32.totalorder %s19, 0
    %p66 = por %p64, %p65
    %p67 = scmp.ne.s32.totalorder %s53, %s54
    %p68 = scmp.eq.s32.totalorder %s20, 1
    %p69 = por %p67, %p68
    %p71 = scmp.ne.s32.totalorder %s54, %s70
    %p72 = scmp.eq.s32.totalorder %s20, 0
    %p73 = por %p71, %p72
    %s75 = sadd.s32 %s74, 1
    %p78 = scmp.eq.s32.totalorder %s14, 1
    %p79 = scmp.ne.s32.totalorder %s74, %s76
    %p80 = scmp.eq.s32.totalorder %s14, 0
    %p81 = por %p79, %p80
    %p82 = scmp.ne.s32.totalorder %s74, %s76
    %p83 = scmp.eq.s32.totalorder %s19, 1
    %p84 = por %p82, %p83
    %p85 = scmp.ne.s32.totalorder %s76, %s77
    %p86 = scmp.eq.s32.totalorder %s19, 0
    %p87 = por %p85, %p86
    %p88 = scmp.ne.s32.totalorder %s76, %s77
    %p89 = scmp.eq.s32.totalorder %s20, 1
    %p90 = por %p88, %p89
    %p92 = scmp.ne.s32.totalorder %s77, %s91
    %p93 = scmp.eq.s32.totalorder %s20, 0
    %p94 = por %p92, %p93
    %s96 = sadd.s32 %s95, 1
    %p99 = scmp.eq.s32.totalorder %s14, 1
    %p100 = scmp.ne.s32.totalorder %s95, %s97
    %p101 = scmp.eq.s32.totalorder %s14, 0
    %p102 = por %p100, %p101
    %p103 = scmp.ne.s32.totalorder %s95, %s97
    %p104 = scmp.eq.s32.totalorder %s19, 1
    %p105 = por %p103, %p104
    %p106 = scmp.ne.s32.totalorder %s97, %s98
    %p107 = scmp.eq.s32.totalorder %s19, 0
    %p108 = por %p106, %p107
    %p109 = scmp.ne.s32.totalorder %s97, %s98
    %p110 = scmp.eq.s32.totalorder %s20, 1
    %p111 = por %p109, %p110
    %p113 = scmp.ne.s32.totalorder %s98, %s112
    %p114 = scmp.eq.s32.totalorder %s20, 0
    %p115 = por %p113, %p114
    %s117 = sadd.s32 %s116, 1
    %p120 = scmp.eq.s32.totalorder %s14, 1
    %p121 = scmp.ne.s32.totalorder %s116, %s118
    %p122 = scmp.eq.s32.totalorder %s14, 0
    %p123 = por %p121, %p122
    %p124 = scmp.ne.s32.totalorder %s116, %s118
    %p125 = scmp.eq.s32.totalorder %s19, 1
    %p126 = por %p124, %p125
    %p127 = scmp.ne.s32.totalorder %s118, %s119
    %p128 = scmp.eq.s32.totalorder %s19, 0
    %p129 = por %p127, %p128
    %p130 = scmp.ne.s32.totalorder %s118, %s119
    %p131 = scmp.eq.s32.totalorder %s20, 1
    %p132 = por %p130, %p131
    %p134 = scmp.ne.s32.totalorder %s119, %s133
    %p135 = scmp.eq.s32.totalorder %s20, 0
    %p136 = por %p134, %p135
    %s138 = sadd.s32 %s137, 1
    %p141 = scmp.eq.s32.totalorder %s14, 1
    %p142 = scmp.ne.s32.totalorder %s137, %s139
    %p143 = scmp.eq.s32.totalorder %s14, 0
    %p144 = por %p142, %p143
    %p145 = scmp.ne.s32.totalorder %s137, %s139
    %p146 = scmp.eq.s32.totalorder %s19, 1
    %p147 = por %p145, %p146
    %p148 = scmp.ne.s32.totalorder %s139, %s140
    %p149 = scmp.eq.s32.totalorder %s19, 0
    %p150 = por %p148, %p149
    %p151 = scmp.ne.s32.totalorder %s139, %s140
    %p152 = scmp.eq.s32.totalorder %s20, 1
    %p153 = por %p151, %p152
    %p155 = scmp.ne.s32.totalorder %s140, %s154
    %p156 = scmp.eq.s32.totalorder %s20, 0
    %p157 = por %p155, %p156
    %s159 = sadd.s32 %s158, 1
    %p162 = scmp.eq.s32.totalorder %s14, 1
    %p163 = scmp.ne.s32.totalorder %s158, %s160
    %p164 = scmp.eq.s32.totalorder %s14, 0
    %p165 = por %p163, %p164
    %p166 = scmp.ne.s32.totalorder %s158, %s160
    %p167 = scmp.eq.s32.totalorder %s19, 1
    %p168 = por %p166, %p167
    %p169 = scmp.ne.s32.totalorder %s160, %s161
    %p170 = scmp.eq.s32.totalorder %s19, 0
    %p171 = por %p169, %p170
    %p172 = scmp.ne.s32.totalorder %s160, %s161
    %p173 = scmp.eq.s32.totalorder %s20, 1
    %p174 = por %p172, %p173
    %p176 = scmp.ne.s32.totalorder %s161, %s175
    %p177 = scmp.eq.s32.totalorder %s20, 0
    %p178 = por %p176, %p177
    %s180 = sadd.s32 %s179, 1
    %p183 = scmp.eq.s32.totalorder %s14, 1
    %p184 = scmp.ne.s32.totalorder %s179, %s181
    %p185 = scmp.eq.s32.totalorder %s14, 0
    %p186 = por %p184, %p185
    %p187 = scmp.ne.s32.totalorder %s179, %s181
    %p188 = scmp.eq.s32.totalorder %s19, 1
    %p189 = por %p187, %p188
    %p190 = scmp.ne.s32.totalorder %s181, %s182
    %p191 = scmp.eq.s32.totalorder %s19, 0
    %p192 = por %p190, %p191
    %p193 = scmp.ne.s32.totalorder %s181, %s182
    %p194 = scmp.eq.s32.totalorder %s20, 1
    %p195 = por %p193, %p194
    %p197 = scmp.ne.s32.totalorder %s182, %s196
    %p198 = scmp.eq.s32.totalorder %s20, 0
    %p199 = por %p197, %p198
    %p200 = scmp.le.s32.totalorder 1, %s14
    %p201 = scmp.lt.s32.totalorder %s14, 3
    %p202 = pnand %p200, %p201
    %p203 = pneg %p202
    // Predicated region
    $region9: #{up_block_apply.6} parent=5 // pred_check
      _
    $region10: #{up_block_apply.6} parent=5 // pred_check_branch
      %205 = sbr.rel (%p202) target = $region12
    $region11: #{up_block_apply.6} parent=5 // pred_region
      %s206 = ssub.s32 %s14, 1
      // Predicated region
      $region13: #{up_block_apply.6} parent=11 // pred_check
        %p207 = pneg %p87
      $region14: #{up_block_apply.6} parent=11 // pred_check_branch
        %209 = sbr.rel (%p207) target = $region16
      $region15: #{up_block_apply.6} parent=11 // pred_region
        _
      $region16: #{up_block_apply.6} parent=11 // pred_fallthru
        _
      // Predicated region
      $region17: #{up_block_apply.6} parent=11 // pred_check
        %p210 = pneg %p108
      $region18: #{up_block_apply.6} parent=11 // pred_check_branch
        %212 = sbr.rel (%p210) target = $region20
      $region19: #{up_block_apply.6} parent=11 // pred_region
        _
      $region20: #{up_block_apply.6} parent=11 // pred_fallthru
        _
      // Predicated region
      $region21: #{up_block_apply.6} parent=11 // pred_check
        %p213 = pneg %p129
      $region22: #{up_block_apply.6} parent=11 // pred_check_branch
        %215 = sbr.rel (%p213) target = $region24
      $region23: #{up_block_apply.6} parent=11 // pred_region
        _
      $region24: #{up_block_apply.6} parent=11 // pred_fallthru
        _
      // Predicated region
      $region25: #{up_block_apply.6} parent=11 // pred_check
        %p216 = pneg %p150
      $region26: #{up_block_apply.6} parent=11 // pred_check_branch
        %218 = sbr.rel (%p216) target = $region28
      $region27: #{up_block_apply.6} parent=11 // pred_region
        _
      $region28: #{up_block_apply.6} parent=11 // pred_fallthru
        _
    $region12: #{up_block_apply.6} parent=5 // pred_fallthru
      _
    %p219 = scmp.lt.s32.totalorder %s14, 2
    // Predicated region
    $region29: #{up_block_apply.6} parent=5 // pred_check
      %p220 = pneg %p219
    $region30: #{up_block_apply.6} parent=5 // pred_check_branch
      %222 = sbr.rel (%p220) target = $region32
    $region31: #{up_block_apply.6} parent=5 // pred_region
      // Predicated region
      $region33: #{up_block_apply.6} parent=31 // pred_check
        %p223 = pneg %p34
      $region34: #{up_block_apply.6} parent=31 // pred_check_branch
        %225 = sbr.rel (%p223) target = $region36
      $region35: #{up_block_apply.6} parent=31 // pred_region
        %p226 = scmp.lt.s32.totalorder %s14, 1
        %s227 = scalar_select %p226, %s14, 1
        %s228 = smul.addr %s227, 32
        %s229 = smul.addr %s228, 8
        %s230 = scalar_lea.vmem %s0, %s229
      $region36: #{up_block_apply.6} parent=31 // pred_fallthru
        _
      // Predicated region
      $region37: #{up_block_apply.6} parent=31 // pred_check
        %p231 = pneg %p60
      $region38: #{up_block_apply.6} parent=31 // pred_check_branch
        %233 = sbr.rel (%p231) target = $region40
      $region39: #{up_block_apply.6} parent=31 // pred_region
        %p234 = scmp.lt.s32.totalorder %s14, 1
        %s235 = scalar_select %p234, %s14, 1
        %s236 = smul.addr %s235, 32
        %s237 = smul.addr %s236, 8
        %s238 = scalar_lea.vmem %s1, %s237
      $region40: #{up_block_apply.6} parent=31 // pred_fallthru
        _
    $region32: #{up_block_apply.6} parent=5 // pred_fallthru
      _
    %p239 = scmp.le.s32.totalorder 1, %s14
    %p240 = scmp.lt.s32.totalorder %s14, 3
    %p241 = pnand %p239, %p240
    %p242 = pneg %p241
    // Predicated region
    $region41: #{up_block_apply.6} parent=5 // pred_check
      _
    $region42: #{up_block_apply.6} parent=5 // pred_check_branch
      %244 = sbr.rel (%p241) target = $region44
    $region43: #{up_block_apply.6} parent=5 // pred_region
      %s245 = ssub.s32 %s14, 1
      %p246 = scmp.lt.s32.totalorder %s19, 1
      %s247 = scalar_select %p246, %s19, 1
      %s248 = smul.addr %s247, 32
      %s249 = smul.addr %s248, 8
      %s250 = scalar_lea.vmem %s0, %s249
      %p251 = pneg %p40
      %p252 = pneg %p37
      %p253 = scmp.lt.s32.totalorder %s19, 1
      %s254 = scalar_select %p253, %s19, 1
      %s255 = smul.addr %s254, 32
      %s256 = smul.addr %s255, 8
      %s257 = scalar_lea.vmem %s1, %s256
      %p258 = pneg %p66
      %p259 = pneg %p63
      %p260 = pneg %p87
      %p261 = pneg %p84
      %p262 = pneg %p108
      %p263 = pneg %p105
      %p264 = pneg %p129
      %p265 = pneg %p126
      %p266 = pneg %p150
      %p267 = pneg %p147
      %p268 = pneg %p171
      %p269 = pneg %p168
      %p270 = pneg %p192
      %p271 = pneg %p189
      %p272 = scmp.lt.s32.totalorder %s19, 1
      %s273 = scalar_select %p272, %s19, 1
      %s274 = smul.addr %s273, 32
      %s275 = smul.addr %s274, 8
      %s276 = scalar_lea.vmem %s0, %s275
      %p277 = scmp.lt.s32.totalorder %s19, 1
      %s278 = scalar_select %p277, %s19, 1
      %s279 = smul.addr %s278, 32
      %s280 = smul.addr %s279, 8
      %s281 = scalar_lea.vmem %s1, %s280
      %p282 = scmp.eq.s32.totalorder %s19, 0
      // Predicated region
      $region45: #{up_block_apply.6} parent=43 // pred_check
        %p283 = pneg %p282
      $region46: #{up_block_apply.6} parent=43 // pred_check_branch
        %285 = sbr.rel (%p283) target = $region48
      $region47: #{up_block_apply.6} parent=43 // pred_region
        %vm286 = vcmask 123904
        %287 = vst.msk [vmem:[%s6] sm:$0x3] %vm286, 0.0
        %vm288 = vcmask 58368
        %289 = vst.msk [vmem:[%s7] sm:$0x3] %vm288, 0.0
      $region48: #{up_block_apply.6} parent=43 // pred_fallthru
        _
      %v290 = vld [vmem:[%s276] sm:$0xff]
      %v291 = vld [vmem:[%s276 + $0x8] sm:$0xff]
      %v292 = vld [vmem:[%s276 + $0x10] sm:$0xff]
      %v293 = vld [vmem:[%s276 + $0x18] sm:$0xff]
      %v294 = vld [vmem:[%s276 + $0x20] sm:$0xff]
      %v295 = vld [vmem:[%s276 + $0x28] sm:$0xff]
      %v296 = vld [vmem:[%s276 + $0x30] sm:$0xff]
      %v297 = vld [vmem:[%s276 + $0x38] sm:$0xff]
      %v298 = vld [vmem:[%s276 + $0x40] sm:$0xff]
      %v299 = vld [vmem:[%s276 + $0x48] sm:$0xff]
      %v300 = vld [vmem:[%s276 + $0x50] sm:$0xff]
      %v301 = vld [vmem:[%s276 + $0x58] sm:$0xff]
      %v302 = vld [vmem:[%s276 + $0x60] sm:$0xff]
      %v303 = vld [vmem:[%s276 + $0x68] sm:$0xff]
      %v304 = vld [vmem:[%s276 + $0x70] sm:$0xff]
      %v305 = vld [vmem:[%s276 + $0x78] sm:$0xff]
      %v306 = vld [vmem:[%s276 + $0x80] sm:$0xff]
      %v307 = vld [vmem:[%s276 + $0x88] sm:$0xff]
      %v308 = vld [vmem:[%s276 + $0x90] sm:$0xff]
      %v309 = vld [vmem:[%s276 + $0x98] sm:$0xff]
      %v310 = vld [vmem:[%s276 + $0xa0] sm:$0xff]
      %v311 = vld [vmem:[%s276 + $0xa8] sm:$0xff]
      %v312 = vld [vmem:[%s276 + $0xb0] sm:$0xff]
      %v313 = vld [vmem:[%s276 + $0xb8] sm:$0xff]
      %v314 = vld [vmem:[%s276 + $0xc0] sm:$0xff]
      %v315 = vld [vmem:[%s276 + $0xc8] sm:$0xff]
      %v316 = vld [vmem:[%s276 + $0xd0] sm:$0xff]
      %v317 = vld [vmem:[%s276 + $0xd8] sm:$0xff]
      %v318 = vld [vmem:[%s276 + $0xe0] sm:$0xff]
      %v319 = vld [vmem:[%s276 + $0xe8] sm:$0xff]
      %v320 = vld [vmem:[%s276 + $0xf0] sm:$0xff]
      %v321 = vld [vmem:[%s276 + $0xf8] sm:$0xff]
      %v322 = vld [vmem:[%s281] sm:$0xff]
      %v323 = vld [vmem:[%s281 + $0x8] sm:$0xff]
      %v324 = vld [vmem:[%s281 + $0x10] sm:$0xff]
      %v325 = vld [vmem:[%s281 + $0x18] sm:$0xff]
      %v326 = vld [vmem:[%s281 + $0x20] sm:$0xff]
      %v327 = vld [vmem:[%s281 + $0x28] sm:$0xff]
      %v328 = vld [vmem:[%s281 + $0x30] sm:$0xff]
      %v329 = vld [vmem:[%s281 + $0x38] sm:$0xff]
      %v330 = vld [vmem:[%s281 + $0x40] sm:$0xff]
      %v331 = vld [vmem:[%s281 + $0x48] sm:$0xff]
      %v332 = vld [vmem:[%s281 + $0x50] sm:$0xff]
      %v333 = vld [vmem:[%s281 + $0x58] sm:$0xff]
      %v334 = vld [vmem:[%s281 + $0x60] sm:$0xff]
      %v335 = vld [vmem:[%s281 + $0x68] sm:$0xff]
      %v336 = vld [vmem:[%s281 + $0x70] sm:$0xff]
      %v337 = vld [vmem:[%s281 + $0x78] sm:$0xff]
      %v338 = vld [vmem:[%s281 + $0x80] sm:$0xff]
      %v339 = vld [vmem:[%s281 + $0x88] sm:$0xff]
      %v340 = vld [vmem:[%s281 + $0x90] sm:$0xff]
      %v341 = vld [vmem:[%s281 + $0x98] sm:$0xff]
      %v342 = vld [vmem:[%s281 + $0xa0] sm:$0xff]
      %v343 = vld [vmem:[%s281 + $0xa8] sm:$0xff]
      %v344 = vld [vmem:[%s281 + $0xb0] sm:$0xff]
      %v345 = vld [vmem:[%s281 + $0xb8] sm:$0xff]
      %v346 = vld [vmem:[%s281 + $0xc0] sm:$0xff]
      %v347 = vld [vmem:[%s281 + $0xc8] sm:$0xff]
      %v348 = vld [vmem:[%s281 + $0xd0] sm:$0xff]
      %v349 = vld [vmem:[%s281 + $0xd8] sm:$0xff]
      %v350 = vld [vmem:[%s281 + $0xe0] sm:$0xff]
      %v351 = vld [vmem:[%s281 + $0xe8] sm:$0xff]
      %v352 = vld [vmem:[%s281 + $0xf0] sm:$0xff]
      %v353 = vld [vmem:[%s281 + $0xf8] sm:$0xff]
      %v354 = vld [vmem:[%s6] sm:$0x3]
      %vm355 = vcmask 130048
      %v356 = vsel %vm355, %v290, 0.0
      %v357 = vsel %vm355, %v291, 0.0
      %v358 = vadd.f32 %v356, %v357
      %v359 = vsel %vm355, %v292, 0.0
      %v360 = vadd.f32 %v358, %v359
      %v361 = vsel %vm355, %v293, 0.0
      %v362 = vadd.f32 %v360, %v361
      %v363 = vsel %vm355, %v294, 0.0
      %v364 = vadd.f32 %v362, %v363
      %v365 = vsel %vm355, %v295, 0.0
      %v366 = vadd.f32 %v364, %v365
      %v367 = vsel %vm355, %v296, 0.0
      %v368 = vadd.f32 %v366, %v367
      %v369 = vsel %vm355, %v297, 0.0
      %v370 = vadd.f32 %v368, %v369
      %v371 = vsel %vm355, %v298, 0.0
      %v372 = vadd.f32 %v370, %v371
      %v373 = vsel %vm355, %v299, 0.0
      %v374 = vadd.f32 %v372, %v373
      %v375 = vsel %vm355, %v300, 0.0
      %v376 = vadd.f32 %v374, %v375
      %v377 = vsel %vm355, %v301, 0.0
      %v378 = vadd.f32 %v376, %v377
      %v379 = vsel %vm355, %v302, 0.0
      %v380 = vadd.f32 %v378, %v379
      %v381 = vsel %vm355, %v303, 0.0
      %v382 = vadd.f32 %v380, %v381
      %v383 = vsel %vm355, %v304, 0.0
      %v384 = vadd.f32 %v382, %v383
      %v385 = vsel %vm355, %v305, 0.0
      %v386 = vadd.f32 %v384, %v385
      %v387 = vsel %vm355, %v306, 0.0
      %v388 = vadd.f32 %v386, %v387
      %v389 = vsel %vm355, %v307, 0.0
      %v390 = vadd.f32 %v388, %v389
      %v391 = vsel %vm355, %v308, 0.0
      %v392 = vadd.f32 %v390, %v391
      %v393 = vsel %vm355, %v309, 0.0
      %v394 = vadd.f32 %v392, %v393
      %v395 = vsel %vm355, %v310, 0.0
      %v396 = vadd.f32 %v394, %v395
      %v397 = vsel %vm355, %v311, 0.0
      %v398 = vadd.f32 %v396, %v397
      %v399 = vsel %vm355, %v312, 0.0
      %v400 = vadd.f32 %v398, %v399
      %v401 = vsel %vm355, %v313, 0.0
      %v402 = vadd.f32 %v400, %v401
      %v403 = vsel %vm355, %v314, 0.0
      %v404 = vadd.f32 %v402, %v403
      %v405 = vsel %vm355, %v315, 0.0
      %v406 = vadd.f32 %v404, %v405
      %v407 = vsel %vm355, %v316, 0.0
      %v408 = vadd.f32 %v406, %v407
      %v409 = vsel %vm355, %v317, 0.0
      %v410 = vadd.f32 %v408, %v409
      %v411 = vsel %vm355, %v318, 0.0
      %v412 = vadd.f32 %v410, %v411
      %v413 = vsel %vm355, %v319, 0.0
      %v414 = vadd.f32 %v412, %v413
      %v415 = vsel %vm355, %v320, 0.0
      %v416 = vadd.f32 %v414, %v415
      %v417 = vsel %vm355, %v321, 0.0
      %v418 = vadd.f32 %v416, %v417
      %v419 = vrot.slane %v418, 4
      %v420 = vadd.f32 %v418, %v419
      %v421 = vrot.slane %v420, 2
      %v422 = vadd.f32 %v420, %v421
      %v423 = vrot.slane %v422, 1
      %v424 = vadd.f32 %v422, %v423
      %v425 = vmul.f32 %v290, %v290
      %v426 = vmul.f32 %v291, %v291
      %v427 = vmul.f32 %v292, %v292
      %v428 = vmul.f32 %v293, %v293
      %v429 = vmul.f32 %v294, %v294
      %v430 = vmul.f32 %v295, %v295
      %v431 = vmul.f32 %v296, %v296
      %v432 = vmul.f32 %v297, %v297
      %v433 = vmul.f32 %v298, %v298
      %v434 = vmul.f32 %v299, %v299
      %v435 = vmul.f32 %v300, %v300
      %v436 = vmul.f32 %v301, %v301
      %v437 = vmul.f32 %v302, %v302
      %v438 = vmul.f32 %v303, %v303
      %v439 = vmul.f32 %v304, %v304
      %v440 = vmul.f32 %v305, %v305
      %v441 = vmul.f32 %v306, %v306
      %v442 = vmul.f32 %v307, %v307
      %v443 = vmul.f32 %v308, %v308
      %v444 = vmul.f32 %v309, %v309
      %v445 = vmul.f32 %v310, %v310
      %v446 = vmul.f32 %v311, %v311
      %v447 = vmul.f32 %v312, %v312
      %v448 = vmul.f32 %v313, %v313
      %v449 = vmul.f32 %v314, %v314
      %v450 = vmul.f32 %v315, %v315
      %v451 = vmul.f32 %v316, %v316
      %v452 = vmul.f32 %v317, %v317
      %v453 = vmul.f32 %v318, %v318
      %v454 = vmul.f32 %v319, %v319
      %v455 = vmul.f32 %v320, %v320
      %v456 = vmul.f32 %v321, %v321
      %v457 = vsel %vm355, %v425, 0.0
      %v458 = vsel %vm355, %v426, 0.0
      %v459 = vadd.f32 %v457, %v458
      %v460 = vsel %vm355, %v427, 0.0
      %v461 = vadd.f32 %v459, %v460
      %v462 = vsel %vm355, %v428, 0.0
      %v463 = vadd.f32 %v461, %v462
      %v464 = vsel %vm355, %v429, 0.0
      %v465 = vadd.f32 %v463, %v464
      %v466 = vsel %vm355, %v430, 0.0
      %v467 = vadd.f32 %v465, %v466
      %v468 = vsel %vm355, %v431, 0.0
      %v469 = vadd.f32 %v467, %v468
      %v470 = vsel %vm355, %v432, 0.0
      %v471 = vadd.f32 %v469, %v470
      %v472 = vsel %vm355, %v433, 0.0
      %v473 = vadd.f32 %v471, %v472
      %v474 = vsel %vm355, %v434, 0.0
      %v475 = vadd.f32 %v473, %v474
      %v476 = vsel %vm355, %v435, 0.0
      %v477 = vadd.f32 %v475, %v476
      %v478 = vsel %vm355, %v436, 0.0
      %v479 = vadd.f32 %v477, %v478
      %v480 = vsel %vm355, %v437, 0.0
      %v481 = vadd.f32 %v479, %v480
      %v482 = vsel %vm355, %v438, 0.0
      %v483 = vadd.f32 %v481, %v482
      %v484 = vsel %vm355, %v439, 0.0
      %v485 = vadd.f32 %v483, %v484
      %v486 = vsel %vm355, %v440, 0.0
      %v487 = vadd.f32 %v485, %v486
      %v488 = vsel %vm355, %v441, 0.0
      %v489 = vadd.f32 %v487, %v488
      %v490 = vsel %vm355, %v442, 0.0
      %v491 = vadd.f32 %v489, %v490
      %v492 = vsel %vm355, %v443, 0.0
      %v493 = vadd.f32 %v491, %v492
      %v494 = vsel %vm355, %v444, 0.0
      %v495 = vadd.f32 %v493, %v494
      %v496 = vsel %vm355, %v445, 0.0
      %v497 = vadd.f32 %v495, %v496
      %v498 = vsel %vm355, %v446, 0.0
      %v499 = vadd.f32 %v497, %v498
      %v500 = vsel %vm355, %v447, 0.0
      %v501 = vadd.f32 %v499, %v500
      %v502 = vsel %vm355, %v448, 0.0
      %v503 = vadd.f32 %v501, %v502
      %v504 = vsel %vm355, %v449, 0.0
      %v505 = vadd.f32 %v503, %v504
      %v506 = vsel %vm355, %v450, 0.0
      %v507 = vadd.f32 %v505, %v506
      %v508 = vsel %vm355, %v451, 0.0
      %v509 = vadd.f32 %v507, %v508
      %v510 = vsel %vm355, %v452, 0.0
      %v511 = vadd.f32 %v509, %v510
      %v512 = vsel %vm355, %v453, 0.0
      %v513 = vadd.f32 %v511, %v512
      %v514 = vsel %vm355, %v454, 0.0
      %v515 = vadd.f32 %v513, %v514
      %v516 = vsel %vm355, %v455, 0.0
      %v517 = vadd.f32 %v515, %v516
      %v518 = vsel %vm355, %v456, 0.0
      %v519 = vadd.f32 %v517, %v518
      %v520 = vrot.slane %v519, 4
      %v521 = vadd.f32 %v519, %v520
      %v522 = vrot.slane %v521, 2
      %v523 = vadd.f32 %v521, %v522
      %v524 = vrot.slane %v523, 1
      %v525 = vadd.f32 %v523, %v524
      %vm526 = vcmask 1040384
      %v527 = vsel %vm526, %v424, %v525
      %v528 = vadd.f32 %v354, %v527
      %vm529 = vcmask 123904
      %530 = vst.msk [vmem:[%s6] sm:$0x3] %vm529, %v528
      %v531 = vld [vmem:[%s7] sm:$0x3]
      %vm532 = vcmask 64512
      %v533 = vsel %vm532, %v322, 0.0
      %v534 = vsel %vm532, %v323, 0.0
      %v535 = vadd.f32 %v533, %v534
      %v536 = vsel %vm532, %v324, 0.0
      %v537 = vadd.f32 %v535, %v536
      %v538 = vsel %vm532, %v325, 0.0
      %v539 = vadd.f32 %v537, %v538
      %v540 = vsel %vm532, %v326, 0.0
      %v541 = vadd.f32 %v539, %v540
      %v542 = vsel %vm532, %v327, 0.0
      %v543 = vadd.f32 %v541, %v542
      %v544 = vsel %vm532, %v328, 0.0
      %v545 = vadd.f32 %v543, %v544
      %v546 = vsel %vm532, %v329, 0.0
      %v547 = vadd.f32 %v545, %v546
      %v548 = vsel %vm532, %v330, 0.0
      %v549 = vadd.f32 %v547, %v548
      %v550 = vsel %vm532, %v331, 0.0
      %v551 = vadd.f32 %v549, %v550
      %v552 = vsel %vm532, %v332, 0.0
      %v553 = vadd.f32 %v551, %v552
      %v554 = vsel %vm532, %v333, 0.0
      %v555 = vadd.f32 %v553, %v554
      %v556 = vsel %vm532, %v334, 0.0
      %v557 = vadd.f32 %v555, %v556
      %v558 = vsel %vm532, %v335, 0.0
      %v559 = vadd.f32 %v557, %v558
      %v560 = vsel %vm532, %v336, 0.0
      %v561 = vadd.f32 %v559, %v560
      %v562 = vsel %vm532, %v337, 0.0
      %v563 = vadd.f32 %v561, %v562
      %v564 = vsel %vm532, %v338, 0.0
      %v565 = vadd.f32 %v563, %v564
      %v566 = vsel %vm532, %v339, 0.0
      %v567 = vadd.f32 %v565, %v566
      %v568 = vsel %vm532, %v340, 0.0
      %v569 = vadd.f32 %v567, %v568
      %v570 = vsel %vm532, %v341, 0.0
      %v571 = vadd.f32 %v569, %v570
      %v572 = vsel %vm532, %v342, 0.0
      %v573 = vadd.f32 %v571, %v572
      %v574 = vsel %vm532, %v343, 0.0
      %v575 = vadd.f32 %v573, %v574
      %v576 = vsel %vm532, %v344, 0.0
      %v577 = vadd.f32 %v575, %v576
      %v578 = vsel %vm532, %v345, 0.0
      %v579 = vadd.f32 %v577, %v578
      %v580 = vsel %vm532, %v346, 0.0
      %v581 = vadd.f32 %v579, %v580
      %v582 = vsel %vm532, %v347, 0.0
      %v583 = vadd.f32 %v581, %v582
      %v584 = vsel %vm532, %v348, 0.0
      %v585 = vadd.f32 %v583, %v584
      %v586 = vsel %vm532, %v349, 0.0
      %v587 = vadd.f32 %v585, %v586
      %v588 = vsel %vm532, %v350, 0.0
      %v589 = vadd.f32 %v587, %v588
      %v590 = vsel %vm532, %v351, 0.0
      %v591 = vadd.f32 %v589, %v590
      %v592 = vsel %vm532, %v352, 0.0
      %v593 = vadd.f32 %v591, %v592
      %v594 = vsel %vm532, %v353, 0.0
      %v595 = vadd.f32 %v593, %v594
      %v596 = vrot.slane %v595, 4
      %v597 = vadd.f32 %v595, %v596
      %v598 = vrot.slane %v597, 2
      %v599 = vadd.f32 %v597, %v598
      %v600 = vrot.slane %v599, 1
      %v601 = vadd.f32 %v599, %v600
      %v602 = vmul.f32 %v322, %v322
      %v603 = vmul.f32 %v323, %v323
      %v604 = vmul.f32 %v324, %v324
      %v605 = vmul.f32 %v325, %v325
      %v606 = vmul.f32 %v326, %v326
      %v607 = vmul.f32 %v327, %v327
      %v608 = vmul.f32 %v328, %v328
      %v609 = vmul.f32 %v329, %v329
      %v610 = vmul.f32 %v330, %v330
      %v611 = vmul.f32 %v331, %v331
      %v612 = vmul.f32 %v332, %v332
      %v613 = vmul.f32 %v333, %v333
      %v614 = vmul.f32 %v334, %v334
      %v615 = vmul.f32 %v335, %v335
      %v616 = vmul.f32 %v336, %v336
      %v617 = vmul.f32 %v337, %v337
      %v618 = vmul.f32 %v338, %v338
      %v619 = vmul.f32 %v339, %v339
      %v620 = vmul.f32 %v340, %v340
      %v621 = vmul.f32 %v341, %v341
      %v622 = vmul.f32 %v342, %v342
      %v623 = vmul.f32 %v343, %v343
      %v624 = vmul.f32 %v344, %v344
      %v625 = vmul.f32 %v345, %v345
      %v626 = vmul.f32 %v346, %v346
      %v627 = vmul.f32 %v347, %v347
      %v628 = vmul.f32 %v348, %v348
      %v629 = vmul.f32 %v349, %v349
      %v630 = vmul.f32 %v350, %v350
      %v631 = vmul.f32 %v351, %v351
      %v632 = vmul.f32 %v352, %v352
      %v633 = vmul.f32 %v353, %v353
      %v634 = vsel %vm532, %v602, 0.0
      %v635 = vsel %vm532, %v603, 0.0
      %v636 = vadd.f32 %v634, %v635
      %v637 = vsel %vm532, %v604, 0.0
      %v638 = vadd.f32 %v636, %v637
      %v639 = vsel %vm532, %v605, 0.0
      %v640 = vadd.f32 %v638, %v639
      %v641 = vsel %vm532, %v606, 0.0
      %v642 = vadd.f32 %v640, %v641
      %v643 = vsel %vm532, %v607, 0.0
      %v644 = vadd.f32 %v642, %v643
      %v645 = vsel %vm532, %v608, 0.0
      %v646 = vadd.f32 %v644, %v645
      %v647 = vsel %vm532, %v609, 0.0
      %v648 = vadd.f32 %v646, %v647
      %v649 = vsel %vm532, %v610, 0.0
      %v650 = vadd.f32 %v648, %v649
      %v651 = vsel %vm532, %v611, 0.0
      %v652 = vadd.f32 %v650, %v651
      %v653 = vsel %vm532, %v612, 0.0
      %v654 = vadd.f32 %v652, %v653
      %v655 = vsel %vm532, %v613, 0.0
      %v656 = vadd.f32 %v654, %v655
      %v657 = vsel %vm532, %v614, 0.0
      %v658 = vadd.f32 %v656, %v657
      %v659 = vsel %vm532, %v615, 0.0
      %v660 = vadd.f32 %v658, %v659
      %v661 = vsel %vm532, %v616, 0.0
      %v662 = vadd.f32 %v660, %v661
      %v663 = vsel %vm532, %v617, 0.0
      %v664 = vadd.f32 %v662, %v663
      %v665 = vsel %vm532, %v618, 0.0
      %v666 = vadd.f32 %v664, %v665
      %v667 = vsel %vm532, %v619, 0.0
      %v668 = vadd.f32 %v666, %v667
      %v669 = vsel %vm532, %v620, 0.0
      %v670 = vadd.f32 %v668, %v669
      %v671 = vsel %vm532, %v621, 0.0
      %v672 = vadd.f32 %v670, %v671
      %v673 = vsel %vm532, %v622, 0.0
      %v674 = vadd.f32 %v672, %v673
      %v675 = vsel %vm532, %v623, 0.0
      %v676 = vadd.f32 %v674, %v675
      %v677 = vsel %vm532, %v624, 0.0
      %v678 = vadd.f32 %v676, %v677
      %v679 = vsel %vm532, %v625, 0.0
      %v680 = vadd.f32 %v678, %v679
      %v681 = vsel %vm532, %v626, 0.0
      %v682 = vadd.f32 %v680, %v681
      %v683 = vsel %vm532, %v627, 0.0
      %v684 = vadd.f32 %v682, %v683
      %v685 = vsel %vm532, %v628, 0.0
      %v686 = vadd.f32 %v684, %v685
      %v687 = vsel %vm532, %v629, 0.0
      %v688 = vadd.f32 %v686, %v687
      %v689 = vsel %vm532, %v630, 0.0
      %v690 = vadd.f32 %v688, %v689
      %v691 = vsel %vm532, %v631, 0.0
      %v692 = vadd.f32 %v690, %v691
      %v693 = vsel %vm532, %v632, 0.0
      %v694 = vadd.f32 %v692, %v693
      %v695 = vsel %vm532, %v633, 0.0
      %v696 = vadd.f32 %v694, %v695
      %v697 = vrot.slane %v696, 4
      %v698 = vadd.f32 %v696, %v697
      %v699 = vrot.slane %v698, 2
      %v700 = vadd.f32 %v698, %v699
      %v701 = vrot.slane %v700, 1
      %v702 = vadd.f32 %v700, %v701
      %v703 = vsel %vm526, %v601, %v702
      %v704 = vadd.f32 %v531, %v703
      %vm705 = vcmask 58368
      %706 = vst.msk [vmem:[%s7] sm:$0x3] %vm705, %v704
      %p707 = scmp.eq.s32.totalorder %s19, 1
      // Predicated region
      $region49: #{up_block_apply.6} parent=43 // pred_check
        %p708 = pneg %p707
      $region50: #{up_block_apply.6} parent=43 // pred_check_branch
        %710 = sbr.rel (%p708) target = $region52
      $region51: #{up_block_apply.6} parent=43 // pred_region
        %v711 = vld [vmem:[%s6] sm:$0x1]
        %v712 = vmul.f32 %v711, 0.001953125
        %v713 = vld [vmem:[%s6 + $0x1] sm:$0x1]
        %v714 = vmul.f32 %v713, 0.001953125
        %v715 = vmul.f32 %v712, %v712
        %v716 = vsub.f32 %v714, %v715
        %v717 = vld [vmem:[%s2] sm:$0x1]
        %v718 = vadd.f32 %v716, 1e-05
        %v719 = vrsqrt.pop %v718
        %v720 = vmul.f32 %v717, %v719
        %vm721 = vcmask 122880
        %722 = vst.msk [vmem:[%s6] sm:$0x1] %vm721, %v720
        %v723 = vld [vmem:[%s3] sm:$0x1]
        %v724 = vmul.f32 %v712, %v720
        %v725 = vsub.f32 %v723, %v724
        %726 = vst.msk [vmem:[%s6 + $0x1] sm:$0x1] %vm721, %v725
        %v727 = vld [vmem:[%s7] sm:$0x1]
        %v728 = vmul.f32 %v727, 0.001953125
        %v729 = vld [vmem:[%s7 + $0x1] sm:$0x1]
        %v730 = vmul.f32 %v729, 0.001953125
        %v731 = vmul.f32 %v728, %v728
        %v732 = vsub.f32 %v730, %v731
        %v733 = vld [vmem:[%s4] sm:$0x1]
        %v734 = vadd.f32 %v732, 1e-05
        %v735 = vrsqrt.pop %v734
        %v736 = vmul.f32 %v733, %v735
        %vm737 = vcmask 57344
        %738 = vst.msk [vmem:[%s7] sm:$0x1] %vm737, %v736
        %v739 = vld [vmem:[%s5] sm:$0x1]
        %v740 = vmul.f32 %v728, %v736
        %v741 = vsub.f32 %v739, %v740
        %742 = vst.msk [vmem:[%s7 + $0x1] sm:$0x1] %vm737, %v741
      $region52: #{up_block_apply.6} parent=43 // pred_fallthru
        _
      // Predicated region
      $region53: #{up_block_apply.6} parent=43 // pred_check
        %p743 = pneg %p168
      $region54: #{up_block_apply.6} parent=43 // pred_check_branch
        %745 = sbr.rel (%p743) target = $region56
      $region55: #{up_block_apply.6} parent=43 // pred_region
        _
      $region56: #{up_block_apply.6} parent=43 // pred_fallthru
        _
      // Predicated region
      $region57: #{up_block_apply.6} parent=43 // pred_check
        %p746 = pneg %p189
      $region58: #{up_block_apply.6} parent=43 // pred_check_branch
        %748 = sbr.rel (%p746) target = $region60
      $region59: #{up_block_apply.6} parent=43 // pred_region
        _
      $region60: #{up_block_apply.6} parent=43 // pred_fallthru
        _
      // Predicated region
      $region61: #{up_block_apply.6} parent=43 // pred_check
        %p749 = pneg %p168
      $region62: #{up_block_apply.6} parent=43 // pred_check_branch
        %751 = sbr.rel (%p749) target = $region64
      $region63: #{up_block_apply.6} parent=43 // pred_region
        _
      $region64: #{up_block_apply.6} parent=43 // pred_fallthru
        _
      // Predicated region
      $region65: #{up_block_apply.6} parent=43 // pred_check
        %p752 = pneg %p189
      $region66: #{up_block_apply.6} parent=43 // pred_check_branch
        %754 = sbr.rel (%p752) target = $region68
      $region67: #{up_block_apply.6} parent=43 // pred_region
        _
      $region68: #{up_block_apply.6} parent=43 // pred_fallthru
        _
    $region44: #{up_block_apply.6} parent=5 // pred_fallthru
      _
    %p755 = scmp.le.s32.totalorder 2, %s14
    // Predicated region
    $region69: #{up_block_apply.6} parent=5 // pred_check
      %p756 = pneg %p755
    $region70: #{up_block_apply.6} parent=5 // pred_check_branch
      %758 = sbr.rel (%p756) target = $region72
    $region71: #{up_block_apply.6} parent=5 // pred_region
      %s759 = ssub.s32 %s14, 2
    $region72: #{up_block_apply.6} parent=5 // pred_fallthru
      _
  $region6: #{up_block_apply.6} parent=0 // loop_footer
    %s18 = sadd.s32 1, %s14
  $region7: #{up_block_apply.6} parent=0 // loop_footer_branch
    %13 = sbr.rel target = $region3
  $region8: #{up_block_apply.6} parent=0 // loop_exit
    _

// kernel: up_block_apply.5
$region0: #{up_block_apply.5}
  #allocation0 [shape = 'u32[]', space=smem, size = 0x4, offset = 0x4, fixed_abs, tag = 'smem constant byte address 0x4 - core index']
  #allocation1 [shape = 'u32[144,128]{1,0:T(1,128)}', space=vmem, size = 0x12000, scoped, tag = 'internal scratch']
  %s0 = inlined_call_operand.hbm [shape: f32[2,8,8,16], index: 0, kind: input, shape index: {}]
  %s1 = inlined_call_operand.vmem [shape: f32[2,16,8,32], index: 1, kind: output, shape index: {}]
  %s2 = sld [smem:[#allocation0]]
  $region41: #{up_block_apply.5} parent=0
    _
  %s4 = ssub.s32 1, %s2
  %s5 = scalar_select 0, %s4, %s2
  $region1: #{up_block_apply.5} parent=0
    #allocation2 [shape = 'u8[65536]{0}', space=vmem, size = 0x10000, scoped, tag = 'input window, operand 0']
    #allocation3 [shape = 's32[2]{0}', space=sflag, size = 0x8, scoped, tag = 'scoped memory for up_block_apply.5']
    %6 = vsyncpa [#allocation3], 0
    %s7 = scalar_lea.sflag [#allocation3], 1
    %8 = vsyncpa %s7, 0
    loop: start=0, step=1, limit=4
    $region2: #{up_block_apply.5} parent=1 // loop_pre_header
      _
    $region3: #{up_block_apply.5} parent=1 // loop_header
      %s10 = sphi 0, %s14
      %p11 = scmp.ge.s32.totalorder %s10, 4
      %s20 = sphi 0, %s22
      %s23 = sphi 0, %s20
      %s24 = sphi 0, %s23
      %s40 = sphi 0, %s24
      %s46 = sphi 0, %s48
      %s49 = sphi 0, %s46
      %s50 = sphi 0, %s49
      %s66 = sphi 0, %s50
    $region4: #{up_block_apply.5} parent=1 // loop_header_branch
      %13 = sbr.rel (%p11) target = $region8
    $region5: #{up_block_apply.5} parent=1 // loop_body
      %s15 = ssub.s32 %s10, 1
      %s16 = ssub.s32 %s10, 2
      %s17 = sadd.s32 %s10, 1
      %s18 = ssub.s32 %s10, %s17
      %p19 = scmp.eq.s32.totalorder %s18, 0
      %s21 = sadd.s32 %s20, 1
      %s22 = scalar_select %p19, %s20, %s21
      %p25 = pneg %p19
      %p26 = scmp.eq.s32.totalorder %s10, 1
      %p27 = por %p25, %p26
      %p28 = scmp.ne.s32.totalorder %s20, %s23
      %p29 = scmp.eq.s32.totalorder %s10, 0
      %p30 = por %p28, %p29
      %p31 = scmp.ne.s32.totalorder %s20, %s23
      %p32 = scmp.eq.s32.totalorder %s15, 1
      %p33 = por %p31, %p32
      %p34 = scmp.ne.s32.totalorder %s23, %s24
      %p35 = scmp.eq.s32.totalorder %s15, 0
      %p36 = por %p34, %p35
      %p37 = scmp.ne.s32.totalorder %s23, %s24
      %p38 = scmp.eq.s32.totalorder %s16, 1
      %p39 = por %p37, %p38
      %p41 = scmp.ne.s32.totalorder %s24, %s40
      %p42 = scmp.eq.s32.totalorder %s16, 0
      %p43 = por %p41, %p42
      %s44 = ssub.s32 %s10, %s17
      %p45 = scmp.eq.s32.totalorder %s44, 0
      %s47 = sadd.s32 %s46, 1
      %s48 = scalar_select %p45, %s46, %s47
      %p51 = pneg %p45
      %p52 = scmp.eq.s32.totalorder %s10, 1
      %p53 = por %p51, %p52
      %p54 = scmp.ne.s32.totalorder %s46, %s49
      %p55 = scmp.eq.s32.totalorder %s10, 0
      %p56 = por %p54, %p55
      %p57 = scmp.ne.s32.totalorder %s46, %s49
      %p58 = scmp.eq.s32.totalorder %s15, 1
      %p59 = por %p57, %p58
      %p60 = scmp.ne.s32.totalorder %s49, %s50
      %p61 = scmp.eq.s32.totalorder %s15, 0
      %p62 = por %p60, %p61
      %p63 = scmp.ne.s32.totalorder %s49, %s50
      %p64 = scmp.eq.s32.totalorder %s16, 1
      %p65 = por %p63, %p64
      %p67 = scmp.ne.s32.totalorder %s50, %s66
      %p68 = scmp.eq.s32.totalorder %s16, 0
      %p69 = por %p67, %p68
      %p70 = scmp.le.s32.totalorder 1, %s10
      %p71 = scmp.lt.s32.totalorder %s10, 3
      %p72 = pnand %p70, %p71
      %p73 = pneg %p72
      // Predicated region
      $region9: #{up_block_apply.5} parent=5 // pred_check
        _
      $region10: #{up_block_apply.5} parent=5 // pred_check_branch
        %75 = sbr.rel (%p72) target = $region12
      $region11: #{up_block_apply.5} parent=5 // pred_region
        %s76 = ssub.s32 %s10, 1
      $region12: #{up_block_apply.5} parent=5 // pred_fallthru
        _
      %p77 = scmp.lt.s32.totalorder %s10, 2
      // Predicated region
      $region13: #{up_block_apply.5} parent=5 // pred_check
        %p78 = pneg %p77
      $region14: #{up_block_apply.5} parent=5 // pred_check_branch
        %80 = sbr.rel (%p78) target = $region16
      $region15: #{up_block_apply.5} parent=5 // pred_region
        // Predicated region
        $region17: #{up_block_apply.5} parent=15 // pred_check
          %p81 = pneg %p30
        $region18: #{up_block_apply.5} parent=15 // pred_check_branch
          %83 = sbr.rel (%p81) target = $region20
        $region19: #{up_block_apply.5} parent=15 // pred_region
          %s84 = sand.u32 %s20, 1
          %s85 = scalar_lea.sflag [#allocation3], %s84
          %s86 = sand.u32 %s20, 1
          %s87 = smul.addr %s86, 64
          %s88 = scalar_lea.vmem [#allocation2], %s87
          %s90 = ssub.s32 1024, 1024
          %91 = vsyncadd %s85, %s90
          %s92 = smul.addr %s10, 8
          %s93 = smul.addr %s92, 128
          %s94 = scalar_lea.hbm %s0, %s93
          %s95 = sshll.u32 %s88, 4
          %s96 = int_to_ptr.vmem [resolvable:$true] %s95
          %101 = dma.hbm_to_vmem [thread:$0]  %s94, 1024, %s96, %s85, 128, 128, 8
        $region20: #{up_block_apply.5} parent=15 // pred_fallthru
          _
      $region16: #{up_block_apply.5} parent=5 // pred_fallthru
        _
      %p102 = scmp.le.s32.totalorder 1, %s10
      %p103 = scmp.lt.s32.totalorder %s10, 3
      %p104 = pnand %p102, %p103
      %p105 = pneg %p104
      // Predicated region
      $region21: #{up_block_apply.5} parent=5 // pred_check
        _
      $region22: #{up_block_apply.5} parent=5 // pred_check_branch
        %107 = sbr.rel (%p104) target = $region24
      $region23: #{up_block_apply.5} parent=5 // pred_region
        %s108 = ssub.s32 %s10, 1
        %s109 = sand.u32 %s23, 1
        %s110 = scalar_lea.sflag [#allocation3], %s109
        %s111 = sand.u32 %s23, 1
        %s112 = smul.addr %s111, 64
        %s113 = scalar_lea.vmem [#allocation2], %s112
        // Predicated region
        $region25: #{up_block_apply.5} parent=23 // pred_check
          %p114 = pneg %p36
        $region26: #{up_block_apply.5} parent=23 // pred_check_branch
          %116 = sbr.rel (%p114) target = $region28
        $region27: #{up_block_apply.5} parent=23 // pred_region
          %117 = dma.done %s110, 1024
        $region28: #{up_block_apply.5} parent=23 // pred_fallthru
          _
        %s118 = sand.u32 %s23, 1
        %s119 = scalar_lea.sflag [#allocation3], %s118
        %s120 = sand.u32 %s23, 1
        %s121 = smul.addr %s120, 64
        %s122 = scalar_lea.vmem [#allocation2], %s121
        %p123 = pneg %p36
        %p124 = pneg %p33
        %p125 = pneg %p62
        %p126 = pneg %p59
        %p127 = scmp.lt.s32.totalorder %s15, 1
        %s128 = scalar_select %p127, %s15, 1
        %s129 = smul.addr %s128, 16
        %s130 = smul.addr %s129, 8
        %s131 = scalar_lea.vmem %s1, %s130
        %p132 = scmp.lt.s32.totalorder %s15, 1
        %s133 = scalar_select %p132, %s15, 1
        %s134 = smul.addr %s133, 16
        %s135 = smul.addr %s134, 8
        %s136 = scalar_lea.vmem %s1, %s135
        %v137 = vld [vmem:[%s113] sm:$0xff]
        %v138 = vld [vmem:[%s113 + $0x8] sm:$0xff]
        %v139 = vld [vmem:[%s113 + $0x10] sm:$0xff]
        %v140 = vld [vmem:[%s113 + $0x18] sm:$0xff]
        %v141 = vld [vmem:[%s113 + $0x20] sm:$0xff]
        %v142 = vld [vmem:[%s113 + $0x28] sm:$0xff]
        %v143 = vld [vmem:[%s113 + $0x30] sm:$0xff]
        %v144 = vld [vmem:[%s113 + $0x38] sm:$0xff]
        %v145 = vmul.f32 %v137, 0.75
        %v146 = vmul.f32 %v138, 0.75
        %v147 = vmul.f32 %v139, 0.75
        %v148 = vmul.f32 %v140, 0.75
        %v149 = vmul.f32 %v141, 0.75
        %v150 = vmul.f32 %v142, 0.75
        %v151 = vmul.f32 %v143, 0.75
        %v152 = vmul.f32 %v144, 0.75
        %v153 = vmul.f32 %v137, 0.25
        %v154 = vmul.f32 %v138, 0.25
        %v155 = vmul.f32 %v139, 0.25
        %v156 = vmul.f32 %v140, 0.25
        %v157 = vmul.f32 %v141, 0.25
        %v158 = vmul.f32 %v142, 0.25
        %v159 = vmul.f32 %v143, 0.25
        %v160 = vadd.f32 %v145, %v153
        %v161 = vadd.f32 %v146, %v153
        %v162 = vadd.f32 %v147, %v154
        %v163 = vadd.f32 %v148, %v155
        %v164 = vadd.f32 %v149, %v156
        %v165 = vadd.f32 %v150, %v157
        %v166 = vadd.f32 %v151, %v158
        %v167 = vadd.f32 %v152, %v159
        %v168 = vmul.f32 %v144, 0.25
        %v169 = vadd.f32 %v145, %v154
        %v170 = vadd.f32 %v146, %v155
        %v171 = vadd.f32 %v147, %v156
        %v172 = vadd.f32 %v148, %v157
        %v173 = vadd.f32 %v149, %v158
        %v174 = vadd.f32 %v150, %v159
        %v175 = vadd.f32 %v151, %v168
        %v176 = vadd.f32 %v152, %v168
        %v185 = vrot.slane %v160, 7
        %v186 = vrot.slane %v161, 7
        %v187 = vrot.slane %v162, 7
        %v188 = vrot.slane %v163, 7
        %v189 = vrot.slane %v164, 7
        %v190 = vrot.slane %v165, 7
        %v191 = vrot.slane %v166, 7
        %v192 = vrot.slane %v167, 7
        %v201 = vrot.slane %v160, 6
        %v202 = vrot.slane %v161, 6
        %v203 = vrot.slane %v162, 6
        %v204 = vrot.slane %v163, 6
        %v205 = vrot.slane %v164, 6
        %v206 = vrot.slane %v165, 6
        %v207 = vrot.slane %v166, 6
        %v208 = vrot.slane %v167, 6
        %vm217 = vcmask 1040384
        %v218 = vsel %vm217, %v160, %v185
        %v219 = vsel %vm217, %v161, %v186
        %v220 = vsel %vm217, %v162, %v187
        %v221 = vsel %vm217, %v163, %v188
        %v222 = vsel %vm217, %v164, %v189
        %v223 = vsel %vm217, %v165, %v190
        %v224 = vsel %vm217, %v166, %v191
        %v225 = vsel %vm217, %v167, %v192
        %v226 = vsel %vm217, %v185, %v201
        %v227 = vsel %vm217, %v186, %v202
        %v228 = vsel %vm217, %v187, %v203
        %v229 = vsel %vm217, %v188, %v204
        %v230 = vsel %vm217, %v189, %v205
        %v231 = vsel %vm217, %v190, %v206
        %v232 = vsel %vm217, %v191, %v207
        %v233 = vsel %vm217, %v192, %v208
        %v234 = vmul.f32 %v160, 0.75
        %v235 = vmul.f32 %v161, 0.75
        %v236 = vmul.f32 %v162, 0.75
        %v237 = vmul.f32 %v163, 0.75
        %v238 = vmul.f32 %v164, 0.75
        %v239 = vmul.f32 %v165, 0.75
        %v240 = vmul.f32 %v166, 0.75
        %v241 = vmul.f32 %v167, 0.75
        %v242 = vmul.f32 %v218, 0.25
        %v243 = vmul.f32 %v219, 0.25
        %v244 = vmul.f32 %v220, 0.25
        %v245 = vmul.f32 %v221, 0.25
        %v246 = vmul.f32 %v222, 0.25
        %v247 = vmul.f32 %v223, 0.25
        %v248 = vmul.f32 %v224, 0.25
        %v249 = vmul.f32 %v225, 0.25
        %v250 = vadd.f32 %v234, %v242
        %v251 = vadd.f32 %v235, %v243
        %v252 = vadd.f32 %v236, %v244
        %v253 = vadd.f32 %v237, %v245
        %v254 = vadd.f32 %v238, %v246
        %v255 = vadd.f32 %v239, %v247
        %v256 = vadd.f32 %v240, %v248
        %v257 = vadd.f32 %v241, %v249
        %v258 = vmul.f32 %v226, 0.25
        %v259 = vmul.f32 %v227, 0.25
        %v260 = vmul.f32 %v228, 0.25
        %v261 = vmul.f32 %v229, 0.25
        %v262 = vmul.f32 %v230, 0.25
        %v263 = vmul.f32 %v231, 0.25
        %v264 = vmul.f32 %v232, 0.25
        %v265 = vmul.f32 %v233, 0.25
        %vm282 = vcmask 1045504
        %v283 = vrot.slane %v242, 2
        %v284 = vrot.slane %v258, 2
        %v285 = vsel %vm282, %v283, %v284
        %v286 = vrot.slane %v243, 2
        %v287 = vrot.slane %v259, 2
        %v288 = vsel %vm282, %v286, %v287
        %v289 = vrot.slane %v244, 2
        %v290 = vrot.slane %v260, 2
        %v291 = vsel %vm282, %v289, %v290
        %v292 = vrot.slane %v245, 2
        %v293 = vrot.slane %v261, 2
        %v294 = vsel %vm282, %v292, %v293
        %v295 = vrot.slane %v246, 2
        %v296 = vrot.slane %v262, 2
        %v297 = vsel %vm282, %v295, %v296
        %v298 = vrot.slane %v247, 2
        %v299 = vrot.slane %v263, 2
        %v300 = vsel %vm282, %v298, %v299
        %v301 = vrot.slane %v248, 2
        %v302 = vrot.slane %v264, 2
        %v303 = vsel %vm282, %v301, %v302
        %v304 = vrot.slane %v249, 2
        %v305 = vrot.slane %v265, 2
        %v306 = vsel %vm282, %v304, %v305
        %v315 = vadd.f32 %v234, %v285
        %v316 = vadd.f32 %v235, %v288
        %v317 = vadd.f32 %v236, %v291
        %v318 = vadd.f32 %v237, %v294
        %v319 = vadd.f32 %v238, %v297
        %v320 = vadd.f32 %v239, %v300
        %v321 = vadd.f32 %v240, %v303
        %v322 = vadd.f32 %v241, %v306
        %v331 = vrot.slane %v169, 7
        %v332 = vrot.slane %v170, 7
        %v333 = vrot.slane %v171, 7
        %v334 = vrot.slane %v172, 7
        %v335 = vrot.slane %v173, 7
        %v336 = vrot.slane %v174, 7
        %v337 = vrot.slane %v175, 7
        %v338 = vrot.slane %v176, 7
        %v347 = vrot.slane %v169, 6
        %v348 = vrot.slane %v170, 6
        %v349 = vrot.slane %v171, 6
        %v350 = vrot.slane %v172, 6
        %v351 = vrot.slane %v173, 6
        %v352 = vrot.slane %v174, 6
        %v353 = vrot.slane %v175, 6
        %v354 = vrot.slane %v176, 6
        %v363 = vsel %vm217, %v169, %v331
        %v364 = vsel %vm217, %v170, %v332
        %v365 = vsel %vm217, %v171, %v333
        %v366 = vsel %vm217, %v172, %v334
        %v367 = vsel %vm217, %v173, %v335
        %v368 = vsel %vm217, %v174, %v336
        %v369 = vsel %vm217, %v175, %v337
        %v370 = vsel %vm217, %v176, %v338
        %v371 = vsel %vm217, %v331, %v347
        %v372 = vsel %vm217, %v332, %v348
        %v373 = vsel %vm217, %v333, %v349
        %v374 = vsel %vm217, %v334, %v350
        %v375 = vsel %vm217, %v335, %v351
        %v376 = vsel %vm217, %v336, %v352
        %v377 = vsel %vm217, %v337, %v353
        %v378 = vsel %vm217, %v338, %v354
        %v379 = vmul.f32 %v169, 0.75
        %v380 = vmul.f32 %v170, 0.75
        %v381 = vmul.f32 %v171, 0.75
        %v382 = vmul.f32 %v172, 0.75
        %v383 = vmul.f32 %v173, 0.75
        %v384 = vmul.f32 %v174, 0.75
        %v385 = vmul.f32 %v175, 0.75
        %v386 = vmul.f32 %v176, 0.75
        %v387 = vmul.f32 %v363, 0.25
        %v388 = vmul.f32 %v364, 0.25
        %v389 = vmul.f32 %v365, 0.25
        %v390 = vmul.f32 %v366, 0.25
        %v391 = vmul.f32 %v367, 0.25
        %v392 = vmul.f32 %v368, 0.25
        %v393 = vmul.f32 %v369, 0.25
        %v394 = vmul.f32 %v370, 0.25
        %v395 = vadd.f32 %v379, %v387
        %v396 = vadd.f32 %v380, %v388
        %v397 = vadd.f32 %v381, %v389
        %v398 = vadd.f32 %v382, %v390
        %v399 = vadd.f32 %v383, %v391
        %v400 = vadd.f32 %v384, %v392
        %v401 = vadd.f32 %v385, %v393
        %v402 = vadd.f32 %v386, %v394
        %v403 = vmul.f32 %v371, 0.25
        %v404 = vmul.f32 %v372, 0.25
        %v405 = vmul.f32 %v373, 0.25
        %v406 = vmul.f32 %v374, 0.25
        %v407 = vmul.f32 %v375, 0.25
        %v408 = vmul.f32 %v376, 0.25
        %v409 = vmul.f32 %v377, 0.25
        %v410 = vmul.f32 %v378, 0.25
        %v427 = vrot.slane %v387, 2
        %v428 = vrot.slane %v403, 2
        %v429 = vsel %vm282, %v427, %v428
        %v430 = vrot.slane %v388, 2
        %v431 = vrot.slane %v404, 2
        %v432 = vsel %vm282, %v430, %v431
        %v433 = vrot.slane %v389, 2
        %v434 = vrot.slane %v405, 2
        %v435 = vsel %vm282, %v433, %v434
        %v436 = vrot.slane %v390, 2
        %v437 = vrot.slane %v406, 2
        %v438 = vsel %vm282, %v436, %v437
        %v439 = vrot.slane %v391, 2
        %v440 = vrot.slane %v407, 2
        %v441 = vsel %vm282, %v439, %v440
        %v442 = vrot.slane %v392, 2
        %v443 = vrot.slane %v408, 2
        %v444 = vsel %vm282, %v442, %v443
        %v445 = vrot.slane %v393, 2
        %v446 = vrot.slane %v409, 2
        %v447 = vsel %vm282, %v445, %v446
        %v448 = vrot.slane %v394, 2
        %v449 = vrot.slane %v410, 2
        %v450 = vsel %vm282, %v448, %v449
        %v459 = vadd.f32 %v379, %v429
        %v460 = vadd.f32 %v380, %v432
        %v461 = vadd.f32 %v381, %v435
        %v462 = vadd.f32 %v382, %v438
        %v463 = vadd.f32 %v383, %v441
        %v464 = vadd.f32 %v384, %v444
        %v465 = vadd.f32 %v385, %v447
        %v466 = vadd.f32 %v386, %v450
        %475 = vrot.lane.b32.xlu0 %v315, 16
        %v476 = vpop.permute.xlu0 %475
        %477 = vrot.lane.b32.xlu0 %v316, 16
        %v478 = vpop.permute.xlu0 %477
        %479 = vrot.lane.b32.xlu0 %v317, 16
        %v480 = vpop.permute.xlu0 %479
        %481 = vrot.lane.b32.xlu0 %v318, 16
        %v482 = vpop.permute.xlu0 %481
        %483 = vrot.lane.b32.xlu0 %v319, 16
        %v484 = vpop.permute.xlu0 %483
        %485 = vrot.lane.b32.xlu0 %v320, 16
        %v486 = vpop.permute.xlu0 %485
        %487 = vrot.lane.b32.xlu0 %v321, 16
        %v488 = vpop.permute.xlu0 %487
        %489 = vrot.lane.b32.xlu0 %v322, 16
        %v490 = vpop.permute.xlu0 %489
        %vm499 = vcmask 130048
        %v500 = vsel %vm499, %v250, %v476
        %v501 = vsel %vm499, %v251, %v478
        %v502 = vsel %vm499, %v252, %v480
        %v503 = vsel %vm499, %v253, %v482
        %v504 = vsel %vm499, %v254, %v484
        %v505 = vsel %vm499, %v255, %v486
        %v506 = vsel %vm499, %v256, %v488
        %v507 = vsel %vm499, %v257, %v490
        %516 = vrot.lane.b32.xlu0 %v459, 16
        %v517 = vpop.permute.xlu0 %516
        %518 = vrot.lane.b32.xlu0 %v460, 16
        %v519 = vpop.permute.xlu0 %518
        %520 = vrot.lane.b32.xlu0 %v461, 16
        %v521 = vpop.permute.xlu0 %520
        %522 = vrot.lane.b32.xlu0 %v462, 16
        %v523 = vpop.permute.xlu0 %522
        %524 = vrot.lane.b32.xlu0 %v463, 16
        %v525 = vpop.permute.xlu0 %524
        %526 = vrot.lane.b32.xlu0 %v464, 16
        %v527 = vpop.permute.xlu0 %526
        %528 = vrot.lane.b32.xlu0 %v465, 16
        %v529 = vpop.permute.xlu0 %528
        %530 = vrot.lane.b32.xlu0 %v466, 16
        %v531 = vpop.permute.xlu0 %530
        %v540 = vsel %vm499, %v395, %v517
        %v541 = vsel %vm499, %v396, %v519
        %v542 = vsel %vm499, %v397, %v521
        %v543 = vsel %vm499, %v398, %v523
        %v544 = vsel %vm499, %v399, %v525
        %v545 = vsel %vm499, %v400, %v527
        %v546 = vsel %vm499, %v401, %v529
        %v547 = vsel %vm499, %v402, %v531
        %vm548 = vcmask 261120
        %549 = vst.msk [vmem:[%s136] sm:$0xff] %vm548, %v500
        %550 = vst.msk [vmem:[%s136 + $0x8] sm:$0xff] %vm548, %v540
        %551 = vst.msk [vmem:[%s136 + $0x10] sm:$0xff] %vm548, %v501
        %552 = vst.msk [vmem:[%s136 + $0x18] sm:$0xff] %vm548, %v541
        %553 = vst.msk [vmem:[%s136 + $0x20] sm:$0xff] %vm548, %v502
        %554 = vst.msk [vmem:[%s136 + $0x28] sm:$0xff] %vm548, %v542
        %555 = vst.msk [vmem:[%s136 + $0x30] sm:$0xff] %vm548, %v503
        %556 = vst.msk [vmem:[%s136 + $0x38] sm:$0xff] %vm548, %v543
        %557 = vst.msk [vmem:[%s136 + $0x40] sm:$0xff] %vm548, %v504
        %558 = vst.msk [vmem:[%s136 + $0x48] sm:$0xff] %vm548, %v544
        %559 = vst.msk [vmem:[%s136 + $0x50] sm:$0xff] %vm548, %v505
        %560 = vst.msk [vmem:[%s136 + $0x58] sm:$0xff] %vm548, %v545
        %561 = vst.msk [vmem:[%s136 + $0x60] sm:$0xff] %vm548, %v506
        %562 = vst.msk [vmem:[%s136 + $0x68] sm:$0xff] %vm548, %v546
        %563 = vst.msk [vmem:[%s136 + $0x70] sm:$0xff] %vm548, %v507
        %564 = vst.msk [vmem:[%s136 + $0x78] sm:$0xff] %vm548, %v547
        %p565 = scmp.lt.s32.totalorder %s15, 1
        %s566 = scalar_select %p565, %s15, 1
        %s567 = smul.addr %s566, 16
        %s568 = smul.addr %s567, 8
        %s569 = scalar_lea.vmem %s1, %s568
        // Predicated region
        $region29: #{up_block_apply.5} parent=23 // pred_check
          %p570 = pneg %p59
        $region30: #{up_block_apply.5} parent=23 // pred_check_branch
          %572 = sbr.rel (%p570) target = $region32
        $region31: #{up_block_apply.5} parent=23 // pred_region
          _
        $region32: #{up_block_apply.5} parent=23 // pred_fallthru
          _
      $region24: #{up_block_apply.5} parent=5 // pred_fallthru
        _
      %p573 = scmp.le.s32.totalorder 2, %s10
      // Predicated region
      $region33: #{up_block_apply.5} parent=5 // pred_check
        %p574 = pneg %p573
      $region34: #{up_block_apply.5} parent=5 // pred_check_branch
        %576 = sbr.rel (%p574) target = $region36
      $region35: #{up_block_apply.5} parent=5 // pred_region
        %s577 = ssub.s32 %s10, 2
        // Predicated region
        $region37: #{up_block_apply.5} parent=35 // pred_check
          %p578 = pneg %p65
        $region38: #{up_block_apply.5} parent=35 // pred_check_branch
          %580 = sbr.rel (%p578) target = $region40
        $region39: #{up_block_apply.5} parent=35 // pred_region
          %p581 = scmp.lt.s32.totalorder %s16, 1
          %s582 = scalar_select %p581, %s16, 1
          %s583 = smul.addr %s582, 16
          %s584 = smul.addr %s583, 8
          %s585 = scalar_lea.vmem %s1, %s584
        $region40: #{up_block_apply.5} parent=35 // pred_fallthru
          _
      $region36: #{up_block_apply.5} parent=5 // pred_fallthru
        _
    $region6: #{up_block_apply.5} parent=1 // loop_footer
      %s14 = sadd.s32 1, %s10
    $region7: #{up_block_apply.5} parent=1 // loop_footer_branch
      %9 = sbr.rel target = $region3
    $region8: #{up_block_apply.5} parent=1 // loop_exit
      _
    %586 = vsyncpa [#allocation3], 1
    %s587 = scalar_lea.sflag [#allocation3], 1
    %588 = vsyncpa %s587, 1

// kernel: up_block_apply.7
$region0: #{up_block_apply.7}
  #allocation0 [shape = 'u32[]', space=smem, size = 0x4, offset = 0x4, fixed_abs, tag = 'smem constant byte address 0x4 - core index']
  #allocation1 [shape = 'u32[144,128]{1,0:T(1,128)}', space=vmem, size = 0x12000, scoped, tag = 'internal scratch']
  %s0 = inlined_call_operand.vmem [shape: f32[2,16,16,16], index: 0, kind: input, shape index: {}]
  %s1 = inlined_call_operand.vmem [shape: f32[2,16,16,8], index: 1, kind: input, shape index: {}]
  %s2 = inlined_call_operand.vmem [shape: f32[2,16], index: 2, kind: input, shape index: {}]
  %s3 = inlined_call_operand.vmem [shape: f32[2,8], index: 3, kind: input, shape index: {}]
  %s4 = inlined_call_operand.vmem [shape: bf16[16,16], index: 4, kind: input, shape index: {}]
  %s5 = inlined_call_operand.vmem [shape: bf16[8,16], index: 5, kind: input, shape index: {}]
  %s6 = inlined_call_operand.vmem [shape: bf16[216,16], index: 6, kind: input, shape index: {}]
  %s7 = inlined_call_operand.vmem [shape: bf16[144,16], index: 7, kind: input, shape index: {}]
  %s8 = inlined_call_operand.vmem [shape: f32[2,16,16,16], index: 8, kind: output, shape index: {}]
  %s9 = sld [smem:[#allocation0]]
  $region65: #{up_block_apply.7} parent=0
    _
  %s11 = ssub.s32 1, %s9
  %s12 = scalar_select 0, %s11, %s9
  loop: start=0, step=1, limit=4
  $region2: #{up_block_apply.7} parent=0 // loop_pre_header
    _
  $region3: #{up_block_apply.7} parent=0 // loop_header
    %s14 = sphi 0, %s18
    %p15 = scmp.ge.s32.totalorder %s14, 4
    %s24 = sphi 0, %s26
    %s27 = sphi 0, %s24
    %s28 = sphi 0, %s27
    %s44 = sphi 0, %s28
    %s50 = sphi 0, %s52
    %s53 = sphi 0, %s50
    %s54 = sphi 0, %s53
    %s70 = sphi 0, %s54
    %s74 = sphi 0, %s74
    %s76 = sphi 0, %s74
    %s77 = sphi 0, %s76
    %s91 = sphi 0, %s77
    %s95 = sphi 0, %s95
    %s97 = sphi 0, %s95
    %s98 = sphi 0, %s97
    %s112 = sphi 0, %s98
    %s116 = sphi 0, %s116
    %s118 = sphi 0, %s116
    %s119 = sphi 0, %s118
    %s133 = sphi 0, %s119
    %s137 = sphi 0, %s137
    %s139 = sphi 0, %s137
    %s140 = sphi 0, %s139
    %s154 = sphi 0, %s140
    %s158 = sphi 0, %s158
    %s160 = sphi 0, %s158
    %s161 = sphi 0, %s160
    %s175 = sphi 0, %s161
    %s179 = sphi 0, %s179
    %s181 = sphi 0, %s179
    %s182 = sphi 0, %s181
    %s196 = sphi 0, %s182
    %s202 = sphi 0, %s204
    %s205 = sphi 0, %s202
    %s206 = sphi 0, %s205
    %s222 = sphi 0, %s206
  $region4: #{up_block_apply.7} parent=0 // loop_header_branch
    %17 = sbr.rel (%p15) target = $region8
  $region5: #{up_block_apply.7} parent=0 // loop_body
    %s19 = ssub.s32 %s14, 1
    %s20 = ssub.s32 %s14, 2
    %s21 = sadd.s32 %s14, 1
    %s22 = ssub.s32 %s14, %s21
    %p23 = scmp.eq.s32.totalorder %s22, 0
    %s25 = sadd.s32 %s24, 1
    %s26 = scalar_select %p23, %s24, %s25
    %p29 = pneg %p23
    %p30 = scmp.eq.s32.totalorder %s14, 1
    %p31 = por %p29, %p30
    %p32 = scmp.ne.s32.totalorder %s24, %s27
    %p33 = scmp.eq.s32.totalorder %s14, 0
    %p34 = por %p32, %p33
    %p35 = scmp.ne.s32.totalorder %s24, %s27
    %p36 = scmp.eq.s32.totalorder %s19, 1
    %p37 = por %p35, %p36
    %p38 = scmp.ne.s32.totalorder %s27, %s28
    %p39 = scmp.eq.s32.totalorder %s19, 0
    %p40 = por %p38, %p39
    %p41 = scmp.ne.s32.totalorder %s27, %s28
    %p42 = scmp.eq.s32.totalorder %s20, 1
    %p43 = por %p41, %p42
    %p45 = scmp.ne.s32.totalorder %s28, %s44
    %p46 = scmp.eq.s32.totalorder %s20, 0
    %p47 = por %p45, %p46
    %s48 = ssub.s32 %s14, %s21
    %p49 = scmp.eq.s32.totalorder %s48, 0
    %s51 = sadd.s32 %s50, 1
    %s52 = scalar_select %p49, %s50, %s51
    %p55 = pneg %p49
    %p56 = scmp.eq.s32.totalorder %s14, 1
    %p57 = por %p55, %p56
    %p58 = scmp.ne.s32.totalorder %s50, %s53
    %p59 = scmp.eq.s32.totalorder %s14, 0
    %p60 = por %p58, %p59
    %p61 = scmp.ne.s32.totalorder %s50, %s53
    %p62 = scmp.eq.s32.totalorder %s19, 1
    %p63 = por %p61, %p62
    %p64 = scmp.ne.s32.totalorder %s53, %s54
    %p65 = scmp.eq.s32.totalorder %s19, 0
    %p66 = por %p64, %p65
    %p67 = scmp.ne.s32.totalorder %s53, %s54
    %p68 = scmp.eq.s32.totalorder %s20, 1
    %p69 = por %p67, %p68
    %p71 = scmp.ne.s32.totalorder %s54, %s70
    %p72 = scmp.eq.s32.totalorder %s20, 0
    %p73 = por %p71, %p72
    %s75 = sadd.s32 %s74, 1
    %p78 = scmp.eq.s32.totalorder %s14, 1
    %p79 = scmp.ne.s32.totalorder %s74, %s76
    %p80 = scmp.eq.s32.totalorder %s14, 0
    %p81 = por %p79, %p80
    %p82 = scmp.ne.s32.totalorder %s74, %s76
    %p83 = scmp.eq.s32.totalorder %s19, 1
    %p84 = por %p82, %p83
    %p85 = scmp.ne.s32.totalorder %s76, %s77
    %p86 = scmp.eq.s32.totalorder %s19, 0
    %p87 = por %p85, %p86
    %p88 = scmp.ne.s32.totalorder %s76, %s77
    %p89 = scmp.eq.s32.totalorder %s20, 1
    %p90 = por %p88, %p89
    %p92 = scmp.ne.s32.totalorder %s77, %s91
    %p93 = scmp.eq.s32.totalorder %s20, 0
    %p94 = por %p92, %p93
    %s96 = sadd.s32 %s95, 1
    %p99 = scmp.eq.s32.totalorder %s14, 1
    %p100 = scmp.ne.s32.totalorder %s95, %s97
    %p101 = scmp.eq.s32.totalorder %s14, 0
    %p102 = por %p100, %p101
    %p103 = scmp.ne.s32.totalorder %s95, %s97
    %p104 = scmp.eq.s32.totalorder %s19, 1
    %p105 = por %p103, %p104
    %p106 = scmp.ne.s32.totalorder %s97, %s98
    %p107 = scmp.eq.s32.totalorder %s19, 0
    %p108 = por %p106, %p107
    %p109 = scmp.ne.s32.totalorder %s97, %s98
    %p110 = scmp.eq.s32.totalorder %s20, 1
    %p111 = por %p109, %p110
    %p113 = scmp.ne.s32.totalorder %s98, %s112
    %p114 = scmp.eq.s32.totalorder %s20, 0
    %p115 = por %p113, %p114
    %s117 = sadd.s32 %s116, 1
    %p120 = scmp.eq.s32.totalorder %s14, 1
    %p121 = scmp.ne.s32.totalorder %s116, %s118
    %p122 = scmp.eq.s32.totalorder %s14, 0
    %p123 = por %p121, %p122
    %p124 = scmp.ne.s32.totalorder %s116, %s118
    %p125 = scmp.eq.s32.totalorder %s19, 1
    %p126 = por %p124, %p125
    %p127 = scmp.ne.s32.totalorder %s118, %s119
    %p128 = scmp.eq.s32.totalorder %s19, 0
    %p129 = por %p127, %p128
    %p130 = scmp.ne.s32.totalorder %s118, %s119
    %p131 = scmp.eq.s32.totalorder %s20, 1
    %p132 = por %p130, %p131
    %p134 = scmp.ne.s32.totalorder %s119, %s133
    %p135 = scmp.eq.s32.totalorder %s20, 0
    %p136 = por %p134, %p135
    %s138 = sadd.s32 %s137, 1
    %p141 = scmp.eq.s32.totalorder %s14, 1
    %p142 = scmp.ne.s32.totalorder %s137, %s139
    %p143 = scmp.eq.s32.totalorder %s14, 0
    %p144 = por %p142, %p143
    %p145 = scmp.ne.s32.totalorder %s137, %s139
    %p146 = scmp.eq.s32.totalorder %s19, 1
    %p147 = por %p145, %p146
    %p148 = scmp.ne.s32.totalorder %s139, %s140
    %p149 = scmp.eq.s32.totalorder %s19, 0
    %p150 = por %p148, %p149
    %p151 = scmp.ne.s32.totalorder %s139, %s140
    %p152 = scmp.eq.s32.totalorder %s20, 1
    %p153 = por %p151, %p152
    %p155 = scmp.ne.s32.totalorder %s140, %s154
    %p156 = scmp.eq.s32.totalorder %s20, 0
    %p157 = por %p155, %p156
    %s159 = sadd.s32 %s158, 1
    %p162 = scmp.eq.s32.totalorder %s14, 1
    %p163 = scmp.ne.s32.totalorder %s158, %s160
    %p164 = scmp.eq.s32.totalorder %s14, 0
    %p165 = por %p163, %p164
    %p166 = scmp.ne.s32.totalorder %s158, %s160
    %p167 = scmp.eq.s32.totalorder %s19, 1
    %p168 = por %p166, %p167
    %p169 = scmp.ne.s32.totalorder %s160, %s161
    %p170 = scmp.eq.s32.totalorder %s19, 0
    %p171 = por %p169, %p170
    %p172 = scmp.ne.s32.totalorder %s160, %s161
    %p173 = scmp.eq.s32.totalorder %s20, 1
    %p174 = por %p172, %p173
    %p176 = scmp.ne.s32.totalorder %s161, %s175
    %p177 = scmp.eq.s32.totalorder %s20, 0
    %p178 = por %p176, %p177
    %s180 = sadd.s32 %s179, 1
    %p183 = scmp.eq.s32.totalorder %s14, 1
    %p184 = scmp.ne.s32.totalorder %s179, %s181
    %p185 = scmp.eq.s32.totalorder %s14, 0
    %p186 = por %p184, %p185
    %p187 = scmp.ne.s32.totalorder %s179, %s181
    %p188 = scmp.eq.s32.totalorder %s19, 1
    %p189 = por %p187, %p188
    %p190 = scmp.ne.s32.totalorder %s181, %s182
    %p191 = scmp.eq.s32.totalorder %s19, 0
    %p192 = por %p190, %p191
    %p193 = scmp.ne.s32.totalorder %s181, %s182
    %p194 = scmp.eq.s32.totalorder %s20, 1
    %p195 = por %p193, %p194
    %p197 = scmp.ne.s32.totalorder %s182, %s196
    %p198 = scmp.eq.s32.totalorder %s20, 0
    %p199 = por %p197, %p198
    %s200 = ssub.s32 %s14, %s21
    %p201 = scmp.eq.s32.totalorder %s200, 0
    %s203 = sadd.s32 %s202, 1
    %s204 = scalar_select %p201, %s202, %s203
    %p207 = pneg %p201
    %p208 = scmp.eq.s32.totalorder %s14, 1
    %p209 = por %p207, %p208
    %p210 = scmp.ne.s32.totalorder %s202, %s205
    %p211 = scmp.eq.s32.totalorder %s14, 0
    %p212 = por %p210, %p211
    %p213 = scmp.ne.s32.totalorder %s202, %s205
    %p214 = scmp.eq.s32.totalorder %s19, 1
    %p215 = por %p213, %p214
    %p216 = scmp.ne.s32.totalorder %s205, %s206
    %p217 = scmp.eq.s32.totalorder %s19, 0
    %p218 = por %p216, %p217
    %p219 = scmp.ne.s32.totalorder %s205, %s206
    %p220 = scmp.eq.s32.totalorder %s20, 1
    %p221 = por %p219, %p220
    %p223 = scmp.ne.s32.totalorder %s206, %s222
    %p224 = scmp.eq.s32.totalorder %s20, 0
    %p225 = por %p223, %p224
    %p226 = scmp.le.s32.totalorder 1, %s14
    %p227 = scmp.lt.s32.totalorder %s14, 3
    %p228 = pnand %p226, %p227
    %p229 = pneg %p228
    // Predicated region
    $region9: #{up_block_apply.7} parent=5 // pred_check
      _
    $region10: #{up_block_apply.7} parent=5 // pred_check_branch
      %231 = sbr.rel (%p228) target = $region12
    $region11: #{up_block_apply.7} parent=5 // pred_region
      %s232 = ssub.s32 %s14, 1
      // Predicated region
      $region13: #{up_block_apply.7} parent=11 // pred_check
        %p233 = pneg %p87
      $region14: #{up_block_apply.7} parent=11 // pred_check_branch
        %235 = sbr.rel (%p233) target = $region16
      $region15: #{up_block_apply.7} parent=11 // pred_region
        _
      $region16: #{up_block_apply.7} parent=11 // pred_fallthru
        _
      // Predicated region
      $region17: #{up_block_apply.7} parent=11 // pred_check
        %p236 = pneg %p108
      $region18: #{up_block_apply.7} parent=11 // pred_check_branch
        %238 = sbr.rel (%p236) target = $region20
      $region19: #{up_block_apply.7} parent=11 // pred_region
        _
      $region20: #{up_block_apply.7} parent=11 // pred_fallthru
        _
      // Predicated region
      $region21: #{up_block_apply.7} parent=11 // pred_check
        %p239 = pneg %p129
      $region22: #{up_block_apply.7} parent=11 // pred_check_branch
        %241 = sbr.rel (%p239) target = $region24
      $region23: #{up_block_apply.7} parent=11 // pred_region
        _
      $region24: #{up_block_apply.7} parent=11 // pred_fallthru
        _
      // Predicated region
      $region25: #{up_block_apply.7} parent=11 // pred_check
        %p242 = pneg %p150
      $region26: #{up_block_apply.7} parent=11 // pred_check_branch
        %244 = sbr.rel (%p242) target = $region28
      $region27: #{up_block_apply.7} parent=11 // pred_region
        _
      $region28: #{up_block_apply.7} parent=11 // pred_fallthru
        _
      // Predicated region
      $region29: #{up_block_apply.7} parent=11 // pred_check
        %p245 = pneg %p171
      $region30: #{up_block_apply.7} parent=11 // pred_check_branch
        %247 = sbr.rel (%p245) target = $region32
      $region31: #{up_block_apply.7} parent=11 // pred_region
        _
      $region32: #{up_block_apply.7} parent=11 // pred_fallthru
        _
      // Predicated region
      $region33: #{up_block_apply.7} parent=11 // pred_check
        %p248 = pneg %p192
      $region34: #{up_block_apply.7} parent=11 // pred_check_branch
        %250 = sbr.rel (%p248) target = $region36
      $region35: #{up_block_apply.7} parent=11 // pred_region
        _
      $region36: #{up_block_apply.7} parent=11 // pred_fallthru
        _
    $region12: #{up_block_apply.7} parent=5 // pred_fallthru
      _
    %p251 = scmp.lt.s32.totalorder %s14, 2
    // Predicated region
    $region37: #{up_block_apply.7} parent=5 // pred_check
      %p252 = pneg %p251
    $region38: #{up_block_apply.7} parent=5 // pred_check_branch
      %254 = sbr.rel (%p252) target = $region40
    $region39: #{up_block_apply.7} parent=5 // pred_region
      // Predicated region
      $region41: #{up_block_apply.7} parent=39 // pred_check
        %p255 = pneg %p34
      $region42: #{up_block_apply.7} parent=39 // pred_check_branch
        %257 = sbr.rel (%p255) target = $region44
      $region43: #{up_block_apply.7} parent=39 // pred_region
        %p258 = scmp.lt.s32.totalorder %s14, 1
        %s259 = scalar_select %p258, %s14, 1
        %s260 = smul.addr %s259, 32
        %s261 = smul.addr %s260, 8
        %s262 = scalar_lea.vmem %s0, %s261
      $region44: #{up_block_apply.7} parent=39 // pred_fallthru
        _
      // Predicated region
      $region45: #{up_block_apply.7} parent=39 // pred_check
        %p263 = pneg %p60
      $region46: #{up_block_apply.7} parent=39 // pred_check_branch
        %265 = sbr.rel (%p263) target = $region48
      $region47: #{up_block_apply.7} parent=39 // pred_region
        %p266 = scmp.lt.s32.totalorder %s14, 1
        %s267 = scalar_select %p266, %s14, 1
        %s268 = smul.addr %s267, 32
        %s269 = smul.addr %s268, 8
        %s270 = scalar_lea.vmem %s1, %s269
      $region48: #{up_block_apply.7} parent=39 // pred_fallthru
        _
    $region40: #{up_block_apply.7} parent=5 // pred_fallthru
      _
    %p271 = scmp.le.s32.totalorder 1, %s14
    %p272 = scmp.lt.s32.totalorder %s14, 3
    %p273 = pnand %p271, %p272
    %p274 = pneg %p273
    // Predicated region
    $region49: #{up_block_apply.7} parent=5 // pred_check
      _
    $region50: #{up_block_apply.7} parent=5 // pred_check_branch
      %276 = sbr.rel (%p273) target = $region52
    $region51: #{up_block_apply.7} parent=5 // pred_region
      %s277 = ssub.s32 %s14, 1
      %p278 = scmp.lt.s32.totalorder %s19, 1
      %s279 = scalar_select %p278, %s19, 1
      %s280 = smul.addr %s279, 32
      %s281 = smul.addr %s280, 8
      %s282 = scalar_lea.vmem %s0, %s281
      %p283 = pneg %p40
      %p284 = pneg %p37
      %p285 = scmp.lt.s32.totalorder %s19, 1
      %s286 = scalar_select %p285, %s19, 1
      %s287 = smul.addr %s286, 32
      %s288 = smul.addr %s287, 8
      %s289 = scalar_lea.vmem %s1, %s288
      %p290 = pneg %p66
      %p291 = pneg %p63
      %p292 = pneg %p87
      %p293 = pneg %p84
      %p294 = pneg %p108
      %p295 = pneg %p105
      %p296 = pneg %p129
      %p297 = pneg %p126
      %p298 = pneg %p150
      %p299 = pneg %p147
      %p300 = pneg %p171
      %p301 = pneg %p168
      %p302 = pneg %p192
      %p303 = pneg %p189
      %p304 = pneg %p218
      %p305 = pneg %p215
      %p306 = scmp.lt.s32.totalorder %s19, 1
      %s307 = scalar_select %p306, %s19, 1
      %s308 = smul.addr %s307, 32
      %s309 = smul.addr %s308, 8
      %s310 = scalar_lea.vmem %s8, %s309
      %p311 = scmp.lt.s32.totalorder %s19, 1
      %s312 = scalar_select %p311, %s19, 1
      %s313 = smul.addr %s312, 32
      %s314 = smul.addr %s313, 8
      %s315 = scalar_lea.vmem %s0, %s314
      %p316 = scmp.lt.s32.totalorder %s19, 1
      %s317 = scalar_select %p316, %s19, 1
      %s318 = smul.addr %s317, 32
      %s319 = smul.addr %s318, 8
      %s320 = scalar_lea.vmem %s1, %s319
      %p321 = scmp.lt.s32.totalorder %s19, 1
      %s322 = scalar_select %p321, %s19, 1
      %s323 = smul.addr %s322, 32
      %s324 = smul.addr %s323, 8
      %s325 = scalar_lea.vmem %s8, %s324
      %v327 = vld [vmem:[%s315] sm:$0xff]
      %v328 = vld [vmem:[%s315 + $0x8] sm:$0xff]
      %v329 = vld [vmem:[%s315 + $0x10] sm:$0xff]
      %v330 = vld [vmem:[%s315 + $0x18] sm:$0xff]
      %v331 = vld [vmem:[%s315 + $0x20] sm:$0xff]
      %v332 = vld [vmem:[%s315 + $0x28] sm:$0xff]
      %v333 = vld [vmem:[%s315 + $0x30] sm:$0xff]
      %v334 = vld [vmem:[%s315 + $0x38] sm:$0xff]
      %v335 = vld [vmem:[%s315 + $0x40] sm:$0xff]
      %v336 = vld [vmem:[%s315 + $0x48] sm:$0xff]
      %v337 = vld [vmem:[%s315 + $0x50] sm:$0xff]
      %v338 = vld [vmem:[%s315 + $0x58] sm:$0xff]
      %v339 = vld [vmem:[%s315 + $0x60] sm:$0xff]
      %v340 = vld [vmem:[%s315 + $0x68] sm:$0xff]
      %v341 = vld [vmem:[%s315 + $0x70] sm:$0xff]
      %v342 = vld [vmem:[%s315 + $0x78] sm:$0xff]
      %v343 = vld [vmem:[%s315 + $0x80] sm:$0xff]
      %v344 = vld [vmem:[%s315 + $0x88] sm:$0xff]
      %v345 = vld [vmem:[%s315 + $0x90] sm:$0xff]
      %v346 = vld [vmem:[%s315 + $0x98] sm:$0xff]
      %v347 = vld [vmem:[%s315 + $0xa0] sm:$0xff]
      %v348 = vld [vmem:[%s315 + $0xa8] sm:$0xff]
      %v349 = vld [vmem:[%s315 + $0xb0] sm:$0xff]
      %v350 = vld [vmem:[%s315 + $0xb8] sm:$0xff]
      %v351 = vld [vmem:[%s315 + $0xc0] sm:$0xff]
      %v352 = vld [vmem:[%s315 + $0xc8] sm:$0xff]
      %v353 = vld [vmem:[%s315 + $0xd0] sm:$0xff]
      %v354 = vld [vmem:[%s315 + $0xd8] sm:$0xff]
      %v355 = vld [vmem:[%s315 + $0xe0] sm:$0xff]
      %v356 = vld [vmem:[%s315 + $0xe8] sm:$0xff]
      %v357 = vld [vmem:[%s315 + $0xf0] sm:$0xff]
      %v358 = vld [vmem:[%s315 + $0xf8] sm:$0xff]
      %v359 = vld [vmem:[%s320] sm:$0xff]
      %v360 = vld [vmem:[%s320 + $0x8] sm:$0xff]
      %v361 = vld [vmem:[%s320 + $0x10] sm:$0xff]
      %v362 = vld [vmem:[%s320 + $0x18] sm:$0xff]
      %v363 = vld [vmem:[%s320 + $0x20] sm:$0xff]
      %v364 = vld [vmem:[%s320 + $0x28] sm:$0xff]
      %v365 = vld [vmem:[%s320 + $0x30] sm:$0xff]
      %v366 = vld [vmem:[%s320 + $0x38] sm:$0xff]
      %v367 = vld [vmem:[%s320 + $0x40] sm:$0xff]
      %v368 = vld [vmem:[%s320 + $0x48] sm:$0xff]
      %v369 = vld [vmem:[%s320 + $0x50] sm:$0xff]
      %v370 = vld [vmem:[%s320 + $0x58] sm:$0xff]
      %v371 = vld [vmem:[%s320 + $0x60] sm:$0xff]
      %v372 = vld [vmem:[%s320 + $0x68] sm:$0xff]
      %v373 = vld [vmem:[%s320 + $0x70] sm:$0xff]
      %v374 = vld [vmem:[%s320 + $0x78] sm:$0xff]
      %v375 = vld [vmem:[%s320 + $0x80] sm:$0xff]
      %v376 = vld [vmem:[%s320 + $0x88] sm:$0xff]
      %v377 = vld [vmem:[%s320 + $0x90] sm:$0xff]
      %v378 = vld [vmem:[%s320 + $0x98] sm:$0xff]
      %v379 = vld [vmem:[%s320 + $0xa0] sm:$0xff]
      %v380 = vld [vmem:[%s320 + $0xa8] sm:$0xff]
      %v381 = vld [vmem:[%s320 + $0xb0] sm:$0xff]
      %v382 = vld [vmem:[%s320 + $0xb8] sm:$0xff]
      %v383 = vld [vmem:[%s320 + $0xc0] sm:$0xff]
      %v384 = vld [vmem:[%s320 + $0xc8] sm:$0xff]
      %v385 = vld [vmem:[%s320 + $0xd0] sm:$0xff]
      %v386 = vld [vmem:[%s320 + $0xd8] sm:$0xff]
      %v387 = vld [vmem:[%s320 + $0xe0] sm:$0xff]
      %v388 = vld [vmem:[%s320 + $0xe8] sm:$0xff]
      %v389 = vld [vmem:[%s320 + $0xf0] sm:$0xff]
      %v390 = vld [vmem:[%s320 + $0xf8] sm:$0xff]
      %v391 = vpack.c.bf16 %v328, %v327
      %v392 = vpack.c.bf16 %v330, %v329
      %v393 = vpack.c.bf16 %v332, %v331
      %v394 = vpack.c.bf16 %v334, %v333
      %v395 = vpack.c.bf16 %v336, %v335
      %v396 = vpack.c.bf16 %v338, %v337
      %v397 = vpack.c.bf16 %v340, %v339
      %v398 = vpack.c.bf16 %v342, %v341
      %v399 = vpack.c.bf16 %v344, %v343
      %v400 = vpack.c.bf16 %v346, %v345
      %v401 = vpack.c.bf16 %v348, %v347
      %v402 = vpack.c.bf16 %v350, %v349
      %v403 = vpack.c.bf16 %v352, %v351
      %v404 = vpack.c.bf16 %v354, %v353
      %v405 = vpack.c.bf16 %v356, %v355
      %v406 = vpack.c.bf16 %v358, %v357
      %v407 = vld [vmem:[%s4] sm:$0xf]
      %v408 = vld [vmem:[%s4 + $0x4] sm:$0xf]
      %v409 = vpack.c.bf16 %v360, %v359
      %v410 = vpack.c.bf16 %v362, %v361
      %v411 = vpack.c.bf16 %v364, %v363
      %v412 = vpack.c.bf16 %v366, %v365
      %v413 = vpack.c.bf16 %v368, %v367
      %v414 = vpack.c.bf16 %v370, %v369
      %v415 = vpack.c.bf16 %v372, %v371
      %v416 = vpack.c.bf16 %v374, %v373
      %v417 = vpack.c.bf16 %v376, %v375
      %v418 = vpack.c.bf16 %v378, %v377
      %v419 = vpack.c.bf16 %v380, %v379
      %v420 = vpack.c.bf16 %v382, %v381
      %v421 = vpack.c.bf16 %v384, %v383
      %v422 = vpack.c.bf16 %v386, %v385
      %v423 = vpack.c.bf16 %v388, %v387
      %v424 = vpack.c.bf16 %v390, %v389
      %v425 = vld [vmem:[%s5] sm:$0xf]
      %vm426 = vcmask 64512
      %v428 = vsel %vm426, %v409, 0
      %v431 = vsel %vm426, %v410, 0
      %v434 = vsel %vm426, %v411, 0
      %v437 = vsel %vm426, %v412, 0
      %v440 = vsel %vm426, %v413, 0
      %v443 = vsel %vm426, %v414, 0
      %v446 = vsel %vm426, %v415, 0
      %v449 = vsel %vm426, %v416, 0
      %v452 = vsel %vm426, %v417, 0
      %v455 = vsel %vm426, %v418, 0
      %v458 = vsel %vm426, %v419, 0
      %v461 = vsel %vm426, %v420, 0
      %v464 = vsel %vm426, %v421, 0
      %v467 = vsel %vm426, %v422, 0
      %v470 = vsel %vm426, %v423, 0
      %v473 = vsel %vm426, %v424, 0
      %vm475 = vcmask 1043456
      %v477 = vsel %vm475, %v425, 0
      %479 = vmatprep.subr.bf16.mxu0 0
      %480 = vmatpush1.bf16.msra.mxu0 0
      %481 = vmatprep.subr.bf16.mxu0 0
      %482 = vmatpush1.bf16.msra.mxu0 0
      %483 = vmatprep.subr.bf16.mxu0 0
      %484 = vmatpush1.bf16.msra.mxu0 0
      %485 = vmatprep.subr.bf16.mxu0 0
      %486 = vmatpush1.bf16.msra.mxu0 0
      %487 = vmatprep.subr.bf16.mxu0 0
      %488 = vmatpush1.bf16.msra.mxu0 0
      %489 = vmatprep.subr.bf16.mxu0 0
      %490 = vmatpush1.bf16.msra.mxu0 0
      %491 = vmatprep.subr.bf16.mxu0 0
      %492 = vmatpush1.bf16.msra.mxu0 0
      %493 = vmatprep.subr.bf16.mxu0 0
      %494 = vmatpush1.bf16.msra.mxu0 %v477
      %495 = vmatprep.subr.bf16.mxu0 0
      %496 = vmatpush2.bf16.msra.mxu0 0
      %497 = vmatprep.subr.bf16.mxu0 0
      %498 = vmatpush2.bf16.msra.mxu0 0
      %499 = vmatprep.subr.bf16.mxu0 0
      %500 = vmatpush2.bf16.msra.mxu0 0
      %501 = vmatprep.subr.bf16.mxu0 0
      %502 = vmatpush2.bf16.msra.mxu0 0
      %503 = vmatprep.subr.bf16.mxu0 0
      %504 = vmatpush2.bf16.msra.mxu0 0
      %505 = vmatprep.subr.bf16.mxu0 0
      %506 = vmatpush2.bf16.msra.mxu0 0
      %507 = vmatprep.subr.bf16.mxu0 0
      %508 = vmatpush2.bf16.msra.mxu0 0
      %509 = vmatprep.subr.bf16.mxu0 0
      %510 = vmatpush2.bf16.msra.mxu0 0
      %511 = vmatprep.mubr.bf16.mxu0 0
      %512 = vmatmul.mubr.bf16.gmra.mxu0 %v428
      %v513 = vpop.f32.mrf.mxu0
      %v514 = vadd.f32 0.0, %v513
      %v515 = vpop.f32.mrf.mxu0
      %v516 = vpop.f32.mrf.mxu0
      %v517 = vadd.f32 0.0, %v516
      %v518 = vpop.f32.mrf.mxu0
      %519 = vmatprep.mubr.bf16.mxu0 0
      %520 = vmatmul.mubr.bf16.gmra.mxu0 %v431
      %v521 = vpop.f32.mrf.mxu0
      %v522 = vadd.f32 0.0, %v521
      %v523 = vpop.f32.mrf.mxu0
      %v524 = vpop.f32.mrf.mxu0
      %v525 = vadd.f32 0.0, %v524
      %v526 = vpop.f32.mrf.mxu0
      %527 = vmatprep.mubr.bf16.mxu0 0
      %528 = vmatmul.mubr.bf16.gmra.mxu0 %v434
      %v529 = vpop.f32.mrf.mxu0
      %v530 = vadd.f32 0.0, %v529
      %v531 = vpop.f32.mrf.mxu0
      %v532 = vpop.f32.mrf.mxu0
      %v533 = vadd.f32 0.0, %v532
      %v534 = vpop.f32.mrf.mxu0
      %535 = vmatprep.mubr.bf16.mxu0 0
      %536 = vmatmul.mubr.bf16.gmra.mxu0 %v437
      %v537 = vpop.f32.mrf.mxu0
      %v538 = vadd.f32 0.0, %v537
      %v539 = vpop.f32.mrf.mxu0
      %v540 = vpop.f32.mrf.mxu0
      %v541 = vadd.f32 0.0, %v540
      %v542 = vpop.f32.mrf.mxu0
      %543 = vmatprep.mubr.bf16.mxu0 0
      %544 = vmatmul.mubr.bf16.gmra.mxu0 %v440
      %v545 = vpop.f32.mrf.mxu0
      %v546 = vadd.f32 0.0, %v545
      %v547 = vpop.f32.mrf.mxu0
      %v548 = vpop.f32.mrf.mxu0
      %v549 = vadd.f32 0.0, %v548
      %v550 = vpop.f32.mrf.mxu0
      %551 = vmatprep.mubr.bf16.mxu0 0
      %552 = vmatmul.mubr.bf16.gmra.mxu0 %v443
      %v553 = vpop.f32.mrf.mxu0
      %v554 = vadd.f32 0.0, %v553
      %v555 = vpop.f32.mrf.mxu0
      %v556 = vpop.f32.mrf.mxu0
      %v557 = vadd.f32 0.0, %v556
      %v558 = vpop.f32.mrf.mxu0
      %559 = vmatprep.mubr.bf16.mxu0 0
      %560 = vmatmul.mubr.bf16.gmra.mxu0 %v446
      %v561 = vpop.f32.mrf.mxu0
      %v562 = vadd.f32 0.0, %v561
      %v563 = vpop.f32.mrf.mxu0
      %v564 = vpop.f32.mrf.mxu0
      %v565 = vadd.f32 0.0, %v564
      %v566 = vpop.f32.mrf.mxu0
      %567 = vmatprep.mubr.bf16.mxu0 0
      %568 = vmatmul.mubr.bf16.gmra.mxu0 %v449
      %v569 = vpop.f32.mrf.mxu0
      %v570 = vadd.f32 0.0, %v569
      %v571 = vpop.f32.mrf.mxu0
      %v572 = vpop.f32.mrf.mxu0
      %v573 = vadd.f32 0.0, %v572
      %v574 = vpop.f32.mrf.mxu0
      %575 = vmatprep.mubr.bf16.mxu0 0
      %576 = vmatmul.mubr.bf16.gmra.mxu0 %v452
      %v577 = vpop.f32.mrf.mxu0
      %v578 = vadd.f32 0.0, %v577
      %v579 = vpop.f32.mrf.mxu0
      %v580 = vpop.f32.mrf.mxu0
      %v581 = vadd.f32 0.0, %v580
      %v582 = vpop.f32.mrf.mxu0
      %583 = vmatprep.mubr.bf16.mxu0 0
      %584 = vmatmul.mubr.bf16.gmra.mxu0 %v455
      %v585 = vpop.f32.mrf.mxu0
      %v586 = vadd.f32 0.0, %v585
      %v587 = vpop.f32.mrf.mxu0
      %v588 = vpop.f32.mrf.mxu0
      %v589 = vadd.f32 0.0, %v588
      %v590 = vpop.f32.mrf.mxu0
      %591 = vmatprep.mubr.bf16.mxu0 0
      %592 = vmatmul.mubr.bf16.gmra.mxu0 %v458
      %v593 = vpop.f32.mrf.mxu0
      %v594 = vadd.f32 0.0, %v593
      %v595 = vpop.f32.mrf.mxu0
      %v596 = vpop.f32.mrf.mxu0
      %v597 = vadd.f32 0.0, %v596
      %v598 = vpop.f32.mrf.mxu0
      %599 = vmatprep.mubr.bf16.mxu0 0
      %600 = vmatmul.mubr.bf16.gmra.mxu0 %v461
      %v601 = vpop.f32.mrf.mxu0
      %v602 = vadd.f32 0.0, %v601
      %v603 = vpop.f32.mrf.mxu0
      %v604 = vpop.f32.mrf.mxu0
      %v605 = vadd.f32 0.0, %v604
      %v606 = vpop.f32.mrf.mxu0
      %607 = vmatprep.mubr.bf16.mxu0 0
      %608 = vmatmul.mubr.bf16.gmra.mxu0 %v464
      %v609 = vpop.f32.mrf.mxu0
      %v610 = vadd.f32 0.0, %v609
      %v611 = vpop.f32.mrf.mxu0
      %v612 = vpop.f32.mrf.mxu0
      %v613 = vadd.f32 0.0, %v612
      %v614 = vpop.f32.mrf.mxu0
      %615 = vmatprep.mubr.bf16.mxu0 0
      %616 = vmatmul.mubr.bf16.gmra.mxu0 %v467
      %v617 = vpop.f32.mrf.mxu0
      %v618 = vadd.f32 0.0, %v617
      %v619 = vpop.f32.mrf.mxu0
      %v620 = vpop.f32.mrf.mxu0
      %v621 = vadd.f32 0.0, %v620
      %v622 = vpop.f32.mrf.mxu0
      %623 = vmatprep.mubr.bf16.mxu0 0
      %624 = vmatmul.mubr.bf16.gmra.mxu0 %v470
      %v625 = vpop.f32.mrf.mxu0
      %v626 = vadd.f32 0.0, %v625
      %v627 = vpop.f32.mrf.mxu0
      %v628 = vpop.f32.mrf.mxu0
      %v629 = vadd.f32 0.0, %v628
      %v630 = vpop.f32.mrf.mxu0
      %631 = vmatprep.mubr.bf16.mxu0 0
      %632 = vmatmul.mubr.bf16.gmra.mxu0 %v473
      %v633 = vpop.f32.mrf.mxu0
      %v634 = vadd.f32 0.0, %v633
      %v635 = vpop.f32.mrf.mxu0
      %v636 = vpop.f32.mrf.mxu0
      %v637 = vadd.f32 0.0, %v636
      %v638 = vpop.f32.mrf.mxu0
      %639 = vdwg.mxu0
      %v642 = vunpack.c.l.b16 %v407
      %v643 = vunpack.c.l.b16 %v408
      %v644 = vpack.c.b16 %v643, %v642
      %vm646 = vcmask 130048
      %v648 = vsel %vm646, %v391, 0
      %v651 = vsel %vm646, %v392, 0
      %v654 = vsel %vm646, %v393, 0
      %v657 = vsel %vm646, %v394, 0
      %v660 = vsel %vm646, %v395, 0
      %v663 = vsel %vm646, %v396, 0
      %v666 = vsel %vm646, %v397, 0
      %v669 = vsel %vm646, %v398, 0
      %v672 = vsel %vm646, %v399, 0
      %v675 = vsel %vm646, %v400, 0
      %v678 = vsel %vm646, %v401, 0
      %v681 = vsel %vm646, %v402, 0
      %v684 = vsel %vm646, %v403, 0
      %v687 = vsel %vm646, %v404, 0
      %v690 = vsel %vm646, %v405, 0
      %v693 = vsel %vm646, %v406, 0
      %695 = vmatprep.subr.bf16.mxu0 0
      %696 = vmatpush1.bf16.msra.mxu0 0
      %697 = vmatprep.subr.bf16.mxu0 0
      %698 = vmatpush1.bf16.msra.mxu0 0
      %699 = vmatprep.subr.bf16.mxu0 0
      %700 = vmatpush1.bf16.msra.mxu0 0
      %701 = vmatprep.subr.bf16.mxu0 0
      %702 = vmatpush1.bf16.msra.mxu0 0
      %703 = vmatprep.subr.bf16.mxu0 0
      %704 = vmatpush1.bf16.msra.mxu0 0
      %705 = vmatprep.subr.bf16.mxu0 0
      %706 = vmatpush1.bf16.msra.mxu0 0
      %707 = vmatprep.subr.bf16.mxu0 0
      %708 = vmatpush1.bf16.msra.mxu0 0
      %709 = vmatprep.subr.bf16.mxu0 0
      %710 = vmatpush1.bf16.msra.mxu0 %v644
      %711 = vmatprep.subr.bf16.mxu0 0
      %712 = vmatpush2.bf16.msra.mxu0 0
      %713 = vmatprep.subr.bf16.mxu0 0
      %714 = vmatpush2.bf16.msra.mxu0 0
      %715 = vmatprep.subr.bf16.mxu0 0
      %716 = vmatpush2.bf16.msra.mxu0 0
      %717 = vmatprep.subr.bf16.mxu0 0
      %718 = vmatpush2.bf16.msra.mxu0 0
      %719 = vmatprep.subr.bf16.mxu0 0
      %720 = vmatpush2.bf16.msra.mxu0 0
      %721 = vmatprep.subr.bf16.mxu0 0
      %722 = vmatpush2.bf16.msra.mxu0 0
      %723 = vmatprep.subr.bf16.mxu0 0
      %724 = vmatpush2.bf16.msra.mxu0 0
      %725 = vmatprep.subr.bf16.mxu0 0
      %726 = vmatpush2.bf16.msra.mxu0 0
      %727 = vmatprep.mubr.bf16.mxu0 0
      %728 = vmatmul.mubr.bf16.gmra.mxu0 %v648
      %v729 = vpop.f32.mrf.mxu0
      %v730 = vadd.f32 %v514, %v729
      %v731 = vpop.f32.mrf.mxu0
      %v732 = vpop.f32.mrf.mxu0
      %v733 = vadd.f32 %v517, %v732
      %v734 = vpop.f32.mrf.mxu0
      %735 = vmatprep.mubr.bf16.mxu0 0
      %736 = vmatmul.mubr.bf16.gmra.mxu0 %v651
      %v737 = vpop.f32.mrf.mxu0
      %v738 = vadd.f32 %v522, %v737
      %v739 = vpop.f32.mrf.mxu0
      %v740 = vpop.f32.mrf.mxu0
      %v741 = vadd.f32 %v525, %v740
      %v742 = vpop.f32.mrf.mxu0
      %743 = vmatprep.mubr.bf16.mxu0 0
      %744 = vmatmul.mubr.bf16.gmra.mxu0 %v654
      %v745 = vpop.f32.mrf.mxu0
      %v746 = vadd.f32 %v530, %v745
      %v747 = vpop.f32.mrf.mxu0
      %v748 = vpop.f32.mrf.mxu0
      %v749 = vadd.f32 %v533, %v748
      %v750 = vpop.f32.mrf.mxu0
      %751 = vmatprep.mubr.bf16.mxu0 0
      %752 = vmatmul.mubr.bf16.gmra.mxu0 %v657
      %v753 = vpop.f32.mrf.mxu0
      %v754 = vadd.f32 %v538, %v753
      %v755 = vpop.f32.mrf.mxu0
      %v756 = vpop.f32.mrf.mxu0
      %v757 = vadd.f32 %v541, %v756
      %v758 = vpop.f32.mrf.mxu0
      %759 = vmatprep.mubr.bf16.mxu0 0
      %760 = vmatmul.mubr.bf16.gmra.mxu0 %v660
      %v761 = vpop.f32.mrf.mxu0
      %v762 = vadd.f32 %v546, %v761
      %v763 = vpop.f32.mrf.mxu0
      %v764 = vpop.f32.mrf.mxu0
      %v765 = vadd.f32 %v549, %v764
      %v766 = vpop.f32.mrf.mxu0
      %767 = vmatprep.mubr.bf16.mxu0 0
      %768 = vmatmul.mubr.bf16.gmra.mxu0 %v663
      %v769 = vpop.f32.mrf.mxu0
      %v770 = vadd.f32 %v554, %v769
      %v771 = vpop.f32.mrf.mxu0
      %v772 = vpop.f32.mrf.mxu0
      %v773 = vadd.f32 %v557, %v772
      %v774 = vpop.f32.mrf.mxu0
      %775 = vmatprep.mubr.bf16.mxu0 0
      %776 = vmatmul.mubr.bf16.gmra.mxu0 %v666
      %v777 = vpop.f32.mrf.mxu0
      %v778 = vadd.f32 %v562, %v777
      %v779 = vpop.f32.mrf.mxu0
      %v780 = vpop.f32.mrf.mxu0
      %v781 = vadd.f32 %v565, %v780
      %v782 = vpop.f32.mrf.mxu0
      %783 = vmatprep.mubr.bf16.mxu0 0
      %784 = vmatmul.mubr.bf16.gmra.mxu0 %v669
      %v785 = vpop.f32.mrf.mxu0
      %v786 = vadd.f32 %v570, %v785
      %v787 = vpop.f32.mrf.mxu0
      %v788 = vpop.f32.mrf.mxu0
      %v789 = vadd.f32 %v573, %v788
      %v790 = vpop.f32.mrf.mxu0
      %791 = vmatprep.mubr.bf16.mxu0 0
      %792 = vmatmul.mubr.bf16.gmra.mxu0 %v672
      %v793 = vpop.f32.mrf.mxu0
      %v794 = vadd.f32 %v578, %v793
      %v795 = vpop.f32.mrf.mxu0
      %v796 = vpop.f32.mrf.mxu0
      %v797 = vadd.f32 %v581, %v796
      %v798 = vpop.f32.mrf.mxu0
      %799 = vmatprep.mubr.bf16.mxu0 0
      %800 = vmatmul.mubr.bf16.gmra.mxu0 %v675
      %v801 = vpop.f32.mrf.mxu0
      %v802 = vadd.f32 %v586, %v801
      %v803 = vpop.f32.mrf.mxu0
      %v804 = vpop.f32.mrf.mxu0
      %v805 = vadd.f32 %v589, %v804
      %v806 = vpop.f32.mrf.mxu0
      %807 = vmatprep.mubr.bf16.mxu0 0
      %808 = vmatmul.mubr.bf16.gmra.mxu0 %v678
      %v809 = vpop.f32.mrf.mxu0
      %v810 = vadd.f32 %v594, %v809
      %v811 = vpop.f32.mrf.mxu0
      %v812 = vpop.f32.mrf.mxu0
      %v813 = vadd.f32 %v597, %v812
      %v814 = vpop.f32.mrf.mxu0
      %815 = vmatprep.mubr.bf16.mxu0 0
      %816 = vmatmul.mubr.bf16.gmra.mxu0 %v681
      %v817 = vpop.f32.mrf.mxu0
      %v818 = vadd.f32 %v602, %v817
      %v819 = vpop.f32.mrf.mxu0
      %v820 = vpop.f32.mrf.mxu0
      %v821 = vadd.f32 %v605, %v820
      %v822 = vpop.f32.mrf.mxu0
      %823 = vmatprep.mubr.bf16.mxu0 0
      %824 = vmatmul.mubr.bf16.gmra.mxu0 %v684
      %v825 = vpop.f32.mrf.mxu0
      %v826 = vadd.f32 %v610, %v825
      %v827 = vpop.f32.mrf.mxu0
      %v828 = vpop.f32.mrf.mxu0
      %v829 = vadd.f32 %v613, %v828
      %v830 = vpop.f32.mrf.mxu0
      %831 = vmatprep.mubr.bf16.mxu0 0
      %832 = vmatmul.mubr.bf16.gmra.mxu0 %v687
      %v833 = vpop.f32.mrf.mxu0
      %v834 = vadd.f32 %v618, %v833
      %v835 = vpop.f32.mrf.mxu0
      %v836 = vpop.f32.mrf.mxu0
      %v837 = vadd.f32 %v621, %v836
      %v838 = vpop.f32.mrf.mxu0
      %839 = vmatprep.mubr.bf16.mxu0 0
      %840 = vmatmul.mubr.bf16.gmra.mxu0 %v690
      %v841 = vpop.f32.mrf.mxu0
      %v842 = vadd.f32 %v626, %v841
      %v843 = vpop.f32.mrf.mxu0
      %v844 = vpop.f32.mrf.mxu0
      %v845 = vadd.f32 %v629, %v844
      %v846 = vpop.f32.mrf.mxu0
      %847 = vmatprep.mubr.bf16.mxu0 0
      %848 = vmatmul.mubr.bf16.gmra.mxu0 %v693
      %v849 = vpop.f32.mrf.mxu0
      %v850 = vadd.f32 %v634, %v849
      %v851 = vpop.f32.mrf.mxu0
      %v852 = vpop.f32.mrf.mxu0
      %v853 = vadd.f32 %v637, %v852
      %v854 = vpop.f32.mrf.mxu0
      %855 = vdwg.mxu0
      %v856 = vld [vmem:[%s2] sm:$0x1]
      %v857 = vlaneseq
      %v858 = vshrl.u32 %v857, 7
      %v859 = vsub.s32 0, %v858
      %v860 = vrot.slane %v856, %v859
      %v861 = vmul.f32 %v327, %v860
      %v862 = vmul.f32 %v328, %v860
      %v863 = vmul.f32 %v329, %v860
      %v864 = vmul.f32 %v330, %v860
      %v865 = vmul.f32 %v331, %v860
      %v866 = vmul.f32 %v332, %v860
      %v867 = vmul.f32 %v333, %v860
      %v868 = vmul.f32 %v334, %v860
      %v869 = vmul.f32 %v335, %v860
      %v870 = vmul.f32 %v336, %v860
      %v871 = vmul.f32 %v337, %v860
      %v872 = vmul.f32 %v338, %v860
      %v873 = vmul.f32 %v339, %v860
      %v874 = vmul.f32 %v340, %v860
      %v875 = vmul.f32 %v341, %v860
      %v876 = vmul.f32 %v342, %v860
      %v877 = vmul.f32 %v343, %v860
      %v878 = vmul.f32 %v344, %v860
      %v879 = vmul.f32 %v345, %v860
      %v880 = vmul.f32 %v346, %v860
      %v881 = vmul.f32 %v347, %v860
      %v882 = vmul.f32 %v348, %v860
      %v883 = vmul.f32 %v349, %v860
      %v884 = vmul.f32 %v350, %v860
      %v885 = vmul.f32 %v351, %v860
      %v886 = vmul.f32 %v352, %v860
      %v887 = vmul.f32 %v353, %v860
      %v888 = vmul.f32 %v354, %v860
      %v889 = vmul.f32 %v355, %v860
      %v890 = vmul.f32 %v356, %v860
      %v891 = vmul.f32 %v357, %v860
      %v892 = vmul.f32 %v358, %v860
      %v893 = vld [vmem:[%s2 + $0x1] sm:$0x1]
      %v894 = vlaneseq
      %v895 = vshrl.u32 %v894, 7
      %v896 = vsub.s32 0, %v895
      %v897 = vrot.slane %v893, %v896
      %v898 = vadd.f32 %v861, %v897
      %v899 = vadd.f32 %v862, %v897
      %v900 = vadd.f32 %v863, %v897
      %v901 = vadd.f32 %v864, %v897
      %v902 = vadd.f32 %v865, %v897
      %v903 = vadd.f32 %v866, %v897
      %v904 = vadd.f32 %v867, %v897
      %v905 = vadd.f32 %v868, %v897
      %v906 = vadd.f32 %v869, %v897
      %v907 = vadd.f32 %v870, %v897
      %v908 = vadd.f32 %v871, %v897
      %v909 = vadd.f32 %v872, %v897
      %v910 = vadd.f32 %v873, %v897
      %v911 = vadd.f32 %v874, %v897
      %v912 = vadd.f32 %v875, %v897
      %v913 = vadd.f32 %v876, %v897
      %v914 = vadd.f32 %v877, %v897
      %v915 = vadd.f32 %v878, %v897
      %v916 = vadd.f32 %v879, %v897
      %v917 = vadd.f32 %v880, %v897
      %v918 = vadd.f32 %v881, %v897
      %v919 = vadd.f32 %v882, %v897
      %v920 = vadd.f32 %v883, %v897
      %v921 = vadd.f32 %v884, %v897
      %v922 = vadd.f32 %v885, %v897
      %v923 = vadd.f32 %v886, %v897
      %v924 = vadd.f32 %v887, %v897
      %v925 = vadd.f32 %v888, %v897
      %v926 = vadd.f32 %v889, %v897
      %v927 = vadd.f32 %v890, %v897
      %v928 = vadd.f32 %v891, %v897
      %v929 = vadd.f32 %v892, %v897
      %v930 = vld [vmem:[%s3] sm:$0x1]
      %v931 = vlaneseq
      %v932 = vshrl.u32 %v931, 7
      %v933 = vsub.s32 0, %v932
      %v934 = vrot.slane %v930, %v933
      %v935 = vmul.f32 %v359, %v934
      %v936 = vmul.f32 %v360, %v934
      %v937 = vmul.f32 %v361, %v934
      %v938 = vmul.f32 %v362, %v934
      %v939 = vmul.f32 %v363, %v934
      %v940 = vmul.f32 %v364, %v934
      %v941 = vmul.f32 %v365, %v934
      %v942 = vmul.f32 %v366, %v934
      %v943 = vmul.f32 %v367, %v934
      %v944 = vmul.f32 %v368, %v934
      %v945 = vmul.f32 %v369, %v934
      %v946 = vmul.f32 %v370, %v934
      %v947 = vmul.f32 %v371, %v934
      %v948 = vmul.f32 %v372, %v934
      %v949 = vmul.f32 %v373, %v934
      %v950 = vmul.f32 %v374, %v934
      %v951 = vmul.f32 %v375, %v934
      %v952 = vmul.f32 %v376, %v934
      %v953 = vmul.f32 %v377, %v934
      %v954 = vmul.f32 %v378, %v934
      %v955 = vmul.f32 %v379, %v934
      %v956 = vmul.f32 %v380, %v934
      %v957 = vmul.f32 %v381, %v934
      %v958 = vmul.f32 %v382, %v934
      %v959 = vmul.f32 %v383, %v934
      %v960 = vmul.f32 %v384, %v934
      %v961 = vmul.f32 %v385, %v934
      %v962 = vmul.f32 %v386, %v934
      %v963 = vmul.f32 %v387, %v934
      %v964 = vmul.f32 %v388, %v934
      %v965 = vmul.f32 %v389, %v934
      %v966 = vmul.f32 %v390, %v934
      %v967 = vld [vmem:[%s3 + $0x1] sm:$0x1]
      %v968 = vlaneseq
      %v969 = vshrl.u32 %v968, 7
      %v970 = vsub.s32 0, %v969
      %v971 = vrot.slane %v967, %v970
      %v972 = vadd.f32 %v935, %v971
      %v973 = vadd.f32 %v936, %v971
      %v974 = vadd.f32 %v937, %v971
      %v975 = vadd.f32 %v938, %v971
      %v976 = vadd.f32 %v939, %v971
      %v977 = vadd.f32 %v940, %v971
      %v978 = vadd.f32 %v941, %v971
      %v979 = vadd.f32 %v942, %v971
      %v980 = vadd.f32 %v943, %v971
      %v981 = vadd.f32 %v944, %v971
      %v982 = vadd.f32 %v945, %v971
      %v983 = vadd.f32 %v946, %v971
      %v984 = vadd.f32 %v947, %v971
      %v985 = vadd.f32 %v948, %v971
      %v986 = vadd.f32 %v949, %v971
      %v987 = vadd.f32 %v950, %v971
      %v988 = vadd.f32 %v951, %v971
      %v989 = vadd.f32 %v952, %v971
      %v990 = vadd.f32 %v953, %v971
      %v991 = vadd.f32 %v954, %v971
      %v992 = vadd.f32 %v955, %v971
      %v993 = vadd.f32 %v956, %v971
      %v994 = vadd.f32 %v957, %v971
      %v995 = vadd.f32 %v958, %v971
      %v996 = vadd.f32 %v959, %v971
      %v997 = vadd.f32 %v960, %v971
      %v998 = vadd.f32 %v961, %v971
      %v999 = vadd.f32 %v962, %v971
      %v1000 = vadd.f32 %v963, %v971
      %v1001 = vadd.f32 %v964, %v971
      %v1002 = vadd.f32 %v965, %v971
      %v1003 = vadd.f32 %v966, %v971
      %1036 = vrot.lane.b32.xlu0 %v972, 16
      %v1037 = vpop.permute.xlu0 %1036
      %1038 = vrot.lane.b32.xlu0 %v973, 16
      %v1039 = vpop.permute.xlu0 %1038
      %1040 = vrot.lane.b32.xlu0 %v974, 16
      %v1041 = vpop.permute.xlu0 %1040
      %1042 = vrot.lane.b32.xlu0 %v975, 16
      %v1043 = vpop.permute.xlu0 %1042
      %1044 = vrot.lane.b32.xlu0 %v976, 16
      %v1045 = vpop.permute.xlu0 %1044
      %1046 = vrot.lane.b32.xlu0 %v977, 16
      %v1047 = vpop.permute.xlu0 %1046
      %1048 = vrot.lane.b32.xlu0 %v978, 16
      %v1049 = vpop.permute.xlu0 %1048
      %1050 = vrot.lane.b32.xlu0 %v979, 16
      %v1051 = vpop.permute.xlu0 %1050
      %1052 = vrot.lane.b32.xlu0 %v980, 16
      %v1053 = vpop.permute.xlu0 %1052
      %1054 = vrot.lane.b32.xlu0 %v981, 16
      %v1055 = vpop.permute.xlu0 %1054
      %1056 = vrot.lane.b32.xlu0 %v982, 16
      %v1057 = vpop.permute.xlu0 %1056
      %1058 = vrot.lane.b32.xlu0 %v983, 16
      %v1059 = vpop.permute.xlu0 %1058
      %1060 = vrot.lane.b32.xlu0 %v984, 16
      %v1061 = vpop.permute.xlu0 %1060
      %1062 = vrot.lane.b32.xlu0 %v985, 16
      %v1063 = vpop.permute.xlu0 %1062
      %1064 = vrot.lane.b32.xlu0 %v986, 16
      %v1065 = vpop.permute.xlu0 %1064
      %1066 = vrot.lane.b32.xlu0 %v987, 16
      %v1067 = vpop.permute.xlu0 %1066
      %1068 = vrot.lane.b32.xlu0 %v988, 16
      %v1069 = vpop.permute.xlu0 %1068
      %1070 = vrot.lane.b32.xlu0 %v989, 16
      %v1071 = vpop.permute.xlu0 %1070
      %1072 = vrot.lane.b32.xlu0 %v990, 16
      %v1073 = vpop.permute.xlu0 %1072
      %1074 = vrot.lane.b32.xlu0 %v991, 16
      %v1075 = vpop.permute.xlu0 %1074
      %1076 = vrot.lane.b32.xlu0 %v992, 16
      %v1077 = vpop.permute.xlu0 %1076
      %1078 = vrot.lane.b32.xlu0 %v993, 16
      %v1079 = vpop.permute.xlu0 %1078
      %1080 = vrot.lane.b32.xlu0 %v994, 16
      %v1081 = vpop.permute.xlu0 %1080
      %1082 = vrot.lane.b32.xlu0 %v995, 16
      %v1083 = vpop.permute.xlu0 %1082
      %1084 = vrot.lane.b32.xlu0 %v996, 16
      %v1085 = vpop.permute.xlu0 %1084
      %1086 = vrot.lane.b32.xlu0 %v997, 16
      %v1087 = vpop.permute.xlu0 %1086
      %1088 = vrot.lane.b32.xlu0 %v998, 16
      %v1089 = vpop.permute.xlu0 %1088
      %1090 = vrot.lane.b32.xlu0 %v999, 16
      %v1091 = vpop.permute.xlu0 %1090
      %1092 = vrot.lane.b32.xlu0 %v1000, 16
      %v1093 = vpop.permute.xlu0 %1092
      %1094 = vrot.lane.b32.xlu0 %v1001, 16
      %v1095 = vpop.permute.xlu0 %1094
      %1096 = vrot.lane.b32.xlu0 %v1002, 16
      %v1097 = vpop.permute.xlu0 %1096
      %1098 = vrot.lane.b32.xlu0 %v1003, 16
      %v1099 = vpop.permute.xlu0 %1098
      %v1132 = vsel %vm646, %v898, %v1037
      %v1133 = vsel %vm646, %v899, %v1039
      %v1134 = vsel %vm646, %v900, %v1041
      %v1135 = vsel %vm646, %v901, %v1043
      %v1136 = vsel %vm646, %v902, %v1045
      %v1137 = vsel %vm646, %v903, %v1047
      %v1138 = vsel %vm646, %v904, %v1049
      %v1139 = vsel %vm646, %v905, %v1051
      %v1140 = vsel %vm646, %v906, %v1053
      %v1141 = vsel %vm646, %v907, %v1055
      %v1142 = vsel %vm646, %v908, %v1057
      %v1143 = vsel %vm646, %v909, %v1059
      %v1144 = vsel %vm646, %v910, %v1061
      %v1145 = vsel %vm646, %v911, %v1063
      %v1146 = vsel %vm646, %v912, %v1065
      %v1147 = vsel %vm646, %v913, %v1067
      %v1148 = vsel %vm646, %v914, %v1069
      %v1149 = vsel %vm646, %v915, %v1071
      %v1150 = vsel %vm646, %v916, %v1073
      %v1151 = vsel %vm646, %v917, %v1075
      %v1152 = vsel %vm646, %v918, %v1077
      %v1153 = vsel %vm646, %v919, %v1079
      %v1154 = vsel %vm646, %v920, %v1081
      %v1155 = vsel %vm646, %v921, %v1083
      %v1156 = vsel %vm646, %v922, %v1085
      %v1157 = vsel %vm646, %v923, %v1087
      %v1158 = vsel %vm646, %v924, %v1089
      %v1159 = vsel %vm646, %v925, %v1091
      %v1160 = vsel %vm646, %v926, %v1093
      %v1161 = vsel %vm646, %v927, %v1095
      %v1162 = vsel %vm646, %v928, %v1097
      %v1163 = vsel %vm646, %v929, %v1099
      %v1164 = vld [vmem:[%s6] sm:$0xf]
      %v1165 = vld [vmem:[%s6 + $0x4] sm:$0xf]
      %v1166 = vld [vmem:[%s6 + $0x8] sm:$0xf]
      %v1167 = vld [vmem:[%s6 + $0xc] sm:$0xf]
      %v1168 = vld [vmem:[%s6 + $0x10] sm:$0xf]
      %v1169 = vld [vmem:[%s6 + $0x14] sm:$0xf]
      %v1170 = vld [vmem:[%s6 + $0x18] sm:$0xf]
      %v1171 = vld [vmem:[%s6 + $0x1c] sm:$0xf]
      %v1172 = vld [vmem:[%s6 + $0x20] sm:$0xf]
      %v1173 = vld [vmem:[%s6 + $0x24] sm:$0xf]
      %v1174 = vld [vmem:[%s6 + $0x28] sm:$0xf]
      %v1175 = vld [vmem:[%s6 + $0x2c] sm:$0xf]
      %v1176 = vld [vmem:[%s6 + $0x30] sm:$0xf]
      %v1177 = vld [vmem:[%s6 + $0x34] sm:$0xf]
      %v1178 = vld [vmem:[%s6 + $0x38] sm:$0xf]
      %v1179 = vld [vmem:[%s6 + $0x3c] sm:$0xf]
      %v1180 = vld [vmem:[%s6 + $0x40] sm:$0xf]
      %v1181 = vld [vmem:[%s6 + $0x44] sm:$0xf]
      %v1182 = vld [vmem:[%s6 + $0x48] sm:$0xf]
      %v1183 = vld [vmem:[%s6 + $0x4c] sm:$0xf]
      %v1184 = vld [vmem:[%s6 + $0x50] sm:$0xf]
      %v1185 = vld [vmem:[%s6 + $0x54] sm:$0xf]
      %v1186 = vld [vmem:[%s6 + $0x58] sm:$0xf]
      %v1187 = vld [vmem:[%s6 + $0x5c] sm:$0xf]
      %v1188 = vld [vmem:[%s6 + $0x60] sm:$0xf]
      %v1189 = vld [vmem:[%s6 + $0x64] sm:$0xf]
      %v1190 = vld [vmem:[%s6 + $0x68] sm:$0xf]
      %vm1224 = vcmask 1040384
      %v1225 = vrot.slane 0.0, 7
      %v1226 = vsel %vm1224, %v1225, %v1225
      %v1227 = vrot.slane %v1132, 7
      %v1228 = vrot.slane %v1133, 7
      %v1229 = vsel %vm1224, %v1227, %v1228
      %v1230 = vrot.slane %v1134, 7
      %v1231 = vrot.slane %v1135, 7
      %v1232 = vsel %vm1224, %v1230, %v1231
      %v1233 = vrot.slane %v1136, 7
      %v1234 = vrot.slane %v1137, 7
      %v1235 = vsel %vm1224, %v1233, %v1234
      %v1236 = vrot.slane %v1138, 7
      %v1237 = vrot.slane %v1139, 7
      %v1238 = vsel %vm1224, %v1236, %v1237
      %v1239 = vrot.slane %v1140, 7
      %v1240 = vrot.slane %v1141, 7
      %v1241 = vsel %vm1224, %v1239, %v1240
      %v1242 = vrot.slane %v1142, 7
      %v1243 = vrot.slane %v1143, 7
      %v1244 = vsel %vm1224, %v1242, %v1243
      %v1245 = vrot.slane %v1144, 7
      %v1246 = vrot.slane %v1145, 7
      %v1247 = vsel %vm1224, %v1245, %v1246
      %v1248 = vrot.slane %v1146, 7
      %v1249 = vrot.slane %v1147, 7
      %v1250 = vsel %vm1224, %v1248, %v1249
      %v1251 = vrot.slane %v1148, 7
      %v1252 = vrot.slane %v1149, 7
      %v1253 = vsel %vm1224, %v1251, %v1252
      %v1254 = vrot.slane %v1150, 7
      %v1255 = vrot.slane %v1151, 7
      %v1256 = vsel %vm1224, %v1254, %v1255
      %v1257 = vrot.slane %v1152, 7
      %v1258 = vrot.slane %v1153, 7
      %v1259 = vsel %vm1224, %v1257, %v1258
      %v1260 = vrot.slane %v1154, 7
      %v1261 = vrot.slane %v1155, 7
      %v1262 = vsel %vm1224, %v1260, %v1261
      %v1263 = vrot.slane %v1156, 7
      %v1264 = vrot.slane %v1157, 7
      %v1265 = vsel %vm1224, %v1263, %v1264
      %v1266 = vrot.slane %v1158, 7
      %v1267 = vrot.slane %v1159, 7
      %v1268 = vsel %vm1224, %v1266, %v1267
      %v1269 = vrot.slane %v1160, 7
      %v1270 = vrot.slane %v1161, 7
      %v1271 = vsel %vm1224, %v1269, %v1270
      %v1272 = vrot.slane %v1162, 7
      %v1273 = vrot.slane %v1163, 7
      %v1274 = vsel %vm1224, %v1272, %v1273
      %v1324 = vsel %vm1224, 0.0, %v1225
      %v1325 = vsel %vm1224, 0.0, %v1227
      %v1326 = vsel %vm1224, 0.0, %v1230
      %v1327 = vsel %vm1224, 0.0, %v1233
      %v1328 = vsel %vm1224, 0.0, %v1236
      %v1329 = vsel %vm1224, 0.0, %v1239
      %v1330 = vsel %vm1224, 0.0, %v1242
      %v1331 = vsel %vm1224, 0.0, %v1245
      %v1332 = vsel %vm1224, 0.0, %v1248
      %v1333 = vsel %vm1224, 0.0, %v1251
      %v1334 = vsel %vm1224, 0.0, %v1254
      %v1335 = vsel %vm1224, 0.0, %v1257
      %v1336 = vsel %vm1224, 0.0, %v1260
      %v1337 = vsel %vm1224, 0.0, %v1263
      %v1338 = vsel %vm1224, 0.0, %v1266
      %v1339 = vsel %vm1224, 0.0, %v1269
      %v1340 = vsel %vm1224, 0.0, %v1272
      %v1341 = vsel %vm1224, %v1225, 0.0
      %v1342 = vsel %vm1224, %v1228, 0.0
      %v1343 = vsel %vm1224, %v1231, 0.0
      %v1344 = vsel %vm1224, %v1234, 0.0
      %v1345 = vsel %vm1224, %v1237, 0.0
      %v1346 = vsel %vm1224, %v1240, 0.0
      %v1347 = vsel %vm1224, %v1243, 0.0
      %v1348 = vsel %vm1224, %v1246, 0.0
      %v1349 = vsel %vm1224, %v1249, 0.0
      %v1350 = vsel %vm1224, %v1252, 0.0
      %v1351 = vsel %vm1224, %v1255, 0.0
      %v1352 = vsel %vm1224, %v1258, 0.0
      %v1353 = vsel %vm1224, %v1261, 0.0
      %v1354 = vsel %vm1224, %v1264, 0.0
      %v1355 = vsel %vm1224, %v1267, 0.0
      %v1356 = vsel %vm1224, %v1270, 0.0
      %v1357 = vsel %vm1224, %v1273, 0.0
      %vm1390 = vcmask 1046528
      %v1391 = vrot.slane %v1324, 1
      %v1392 = vrot.slane %v1226, 1
      %v1393 = vsel %vm1390, %v1391, %v1392
      %v1394 = vrot.slane %v1341, 1
      %v1395 = vsel %vm1390, %v1392, %v1394
      %v1396 = vrot.slane %v1325, 1
      %v1397 = vrot.slane %v1229, 1
      %v1398 = vsel %vm1390, %v1396, %v1397
      %v1399 = vrot.slane %v1342, 1
      %v1400 = vsel %vm1390, %v1397, %v1399
      %v1401 = vrot.slane %v1326, 1
      %v1402 = vrot.slane %v1232, 1
      %v1403 = vsel %vm1390, %v1401, %v1402
      %v1404 = vrot.slane %v1343, 1
      %v1405 = vsel %vm1390, %v1402, %v1404
      %v1406 = vrot.slane %v1327, 1
      %v1407 = vrot.slane %v1235, 1
      %v1408 = vsel %vm1390, %v1406, %v1407
      %v1409 = vrot.slane %v1344, 1
      %v1410 = vsel %vm1390, %v1407, %v1409
      %v1411 = vrot.slane %v1328, 1
      %v1412 = vrot.slane %v1238, 1
      %v1413 = vsel %vm1390, %v1411, %v1412
      %v1414 = vrot.slane %v1345, 1
      %v1415 = vsel %vm1390, %v1412, %v1414
      %v1416 = vrot.slane %v1329, 1
      %v1417 = vrot.slane %v1241, 1
      %v1418 = vsel %vm1390, %v1416, %v1417
      %v1419 = vrot.slane %v1346, 1
      %v1420 = vsel %vm1390, %v1417, %v1419
      %v1421 = vrot.slane %v1330, 1
      %v1422 = vrot.slane %v1244, 1
      %v1423 = vsel %vm1390, %v1421, %v1422
      %v1424 = vrot.slane %v1347, 1
      %v1425 = vsel %vm1390, %v1422, %v1424
      %v1426 = vrot.slane %v1331, 1
      %v1427 = vrot.slane %v1247, 1
      %v1428 = vsel %vm1390, %v1426, %v1427
      %v1429 = vrot.slane %v1348, 1
      %v1430 = vsel %vm1390, %v1427, %v1429
      %v1431 = vrot.slane %v1332, 1
      %v1432 = vrot.slane %v1250, 1
      %v1433 = vsel %vm1390, %v1431, %v1432
      %v1434 = vrot.slane %v1349, 1
      %v1435 = vsel %vm1390, %v1432, %v1434
      %v1436 = vrot.slane %v1333, 1
      %v1437 = vrot.slane %v1253, 1
      %v1438 = vsel %vm1390, %v1436, %v1437
      %v1439 = vrot.slane %v1350, 1
      %v1440 = vsel %vm1390, %v1437, %v1439
      %v1441 = vrot.slane %v1334, 1
      %v1442 = vrot.slane %v1256, 1
      %v1443 = vsel %vm1390, %v1441, %v1442
      %v1444 = vrot.slane %v1351, 1
      %v1445 = vsel %vm1390, %v1442, %v1444
      %v1446 = vrot.slane %v1335, 1
      %v1447 = vrot.slane %v1259, 1
      %v1448 = vsel %vm1390, %v1446, %v1447
      %v1449 = vrot.slane %v1352, 1
      %v1450 = vsel %vm1390, %v1447, %v1449
      %v1451 = vrot.slane %v1336, 1
      %v1452 = vrot.slane %v1262, 1
      %v1453 = vsel %vm1390, %v1451, %v1452
      %v1454 = vrot.slane %v1353, 1
      %v1455 = vsel %vm1390, %v1452, %v1454
      %v1456 = vrot.slane %v1337, 1
      %v1457 = vrot.slane %v1265, 1
      %v1458 = vsel %vm1390, %v1456, %v1457
      %v1459 = vrot.slane %v1354, 1
      %v1460 = vsel %vm1390, %v1457, %v1459
      %v1461 = vrot.slane %v1338, 1
      %v1462 = vrot.slane %v1268, 1
      %v1463 = vsel %vm1390, %v1461, %v1462
      %v1464 = vrot.slane %v1355, 1
      %v1465 = vsel %vm1390, %v1462, %v1464
      %v1466 = vrot.slane %v1339, 1
      %v1467 = vrot.slane %v1271, 1
      %v1468 = vsel %vm1390, %v1466, %v1467
      %v1469 = vrot.slane %v1356, 1
      %v1470 = vsel %vm1390, %v1467, %v1469
      %vm1471 = vcmask 1045504
      %v1472 = vrot.slane %v1324, 2
      %v1473 = vrot.slane %v1226, 2
      %v1474 = vsel %vm1471, %v1472, %v1473
      %v1475 = vrot.slane %v1341, 2
      %v1476 = vsel %vm1471, %v1473, %v1475
      %v1477 = vrot.slane %v1325, 2
      %v1478 = vrot.slane %v1229, 2
      %v1479 = vsel %vm1471, %v1477, %v1478
      %v1480 = vrot.slane %v1342, 2
      %v1481 = vsel %vm1471, %v1478, %v1480
      %v1482 = vrot.slane %v1326, 2
      %v1483 = vrot.slane %v1232, 2
      %v1484 = vsel %vm1471, %v1482, %v1483
      %v1485 = vrot.slane %v1343, 2
      %v1486 = vsel %vm1471, %v1483, %v1485
      %v1487 = vrot.slane %v1327, 2
      %v1488 = vrot.slane %v1235, 2
      %v1489 = vsel %vm1471, %v1487, %v1488
      %v1490 = vrot.slane %v1344, 2
      %v1491 = vsel %vm1471, %v1488, %v1490
      %v1492 = vrot.slane %v1328, 2
      %v1493 = vrot.slane %v1238, 2
      %v1494 = vsel %vm1471, %v1492, %v1493
      %v1495 = vrot.slane %v1345, 2
      %v1496 = vsel %vm1471, %v1493, %v1495
      %v1497 = vrot.slane %v1329, 2
      %v1498 = vrot.slane %v1241, 2
      %v1499 = vsel %vm1471, %v1497, %v1498
      %v1500 = vrot.slane %v1346, 2
      %v1501 = vsel %vm1471, %v1498, %v1500
      %v1502 = vrot.slane %v1330, 2
      %v1503 = vrot.slane %v1244, 2
      %v1504 = vsel %vm1471, %v1502, %v1503
      %v1505 = vrot.slane %v1347, 2
      %v1506 = vsel %vm1471, %v1503, %v1505
      %v1507 = vrot.slane %v1331, 2
      %v1508 = vrot.slane %v1247, 2
      %v1509 = vsel %vm1471, %v1507, %v1508
      %v1510 = vrot.slane %v1348, 2
      %v1511 = vsel %vm1471, %v1508, %v1510
      %v1512 = vrot.slane %v1332, 2
      %v1513 = vrot.slane %v1250, 2
      %v1514 = vsel %vm1471, %v1512, %v1513
      %v1515 = vrot.slane %v1349, 2
      %v1516 = vsel %vm1471, %v1513, %v1515
      %v1517 = vrot.slane %v1333, 2
      %v1518 = vrot.slane %v1253, 2
      %v1519 = vsel %vm1471, %v1517, %v1518
      %v1520 = vrot.slane %v1350, 2
      %v1521 = vsel %vm1471, %v1518, %v1520
      %v1522 = vrot.slane %v1334, 2
      %v1523 = vrot.slane %v1256, 2
      %v1524 = vsel %vm1471, %v1522, %v1523
      %v1525 = vrot.slane %v1351, 2
      %v1526 = vsel %vm1471, %v1523, %v1525
      %v1527 = vrot.slane %v1335, 2
      %v1528 = vrot.slane %v1259, 2
      %v1529 = vsel %vm1471, %v1527, %v1528
      %v1530 = vrot.slane %v1352, 2
      %v1531 = vsel %vm1471, %v1528, %v1530
      %v1532 = vrot.slane %v1336, 2
      %v1533 = vrot.slane %v1262, 2
      %v1534 = vsel %vm1471, %v1532, %v1533
      %v1535 = vrot.slane %v1353, 2
      %v1536 = vsel %vm1471, %v1533, %v1535
      %v1537 = vrot.slane %v1337, 2
      %v1538 = vrot.slane %v1265, 2
      %v1539 = vsel %vm1471, %v1537, %v1538
      %v1540 = vrot.slane %v1354, 2
      %v1541 = vsel %vm1471, %v1538, %v1540
      %v1542 = vrot.slane %v1338, 2
      %v1543 = vrot.slane %v1268, 2
      %v1544 = vsel %vm1471, %v1542, %v1543
      %v1545 = vrot.slane %v1355, 2
      %v1546 = vsel %vm1471, %v1543, %v1545
      %v1547 = vrot.slane %v1339, 2
      %v1548 = vrot.slane %v1271, 2
      %v1549 = vsel %vm1471, %v1547, %v1548
      %v1550 = vrot.slane %v1356, 2
      %v1551 = vsel %vm1471, %v1548, %v1550
      %v1554 = vrot.slane %v1340, 1
      %v1555 = vrot.slane %v1274, 1
      %v1556 = vsel %vm1390, %v1554, %v1555
      %v1557 = vrot.slane %v1357, 1
      %v1558 = vsel %vm1390, %v1555, %v1557
      %v1559 = vrot.slane %v1340, 2
      %v1560 = vrot.slane %v1274, 2
      %v1561 = vsel %vm1471, %v1559, %v1560
      %v1562 = vrot.slane %v1357, 2
      %v1563 = vsel %vm1471, %v1560, %v1562
      %1564 = vrot.lane.b32.xlu0 %v1393, 24
      %v1565 = vpop.permute.xlu0 %1564
      %1566 = vrot.lane.b32.xlu0 %v1395, 24
      %v1567 = vpop.permute.xlu0 %1566
      %1568 = vrot.lane.b32.xlu0 %v1398, 24
      %v1569 = vpop.permute.xlu0 %1568
      %1570 = vrot.lane.b32.xlu0 %v1400, 24
      %v1571 = vpop.permute.xlu0 %1570
      %1572 = vrot.lane.b32.xlu0 %v1403, 24
      %v1573 = vpop.permute.xlu0 %1572
      %1574 = vrot.lane.b32.xlu0 %v1405, 24
      %v1575 = vpop.permute.xlu0 %1574
      %1576 = vrot.lane.b32.xlu0 %v1408, 24
      %v1577 = vpop.permute.xlu0 %1576
      %1578 = vrot.lane.b32.xlu0 %v1410, 24
      %v1579 = vpop.permute.xlu0 %1578
      %1580 = vrot.lane.b32.xlu0 %v1413, 24
      %v1581 = vpop.permute.xlu0 %1580
      %1582 = vrot.lane.b32.xlu0 %v1415, 24
      %v1583 = vpop.permute.xlu0 %1582
      %1584 = vrot.lane.b32.xlu0 %v1418, 24
      %v1585 = vpop.permute.xlu0 %1584
      %1586 = vrot.lane.b32.xlu0 %v1420, 24
      %v1587 = vpop.permute.xlu0 %1586
      %1588 = vrot.lane.b32.xlu0 %v1423, 24
      %v1589 = vpop.permute.xlu0 %1588
      %1590 = vrot.lane.b32.xlu0 %v1425, 24
      %v1591 = vpop.permute.xlu0 %1590
      %1592 = vrot.lane.b32.xlu0 %v1428, 24
      %v1593 = vpop.permute.xlu0 %1592
      %1594 = vrot.lane.b32.xlu0 %v1430, 24
      %v1595 = vpop.permute.xlu0 %1594
      %1596 = vrot.lane.b32.xlu0 %v1433, 24
      %v1597 = vpop.permute.xlu0 %1596
      %1598 = vrot.lane.b32.xlu0 %v1435, 24
      %v1599 = vpop.permute.xlu0 %1598
      %1600 = vrot.lane.b32.xlu0 %v1438, 24
      %v1601 = vpop.permute.xlu0 %1600
      %1602 = vrot.lane.b32.xlu0 %v1440, 24
      %v1603 = vpop.permute.xlu0 %1602
      %1604 = vrot.lane.b32.xlu0 %v1443, 24
      %v1605 = vpop.permute.xlu0 %1604
      %1606 = vrot.lane.b32.xlu0 %v1445, 24
      %v1607 = vpop.permute.xlu0 %1606
      %1608 = vrot.lane.b32.xlu0 %v1448, 24
      %v1609 = vpop.permute.xlu0 %1608
      %1610 = vrot.lane.b32.xlu0 %v1450, 24
      %v1611 = vpop.permute.xlu0 %1610
      %1612 = vrot.lane.b32.xlu0 %v1453, 24
      %v1613 = vpop.permute.xlu0 %1612
      %1614 = vrot.lane.b32.xlu0 %v1455, 24
      %v1615 = vpop.permute.xlu0 %1614
      %1616 = vrot.lane.b32.xlu0 %v1458, 24
      %v1617 = vpop.permute.xlu0 %1616
      %1618 = vrot.lane.b32.xlu0 %v1460, 24
      %v1619 = vpop.permute.xlu0 %1618
      %1620 = vrot.lane.b32.xlu0 %v1463, 24
      %v1621 = vpop.permute.xlu0 %1620
      %1622 = vrot.lane.b32.xlu0 %v1465, 24
      %v1623 = vpop.permute.xlu0 %1622
      %1624 = vrot.lane.b32.xlu0 %v1468, 24
      %v1625 = vpop.permute.xlu0 %1624
      %1626 = vrot.lane.b32.xlu0 %v1470, 24
      %v1627 = vpop.permute.xlu0 %1626
      %1660 = vrot.lane.b32.xlu0 %v1474, 48
      %v1661 = vpop.permute.xlu0 %1660
      %1662 = vrot.lane.b32.xlu0 %v1476, 48
      %v1663 = vpop.permute.xlu0 %1662
      %1664 = vrot.lane.b32.xlu0 %v1479, 48
      %v1665 = vpop.permute.xlu0 %1664
      %1666 = vrot.lane.b32.xlu0 %v1481, 48
      %v1667 = vpop.permute.xlu0 %1666
      %1668 = vrot.lane.b32.xlu0 %v1484, 48
      %v1669 = vpop.permute.xlu0 %1668
      %1670 = vrot.lane.b32.xlu0 %v1486, 48
      %v1671 = vpop.permute.xlu0 %1670
      %1672 = vrot.lane.b32.xlu0 %v1489, 48
      %v1673 = vpop.permute.xlu0 %1672
      %1674 = vrot.lane.b32.xlu0 %v1491, 48
      %v1675 = vpop.permute.xlu0 %1674
      %1676 = vrot.lane.b32.xlu0 %v1494, 48
      %v1677 = vpop.permute.xlu0 %1676
      %1678 = vrot.lane.b32.xlu0 %v1496, 48
      %v1679 = vpop.permute.xlu0 %1678
      %1680 = vrot.lane.b32.xlu0 %v1499, 48
      %v1681 = vpop.permute.xlu0 %1680
      %1682 = vrot.lane.b32.xlu0 %v1501, 48
      %v1683 = vpop.permute.xlu0 %1682
      %1684 = vrot.lane.b32.xlu0 %v1504, 48
      %v1685 = vpop.permute.xlu0 %1684
      %1686 = vrot.lane.b32.xlu0 %v1506, 48
      %v1687 = vpop.permute.xlu0 %1686
      %1688 = vrot.lane.b32.xlu0 %v1509, 48
      %v1689 = vpop.permute.xlu0 %1688
      %1690 = vrot.lane.b32.xlu0 %v1511, 48
      %v1691 = vpop.permute.xlu0 %1690
      %1692 = vrot.lane.b32.xlu0 %v1514, 48
      %v1693 = vpop.permute.xlu0 %1692
      %1694 = vrot.lane.b32.xlu0 %v1516, 48
      %v1695 = vpop.permute.xlu0 %1694
      %1696 = vrot.lane.b32.xlu0 %v1519, 48
      %v1697 = vpop.permute.xlu0 %1696
      %1698 = vrot.lane.b32.xlu0 %v1521, 48
      %v1699 = vpop.permute.xlu0 %1698
      %1700 = vrot.lane.b32.xlu0 %v1524, 48
      %v1701 = vpop.permute.xlu0 %1700
      %1702 = vrot.lane.b32.xlu0 %v1526, 48
      %v1703 = vpop.permute.xlu0 %1702
      %1704 = vrot.lane.b32.xlu0 %v1529, 48
      %v1705 = vpop.permute.xlu0 %1704
      %1706 = vrot.lane.b32.xlu0 %v1531, 48
      %v1707 = vpop.permute.xlu0 %1706
      %1708 = vrot.lane.b32.xlu0 %v1534, 48
      %v1709 = vpop.permute.xlu0 %1708
      %1710 = vrot.lane.b32.xlu0 %v1536, 48
      %v1711 = vpop.permute.xlu0 %1710
      %1712 = vrot.lane.b32.xlu0 %v1539, 48
      %v1713 = vpop.permute.xlu0 %1712
      %1714 = vrot.lane.b32.xlu0 %v1541, 48
      %v1715 = vpop.permute.xlu0 %1714
      %1716 = vrot.lane.b32.xlu0 %v1544, 48
      %v1717 = vpop.permute.xlu0 %1716
      %1718 = vrot.lane.b32.xlu0 %v1546, 48
      %v1719 = vpop.permute.xlu0 %1718
      %1720 = vrot.lane.b32.xlu0 %v1549, 48
      %v1721 = vpop.permute.xlu0 %1720
      %1722 = vrot.lane.b32.xlu0 %v1551, 48
      %v1723 = vpop.permute.xlu0 %1722
      %1756 = vrot.lane.b32.xlu0 %v1325, 72
      %v1757 = vpop.permute.xlu0 %1756
      %1758 = vrot.lane.b32.xlu0 %v1229, 72
      %v1759 = vpop.permute.xlu0 %1758
      %1760 = vrot.lane.b32.xlu0 %v1326, 72
      %v1761 = vpop.permute.xlu0 %1760
      %1762 = vrot.lane.b32.xlu0 %v1232, 72
      %v1763 = vpop.permute.xlu0 %1762
      %1764 = vrot.lane.b32.xlu0 %v1327, 72
      %v1765 = vpop.permute.xlu0 %1764
      %1766 = vrot.lane.b32.xlu0 %v1235, 72
      %v1767 = vpop.permute.xlu0 %1766
      %1768 = vrot.lane.b32.xlu0 %v1328, 72
      %v1769 = vpop.permute.xlu0 %1768
      %1770 = vrot.lane.b32.xlu0 %v1238, 72
      %v1771 = vpop.permute.xlu0 %1770
      %1772 = vrot.lane.b32.xlu0 %v1329, 72
      %v1773 = vpop.permute.xlu0 %1772
      %1774 = vrot.lane.b32.xlu0 %v1241, 72
      %v1775 = vpop.permute.xlu0 %1774
      %1776 = vrot.lane.b32.xlu0 %v1330, 72
      %v1777 = vpop.permute.xlu0 %1776
      %1778 = vrot.lane.b32.xlu0 %v1244, 72
      %v1779 = vpop.permute.xlu0 %1778
      %1780 = vrot.lane.b32.xlu0 %v1331, 72
      %v1781 = vpop.permute.xlu0 %1780
      %1782 = vrot.lane.b32.xlu0 %v1247, 72
      %v1783 = vpop.permute.xlu0 %1782
      %1784 = vrot.lane.b32.xlu0 %v1332, 72
      %v1785 = vpop.permute.xlu0 %1784
      %1786 = vrot.lane.b32.xlu0 %v1250, 72
      %v1787 = vpop.permute.xlu0 %1786
      %1788 = vrot.lane.b32.xlu0 %v1333, 72
      %v1789 = vpop.permute.xlu0 %1788
      %1790 = vrot.lane.b32.xlu0 %v1253, 72
      %v1791 = vpop.permute.xlu0 %1790
      %1792 = vrot.lane.b32.xlu0 %v1334, 72
      %v1793 = vpop.permute.xlu0 %1792
      %1794 = vrot.lane.b32.xlu0 %v1256, 72
      %v1795 = vpop.permute.xlu0 %1794
      %1796 = vrot.lane.b32.xlu0 %v1335, 72
      %v1797 = vpop.permute.xlu0 %1796
      %1798 = vrot.lane.b32.xlu0 %v1259, 72
      %v1799 = vpop.permute.xlu0 %1798
      %1800 = vrot.lane.b32.xlu0 %v1336, 72
      %v1801 = vpop.permute.xlu0 %1800
      %1802 = vrot.lane.b32.xlu0 %v1262, 72
      %v1803 = vpop.permute.xlu0 %1802
      %1804 = vrot.lane.b32.xlu0 %v1337, 72
      %v1805 = vpop.permute.xlu0 %1804
      %1806 = vrot.lane.b32.xlu0 %v1265, 72
      %v1807 = vpop.permute.xlu0 %1806
      %1808 = vrot.lane.b32.xlu0 %v1338, 72
      %v1809 = vpop.permute.xlu0 %1808
      %1810 = vrot.lane.b32.xlu0 %v1268, 72
      %v1811 = vpop.permute.xlu0 %1810
      %1812 = vrot.lane.b32.xlu0 %v1339, 72
      %v1813 = vpop.permute.xlu0 %1812
      %1814 = vrot.lane.b32.xlu0 %v1271, 72
      %v1815 = vpop.permute.xlu0 %1814
      %1816 = vrot.lane.b32.xlu0 %v1340, 72
      %v1817 = vpop.permute.xlu0 %1816
      %1818 = vrot.lane.b32.xlu0 %v1274, 72
      %v1819 = vpop.permute.xlu0 %1818
      %1852 = vrot.lane.b32.xlu0 %v1398, 96
      %v1853 = vpop.permute.xlu0 %1852
      %1854 = vrot.lane.b32.xlu0 %v1400, 96
      %v1855 = vpop.permute.xlu0 %1854
      %1856 = vrot.lane.b32.xlu0 %v1403, 96
      %v1857 = vpop.permute.xlu0 %1856
      %1858 = vrot.lane.b32.xlu0 %v1405, 96
      %v1859 = vpop.permute.xlu0 %1858
      %1860 = vrot.lane.b32.xlu0 %v1408, 96
      %v1861 = vpop.permute.xlu0 %1860
      %1862 = vrot.lane.b32.xlu0 %v1410, 96
      %v1863 = vpop.permute.xlu0 %1862
      %1864 = vrot.lane.b32.xlu0 %v1413, 96
      %v1865 = vpop.permute.xlu0 %1864
      %1866 = vrot.lane.b32.xlu0 %v1415, 96
      %v1867 = vpop.permute.xlu0 %1866
      %1868 = vrot.lane.b32.xlu0 %v1418, 96
      %v1869 = vpop.permute.xlu0 %1868
      %1870 = vrot.lane.b32.xlu0 %v1420, 96
      %v1871 = vpop.permute.xlu0 %1870
      %1872 = vrot.lane.b32.xlu0 %v1423, 96
      %v1873 = vpop.permute.xlu0 %1872
      %1874 = vrot.lane.b32.xlu0 %v1425, 96
      %v1875 = vpop.permute.xlu0 %1874
      %1876 = vrot.lane.b32.xlu0 %v1428, 96
      %v1877 = vpop.permute.xlu0 %1876
      %1878 = vrot.lane.b32.xlu0 %v1430, 96
      %v1879 = vpop.permute.xlu0 %1878
      %1880 = vrot.lane.b32.xlu0 %v1433, 96
      %v1881 = vpop.permute.xlu0 %1880
      %1882 = vrot.lane.b32.xlu0 %v1435, 96
      %v1883 = vpop.permute.xlu0 %1882
      %1884 = vrot.lane.b32.xlu0 %v1438, 96
      %v1885 = vpop.permute.xlu0 %1884
      %1886 = vrot.lane.b32.xlu0 %v1440, 96
      %v1887 = vpop.permute.xlu0 %1886
      %1888 = vrot.lane.b32.xlu0 %v1443, 96
      %v1889 = vpop.permute.xlu0 %1888
      %1890 = vrot.lane.b32.xlu0 %v1445, 96
      %v1891 = vpop.permute.xlu0 %1890
      %1892 = vrot.lane.b32.xlu0 %v1448, 96
      %v1893 = vpop.permute.xlu0 %1892
      %1894 = vrot.lane.b32.xlu0 %v1450, 96
      %v1895 = vpop.permute.xlu0 %1894
      %1896 = vrot.lane.b32.xlu0 %v1453, 96
      %v1897 = vpop.permute.xlu0 %1896
      %1898 = vrot.lane.b32.xlu0 %v1455, 96
      %v1899 = vpop.permute.xlu0 %1898
      %1900 = vrot.lane.b32.xlu0 %v1458, 96
      %v1901 = vpop.permute.xlu0 %1900
      %1902 = vrot.lane.b32.xlu0 %v1460, 96
      %v1903 = vpop.permute.xlu0 %1902
      %1904 = vrot.lane.b32.xlu0 %v1463, 96
      %v1905 = vpop.permute.xlu0 %1904
      %1906 = vrot.lane.b32.xlu0 %v1465, 96
      %v1907 = vpop.permute.xlu0 %1906
      %1908 = vrot.lane.b32.xlu0 %v1468, 96
      %v1909 = vpop.permute.xlu0 %1908
      %1910 = vrot.lane.b32.xlu0 %v1470, 96
      %v1911 = vpop.permute.xlu0 %1910
      %1912 = vrot.lane.b32.xlu0 %v1556, 96
      %v1913 = vpop.permute.xlu0 %1912
      %1914 = vrot.lane.b32.xlu0 %v1558, 96
      %v1915 = vpop.permute.xlu0 %1914
      %1948 = vrot.lane.b32.xlu0 %v1479, 120
      %v1949 = vpop.permute.xlu0 %1948
      %1950 = vrot.lane.b32.xlu0 %v1481, 120
      %v1951 = vpop.permute.xlu0 %1950
      %1952 = vrot.lane.b32.xlu0 %v1484, 120
      %v1953 = vpop.permute.xlu0 %1952
      %1954 = vrot.lane.b32.xlu0 %v1486, 120
      %v1955 = vpop.permute.xlu0 %1954
      %1956 = vrot.lane.b32.xlu0 %v1489, 120
      %v1957 = vpop.permute.xlu0 %1956
      %1958 = vrot.lane.b32.xlu0 %v1491, 120
      %v1959 = vpop.permute.xlu0 %1958
      %1960 = vrot.lane.b32.xlu0 %v1494, 120
      %v1961 = vpop.permute.xlu0 %1960
      %1962 = vrot.lane.b32.xlu0 %v1496, 120
      %v1963 = vpop.permute.xlu0 %1962
      %1964 = vrot.lane.b32.xlu0 %v1499, 120
      %v1965 = vpop.permute.xlu0 %1964
      %1966 = vrot.lane.b32.xlu0 %v1501, 120
      %v1967 = vpop.permute.xlu0 %1966
      %1968 = vrot.lane.b32.xlu0 %v1504, 120
      %v1969 = vpop.permute.xlu0 %1968
      %1970 = vrot.lane.b32.xlu0 %v1506, 120
      %v1971 = vpop.permute.xlu0 %1970
      %1972 = vrot.lane.b32.xlu0 %v1509, 120
      %v1973 = vpop.permute.xlu0 %1972
      %1974 = vrot.lane.b32.xlu0 %v1511, 120
      %v1975 = vpop.permute.xlu0 %1974
      %1976 = vrot.lane.b32.xlu0 %v1514, 120
      %v1977 = vpop.permute.xlu0 %1976
      %1978 = vrot.lane.b32.xlu0 %v1516, 120
      %v1979 = vpop.permute.xlu0 %1978
      %1980 = vrot.lane.b32.xlu0 %v1519, 120
      %v1981 = vpop.permute.xlu0 %1980
      %1982 = vrot.lane.b32.xlu0 %v1521, 120
      %v1983 = vpop.permute.xlu0 %1982
      %1984 = vrot.lane.b32.xlu0 %v1524, 120
      %v1985 = vpop.permute.xlu0 %1984
      %1986 = vrot.lane.b32.xlu0 %v1526, 120
      %v1987 = vpop.permute.xlu0 %1986
      %1988 = vrot.lane.b32.xlu0 %v1529, 120
      %v1989 = vpop.permute.xlu0 %1988
      %1990 = vrot.lane.b32.xlu0 %v1531, 120
      %v1991 = vpop.permute.xlu0 %1990
      %1992 = vrot.lane.b32.xlu0 %v1534, 120
      %v1993 = vpop.permute.xlu0 %1992
      %1994 = vrot.lane.b32.xlu0 %v1536, 120
      %v1995 = vpop.permute.xlu0 %1994
      %1996 = vrot.lane.b32.xlu0 %v1539, 120
      %v1997 = vpop.permute.xlu0 %1996
      %1998 = vrot.lane.b32.xlu0 %v1541, 120
      %v1999 = vpop.permute.xlu0 %1998
      %2000 = vrot.lane.b32.xlu0 %v1544, 120
      %v2001 = vpop.permute.xlu0 %2000
      %2002 = vrot.lane.b32.xlu0 %v1546, 120
      %v2003 = vpop.permute.xlu0 %2002
      %2004 = vrot.lane.b32.xlu0 %v1549, 120
      %v2005 = vpop.permute.xlu0 %2004
      %2006 = vrot.lane.b32.xlu0 %v1551, 120
      %v2007 = vpop.permute.xlu0 %2006
      %2008 = vrot.lane.b32.xlu0 %v1561, 120
      %v2009 = vpop.permute.xlu0 %2008
      %2010 = vrot.lane.b32.xlu0 %v1563, 120
      %v2011 = vpop.permute.xlu0 %2010
      %2044 = vrot.lane.b32.xlu0 %v1326, 16
      %v2045 = vpop.permute.xlu0 %2044
      %2046 = vrot.lane.b32.xlu0 %v1232, 16
      %v2047 = vpop.permute.xlu0 %2046
      %2048 = vrot.lane.b32.xlu0 %v1327, 16
      %v2049 = vpop.permute.xlu0 %2048
      %2050 = vrot.lane.b32.xlu0 %v1235, 16
      %v2051 = vpop.permute.xlu0 %2050
      %2052 = vrot.lane.b32.xlu0 %v1328, 16
      %v2053 = vpop.permute.xlu0 %2052
      %2054 = vrot.lane.b32.xlu0 %v1238, 16
      %v2055 = vpop.permute.xlu0 %2054
      %2056 = vrot.lane.b32.xlu0 %v1329, 16
      %v2057 = vpop.permute.xlu0 %2056
      %2058 = vrot.lane.b32.xlu0 %v1241, 16
      %v2059 = vpop.permute.xlu0 %2058
      %2060 = vrot.lane.b32.xlu0 %v1330, 16
      %v2061 = vpop.permute.xlu0 %2060
      %2062 = vrot.lane.b32.xlu0 %v1244, 16
      %v2063 = vpop.permute.xlu0 %2062
      %2064 = vrot.lane.b32.xlu0 %v1331, 16
      %v2065 = vpop.permute.xlu0 %2064
      %2066 = vrot.lane.b32.xlu0 %v1247, 16
      %v2067 = vpop.permute.xlu0 %2066
      %2068 = vrot.lane.b32.xlu0 %v1332, 16
      %v2069 = vpop.permute.xlu0 %2068
      %2070 = vrot.lane.b32.xlu0 %v1250, 16
      %v2071 = vpop.permute.xlu0 %2070
      %2072 = vrot.lane.b32.xlu0 %v1333, 16
      %v2073 = vpop.permute.xlu0 %2072
      %2074 = vrot.lane.b32.xlu0 %v1253, 16
      %v2075 = vpop.permute.xlu0 %2074
      %2076 = vrot.lane.b32.xlu0 %v1334, 16
      %v2077 = vpop.permute.xlu0 %2076
      %2078 = vrot.lane.b32.xlu0 %v1256, 16
      %v2079 = vpop.permute.xlu0 %2078
      %2080 = vrot.lane.b32.xlu0 %v1335, 16
      %v2081 = vpop.permute.xlu0 %2080
      %2082 = vrot.lane.b32.xlu0 %v1259, 16
      %v2083 = vpop.permute.xlu0 %2082
      %2084 = vrot.lane.b32.xlu0 %v1336, 16
      %v2085 = vpop.permute.xlu0 %2084
      %2086 = vrot.lane.b32.xlu0 %v1262, 16
      %v2087 = vpop.permute.xlu0 %2086
      %2088 = vrot.lane.b32.xlu0 %v1337, 16
      %v2089 = vpop.permute.xlu0 %2088
      %2090 = vrot.lane.b32.xlu0 %v1265, 16
      %v2091 = vpop.permute.xlu0 %2090
      %2092 = vrot.lane.b32.xlu0 %v1338, 16
      %v2093 = vpop.permute.xlu0 %2092
      %2094 = vrot.lane.b32.xlu0 %v1268, 16
      %v2095 = vpop.permute.xlu0 %2094
      %2096 = vrot.lane.b32.xlu0 %v1339, 16
      %v2097 = vpop.permute.xlu0 %2096
      %2098 = vrot.lane.b32.xlu0 %v1271, 16
      %v2099 = vpop.permute.xlu0 %2098
      %2100 = vrot.lane.b32.xlu0 %v1340, 16
      %v2101 = vpop.permute.xlu0 %2100
      %2102 = vrot.lane.b32.xlu0 %v1274, 16
      %v2103 = vpop.permute.xlu0 %2102
      %2104 = vrot.lane.b32.xlu0 %v1324, 16
      %v2105 = vpop.permute.xlu0 %2104
      %2106 = vrot.lane.b32.xlu0 %v1226, 16
      %v2107 = vpop.permute.xlu0 %2106
      %2140 = vrot.lane.b32.xlu0 %v1403, 40
      %v2141 = vpop.permute.xlu0 %2140
      %2142 = vrot.lane.b32.xlu0 %v1405, 40
      %v2143 = vpop.permute.xlu0 %2142
      %2144 = vrot.lane.b32.xlu0 %v1408, 40
      %v2145 = vpop.permute.xlu0 %2144
      %2146 = vrot.lane.b32.xlu0 %v1410, 40
      %v2147 = vpop.permute.xlu0 %2146
      %2148 = vrot.lane.b32.xlu0 %v1413, 40
      %v2149 = vpop.permute.xlu0 %2148
      %2150 = vrot.lane.b32.xlu0 %v1415, 40
      %v2151 = vpop.permute.xlu0 %2150
      %2152 = vrot.lane.b32.xlu0 %v1418, 40
      %v2153 = vpop.permute.xlu0 %2152
      %2154 = vrot.lane.b32.xlu0 %v1420, 40
      %v2155 = vpop.permute.xlu0 %2154
      %2156 = vrot.lane.b32.xlu0 %v1423, 40
      %v2157 = vpop.permute.xlu0 %2156
      %2158 = vrot.lane.b32.xlu0 %v1425, 40
      %v2159 = vpop.permute.xlu0 %2158
      %2160 = vrot.lane.b32.xlu0 %v1428, 40
      %v2161 = vpop.permute.xlu0 %2160
      %2162 = vrot.lane.b32.xlu0 %v1430, 40
      %v2163 = vpop.permute.xlu0 %2162
      %2164 = vrot.lane.b32.xlu0 %v1433, 40
      %v2165 = vpop.permute.xlu0 %2164
      %2166 = vrot.lane.b32.xlu0 %v1435, 40
      %v2167 = vpop.permute.xlu0 %2166
      %2168 = vrot.lane.b32.xlu0 %v1438, 40
      %v2169 = vpop.permute.xlu0 %2168
      %2170 = vrot.lane.b32.xlu0 %v1440, 40
      %v2171 = vpop.permute.xlu0 %2170
      %2172 = vrot.lane.b32.xlu0 %v1443, 40
      %v2173 = vpop.permute.xlu0 %2172
      %2174 = vrot.lane.b32.xlu0 %v1445, 40
      %v2175 = vpop.permute.xlu0 %2174
      %2176 = vrot.lane.b32.xlu0 %v1448, 40
      %v2177 = vpop.permute.xlu0 %2176
      %2178 = vrot.lane.b32.xlu0 %v1450, 40
      %v2179 = vpop.permute.xlu0 %2178
      %2180 = vrot.lane.b32.xlu0 %v1453, 40
      %v2181 = vpop.permute.xlu0 %2180
      %2182 = vrot.lane.b32.xlu0 %v1455, 40
      %v2183 = vpop.permute.xlu0 %2182
      %2184 = vrot.lane.b32.xlu0 %v1458, 40
      %v2185 = vpop.permute.xlu0 %2184
      %2186 = vrot.lane.b32.xlu0 %v1460, 40
      %v2187 = vpop.permute.xlu0 %2186
      %2188 = vrot.lane.b32.xlu0 %v1463, 40
      %v2189 = vpop.permute.xlu0 %2188
      %2190 = vrot.lane.b32.xlu0 %v1465, 40
      %v2191 = vpop.permute.xlu0 %2190
      %2192 = vrot.lane.b32.xlu0 %v1468, 40
      %v2193 = vpop.permute.xlu0 %2192
      %2194 = vrot.lane.b32.xlu0 %v1470, 40
      %v2195 = vpop.permute.xlu0 %2194
      %2196 = vrot.lane.b32.xlu0 %v1556, 40
      %v2197 = vpop.permute.xlu0 %2196
      %2198 = vrot.lane.b32.xlu0 %v1558, 40
      %v2199 = vpop.permute.xlu0 %2198
      %2200 = vrot.lane.b32.xlu0 %v1393, 40
      %v2201 = vpop.permute.xlu0 %2200
      %2202 = vrot.lane.b32.xlu0 %v1395, 40
      %v2203 = vpop.permute.xlu0 %2202
      %2236 = vrot.lane.b32.xlu0 %v1484, 64
      %v2237 = vpop.permute.xlu0 %2236
      %2238 = vrot.lane.b32.xlu0 %v1486, 64
      %v2239 = vpop.permute.xlu0 %2238
      %2240 = vrot.lane.b32.xlu0 %v1489, 64
      %v2241 = vpop.permute.xlu0 %2240
      %2242 = vrot.lane.b32.xlu0 %v1491, 64
      %v2243 = vpop.permute.xlu0 %2242
      %2244 = vrot.lane.b32.xlu0 %v1494, 64
      %v2245 = vpop.permute.xlu0 %2244
      %2246 = vrot.lane.b32.xlu0 %v1496, 64
      %v2247 = vpop.permute.xlu0 %2246
      %2248 = vrot.lane.b32.xlu0 %v1499, 64
      %v2249 = vpop.permute.xlu0 %2248
      %2250 = vrot.lane.b32.xlu0 %v1501, 64
      %v2251 = vpop.permute.xlu0 %2250
      %2252 = vrot.lane.b32.xlu0 %v1504, 64
      %v2253 = vpop.permute.xlu0 %2252
      %2254 = vrot.lane.b32.xlu0 %v1506, 64
      %v2255 = vpop.permute.xlu0 %2254
      %2256 = vrot.lane.b32.xlu0 %v1509, 64
      %v2257 = vpop.permute.xlu0 %2256
      %2258 = vrot.lane.b32.xlu0 %v1511, 64
      %v2259 = vpop.permute.xlu0 %2258
      %2260 = vrot.lane.b32.xlu0 %v1514, 64
      %v2261 = vpop.permute.xlu0 %2260
      %2262 = vrot.lane.b32.xlu0 %v1516, 64
      %v2263 = vpop.permute.xlu0 %2262
      %2264 = vrot.lane.b32.xlu0 %v1519, 64
      %v2265 = vpop.permute.xlu0 %2264
      %2266 = vrot.lane.b32.xlu0 %v1521, 64
      %v2267 = vpop.permute.xlu0 %2266
      %2268 = vrot.lane.b32.xlu0 %v1524, 64
      %v2269 = vpop.permute.xlu0 %2268
      %2270 = vrot.lane.b32.xlu0 %v1526, 64
      %v2271 = vpop.permute.xlu0 %2270
      %2272 = vrot.lane.b32.xlu0 %v1529, 64
      %v2273 = vpop.permute.xlu0 %2272
      %2274 = vrot.lane.b32.xlu0 %v1531, 64
      %v2275 = vpop.permute.xlu0 %2274
      %2276 = vrot.lane.b32.xlu0 %v1534, 64
      %v2277 = vpop.permute.xlu0 %2276
      %2278 = vrot.lane.b32.xlu0 %v1536, 64
      %v2279 = vpop.permute.xlu0 %2278
      %2280 = vrot.lane.b32.xlu0 %v1539, 64
      %v2281 = vpop.permute.xlu0 %2280
      %2282 = vrot.lane.b32.xlu0 %v1541, 64
      %v2283 = vpop.permute.xlu0 %2282
      %2284 = vrot.lane.b32.xlu0 %v1544, 64
      %v2285 = vpop.permute.xlu0 %2284
      %2286 = vrot.lane.b32.xlu0 %v1546, 64
      %v2287 = vpop.permute.xlu0 %2286
      %2288 = vrot.lane.b32.xlu0 %v1549, 64
      %v2289 = vpop.permute.xlu0 %2288
      %2290 = vrot.lane.b32.xlu0 %v1551, 64
      %v2291 = vpop.permute.xlu0 %2290
      %2292 = vrot.lane.b32.xlu0 %v1561, 64
      %v2293 = vpop.permute.xlu0 %2292
      %2294 = vrot.lane.b32.xlu0 %v1563, 64
      %v2295 = vpop.permute.xlu0 %2294
      %2296 = vrot.lane.b32.xlu0 %v1474, 64
      %v2297 = vpop.permute.xlu0 %2296
      %2298 = vrot.lane.b32.xlu0 %v1476, 64
      %v2299 = vpop.permute.xlu0 %2298
      %vm2332 = vcmask 195584
      %v2333 = vsel %vm2332, %v1324, %v1565
      %v2334 = vsel %vm2332, %v1226, %v1567
      %v2335 = vsel %vm2332, %v1325, %v1569
      %v2336 = vsel %vm2332, %v1229, %v1571
      %v2337 = vsel %vm2332, %v1326, %v1573
      %v2338 = vsel %vm2332, %v1232, %v1575
      %v2339 = vsel %vm2332, %v1327, %v1577
      %v2340 = vsel %vm2332, %v1235, %v1579
      %v2341 = vsel %vm2332, %v1328, %v1581
      %v2342 = vsel %vm2332, %v1238, %v1583
      %v2343 = vsel %vm2332, %v1329, %v1585
      %v2344 = vsel %vm2332, %v1241, %v1587
      %v2345 = vsel %vm2332, %v1330, %v1589
      %v2346 = vsel %vm2332, %v1244, %v1591
      %v2347 = vsel %vm2332, %v1331, %v1593
      %v2348 = vsel %vm2332, %v1247, %v1595
      %v2349 = vsel %vm2332, %v1332, %v1597
      %v2350 = vsel %vm2332, %v1250, %v1599
      %v2351 = vsel %vm2332, %v1333, %v1601
      %v2352 = vsel %vm2332, %v1253, %v1603
      %v2353 = vsel %vm2332, %v1334, %v1605
      %v2354 = vsel %vm2332, %v1256, %v1607
      %v2355 = vsel %vm2332, %v1335, %v1609
      %v2356 = vsel %vm2332, %v1259, %v1611
      %v2357 = vsel %vm2332, %v1336, %v1613
      %v2358 = vsel %vm2332, %v1262, %v1615
      %v2359 = vsel %vm2332, %v1337, %v1617
      %v2360 = vsel %vm2332, %v1265, %v1619
      %v2361 = vsel %vm2332, %v1338, %v1621
      %v2362 = vsel %vm2332, %v1268, %v1623
      %v2363 = vsel %vm2332, %v1339, %v1625
      %v2364 = vsel %vm2332, %v1271, %v1627
      %vm2365 = vcmask 392192
      %v2366 = vsel %vm2365, %v2333, %v1661
      %v2367 = vsel %vm2365, %v2334, %v1663
      %v2368 = vsel %vm2365, %v2335, %v1665
      %v2369 = vsel %vm2365, %v2336, %v1667
      %v2370 = vsel %vm2365, %v2337, %v1669
      %v2371 = vsel %vm2365, %v2338, %v1671
      %v2372 = vsel %vm2365, %v2339, %v1673
      %v2373 = vsel %vm2365, %v2340, %v1675
      %v2374 = vsel %vm2365, %v2341, %v1677
      %v2375 = vsel %vm2365, %v2342, %v1679
      %v2376 = vsel %vm2365, %v2343, %v1681
      %v2377 = vsel %vm2365, %v2344, %v1683
      %v2378 = vsel %vm2365, %v2345, %v1685
      %v2379 = vsel %vm2365, %v2346, %v1687
      %v2380 = vsel %vm2365, %v2347, %v1689
      %v2381 = vsel %vm2365, %v2348, %v1691
      %v2382 = vsel %vm2365, %v2349, %v1693
      %v2383 = vsel %vm2365, %v2350, %v1695
      %v2384 = vsel %vm2365, %v2351, %v1697
      %v2385 = vsel %vm2365, %v2352, %v1699
      %v2386 = vsel %vm2365, %v2353, %v1701
      %v2387 = vsel %vm2365, %v2354, %v1703
      %v2388 = vsel %vm2365, %v2355, %v1705
      %v2389 = vsel %vm2365, %v2356, %v1707
      %v2390 = vsel %vm2365, %v2357, %v1709
      %v2391 = vsel %vm2365, %v2358, %v1711
      %v2392 = vsel %vm2365, %v2359, %v1713
      %v2393 = vsel %vm2365, %v2360, %v1715
      %v2394 = vsel %vm2365, %v2361, %v1717
      %v2395 = vsel %vm2365, %v2362, %v1719
      %v2396 = vsel %vm2365, %v2363, %v1721
      %v2397 = vsel %vm2365, %v2364, %v1723
      %vm2398 = vcmask 588800
      %v2399 = vsel %vm2398, %v2366, %v1757
      %v2400 = vsel %vm2398, %v2367, %v1759
      %v2401 = vsel %vm2398, %v2368, %v1761
      %v2402 = vsel %vm2398, %v2369, %v1763
      %v2403 = vsel %vm2398, %v2370, %v1765
      %v2404 = vsel %vm2398, %v2371, %v1767
      %v2405 = vsel %vm2398, %v2372, %v1769
      %v2406 = vsel %vm2398, %v2373, %v1771
      %v2407 = vsel %vm2398, %v2374, %v1773
      %v2408 = vsel %vm2398, %v2375, %v1775
      %v2409 = vsel %vm2398, %v2376, %v1777
      %v2410 = vsel %vm2398, %v2377, %v1779
      %v2411 = vsel %vm2398, %v2378, %v1781
      %v2412 = vsel %vm2398, %v2379, %v1783
      %v2413 = vsel %vm2398, %v2380, %v1785
      %v2414 = vsel %vm2398, %v2381, %v1787
      %v2415 = vsel %vm2398, %v2382, %v1789
      %v2416 = vsel %vm2398, %v2383, %v1791
      %v2417 = vsel %vm2398, %v2384, %v1793
      %v2418 = vsel %vm2398, %v2385, %v1795
      %v2419 = vsel %vm2398, %v2386, %v1797
      %v2420 = vsel %vm2398, %v2387, %v1799
      %v2421 = vsel %vm2398, %v2388, %v1801
      %v2422 = vsel %vm2398, %v2389, %v1803
      %v2423 = vsel %vm2398, %v2390, %v1805
      %v2424 = vsel %vm2398, %v2391, %v1807
      %v2425 = vsel %vm2398, %v2392, %v1809
      %v2426 = vsel %vm2398, %v2393, %v1811
      %v2427 = vsel %vm2398, %v2394, %v1813
      %v2428 = vsel %vm2398, %v2395, %v1815
      %v2429 = vsel %vm2398, %v2396, %v1817
      %v2430 = vsel %vm2398, %v2397, %v1819
      %vm2431 = vcmask 785408
      %v2432 = vsel %vm2431, %v2399, %v1853
      %v2433 = vsel %vm2431, %v2400, %v1855
      %v2434 = vsel %vm2431, %v2401, %v1857
      %v2435 = vsel %vm2431, %v2402, %v1859
      %v2436 = vsel %vm2431, %v2403, %v1861
      %v2437 = vsel %vm2431, %v2404, %v1863
      %v2438 = vsel %vm2431, %v2405, %v1865
      %v2439 = vsel %vm2431, %v2406, %v1867
      %v2440 = vsel %vm2431, %v2407, %v1869
      %v2441 = vsel %vm2431, %v2408, %v1871
      %v2442 = vsel %vm2431, %v2409, %v1873
      %v2443 = vsel %vm2431, %v2410, %v1875
      %v2444 = vsel %vm2431, %v2411, %v1877
      %v2445 = vsel %vm2431, %v2412, %v1879
      %v2446 = vsel %vm2431, %v2413, %v1881
      %v2447 = vsel %vm2431, %v2414, %v1883
      %v2448 = vsel %vm2431, %v2415, %v1885
      %v2449 = vsel %vm2431, %v2416, %v1887
      %v2450 = vsel %vm2431, %v2417, %v1889
      %v2451 = vsel %vm2431, %v2418, %v1891
      %v2452 = vsel %vm2431, %v2419, %v1893
      %v2453 = vsel %vm2431, %v2420, %v1895
      %v2454 = vsel %vm2431, %v2421, %v1897
      %v2455 = vsel %vm2431, %v2422, %v1899
      %v2456 = vsel %vm2431, %v2423, %v1901
      %v2457 = vsel %vm2431, %v2424, %v1903
      %v2458 = vsel %vm2431, %v2425, %v1905
      %v2459 = vsel %vm2431, %v2426, %v1907
      %v2460 = vsel %vm2431, %v2427, %v1909
      %v2461 = vsel %vm2431, %v2428, %v1911
      %v2462 = vsel %vm2431, %v2429, %v1913
      %v2463 = vsel %vm2431, %v2430, %v1915
      %vm2464 = vcmask 982016
      %v2465 = vsel %vm2464, %v2432, %v1949
      %v2466 = vsel %vm2464, %v2433, %v1951
      %v2467 = vsel %vm2464, %v2434, %v1953
      %v2468 = vsel %vm2464, %v2435, %v1955
      %v2469 = vsel %vm2464, %v2436, %v1957
      %v2470 = vsel %vm2464, %v2437, %v1959
      %v2471 = vsel %vm2464, %v2438, %v1961
      %v2472 = vsel %vm2464, %v2439, %v1963
      %v2473 = vsel %vm2464, %v2440, %v1965
      %v2474 = vsel %vm2464, %v2441, %v1967
      %v2475 = vsel %vm2464, %v2442, %v1969
      %v2476 = vsel %vm2464, %v2443, %v1971
      %v2477 = vsel %vm2464, %v2444, %v1973
      %v2478 = vsel %vm2464, %v2445, %v1975
      %v2479 = vsel %vm2464, %v2446, %v1977
      %v2480 = vsel %vm2464, %v2447, %v1979
      %v2481 = vsel %vm2464, %v2448, %v1981
      %v2482 = vsel %vm2464, %v2449, %v1983
      %v2483 = vsel %vm2464, %v2450, %v1985
      %v2484 = vsel %vm2464, %v2451, %v1987
      %v2485 = vsel %vm2464, %v2452, %v1989
      %v2486 = vsel %vm2464, %v2453, %v1991
      %v2487 = vsel %vm2464, %v2454, %v1993
      %v2488 = vsel %vm2464, %v2455, %v1995
      %v2489 = vsel %vm2464, %v2456, %v1997
      %v2490 = vsel %vm2464, %v2457, %v1999
      %v2491 = vsel %vm2464, %v2458, %v2001
      %v2492 = vsel %vm2464, %v2459, %v2003
      %v2493 = vsel %vm2464, %v2460, %v2005
      %v2494 = vsel %vm2464, %v2461, %v2007
      %v2495 = vsel %vm2464, %v2462, %v2009
      %v2496 = vsel %vm2464, %v2463, %v2011
      %v2497 = vsel %vm646, %v1949, %v2045
      %v2498 = vsel %vm646, %v1951, %v2047
      %v2499 = vsel %vm646, %v1953, %v2049
      %v2500 = vsel %vm646, %v1955, %v2051
      %v2501 = vsel %vm646, %v1957, %v2053
      %v2502 = vsel %vm646, %v1959, %v2055
      %v2503 = vsel %vm646, %v1961, %v2057
      %v2504 = vsel %vm646, %v1963, %v2059
      %v2505 = vsel %vm646, %v1965, %v2061
      %v2506 = vsel %vm646, %v1967, %v2063
      %v2507 = vsel %vm646, %v1969, %v2065
      %v2508 = vsel %vm646, %v1971, %v2067
      %v2509 = vsel %vm646, %v1973, %v2069
      %v2510 = vsel %vm646, %v1975, %v2071
      %v2511 = vsel %vm646, %v1977, %v2073
      %v2512 = vsel %vm646, %v1979, %v2075
      %v2513 = vsel %vm646, %v1981, %v2077
      %v2514 = vsel %vm646, %v1983, %v2079
      %v2515 = vsel %vm646, %v1985, %v2081
      %v2516 = vsel %vm646, %v1987, %v2083
      %v2517 = vsel %vm646, %v1989, %v2085
      %v2518 = vsel %vm646, %v1991, %v2087
      %v2519 = vsel %vm646, %v1993, %v2089
      %v2520 = vsel %vm646, %v1995, %v2091
      %v2521 = vsel %vm646, %v1997, %v2093
      %v2522 = vsel %vm646, %v1999, %v2095
      %v2523 = vsel %vm646, %v2001, %v2097
      %v2524 = vsel %vm646, %v2003, %v2099
      %v2525 = vsel %vm646, %v2005, %v2101
      %v2526 = vsel %vm646, %v2007, %v2103
      %v2527 = vsel %vm646, %v2009, %v2105
      %v2528 = vsel %vm646, %v2011, %v2107
      %vm2529 = vcmask 326656
      %v2530 = vsel %vm2529, %v2497, %v2141
      %v2531 = vsel %vm2529, %v2498, %v2143
      %v2532 = vsel %vm2529, %v2499, %v2145
      %v2533 = vsel %vm2529, %v2500, %v2147
      %v2534 = vsel %vm2529, %v2501, %v2149
      %v2535 = vsel %vm2529, %v2502, %v2151
      %v2536 = vsel %vm2529, %v2503, %v2153
      %v2537 = vsel %vm2529, %v2504, %v2155
      %v2538 = vsel %vm2529, %v2505, %v2157
      %v2539 = vsel %vm2529, %v2506, %v2159
      %v2540 = vsel %vm2529, %v2507, %v2161
      %v2541 = vsel %vm2529, %v2508, %v2163
      %v2542 = vsel %vm2529, %v2509, %v2165
      %v2543 = vsel %vm2529, %v2510, %v2167
      %v2544 = vsel %vm2529, %v2511, %v2169
      %v2545 = vsel %vm2529, %v2512, %v2171
      %v2546 = vsel %vm2529, %v2513, %v2173
      %v2547 = vsel %vm2529, %v2514, %v2175
      %v2548 = vsel %vm2529, %v2515, %v2177
      %v2549 = vsel %vm2529, %v2516, %v2179
      %v2550 = vsel %vm2529, %v2517, %v2181
      %v2551 = vsel %vm2529, %v2518, %v2183
      %v2552 = vsel %vm2529, %v2519, %v2185
      %v2553 = vsel %vm2529, %v2520, %v2187
      %v2554 = vsel %vm2529, %v2521, %v2189
      %v2555 = vsel %vm2529, %v2522, %v2191
      %v2556 = vsel %vm2529, %v2523, %v2193
      %v2557 = vsel %vm2529, %v2524, %v2195
      %v2558 = vsel %vm2529, %v2525, %v2197
      %v2559 = vsel %vm2529, %v2526, %v2199
      %v2560 = vsel %vm2529, %v2527, %v2201
      %v2561 = vsel %vm2529, %v2528, %v2203
      %vm2562 = vcmask 523264
      %v2563 = vsel %vm2562, %v2530, %v2237
      %v2564 = vsel %vm2562, %v2531, %v2239
      %v2565 = vsel %vm2562, %v2532, %v2241
      %v2566 = vsel %vm2562, %v2533, %v2243
      %v2567 = vsel %vm2562, %v2534, %v2245
      %v2568 = vsel %vm2562, %v2535, %v2247
      %v2569 = vsel %vm2562, %v2536, %v2249
      %v2570 = vsel %vm2562, %v2537, %v2251
      %v2571 = vsel %vm2562, %v2538, %v2253
      %v2572 = vsel %vm2562, %v2539, %v2255
      %v2573 = vsel %vm2562, %v2540, %v2257
      %v2574 = vsel %vm2562, %v2541, %v2259
      %v2575 = vsel %vm2562, %v2542, %v2261
      %v2576 = vsel %vm2562, %v2543, %v2263
      %v2577 = vsel %vm2562, %v2544, %v2265
      %v2578 = vsel %vm2562, %v2545, %v2267
      %v2579 = vsel %vm2562, %v2546, %v2269
      %v2580 = vsel %vm2562, %v2547, %v2271
      %v2581 = vsel %vm2562, %v2548, %v2273
      %v2582 = vsel %vm2562, %v2549, %v2275
      %v2583 = vsel %vm2562, %v2550, %v2277
      %v2584 = vsel %vm2562, %v2551, %v2279
      %v2585 = vsel %vm2562, %v2552, %v2281
      %v2586 = vsel %vm2562, %v2553, %v2283
      %v2587 = vsel %vm2562, %v2554, %v2285
      %v2588 = vsel %vm2562, %v2555, %v2287
      %v2589 = vsel %vm2562, %v2556, %v2289
      %v2590 = vsel %vm2562, %v2557, %v2291
      %v2591 = vsel %vm2562, %v2558, %v2293
      %v2592 = vsel %vm2562, %v2559, %v2295
      %v2593 = vsel %vm2562, %v2560, %v2297
      %v2594 = vsel %vm2562, %v2561, %v2299
      %v2595 = vpack.c.bf16 %v2466, %v2465
      %v2596 = vpack.c.bf16 %v2564, %v2563
      %v2597 = vpack.c.bf16 %v2468, %v2467
      %v2598 = vpack.c.bf16 %v2566, %v2565
      %v2599 = vpack.c.bf16 %v2470, %v2469
      %v2600 = vpack.c.bf16 %v2568, %v2567
      %v2601 = vpack.c.bf16 %v2472, %v2471
      %v2602 = vpack.c.bf16 %v2570, %v2569
      %v2603 = vpack.c.bf16 %v2474, %v2473
      %v2604 = vpack.c.bf16 %v2572, %v2571
      %v2605 = vpack.c.bf16 %v2476, %v2475
      %v2606 = vpack.c.bf16 %v2574, %v2573
      %v2607 = vpack.c.bf16 %v2478, %v2477
      %v2608 = vpack.c.bf16 %v2576, %v2575
      %v2609 = vpack.c.bf16 %v2480, %v2479
      %v2610 = vpack.c.bf16 %v2578, %v2577
      %v2611 = vpack.c.bf16 %v2482, %v2481
      %v2612 = vpack.c.bf16 %v2580, %v2579
      %v2613 = vpack.c.bf16 %v2484, %v2483
      %v2614 = vpack.c.bf16 %v2582, %v2581
      %v2615 = vpack.c.bf16 %v2486, %v2485
      %v2616 = vpack.c.bf16 %v2584, %v2583
      %v2617 = vpack.c.bf16 %v2488, %v2487
      %v2618 = vpack.c.bf16 %v2586, %v2585
      %v2619 = vpack.c.bf16 %v2490, %v2489
      %v2620 = vpack.c.bf16 %v2588, %v2587
      %v2621 = vpack.c.bf16 %v2492, %v2491
      %v2622 = vpack.c.bf16 %v2590, %v2589
      %v2623 = vpack.c.bf16 %v2494, %v2493
      %v2624 = vpack.c.bf16 %v2592, %v2591
      %v2625 = vpack.c.bf16 %v2496, %v2495
      %v2626 = vpack.c.bf16 %v2594, %v2593
      %v2654 = vunpack.c.l.b16 %v1164
      %v2655 = vunpack.c.l.b16 %v1165
      %v2656 = vunpack.c.l.b16 %v1166
      %v2657 = vunpack.c.l.b16 %v1167
      %v2658 = vunpack.c.l.b16 %v1168
      %v2659 = vunpack.c.l.b16 %v1169
      %v2660 = vunpack.c.l.b16 %v1170
      %v2661 = vunpack.c.l.b16 %v1171
      %v2662 = vunpack.c.l.b16 %v1172
      %v2663 = vunpack.c.l.b16 %v1173
      %v2664 = vunpack.c.l.b16 %v1174
      %v2665 = vunpack.c.l.b16 %v1175
      %v2666 = vunpack.c.l.b16 %v1176
      %v2667 = vunpack.c.l.b16 %v1177
      %v2668 = vunpack.c.l.b16 %v1178
      %v2669 = vunpack.c.l.b16 %v1179
      %v2670 = vunpack.c.l.b16 %v1180
      %v2671 = vunpack.c.l.b16 %v1181
      %v2672 = vunpack.c.l.b16 %v1182
      %v2673 = vunpack.c.l.b16 %v1183
      %v2674 = vunpack.c.l.b16 %v1184
      %v2675 = vunpack.c.l.b16 %v1185
      %v2676 = vunpack.c.l.b16 %v1186
      %v2677 = vunpack.c.l.b16 %v1187
      %v2678 = vunpack.c.l.b16 %v1188
      %v2679 = vunpack.c.l.b16 %v1189
      %v2680 = vunpack.c.l.b16 %v1190
      %v2681 = vpack.c.b16 %v2655, %v2654
      %v2682 = vpack.c.b16 %v2657, %v2656
      %v2683 = vpack.c.b16 %v2659, %v2658
      %v2684 = vpack.c.b16 %v2661, %v2660
      %v2685 = vpack.c.b16 %v2663, %v2662
      %v2686 = vpack.c.b16 %v2665, %v2664
      %v2687 = vpack.c.b16 %v2667, %v2666
      %v2688 = vpack.c.b16 %v2669, %v2668
      %v2689 = vpack.c.b16 %v2671, %v2670
      %v2690 = vpack.c.b16 %v2673, %v2672
      %v2691 = vpack.c.b16 %v2675, %v2674
      %v2692 = vpack.c.b16 %v2677, %v2676
      %v2693 = vpack.c.b16 %v2679, %v2678
      %v2694 = vpack.c.b16 %v2680, %v2680
      %vm2708 = vcmask 719872
      %v2710 = vsel %vm2708, %v2596, 0
      %v2713 = vsel %vm2708, %v2598, 0
      %v2716 = vsel %vm2708, %v2600, 0
      %v2719 = vsel %vm2708, %v2602, 0
      %v2722 = vsel %vm2708, %v2604, 0
      %v2725 = vsel %vm2708, %v2606, 0
      %v2728 = vsel %vm2708, %v2608, 0
      %v2731 = vsel %vm2708, %v2610, 0
      %v2734 = vsel %vm2708, %v2612, 0
      %v2737 = vsel %vm2708, %v2614, 0
      %v2740 = vsel %vm2708, %v2616, 0
      %v2743 = vsel %vm2708, %v2618, 0
      %v2746 = vsel %vm2708, %v2620, 0
      %v2749 = vsel %vm2708, %v2622, 0
      %v2752 = vsel %vm2708, %v2624, 0
      %v2755 = vsel %vm2708, %v2626, 0
      %v2758 = vsel %vm475, %v2694, 0
      %2760 = vmatprep.subr.bf16.mxu0 0
      %2761 = vmatpush1.bf16.msra.mxu0 %v2688
      %2762 = vmatprep.subr.bf16.mxu0 0
      %2763 = vmatpush1.bf16.msra.mxu0 %v2687
      %2764 = vmatprep.subr.bf16.mxu0 0
      %2765 = vmatpush1.bf16.msra.mxu0 %v2686
      %2766 = vmatprep.subr.bf16.mxu0 0
      %2767 = vmatpush1.bf16.msra.mxu0 %v2685
      %2768 = vmatprep.subr.bf16.mxu0 0
      %2769 = vmatpush1.bf16.msra.mxu0 %v2684
      %2770 = vmatprep.subr.bf16.mxu0 0
      %2771 = vmatpush1.bf16.msra.mxu0 %v2683
      %2772 = vmatprep.subr.bf16.mxu0 0
      %2773 = vmatpush1.bf16.msra.mxu0 %v2682
      %2774 = vmatprep.subr.bf16.mxu0 0
      %2775 = vmatpush1.bf16.msra.mxu0 %v2681
      %2776 = vmatprep.subr.bf16.mxu0 0
      %2777 = vmatpush2.bf16.msra.mxu0 0
      %2778 = vmatprep.subr.bf16.mxu0 0
      %2779 = vmatpush2.bf16.msra.mxu0 0
      %2780 = vmatprep.subr.bf16.mxu0 0
      %2781 = vmatpush2.bf16.msra.mxu0 %v2758
      %2782 = vmatprep.subr.bf16.mxu0 0
      %2783 = vmatpush2.bf16.msra.mxu0 %v2693
      %2784 = vmatprep.subr.bf16.mxu0 0
      %2785 = vmatpush2.bf16.msra.mxu0 %v2692
      %2786 = vmatprep.subr.bf16.mxu0 0
      %2787 = vmatpush2.bf16.msra.mxu0 %v2691
      %2788 = vmatprep.subr.bf16.mxu0 0
      %2789 = vmatpush2.bf16.msra.mxu0 %v2690
      %2790 = vmatprep.subr.bf16.mxu0 0
      %2791 = vmatpush2.bf16.msra.mxu0 %v2689
      %2792 = vmatprep.mubr.bf16.mxu0 %v2710
      %2793 = vmatmul.mubr.bf16.gmra.mxu0 %v2595
      %v2794 = vpop.f32.mrf.mxu0
      %v2795 = vadd.f32 0.0, %v2794
      %v2796 = vpop.f32.mrf.mxu0
      %v2797 = vpop.f32.mrf.mxu0
      %v2798 = vadd.f32 0.0, %v2797
      %v2799 = vpop.f32.mrf.mxu0
      %2800 = vmatprep.mubr.bf16.mxu0 %v2713
      %2801 = vmatmul.mubr.bf16.gmra.mxu0 %v2597
      %v2802 = vpop.f32.mrf.mxu0
      %v2803 = vadd.f32 0.0, %v2802
      %v2804 = vpop.f32.mrf.mxu0
      %v2805 = vpop.f32.mrf.mxu0
      %v2806 = vadd.f32 0.0, %v2805
      %v2807 = vpop.f32.mrf.mxu0
      %2808 = vmatprep.mubr.bf16.mxu0 %v2716
      %2809 = vmatmul.mubr.bf16.gmra.mxu0 %v2599
      %v2810 = vpop.f32.mrf.mxu0
      %v2811 = vadd.f32 0.0, %v2810
      %v2812 = vpop.f32.mrf.mxu0
      %v2813 = vpop.f32.mrf.mxu0
      %v2814 = vadd.f32 0.0, %v2813
      %v2815 = vpop.f32.mrf.mxu0
      %2816 = vmatprep.mubr.bf16.mxu0 %v2719
      %2817 = vmatmul.mubr.bf16.gmra.mxu0 %v2601
      %v2818 = vpop.f32.mrf.mxu0
      %v2819 = vadd.f32 0.0, %v2818
      %v2820 = vpop.f32.mrf.mxu0
      %v2821 = vpop.f32.mrf.mxu0
      %v2822 = vadd.f32 0.0, %v2821
      %v2823 = vpop.f32.mrf.mxu0
      %2824 = vmatprep.mubr.bf16.mxu0 %v2722
      %2825 = vmatmul.mubr.bf16.gmra.mxu0 %v2603
      %v2826 = vpop.f32.mrf.mxu0
      %v2827 = vadd.f32 0.0, %v2826
      %v2828 = vpop.f32.mrf.mxu0
      %v2829 = vpop.f32.mrf.mxu0
      %v2830 = vadd.f32 0.0, %v2829
      %v2831 = vpop.f32.mrf.mxu0
      %2832 = vmatprep.mubr.bf16.mxu0 %v2725
      %2833 = vmatmul.mubr.bf16.gmra.mxu0 %v2605
      %v2834 = vpop.f32.mrf.mxu0
      %v2835 = vadd.f32 0.0, %v2834
      %v2836 = vpop.f32.mrf.mxu0
      %v2837 = vpop.f32.mrf.mxu0
      %v2838 = vadd.f32 0.0, %v2837
      %v2839 = vpop.f32.mrf.mxu0
      %2840 = vmatprep.mubr.bf16.mxu0 %v2728
      %2841 = vmatmul.mubr.bf16.gmra.mxu0 %v2607
      %v2842 = vpop.f32.mrf.mxu0
      %v2843 = vadd.f32 0.0, %v2842
      %v2844 = vpop.f32.mrf.mxu0
      %v2845 = vpop.f32.mrf.mxu0
      %v2846 = vadd.f32 0.0, %v2845
      %v2847 = vpop.f32.mrf.mxu0
      %2848 = vmatprep.mubr.bf16.mxu0 %v2731
      %2849 = vmatmul.mubr.bf16.gmra.mxu0 %v2609
      %v2850 = vpop.f32.mrf.mxu0
      %v2851 = vadd.f32 0.0, %v2850
      %v2852 = vpop.f32.mrf.mxu0
      %v2853 = vpop.f32.mrf.mxu0
      %v2854 = vadd.f32 0.0, %v2853
      %v2855 = vpop.f32.mrf.mxu0
      %2856 = vmatprep.mubr.bf16.mxu0 %v2734
      %2857 = vmatmul.mubr.bf16.gmra.mxu0 %v2611
      %v2858 = vpop.f32.mrf.mxu0
      %v2859 = vadd.f32 0.0, %v2858
      %v2860 = vpop.f32.mrf.mxu0
      %v2861 = vpop.f32.mrf.mxu0
      %v2862 = vadd.f32 0.0, %v2861
      %v2863 = vpop.f32.mrf.mxu0
      %2864 = vmatprep.mubr.bf16.mxu0 %v2737
      %2865 = vmatmul.mubr.bf16.gmra.mxu0 %v2613
      %v2866 = vpop.f32.mrf.mxu0
      %v2867 = vadd.f32 0.0, %v2866
      %v2868 = vpop.f32.mrf.mxu0
      %v2869 = vpop.f32.mrf.mxu0
      %v2870 = vadd.f32 0.0, %v2869
      %v2871 = vpop.f32.mrf.mxu0
      %2872 = vmatprep.mubr.bf16.mxu0 %v2740
      %2873 = vmatmul.mubr.bf16.gmra.mxu0 %v2615
      %v2874 = vpop.f32.mrf.mxu0
      %v2875 = vadd.f32 0.0, %v2874
      %v2876 = vpop.f32.mrf.mxu0
      %v2877 = vpop.f32.mrf.mxu0
      %v2878 = vadd.f32 0.0, %v2877
      %v2879 = vpop.f32.mrf.mxu0
      %2880 = vmatprep.mubr.bf16.mxu0 %v2743
      %2881 = vmatmul.mubr.bf16.gmra.mxu0 %v2617
      %v2882 = vpop.f32.mrf.mxu0
      %v2883 = vadd.f32 0.0, %v2882
      %v2884 = vpop.f32.mrf.mxu0
      %v2885 = vpop.f32.mrf.mxu0
      %v2886 = vadd.f32 0.0, %v2885
      %v2887 = vpop.f32.mrf.mxu0
      %2888 = vmatprep.mubr.bf16.mxu0 %v2746
      %2889 = vmatmul.mubr.bf16.gmra.mxu0 %v2619
      %v2890 = vpop.f32.mrf.mxu0
      %v2891 = vadd.f32 0.0, %v2890
      %v2892 = vpop.f32.mrf.mxu0
      %v2893 = vpop.f32.mrf.mxu0
      %v2894 = vadd.f32 0.0, %v2893
      %v2895 = vpop.f32.mrf.mxu0
      %2896 = vmatprep.mubr.bf16.mxu0 %v2749
      %2897 = vmatmul.mubr.bf16.gmra.mxu0 %v2621
      %v2898 = vpop.f32.mrf.mxu0
      %v2899 = vadd.f32 0.0, %v2898
      %v2900 = vpop.f32.mrf.mxu0
      %v2901 = vpop.f32.mrf.mxu0
      %v2902 = vadd.f32 0.0, %v2901
      %v2903 = vpop.f32.mrf.mxu0
      %2904 = vmatprep.mubr.bf16.mxu0 %v2752
      %2905 = vmatmul.mubr.bf16.gmra.mxu0 %v2623
      %v2906 = vpop.f32.mrf.mxu0
      %v2907 = vadd.f32 0.0, %v2906
      %v2908 = vpop.f32.mrf.mxu0
      %v2909 = vpop.f32.mrf.mxu0
      %v2910 = vadd.f32 0.0, %v2909
      %v2911 = vpop.f32.mrf.mxu0
      %2912 = vmatprep.mubr.bf16.mxu0 %v2755
      %2913 = vmatmul.mubr.bf16.gmra.mxu0 %v2625
      %v2914 = vpop.f32.mrf.mxu0
      %v2915 = vadd.f32 0.0, %v2914
      %v2916 = vpop.f32.mrf.mxu0
      %v2917 = vpop.f32.mrf.mxu0
      %v2918 = vadd.f32 0.0, %v2917
      %v2919 = vpop.f32.mrf.mxu0
      %2920 = vdwg.mxu0
      %v2921 = vxor.u32 %v2795, 2147483648
      %v2922 = vxor.u32 %v2798, 2147483648
      %v2923 = vxor.u32 %v2803, 2147483648
      %v2924 = vxor.u32 %v2806, 2147483648
      %v2925 = vxor.u32 %v2811, 2147483648
      %v2926 = vxor.u32 %v2814, 2147483648
      %v2927 = vxor.u32 %v2819, 2147483648
      %v2928 = vxor.u32 %v2822, 2147483648
      %v2929 = vxor.u32 %v2827, 2147483648
      %v2930 = vxor.u32 %v2830, 2147483648
      %v2931 = vxor.u32 %v2835, 2147483648
      %v2932 = vxor.u32 %v2838, 2147483648
      %v2933 = vxor.u32 %v2843, 2147483648
      %v2934 = vxor.u32 %v2846, 2147483648
      %v2935 = vxor.u32 %v2851, 2147483648
      %v2936 = vxor.u32 %v2854, 2147483648
      %v2937 = vxor.u32 %v2859, 2147483648
      %v2938 = vxor.u32 %v2862, 2147483648
      %v2939 = vxor.u32 %v2867, 2147483648
      %v2940 = vxor.u32 %v2870, 2147483648
      %v2941 = vxor.u32 %v2875, 2147483648
      %v2942 = vxor.u32 %v2878, 2147483648
      %v2943 = vxor.u32 %v2883, 2147483648
      %v2944 = vxor.u32 %v2886, 2147483648
      %v2945 = vxor.u32 %v2891, 2147483648
      %v2946 = vxor.u32 %v2894, 2147483648
      %v2947 = vxor.u32 %v2899, 2147483648
      %v2948 = vxor.u32 %v2902, 2147483648
      %v2949 = vxor.u32 %v2907, 2147483648
      %v2950 = vxor.u32 %v2910, 2147483648
      %v2951 = vxor.u32 %v2915, 2147483648
      %v2952 = vxor.u32 %v2918, 2147483648
      %v2953 = vmul.f32 %v2921, 1.442695
      %v2954 = vpow.pop %v2953
      %v2955 = vmul.f32 %v2922, 1.442695
      %v2956 = vpow.pop %v2955
      %v2957 = vmul.f32 %v2923, 1.442695
      %v2958 = vpow.pop %v2957
      %v2959 = vmul.f32 %v2924, 1.442695
      %v2960 = vpow.pop %v2959
      %v2961 = vmul.f32 %v2925, 1.442695
      %v2962 = vpow.pop %v2961
      %v2963 = vmul.f32 %v2926, 1.442695
      %v2964 = vpow.pop %v2963
      %v2965 = vmul.f32 %v2927, 1.442695
      %v2966 = vpow.pop %v2965
      %v2967 = vmul.f32 %v2928, 1.442695
      %v2968 = vpow.pop %v2967
      %v2969 = vmul.f32 %v2929, 1.442695
      %v2970 = vpow.pop %v2969
      %v2971 = vmul.f32 %v2930, 1.442695
      %v2972 = vpow.pop %v2971
      %v2973 = vmul.f32 %v2931, 1.442695
      %v2974 = vpow.pop %v2973
      %v2975 = vmul.f32 %v2932, 1.442695
      %v2976 = vpow.pop %v2975
      %v2977 = vmul.f32 %v2933, 1.442695
      %v2978 = vpow.pop %v2977
      %v2979 = vmul.f32 %v2934, 1.442695
      %v2980 = vpow.pop %v2979
      %v2981 = vmul.f32 %v2935, 1.442695
      %v2982 = vpow.pop %v2981
      %v2983 = vmul.f32 %v2936, 1.442695
      %v2984 = vpow.pop %v2983
      %v2985 = vmul.f32 %v2937, 1.442695
      %v2986 = vpow.pop %v2985
      %v2987 = vmul.f32 %v2938, 1.442695
      %v2988 = vpow.pop %v2987
      %v2989 = vmul.f32 %v2939, 1.442695
      %v2990 = vpow.pop %v2989
      %v2991 = vmul.f32 %v2940, 1.442695
      %v2992 = vpow.pop %v2991
      %v2993 = vmul.f32 %v2941, 1.442695
      %v2994 = vpow.pop %v2993
      %v2995 = vmul.f32 %v2942, 1.442695
      %v2996 = vpow.pop %v2995
      %v2997 = vmul.f32 %v2943, 1.442695
      %v2998 = vpow.pop %v2997
      %v2999 = vmul.f32 %v2944, 1.442695
      %v3000 = vpow.pop %v2999
      %v3001 = vmul.f32 %v2945, 1.442695
      %v3002 = vpow.pop %v3001
      %v3003 = vmul.f32 %v2946, 1.442695
      %v3004 = vpow.pop %v3003
      %v3005 = vmul.f32 %v2947, 1.442695
      %v3006 = vpow.pop %v3005
      %v3007 = vmul.f32 %v2948, 1.442695
      %v3008 = vpow.pop %v3007
      %v3009 = vmul.f32 %v2949, 1.442695
      %v3010 = vpow.pop %v3009
      %v3011 = vmul.f32 %v2950, 1.442695
      %v3012 = vpow.pop %v3011
      %v3013 = vmul.f32 %v2951, 1.442695
      %v3014 = vpow.pop %v3013
      %v3015 = vmul.f32 %v2952, 1.442695
      %v3016 = vpow.pop %v3015
      %v3017 = vadd.f32 %v2954, 1.0
      %v3018 = vadd.f32 %v2956, 1.0
      %v3019 = vadd.f32 %v2958, 1.0
      %v3020 = vadd.f32 %v2960, 1.0
      %v3021 = vadd.f32 %v2962, 1.0
      %v3022 = vadd.f32 %v2964, 1.0
      %v3023 = vadd.f32 %v2966, 1.0
      %v3024 = vadd.f32 %v2968, 1.0
      %v3025 = vadd.f32 %v2970, 1.0
      %v3026 = vadd.f32 %v2972, 1.0
      %v3027 = vadd.f32 %v2974, 1.0
      %v3028 = vadd.f32 %v2976, 1.0
      %v3029 = vadd.f32 %v2978, 1.0
      %v3030 = vadd.f32 %v2980, 1.0
      %v3031 = vadd.f32 %v2982, 1.0
      %v3032 = vadd.f32 %v2984, 1.0
      %v3033 = vadd.f32 %v2986, 1.0
      %v3034 = vadd.f32 %v2988, 1.0
      %v3035 = vadd.f32 %v2990, 1.0
      %v3036 = vadd.f32 %v2992, 1.0
      %v3037 = vadd.f32 %v2994, 1.0
      %v3038 = vadd.f32 %v2996, 1.0
      %v3039 = vadd.f32 %v2998, 1.0
      %v3040 = vadd.f32 %v3000, 1.0
      %v3041 = vadd.f32 %v3002, 1.0
      %v3042 = vadd.f32 %v3004, 1.0
      %v3043 = vadd.f32 %v3006, 1.0
      %v3044 = vadd.f32 %v3008, 1.0
      %v3045 = vadd.f32 %v3010, 1.0
      %v3046 = vadd.f32 %v3012, 1.0
      %v3047 = vadd.f32 %v3014, 1.0
      %v3048 = vadd.f32 %v3016, 1.0
      %v3049 = vrcp.pop %v3017
      %v3050 = vmul.f32 1.0, %v3049
      %v3051 = vrcp.pop %v3018
      %v3052 = vmul.f32 1.0, %v3051
      %v3053 = vrcp.pop %v3019
      %v3054 = vmul.f32 1.0, %v3053
      %v3055 = vrcp.pop %v3020
      %v3056 = vmul.f32 1.0, %v3055
      %v3057 = vrcp.pop %v3021
      %v3058 = vmul.f32 1.0, %v3057
      %v3059 = vrcp.pop %v3022
      %v3060 = vmul.f32 1.0, %v3059
      %v3061 = vrcp.pop %v3023
      %v3062 = vmul.f32 1.0, %v3061
      %v3063 = vrcp.pop %v3024
      %v3064 = vmul.f32 1.0, %v3063
      %v3065 = vrcp.pop %v3025
      %v3066 = vmul.f32 1.0, %v3065
      %v3067 = vrcp.pop %v3026
      %v3068 = vmul.f32 1.0, %v3067
      %v3069 = vrcp.pop %v3027
      %v3070 = vmul.f32 1.0, %v3069
      %v3071 = vrcp.pop %v3028
      %v3072 = vmul.f32 1.0, %v3071
      %v3073 = vrcp.pop %v3029
      %v3074 = vmul.f32 1.0, %v3073
      %v3075 = vrcp.pop %v3030
      %v3076 = vmul.f32 1.0, %v3075
      %v3077 = vrcp.pop %v3031
      %v3078 = vmul.f32 1.0, %v3077
      %v3079 = vrcp.pop %v3032
      %v3080 = vmul.f32 1.0, %v3079
      %v3081 = vrcp.pop %v3033
      %v3082 = vmul.f32 1.0, %v3081
      %v3083 = vrcp.pop %v3034
      %v3084 = vmul.f32 1.0, %v3083
      %v3085 = vrcp.pop %v3035
      %v3086 = vmul.f32 1.0, %v3085
      %v3087 = vrcp.pop %v3036
      %v3088 = vmul.f32 1.0, %v3087
      %v3089 = vrcp.pop %v3037
      %v3090 = vmul.f32 1.0, %v3089
      %v3091 = vrcp.pop %v3038
      %v3092 = vmul.f32 1.0, %v3091
      %v3093 = vrcp.pop %v3039
      %v3094 = vmul.f32 1.0, %v3093
      %v3095 = vrcp.pop %v3040
      %v3096 = vmul.f32 1.0, %v3095
      %v3097 = vrcp.pop %v3041
      %v3098 = vmul.f32 1.0, %v3097
      %v3099 = vrcp.pop %v3042
      %v3100 = vmul.f32 1.0, %v3099
      %v3101 = vrcp.pop %v3043
      %v3102 = vmul.f32 1.0, %v3101
      %v3103 = vrcp.pop %v3044
      %v3104 = vmul.f32 1.0, %v3103
      %v3105 = vrcp.pop %v3045
      %v3106 = vmul.f32 1.0, %v3105
      %v3107 = vrcp.pop %v3046
      %v3108 = vmul.f32 1.0, %v3107
      %v3109 = vrcp.pop %v3047
      %v3110 = vmul.f32 1.0, %v3109
      %v3111 = vrcp.pop %v3048
      %v3112 = vmul.f32 1.0, %v3111
      %v3113 = vmul.f32 %v2795, %v3050
      %v3114 = vmul.f32 %v2798, %v3052
      %v3115 = vmul.f32 %v2803, %v3054
      %v3116 = vmul.f32 %v2806, %v3056
      %v3117 = vmul.f32 %v2811, %v3058
      %v3118 = vmul.f32 %v2814, %v3060
      %v3119 = vmul.f32 %v2819, %v3062
      %v3120 = vmul.f32 %v2822, %v3064
      %v3121 = vmul.f32 %v2827, %v3066
      %v3122 = vmul.f32 %v2830, %v3068
      %v3123 = vmul.f32 %v2835, %v3070
      %v3124 = vmul.f32 %v2838, %v3072
      %v3125 = vmul.f32 %v2843, %v3074
      %v3126 = vmul.f32 %v2846, %v3076
      %v3127 = vmul.f32 %v2851, %v3078
      %v3128 = vmul.f32 %v2854, %v3080
      %v3129 = vmul.f32 %v2859, %v3082
      %v3130 = vmul.f32 %v2862, %v3084
      %v3131 = vmul.f32 %v2867, %v3086
      %v3132 = vmul.f32 %v2870, %v3088
      %v3133 = vmul.f32 %v2875, %v3090
      %v3134 = vmul.f32 %v2878, %v3092
      %v3135 = vmul.f32 %v2883, %v3094
      %v3136 = vmul.f32 %v2886, %v3096
      %v3137 = vmul.f32 %v2891, %v3098
      %v3138 = vmul.f32 %v2894, %v3100
      %v3139 = vmul.f32 %v2899, %v3102
      %v3140 = vmul.f32 %v2902, %v3104
      %v3141 = vmul.f32 %v2907, %v3106
      %v3142 = vmul.f32 %v2910, %v3108
      %v3143 = vmul.f32 %v2915, %v3110
      %v3144 = vmul.f32 %v2918, %v3112
      %v3145 = vld [vmem:[%s7] sm:$0xf]
      %v3146 = vld [vmem:[%s7 + $0x4] sm:$0xf]
      %v3147 = vld [vmem:[%s7 + $0x8] sm:$0xf]
      %v3148 = vld [vmem:[%s7 + $0xc] sm:$0xf]
      %v3149 = vld [vmem:[%s7 + $0x10] sm:$0xf]
      %v3150 = vld [vmem:[%s7 + $0x14] sm:$0xf]
      %v3151 = vld [vmem:[%s7 + $0x18] sm:$0xf]
      %v3152 = vld [vmem:[%s7 + $0x1c] sm:$0xf]
      %v3153 = vld [vmem:[%s7 + $0x20] sm:$0xf]
      %v3154 = vld [vmem:[%s7 + $0x24] sm:$0xf]
      %v3155 = vld [vmem:[%s7 + $0x28] sm:$0xf]
      %v3156 = vld [vmem:[%s7 + $0x2c] sm:$0xf]
      %v3157 = vld [vmem:[%s7 + $0x30] sm:$0xf]
      %v3158 = vld [vmem:[%s7 + $0x34] sm:$0xf]
      %v3159 = vld [vmem:[%s7 + $0x38] sm:$0xf]
      %v3160 = vld [vmem:[%s7 + $0x3c] sm:$0xf]
      %v3161 = vld [vmem:[%s7 + $0x40] sm:$0xf]
      %v3162 = vld [vmem:[%s7 + $0x44] sm:$0xf]
      %v3195 = vrot.slane %v3113, 7
      %v3196 = vrot.slane %v3114, 7
      %v3197 = vsel %vm1224, %v3195, %v3196
      %v3198 = vrot.slane %v3115, 7
      %v3199 = vrot.slane %v3116, 7
      %v3200 = vsel %vm1224, %v3198, %v3199
      %v3201 = vrot.slane %v3117, 7
      %v3202 = vrot.slane %v3118, 7
      %v3203 = vsel %vm1224, %v3201, %v3202
      %v3204 = vrot.slane %v3119, 7
      %v3205 = vrot.slane %v3120, 7
      %v3206 = vsel %vm1224, %v3204, %v3205
      %v3207 = vrot.slane %v3121, 7
      %v3208 = vrot.slane %v3122, 7
      %v3209 = vsel %vm1224, %v3207, %v3208
      %v3210 = vrot.slane %v3123, 7
      %v3211 = vrot.slane %v3124, 7
      %v3212 = vsel %vm1224, %v3210, %v3211
      %v3213 = vrot.slane %v3125, 7
      %v3214 = vrot.slane %v3126, 7
      %v3215 = vsel %vm1224, %v3213, %v3214
      %v3216 = vrot.slane %v3127, 7
      %v3217 = vrot.slane %v3128, 7
      %v3218 = vsel %vm1224, %v3216, %v3217
      %v3219 = vrot.slane %v3129, 7
      %v3220 = vrot.slane %v3130, 7
      %v3221 = vsel %vm1224, %v3219, %v3220
      %v3222 = vrot.slane %v3131, 7
      %v3223 = vrot.slane %v3132, 7
      %v3224 = vsel %vm1224, %v3222, %v3223
      %v3225 = vrot.slane %v3133, 7
      %v3226 = vrot.slane %v3134, 7
      %v3227 = vsel %vm1224, %v3225, %v3226
      %v3228 = vrot.slane %v3135, 7
      %v3229 = vrot.slane %v3136, 7
      %v3230 = vsel %vm1224, %v3228, %v3229
      %v3231 = vrot.slane %v3137, 7
      %v3232 = vrot.slane %v3138, 7
      %v3233 = vsel %vm1224, %v3231, %v3232
      %v3234 = vrot.slane %v3139, 7
      %v3235 = vrot.slane %v3140, 7
      %v3236 = vsel %vm1224, %v3234, %v3235
      %v3237 = vrot.slane %v3141, 7
      %v3238 = vrot.slane %v3142, 7
      %v3239 = vsel %vm1224, %v3237, %v3238
      %v3240 = vrot.slane %v3143, 7
      %v3241 = vrot.slane %v3144, 7
      %v3242 = vsel %vm1224, %v3240, %v3241
      %v3290 = vsel %vm1224, 0.0, %v3195
      %v3291 = vsel %vm1224, 0.0, %v3198
      %v3292 = vsel %vm1224, 0.0, %v3201
      %v3293 = vsel %vm1224, 0.0, %v3204
      %v3294 = vsel %vm1224, 0.0, %v3207
      %v3295 = vsel %vm1224, 0.0, %v3210
      %v3296 = vsel %vm1224, 0.0, %v3213
      %v3297 = vsel %vm1224, 0.0, %v3216
      %v3298 = vsel %vm1224, 0.0, %v3219
      %v3299 = vsel %vm1224, 0.0, %v3222
      %v3300 = vsel %vm1224, 0.0, %v3225
      %v3301 = vsel %vm1224, 0.0, %v3228
      %v3302 = vsel %vm1224, 0.0, %v3231
      %v3303 = vsel %vm1224, 0.0, %v3234
      %v3304 = vsel %vm1224, 0.0, %v3237
      %v3305 = vsel %vm1224, 0.0, %v3240
      %v3306 = vsel %vm1224, %v3196, 0.0
      %v3307 = vsel %vm1224, %v3199, 0.0
      %v3308 = vsel %vm1224, %v3202, 0.0
      %v3309 = vsel %vm1224, %v3205, 0.0
      %v3310 = vsel %vm1224, %v3208, 0.0
      %v3311 = vsel %vm1224, %v3211, 0.0
      %v3312 = vsel %vm1224, %v3214, 0.0
      %v3313 = vsel %vm1224, %v3217, 0.0
      %v3314 = vsel %vm1224, %v3220, 0.0
      %v3315 = vsel %vm1224, %v3223, 0.0
      %v3316 = vsel %vm1224, %v3226, 0.0
      %v3317 = vsel %vm1224, %v3229, 0.0
      %v3318 = vsel %vm1224, %v3232, 0.0
      %v3319 = vsel %vm1224, %v3235, 0.0
      %v3320 = vsel %vm1224, %v3238, 0.0
      %v3321 = vsel %vm1224, %v3241, 0.0
      %v3352 = vrot.slane %v3290, 1
      %v3353 = vrot.slane %v3197, 1
      %v3354 = vsel %vm1390, %v3352, %v3353
      %v3355 = vrot.slane %v3306, 1
      %v3356 = vsel %vm1390, %v3353, %v3355
      %v3357 = vrot.slane %v3291, 1
      %v3358 = vrot.slane %v3200, 1
      %v3359 = vsel %vm1390, %v3357, %v3358
      %v3360 = vrot.slane %v3307, 1
      %v3361 = vsel %vm1390, %v3358, %v3360
      %v3362 = vrot.slane %v3292, 1
      %v3363 = vrot.slane %v3203, 1
      %v3364 = vsel %vm1390, %v3362, %v3363
      %v3365 = vrot.slane %v3308, 1
      %v3366 = vsel %vm1390, %v3363, %v3365
      %v3367 = vrot.slane %v3293, 1
      %v3368 = vrot.slane %v3206, 1
      %v3369 = vsel %vm1390, %v3367, %v3368
      %v3370 = vrot.slane %v3309, 1
      %v3371 = vsel %vm1390, %v3368, %v3370
      %v3372 = vrot.slane %v3294, 1
      %v3373 = vrot.slane %v3209, 1
      %v3374 = vsel %vm1390, %v3372, %v3373
      %v3375 = vrot.slane %v3310, 1
      %v3376 = vsel %vm1390, %v3373, %v3375
      %v3377 = vrot.slane %v3295, 1
      %v3378 = vrot.slane %v3212, 1
      %v3379 = vsel %vm1390, %v3377, %v3378
      %v3380 = vrot.slane %v3311, 1
      %v3381 = vsel %vm1390, %v3378, %v3380
      %v3382 = vrot.slane %v3296, 1
      %v3383 = vrot.slane %v3215, 1
      %v3384 = vsel %vm1390, %v3382, %v3383
      %v3385 = vrot.slane %v3312, 1
      %v3386 = vsel %vm1390, %v3383, %v3385
      %v3387 = vrot.slane %v3297, 1
      %v3388 = vrot.slane %v3218, 1
      %v3389 = vsel %vm1390, %v3387, %v3388
      %v3390 = vrot.slane %v3313, 1
      %v3391 = vsel %vm1390, %v3388, %v3390
      %v3392 = vrot.slane %v3298, 1
      %v3393 = vrot.slane %v3221, 1
      %v3394 = vsel %vm1390, %v3392, %v3393
      %v3395 = vrot.slane %v3314, 1
      %v3396 = vsel %vm1390, %v3393, %v3395
      %v3397 = vrot.slane %v3299, 1
      %v3398 = vrot.slane %v3224, 1
      %v3399 = vsel %vm1390, %v3397, %v3398
      %v3400 = vrot.slane %v3315, 1
      %v3401 = vsel %vm1390, %v3398, %v3400
      %v3402 = vrot.slane %v3300, 1
      %v3403 = vrot.slane %v3227, 1
      %v3404 = vsel %vm1390, %v3402, %v3403
      %v3405 = vrot.slane %v3316, 1
      %v3406 = vsel %vm1390, %v3403, %v3405
      %v3407 = vrot.slane %v3301, 1
      %v3408 = vrot.slane %v3230, 1
      %v3409 = vsel %vm1390, %v3407, %v3408
      %v3410 = vrot.slane %v3317, 1
      %v3411 = vsel %vm1390, %v3408, %v3410
      %v3412 = vrot.slane %v3302, 1
      %v3413 = vrot.slane %v3233, 1
      %v3414 = vsel %vm1390, %v3412, %v3413
      %v3415 = vrot.slane %v3318, 1
      %v3416 = vsel %vm1390, %v3413, %v3415
      %v3417 = vrot.slane %v3303, 1
      %v3418 = vrot.slane %v3236, 1
      %v3419 = vsel %vm1390, %v3417, %v3418
      %v3420 = vrot.slane %v3319, 1
      %v3421 = vsel %vm1390, %v3418, %v3420
      %v3422 = vrot.slane %v3304, 1
      %v3423 = vrot.slane %v3239, 1
      %v3424 = vsel %vm1390, %v3422, %v3423
      %v3425 = vrot.slane %v3320, 1
      %v3426 = vsel %vm1390, %v3423, %v3425
      %v3427 = vrot.slane %v3290, 2
      %v3428 = vrot.slane %v3197, 2
      %v3429 = vsel %vm1471, %v3427, %v3428
      %v3430 = vrot.slane %v3306, 2
      %v3431 = vsel %vm1471, %v3428, %v3430
      %v3432 = vrot.slane %v3291, 2
      %v3433 = vrot.slane %v3200, 2
      %v3434 = vsel %vm1471, %v3432, %v3433
      %v3435 = vrot.slane %v3307, 2
      %v3436 = vsel %vm1471, %v3433, %v3435
      %v3437 = vrot.slane %v3292, 2
      %v3438 = vrot.slane %v3203, 2
      %v3439 = vsel %vm1471, %v3437, %v3438
      %v3440 = vrot.slane %v3308, 2
      %v3441 = vsel %vm1471, %v3438, %v3440
      %v3442 = vrot.slane %v3293, 2
      %v3443 = vrot.slane %v3206, 2
      %v3444 = vsel %vm1471, %v3442, %v3443
      %v3445 = vrot.slane %v3309, 2
      %v3446 = vsel %vm1471, %v3443, %v3445
      %v3447 = vrot.slane %v3294, 2
      %v3448 = vrot.slane %v3209, 2
      %v3449 = vsel %vm1471, %v3447, %v3448
      %v3450 = vrot.slane %v3310, 2
      %v3451 = vsel %vm1471, %v3448, %v3450
      %v3452 = vrot.slane %v3295, 2
      %v3453 = vrot.slane %v3212, 2
      %v3454 = vsel %vm1471, %v3452, %v3453
      %v3455 = vrot.slane %v3311, 2
      %v3456 = vsel %vm1471, %v3453, %v3455
      %v3457 = vrot.slane %v3296, 2
      %v3458 = vrot.slane %v3215, 2
      %v3459 = vsel %vm1471, %v3457, %v3458
      %v3460 = vrot.slane %v3312, 2
      %v3461 = vsel %vm1471, %v3458, %v3460
      %v3462 = vrot.slane %v3297, 2
      %v3463 = vrot.slane %v3218, 2
      %v3464 = vsel %vm1471, %v3462, %v3463
      %v3465 = vrot.slane %v3313, 2
      %v3466 = vsel %vm1471, %v3463, %v3465
      %v3467 = vrot.slane %v3298, 2
      %v3468 = vrot.slane %v3221, 2
      %v3469 = vsel %vm1471, %v3467, %v3468
      %v3470 = vrot.slane %v3314, 2
      %v3471 = vsel %vm1471, %v3468, %v3470
      %v3472 = vrot.slane %v3299, 2
      %v3473 = vrot.slane %v3224, 2
      %v3474 = vsel %vm1471, %v3472, %v3473
      %v3475 = vrot.slane %v3315, 2
      %v3476 = vsel %vm1471, %v3473, %v3475
      %v3477 = vrot.slane %v3300, 2
      %v3478 = vrot.slane %v3227, 2
      %v3479 = vsel %vm1471, %v3477, %v3478
      %v3480 = vrot.slane %v3316, 2
      %v3481 = vsel %vm1471, %v3478, %v3480
      %v3482 = vrot.slane %v3301, 2
      %v3483 = vrot.slane %v3230, 2
      %v3484 = vsel %vm1471, %v3482, %v3483
      %v3485 = vrot.slane %v3317, 2
      %v3486 = vsel %vm1471, %v3483, %v3485
      %v3487 = vrot.slane %v3302, 2
      %v3488 = vrot.slane %v3233, 2
      %v3489 = vsel %vm1471, %v3487, %v3488
      %v3490 = vrot.slane %v3318, 2
      %v3491 = vsel %vm1471, %v3488, %v3490
      %v3492 = vrot.slane %v3303, 2
      %v3493 = vrot.slane %v3236, 2
      %v3494 = vsel %vm1471, %v3492, %v3493
      %v3495 = vrot.slane %v3319, 2
      %v3496 = vsel %vm1471, %v3493, %v3495
      %v3497 = vrot.slane %v3304, 2
      %v3498 = vrot.slane %v3239, 2
      %v3499 = vsel %vm1471, %v3497, %v3498
      %v3500 = vrot.slane %v3320, 2
      %v3501 = vsel %vm1471, %v3498, %v3500
      %v3504 = vrot.slane %v3305, 1
      %v3505 = vrot.slane %v3242, 1
      %v3506 = vsel %vm1390, %v3504, %v3505
      %v3507 = vrot.slane %v3321, 1
      %v3508 = vsel %vm1390, %v3505, %v3507
      %v3509 = vrot.slane %v3305, 2
      %v3510 = vrot.slane %v3242, 2
      %v3511 = vsel %vm1471, %v3509, %v3510
      %v3512 = vrot.slane %v3321, 2
      %v3513 = vsel %vm1471, %v3510, %v3512
      %3546 = vrot.lane.b32.xlu0 %v1393, 16
      %v3547 = vpop.permute.xlu0 %3546
      %3548 = vrot.lane.b32.xlu0 %v1395, 16
      %v3549 = vpop.permute.xlu0 %3548
      %3550 = vrot.lane.b32.xlu0 %v3354, 16
      %v3551 = vpop.permute.xlu0 %3550
      %3552 = vrot.lane.b32.xlu0 %v3356, 16
      %v3553 = vpop.permute.xlu0 %3552
      %3554 = vrot.lane.b32.xlu0 %v3359, 16
      %v3555 = vpop.permute.xlu0 %3554
      %3556 = vrot.lane.b32.xlu0 %v3361, 16
      %v3557 = vpop.permute.xlu0 %3556
      %3558 = vrot.lane.b32.xlu0 %v3364, 16
      %v3559 = vpop.permute.xlu0 %3558
      %3560 = vrot.lane.b32.xlu0 %v3366, 16
      %v3561 = vpop.permute.xlu0 %3560
      %3562 = vrot.lane.b32.xlu0 %v3369, 16
      %v3563 = vpop.permute.xlu0 %3562
      %3564 = vrot.lane.b32.xlu0 %v3371, 16
      %v3565 = vpop.permute.xlu0 %3564
      %3566 = vrot.lane.b32.xlu0 %v3374, 16
      %v3567 = vpop.permute.xlu0 %3566
      %3568 = vrot.lane.b32.xlu0 %v3376, 16
      %v3569 = vpop.permute.xlu0 %3568
      %3570 = vrot.lane.b32.xlu0 %v3379, 16
      %v3571 = vpop.permute.xlu0 %3570
      %3572 = vrot.lane.b32.xlu0 %v3381, 16
      %v3573 = vpop.permute.xlu0 %3572
      %3574 = vrot.lane.b32.xlu0 %v3384, 16
      %v3575 = vpop.permute.xlu0 %3574
      %3576 = vrot.lane.b32.xlu0 %v3386, 16
      %v3577 = vpop.permute.xlu0 %3576
      %3578 = vrot.lane.b32.xlu0 %v3389, 16
      %v3579 = vpop.permute.xlu0 %3578
      %3580 = vrot.lane.b32.xlu0 %v3391, 16
      %v3581 = vpop.permute.xlu0 %3580
      %3582 = vrot.lane.b32.xlu0 %v3394, 16
      %v3583 = vpop.permute.xlu0 %3582
      %3584 = vrot.lane.b32.xlu0 %v3396, 16
      %v3585 = vpop.permute.xlu0 %3584
      %3586 = vrot.lane.b32.xlu0 %v3399, 16
      %v3587 = vpop.permute.xlu0 %3586
      %3588 = vrot.lane.b32.xlu0 %v3401, 16
      %v3589 = vpop.permute.xlu0 %3588
      %3590 = vrot.lane.b32.xlu0 %v3404, 16
      %v3591 = vpop.permute.xlu0 %3590
      %3592 = vrot.lane.b32.xlu0 %v3406, 16
      %v3593 = vpop.permute.xlu0 %3592
      %3594 = vrot.lane.b32.xlu0 %v3409, 16
      %v3595 = vpop.permute.xlu0 %3594
      %3596 = vrot.lane.b32.xlu0 %v3411, 16
      %v3597 = vpop.permute.xlu0 %3596
      %3598 = vrot.lane.b32.xlu0 %v3414, 16
      %v3599 = vpop.permute.xlu0 %3598
      %3600 = vrot.lane.b32.xlu0 %v3416, 16
      %v3601 = vpop.permute.xlu0 %3600
      %3602 = vrot.lane.b32.xlu0 %v3419, 16
      %v3603 = vpop.permute.xlu0 %3602
      %3604 = vrot.lane.b32.xlu0 %v3421, 16
      %v3605 = vpop.permute.xlu0 %3604
      %3606 = vrot.lane.b32.xlu0 %v3424, 16
      %v3607 = vpop.permute.xlu0 %3606
      %3608 = vrot.lane.b32.xlu0 %v3426, 16
      %v3609 = vpop.permute.xlu0 %3608
      %3642 = vrot.lane.b32.xlu0 %v1474, 32
      %v3643 = vpop.permute.xlu0 %3642
      %3644 = vrot.lane.b32.xlu0 %v1476, 32
      %v3645 = vpop.permute.xlu0 %3644
      %3646 = vrot.lane.b32.xlu0 %v3429, 32
      %v3647 = vpop.permute.xlu0 %3646
      %3648 = vrot.lane.b32.xlu0 %v3431, 32
      %v3649 = vpop.permute.xlu0 %3648
      %3650 = vrot.lane.b32.xlu0 %v3434, 32
      %v3651 = vpop.permute.xlu0 %3650
      %3652 = vrot.lane.b32.xlu0 %v3436, 32
      %v3653 = vpop.permute.xlu0 %3652
      %3654 = vrot.lane.b32.xlu0 %v3439, 32
      %v3655 = vpop.permute.xlu0 %3654
      %3656 = vrot.lane.b32.xlu0 %v3441, 32
      %v3657 = vpop.permute.xlu0 %3656
      %3658 = vrot.lane.b32.xlu0 %v3444, 32
      %v3659 = vpop.permute.xlu0 %3658
      %3660 = vrot.lane.b32.xlu0 %v3446, 32
      %v3661 = vpop.permute.xlu0 %3660
      %3662 = vrot.lane.b32.xlu0 %v3449, 32
      %v3663 = vpop.permute.xlu0 %3662
      %3664 = vrot.lane.b32.xlu0 %v3451, 32
      %v3665 = vpop.permute.xlu0 %3664
      %3666 = vrot.lane.b32.xlu0 %v3454, 32
      %v3667 = vpop.permute.xlu0 %3666
      %3668 = vrot.lane.b32.xlu0 %v3456, 32
      %v3669 = vpop.permute.xlu0 %3668
      %3670 = vrot.lane.b32.xlu0 %v3459, 32
      %v3671 = vpop.permute.xlu0 %3670
      %3672 = vrot.lane.b32.xlu0 %v3461, 32
      %v3673 = vpop.permute.xlu0 %3672
      %3674 = vrot.lane.b32.xlu0 %v3464, 32
      %v3675 = vpop.permute.xlu0 %3674
      %3676 = vrot.lane.b32.xlu0 %v3466, 32
      %v3677 = vpop.permute.xlu0 %3676
      %3678 = vrot.lane.b32.xlu0 %v3469, 32
      %v3679 = vpop.permute.xlu0 %3678
      %3680 = vrot.lane.b32.xlu0 %v3471, 32
      %v3681 = vpop.permute.xlu0 %3680
      %3682 = vrot.lane.b32.xlu0 %v3474, 32
      %v3683 = vpop.permute.xlu0 %3682
      %3684 = vrot.lane.b32.xlu0 %v3476, 32
      %v3685 = vpop.permute.xlu0 %3684
      %3686 = vrot.lane.b32.xlu0 %v3479, 32
      %v3687 = vpop.permute.xlu0 %3686
      %3688 = vrot.lane.b32.xlu0 %v3481, 32
      %v3689 = vpop.permute.xlu0 %3688
      %3690 = vrot.lane.b32.xlu0 %v3484, 32
      %v3691 = vpop.permute.xlu0 %3690
      %3692 = vrot.lane.b32.xlu0 %v3486, 32
      %v3693 = vpop.permute.xlu0 %3692
      %3694 = vrot.lane.b32.xlu0 %v3489, 32
      %v3695 = vpop.permute.xlu0 %3694
      %3696 = vrot.lane.b32.xlu0 %v3491, 32
      %v3697 = vpop.permute.xlu0 %3696
      %3698 = vrot.lane.b32.xlu0 %v3494, 32
      %v3699 = vpop.permute.xlu0 %3698
      %3700 = vrot.lane.b32.xlu0 %v3496, 32
      %v3701 = vpop.permute.xlu0 %3700
      %3702 = vrot.lane.b32.xlu0 %v3499, 32
      %v3703 = vpop.permute.xlu0 %3702
      %3704 = vrot.lane.b32.xlu0 %v3501, 32
      %v3705 = vpop.permute.xlu0 %3704
      %3738 = vrot.lane.b32.xlu0 %v3290, 48
      %v3739 = vpop.permute.xlu0 %3738
      %3740 = vrot.lane.b32.xlu0 %v3197, 48
      %v3741 = vpop.permute.xlu0 %3740
      %3742 = vrot.lane.b32.xlu0 %v3291, 48
      %v3743 = vpop.permute.xlu0 %3742
      %3744 = vrot.lane.b32.xlu0 %v3200, 48
      %v3745 = vpop.permute.xlu0 %3744
      %3746 = vrot.lane.b32.xlu0 %v3292, 48
      %v3747 = vpop.permute.xlu0 %3746
      %3748 = vrot.lane.b32.xlu0 %v3203, 48
      %v3749 = vpop.permute.xlu0 %3748
      %3750 = vrot.lane.b32.xlu0 %v3293, 48
      %v3751 = vpop.permute.xlu0 %3750
      %3752 = vrot.lane.b32.xlu0 %v3206, 48
      %v3753 = vpop.permute.xlu0 %3752
      %3754 = vrot.lane.b32.xlu0 %v3294, 48
      %v3755 = vpop.permute.xlu0 %3754
      %3756 = vrot.lane.b32.xlu0 %v3209, 48
      %v3757 = vpop.permute.xlu0 %3756
      %3758 = vrot.lane.b32.xlu0 %v3295, 48
      %v3759 = vpop.permute.xlu0 %3758
      %3760 = vrot.lane.b32.xlu0 %v3212, 48
      %v3761 = vpop.permute.xlu0 %3760
      %3762 = vrot.lane.b32.xlu0 %v3296, 48
      %v3763 = vpop.permute.xlu0 %3762
      %3764 = vrot.lane.b32.xlu0 %v3215, 48
      %v3765 = vpop.permute.xlu0 %3764
      %3766 = vrot.lane.b32.xlu0 %v3297, 48
      %v3767 = vpop.permute.xlu0 %3766
      %3768 = vrot.lane.b32.xlu0 %v3218, 48
      %v3769 = vpop.permute.xlu0 %3768
      %3770 = vrot.lane.b32.xlu0 %v3298, 48
      %v3771 = vpop.permute.xlu0 %3770
      %3772 = vrot.lane.b32.xlu0 %v3221, 48
      %v3773 = vpop.permute.xlu0 %3772
      %3774 = vrot.lane.b32.xlu0 %v3299, 48
      %v3775 = vpop.permute.xlu0 %3774
      %3776 = vrot.lane.b32.xlu0 %v3224, 48
      %v3777 = vpop.permute.xlu0 %3776
      %3778 = vrot.lane.b32.xlu0 %v3300, 48
      %v3779 = vpop.permute.xlu0 %3778
      %3780 = vrot.lane.b32.xlu0 %v3227, 48
      %v3781 = vpop.permute.xlu0 %3780
      %3782 = vrot.lane.b32.xlu0 %v3301, 48
      %v3783 = vpop.permute.xlu0 %3782
      %3784 = vrot.lane.b32.xlu0 %v3230, 48
      %v3785 = vpop.permute.xlu0 %3784
      %3786 = vrot.lane.b32.xlu0 %v3302, 48
      %v3787 = vpop.permute.xlu0 %3786
      %3788 = vrot.lane.b32.xlu0 %v3233, 48
      %v3789 = vpop.permute.xlu0 %3788
      %3790 = vrot.lane.b32.xlu0 %v3303, 48
      %v3791 = vpop.permute.xlu0 %3790
      %3792 = vrot.lane.b32.xlu0 %v3236, 48
      %v3793 = vpop.permute.xlu0 %3792
      %3794 = vrot.lane.b32.xlu0 %v3304, 48
      %v3795 = vpop.permute.xlu0 %3794
      %3796 = vrot.lane.b32.xlu0 %v3239, 48
      %v3797 = vpop.permute.xlu0 %3796
      %3798 = vrot.lane.b32.xlu0 %v3305, 48
      %v3799 = vpop.permute.xlu0 %3798
      %3800 = vrot.lane.b32.xlu0 %v3242, 48
      %v3801 = vpop.permute.xlu0 %3800
      %3834 = vrot.lane.b32.xlu0 %v3354, 64
      %v3835 = vpop.permute.xlu0 %3834
      %3836 = vrot.lane.b32.xlu0 %v3356, 64
      %v3837 = vpop.permute.xlu0 %3836
      %3838 = vrot.lane.b32.xlu0 %v3359, 64
      %v3839 = vpop.permute.xlu0 %3838
      %3840 = vrot.lane.b32.xlu0 %v3361, 64
      %v3841 = vpop.permute.xlu0 %3840
      %3842 = vrot.lane.b32.xlu0 %v3364, 64
      %v3843 = vpop.permute.xlu0 %3842
      %3844 = vrot.lane.b32.xlu0 %v3366, 64
      %v3845 = vpop.permute.xlu0 %3844
      %3846 = vrot.lane.b32.xlu0 %v3369, 64
      %v3847 = vpop.permute.xlu0 %3846
      %3848 = vrot.lane.b32.xlu0 %v3371, 64
      %v3849 = vpop.permute.xlu0 %3848
      %3850 = vrot.lane.b32.xlu0 %v3374, 64
      %v3851 = vpop.permute.xlu0 %3850
      %3852 = vrot.lane.b32.xlu0 %v3376, 64
      %v3853 = vpop.permute.xlu0 %3852
      %3854 = vrot.lane.b32.xlu0 %v3379, 64
      %v3855 = vpop.permute.xlu0 %3854
      %3856 = vrot.lane.b32.xlu0 %v3381, 64
      %v3857 = vpop.permute.xlu0 %3856
      %3858 = vrot.lane.b32.xlu0 %v3384, 64
      %v3859 = vpop.permute.xlu0 %3858
      %3860 = vrot.lane.b32.xlu0 %v3386, 64
      %v3861 = vpop.permute.xlu0 %3860
      %3862 = vrot.lane.b32.xlu0 %v3389, 64
      %v3863 = vpop.permute.xlu0 %3862
      %3864 = vrot.lane.b32.xlu0 %v3391, 64
      %v3865 = vpop.permute.xlu0 %3864
      %3866 = vrot.lane.b32.xlu0 %v3394, 64
      %v3867 = vpop.permute.xlu0 %3866
      %3868 = vrot.lane.b32.xlu0 %v3396, 64
      %v3869 = vpop.permute.xlu0 %3868
      %3870 = vrot.lane.b32.xlu0 %v3399, 64
      %v3871 = vpop.permute.xlu0 %3870
      %3872 = vrot.lane.b32.xlu0 %v3401, 64
      %v3873 = vpop.permute.xlu0 %3872
      %3874 = vrot.lane.b32.xlu0 %v3404, 64
      %v3875 = vpop.permute.xlu0 %3874
      %3876 = vrot.lane.b32.xlu0 %v3406, 64
      %v3877 = vpop.permute.xlu0 %3876
      %3878 = vrot.lane.b32.xlu0 %v3409, 64
      %v3879 = vpop.permute.xlu0 %3878
      %3880 = vrot.lane.b32.xlu0 %v3411, 64
      %v3881 = vpop.permute.xlu0 %3880
      %3882 = vrot.lane.b32.xlu0 %v3414, 64
      %v3883 = vpop.permute.xlu0 %3882
      %3884 = vrot.lane.b32.xlu0 %v3416, 64
      %v3885 = vpop.permute.xlu0 %3884
      %3886 = vrot.lane.b32.xlu0 %v3419, 64
      %v3887 = vpop.permute.xlu0 %3886
      %3888 = vrot.lane.b32.xlu0 %v3421, 64
      %v3889 = vpop.permute.xlu0 %3888
      %3890 = vrot.lane.b32.xlu0 %v3424, 64
      %v3891 = vpop.permute.xlu0 %3890
      %3892 = vrot.lane.b32.xlu0 %v3426, 64
      %v3893 = vpop.permute.xlu0 %3892
      %3894 = vrot.lane.b32.xlu0 %v3506, 64
      %v3895 = vpop.permute.xlu0 %3894
      %3896 = vrot.lane.b32.xlu0 %v3508, 64
      %v3897 = vpop.permute.xlu0 %3896
      %3930 = vrot.lane.b32.xlu0 %v3429, 80
      %v3931 = vpop.permute.xlu0 %3930
      %3932 = vrot.lane.b32.xlu0 %v3431, 80
      %v3933 = vpop.permute.xlu0 %3932
      %3934 = vrot.lane.b32.xlu0 %v3434, 80
      %v3935 = vpop.permute.xlu0 %3934
      %3936 = vrot.lane.b32.xlu0 %v3436, 80
      %v3937 = vpop.permute.xlu0 %3936
      %3938 = vrot.lane.b32.xlu0 %v3439, 80
      %v3939 = vpop.permute.xlu0 %3938
      %3940 = vrot.lane.b32.xlu0 %v3441, 80
      %v3941 = vpop.permute.xlu0 %3940
      %3942 = vrot.lane.b32.xlu0 %v3444, 80
      %v3943 = vpop.permute.xlu0 %3942
      %3944 = vrot.lane.b32.xlu0 %v3446, 80
      %v3945 = vpop.permute.xlu0 %3944
      %3946 = vrot.lane.b32.xlu0 %v3449, 80
      %v3947 = vpop.permute.xlu0 %3946
      %3948 = vrot.lane.b32.xlu0 %v3451, 80
      %v3949 = vpop.permute.xlu0 %3948
      %3950 = vrot.lane.b32.xlu0 %v3454, 80
      %v3951 = vpop.permute.xlu0 %3950
      %3952 = vrot.lane.b32.xlu0 %v3456, 80
      %v3953 = vpop.permute.xlu0 %3952
      %3954 = vrot.lane.b32.xlu0 %v3459, 80
      %v3955 = vpop.permute.xlu0 %3954
      %3956 = vrot.lane.b32.xlu0 %v3461, 80
      %v3957 = vpop.permute.xlu0 %3956
      %3958 = vrot.lane.b32.xlu0 %v3464, 80
      %v3959 = vpop.permute.xlu0 %3958
      %3960 = vrot.lane.b32.xlu0 %v3466, 80
      %v3961 = vpop.permute.xlu0 %3960
      %3962 = vrot.lane.b32.xlu0 %v3469, 80
      %v3963 = vpop.permute.xlu0 %3962
      %3964 = vrot.lane.b32.xlu0 %v3471, 80
      %v3965 = vpop.permute.xlu0 %3964
      %3966 = vrot.lane.b32.xlu0 %v3474, 80
      %v3967 = vpop.permute.xlu0 %3966
      %3968 = vrot.lane.b32.xlu0 %v3476, 80
      %v3969 = vpop.permute.xlu0 %3968
      %3970 = vrot.lane.b32.xlu0 %v3479, 80
      %v3971 = vpop.permute.xlu0 %3970
      %3972 = vrot.lane.b32.xlu0 %v3481, 80
      %v3973 = vpop.permute.xlu0 %3972
      %3974 = vrot.lane.b32.xlu0 %v3484, 80
      %v3975 = vpop.permute.xlu0 %3974
      %3976 = vrot.lane.b32.xlu0 %v3486, 80
      %v3977 = vpop.permute.xlu0 %3976
      %3978 = vrot.lane.b32.xlu0 %v3489, 80
      %v3979 = vpop.permute.xlu0 %3978
      %3980 = vrot.lane.b32.xlu0 %v3491, 80
      %v3981 = vpop.permute.xlu0 %3980
      %3982 = vrot.lane.b32.xlu0 %v3494, 80
      %v3983 = vpop.permute.xlu0 %3982
      %3984 = vrot.lane.b32.xlu0 %v3496, 80
      %v3985 = vpop.permute.xlu0 %3984
      %3986 = vrot.lane.b32.xlu0 %v3499, 80
      %v3987 = vpop.permute.xlu0 %3986
      %3988 = vrot.lane.b32.xlu0 %v3501, 80
      %v3989 = vpop.permute.xlu0 %3988
      %3990 = vrot.lane.b32.xlu0 %v3511, 80
      %v3991 = vpop.permute.xlu0 %3990
      %3992 = vrot.lane.b32.xlu0 %v3513, 80
      %v3993 = vpop.permute.xlu0 %3992
      %4026 = vrot.lane.b32.xlu0 %v3291, 96
      %v4027 = vpop.permute.xlu0 %4026
      %4028 = vrot.lane.b32.xlu0 %v3200, 96
      %v4029 = vpop.permute.xlu0 %4028
      %4030 = vrot.lane.b32.xlu0 %v3292, 96
      %v4031 = vpop.permute.xlu0 %4030
      %4032 = vrot.lane.b32.xlu0 %v3203, 96
      %v4033 = vpop.permute.xlu0 %4032
      %4034 = vrot.lane.b32.xlu0 %v3293, 96
      %v4035 = vpop.permute.xlu0 %4034
      %4036 = vrot.lane.b32.xlu0 %v3206, 96
      %v4037 = vpop.permute.xlu0 %4036
      %4038 = vrot.lane.b32.xlu0 %v3294, 96
      %v4039 = vpop.permute.xlu0 %4038
      %4040 = vrot.lane.b32.xlu0 %v3209, 96
      %v4041 = vpop.permute.xlu0 %4040
      %4042 = vrot.lane.b32.xlu0 %v3295, 96
      %v4043 = vpop.permute.xlu0 %4042
      %4044 = vrot.lane.b32.xlu0 %v3212, 96
      %v4045 = vpop.permute.xlu0 %4044
      %4046 = vrot.lane.b32.xlu0 %v3296, 96
      %v4047 = vpop.permute.xlu0 %4046
      %4048 = vrot.lane.b32.xlu0 %v3215, 96
      %v4049 = vpop.permute.xlu0 %4048
      %4050 = vrot.lane.b32.xlu0 %v3297, 96
      %v4051 = vpop.permute.xlu0 %4050
      %4052 = vrot.lane.b32.xlu0 %v3218, 96
      %v4053 = vpop.permute.xlu0 %4052
      %4054 = vrot.lane.b32.xlu0 %v3298, 96
      %v4055 = vpop.permute.xlu0 %4054
      %4056 = vrot.lane.b32.xlu0 %v3221, 96
      %v4057 = vpop.permute.xlu0 %4056
      %4058 = vrot.lane.b32.xlu0 %v3299, 96
      %v4059 = vpop.permute.xlu0 %4058
      %4060 = vrot.lane.b32.xlu0 %v3224, 96
      %v4061 = vpop.permute.xlu0 %4060
      %4062 = vrot.lane.b32.xlu0 %v3300, 96
      %v4063 = vpop.permute.xlu0 %4062
      %4064 = vrot.lane.b32.xlu0 %v3227, 96
      %v4065 = vpop.permute.xlu0 %4064
      %4066 = vrot.lane.b32.xlu0 %v3301, 96
      %v4067 = vpop.permute.xlu0 %4066
      %4068 = vrot.lane.b32.xlu0 %v3230, 96
      %v4069 = vpop.permute.xlu0 %4068
      %4070 = vrot.lane.b32.xlu0 %v3302, 96
      %v4071 = vpop.permute.xlu0 %4070
      %4072 = vrot.lane.b32.xlu0 %v3233, 96
      %v4073 = vpop.permute.xlu0 %4072
      %4074 = vrot.lane.b32.xlu0 %v3303, 96
      %v4075 = vpop.permute.xlu0 %4074
      %4076 = vrot.lane.b32.xlu0 %v3236, 96
      %v4077 = vpop.permute.xlu0 %4076
      %4078 = vrot.lane.b32.xlu0 %v3304, 96
      %v4079 = vpop.permute.xlu0 %4078
      %4080 = vrot.lane.b32.xlu0 %v3239, 96
      %v4081 = vpop.permute.xlu0 %4080
      %4082 = vrot.lane.b32.xlu0 %v3305, 96
      %v4083 = vpop.permute.xlu0 %4082
      %4084 = vrot.lane.b32.xlu0 %v3242, 96
      %v4085 = vpop.permute.xlu0 %4084
      %4086 = vrot.lane.b32.xlu0 %v1324, 96
      %v4087 = vpop.permute.xlu0 %4086
      %4088 = vrot.lane.b32.xlu0 %v1226, 96
      %v4089 = vpop.permute.xlu0 %4088
      %4122 = vrot.lane.b32.xlu0 %v3359, 112
      %v4123 = vpop.permute.xlu0 %4122
      %4124 = vrot.lane.b32.xlu0 %v3361, 112
      %v4125 = vpop.permute.xlu0 %4124
      %4126 = vrot.lane.b32.xlu0 %v3364, 112
      %v4127 = vpop.permute.xlu0 %4126
      %4128 = vrot.lane.b32.xlu0 %v3366, 112
      %v4129 = vpop.permute.xlu0 %4128
      %4130 = vrot.lane.b32.xlu0 %v3369, 112
      %v4131 = vpop.permute.xlu0 %4130
      %4132 = vrot.lane.b32.xlu0 %v3371, 112
      %v4133 = vpop.permute.xlu0 %4132
      %4134 = vrot.lane.b32.xlu0 %v3374, 112
      %v4135 = vpop.permute.xlu0 %4134
      %4136 = vrot.lane.b32.xlu0 %v3376, 112
      %v4137 = vpop.permute.xlu0 %4136
      %4138 = vrot.lane.b32.xlu0 %v3379, 112
      %v4139 = vpop.permute.xlu0 %4138
      %4140 = vrot.lane.b32.xlu0 %v3381, 112
      %v4141 = vpop.permute.xlu0 %4140
      %4142 = vrot.lane.b32.xlu0 %v3384, 112
      %v4143 = vpop.permute.xlu0 %4142
      %4144 = vrot.lane.b32.xlu0 %v3386, 112
      %v4145 = vpop.permute.xlu0 %4144
      %4146 = vrot.lane.b32.xlu0 %v3389, 112
      %v4147 = vpop.permute.xlu0 %4146
      %4148 = vrot.lane.b32.xlu0 %v3391, 112
      %v4149 = vpop.permute.xlu0 %4148
      %4150 = vrot.lane.b32.xlu0 %v3394, 112
      %v4151 = vpop.permute.xlu0 %4150
      %4152 = vrot.lane.b32.xlu0 %v3396, 112
      %v4153 = vpop.permute.xlu0 %4152
      %4154 = vrot.lane.b32.xlu0 %v3399, 112
      %v4155 = vpop.permute.xlu0 %4154
      %4156 = vrot.lane.b32.xlu0 %v3401, 112
      %v4157 = vpop.permute.xlu0 %4156
      %4158 = vrot.lane.b32.xlu0 %v3404, 112
      %v4159 = vpop.permute.xlu0 %4158
      %4160 = vrot.lane.b32.xlu0 %v3406, 112
      %v4161 = vpop.permute.xlu0 %4160
      %4162 = vrot.lane.b32.xlu0 %v3409, 112
      %v4163 = vpop.permute.xlu0 %4162
      %4164 = vrot.lane.b32.xlu0 %v3411, 112
      %v4165 = vpop.permute.xlu0 %4164
      %4166 = vrot.lane.b32.xlu0 %v3414, 112
      %v4167 = vpop.permute.xlu0 %4166
      %4168 = vrot.lane.b32.xlu0 %v3416, 112
      %v4169 = vpop.permute.xlu0 %4168
      %4170 = vrot.lane.b32.xlu0 %v3419, 112
      %v4171 = vpop.permute.xlu0 %4170
      %4172 = vrot.lane.b32.xlu0 %v3421, 112
      %v4173 = vpop.permute.xlu0 %4172
      %4174 = vrot.lane.b32.xlu0 %v3424, 112
      %v4175 = vpop.permute.xlu0 %4174
      %4176 = vrot.lane.b32.xlu0 %v3426, 112
      %v4177 = vpop.permute.xlu0 %4176
      %4178 = vrot.lane.b32.xlu0 %v3506, 112
      %v4179 = vpop.permute.xlu0 %4178
      %4180 = vrot.lane.b32.xlu0 %v3508, 112
      %v4181 = vpop.permute.xlu0 %4180
      %4182 = vrot.lane.b32.xlu0 %v1393, 112
      %v4183 = vpop.permute.xlu0 %4182
      %4184 = vrot.lane.b32.xlu0 %v1395, 112
      %v4185 = vpop.permute.xlu0 %4184
      %v4218 = vsel %vm646, %v1324, %v3547
      %v4219 = vsel %vm646, %v1226, %v3549
      %v4220 = vsel %vm646, %v3290, %v3551
      %v4221 = vsel %vm646, %v3197, %v3553
      %v4222 = vsel %vm646, %v3291, %v3555
      %v4223 = vsel %vm646, %v3200, %v3557
      %v4224 = vsel %vm646, %v3292, %v3559
      %v4225 = vsel %vm646, %v3203, %v3561
      %v4226 = vsel %vm646, %v3293, %v3563
      %v4227 = vsel %vm646, %v3206, %v3565
      %v4228 = vsel %vm646, %v3294, %v3567
      %v4229 = vsel %vm646, %v3209, %v3569
      %v4230 = vsel %vm646, %v3295, %v3571
      %v4231 = vsel %vm646, %v3212, %v3573
      %v4232 = vsel %vm646, %v3296, %v3575
      %v4233 = vsel %vm646, %v3215, %v3577
      %v4234 = vsel %vm646, %v3297, %v3579
      %v4235 = vsel %vm646, %v3218, %v3581
      %v4236 = vsel %vm646, %v3298, %v3583
      %v4237 = vsel %vm646, %v3221, %v3585
      %v4238 = vsel %vm646, %v3299, %v3587
      %v4239 = vsel %vm646, %v3224, %v3589
      %v4240 = vsel %vm646, %v3300, %v3591
      %v4241 = vsel %vm646, %v3227, %v3593
      %v4242 = vsel %vm646, %v3301, %v3595
      %v4243 = vsel %vm646, %v3230, %v3597
      %v4244 = vsel %vm646, %v3302, %v3599
      %v4245 = vsel %vm646, %v3233, %v3601
      %v4246 = vsel %vm646, %v3303, %v3603
      %v4247 = vsel %vm646, %v3236, %v3605
      %v4248 = vsel %vm646, %v3304, %v3607
      %v4249 = vsel %vm646, %v3239, %v3609
      %vm4250 = vcmask 261120
      %v4251 = vsel %vm4250, %v4218, %v3643
      %v4252 = vsel %vm4250, %v4219, %v3645
      %v4253 = vsel %vm4250, %v4220, %v3647
      %v4254 = vsel %vm4250, %v4221, %v3649
      %v4255 = vsel %vm4250, %v4222, %v3651
      %v4256 = vsel %vm4250, %v4223, %v3653
      %v4257 = vsel %vm4250, %v4224, %v3655
      %v4258 = vsel %vm4250, %v4225, %v3657
      %v4259 = vsel %vm4250, %v4226, %v3659
      %v4260 = vsel %vm4250, %v4227, %v3661
      %v4261 = vsel %vm4250, %v4228, %v3663
      %v4262 = vsel %vm4250, %v4229, %v3665
      %v4263 = vsel %vm4250, %v4230, %v3667
      %v4264 = vsel %vm4250, %v4231, %v3669
      %v4265 = vsel %vm4250, %v4232, %v3671
      %v4266 = vsel %vm4250, %v4233, %v3673
      %v4267 = vsel %vm4250, %v4234, %v3675
      %v4268 = vsel %vm4250, %v4235, %v3677
      %v4269 = vsel %vm4250, %v4236, %v3679
      %v4270 = vsel %vm4250, %v4237, %v3681
      %v4271 = vsel %vm4250, %v4238, %v3683
      %v4272 = vsel %vm4250, %v4239, %v3685
      %v4273 = vsel %vm4250, %v4240, %v3687
      %v4274 = vsel %vm4250, %v4241, %v3689
      %v4275 = vsel %vm4250, %v4242, %v3691
      %v4276 = vsel %vm4250, %v4243, %v3693
      %v4277 = vsel %vm4250, %v4244, %v3695
      %v4278 = vsel %vm4250, %v4245, %v3697
      %v4279 = vsel %vm4250, %v4246, %v3699
      %v4280 = vsel %vm4250, %v4247, %v3701
      %v4281 = vsel %vm4250, %v4248, %v3703
      %v4282 = vsel %vm4250, %v4249, %v3705
      %v4283 = vsel %vm2365, %v4251, %v3739
      %v4284 = vsel %vm2365, %v4252, %v3741
      %v4285 = vsel %vm2365, %v4253, %v3743
      %v4286 = vsel %vm2365, %v4254, %v3745
      %v4287 = vsel %vm2365, %v4255, %v3747
      %v4288 = vsel %vm2365, %v4256, %v3749
      %v4289 = vsel %vm2365, %v4257, %v3751
      %v4290 = vsel %vm2365, %v4258, %v3753
      %v4291 = vsel %vm2365, %v4259, %v3755
      %v4292 = vsel %vm2365, %v4260, %v3757
      %v4293 = vsel %vm2365, %v4261, %v3759
      %v4294 = vsel %vm2365, %v4262, %v3761
      %v4295 = vsel %vm2365, %v4263, %v3763
      %v4296 = vsel %vm2365, %v4264, %v3765
      %v4297 = vsel %vm2365, %v4265, %v3767
      %v4298 = vsel %vm2365, %v4266, %v3769
      %v4299 = vsel %vm2365, %v4267, %v3771
      %v4300 = vsel %vm2365, %v4268, %v3773
      %v4301 = vsel %vm2365, %v4269, %v3775
      %v4302 = vsel %vm2365, %v4270, %v3777
      %v4303 = vsel %vm2365, %v4271, %v3779
      %v4304 = vsel %vm2365, %v4272, %v3781
      %v4305 = vsel %vm2365, %v4273, %v3783
      %v4306 = vsel %vm2365, %v4274, %v3785
      %v4307 = vsel %vm2365, %v4275, %v3787
      %v4308 = vsel %vm2365, %v4276, %v3789
      %v4309 = vsel %vm2365, %v4277, %v3791
      %v4310 = vsel %vm2365, %v4278, %v3793
      %v4311 = vsel %vm2365, %v4279, %v3795
      %v4312 = vsel %vm2365, %v4280, %v3797
      %v4313 = vsel %vm2365, %v4281, %v3799
      %v4314 = vsel %vm2365, %v4282, %v3801
      %v4315 = vsel %vm2562, %v4283, %v3835
      %v4316 = vsel %vm2562, %v4284, %v3837
      %v4317 = vsel %vm2562, %v4285, %v3839
      %v4318 = vsel %vm2562, %v4286, %v3841
      %v4319 = vsel %vm2562, %v4287, %v3843
      %v4320 = vsel %vm2562, %v4288, %v3845
      %v4321 = vsel %vm2562, %v4289, %v3847
      %v4322 = vsel %vm2562, %v4290, %v3849
      %v4323 = vsel %vm2562, %v4291, %v3851
      %v4324 = vsel %vm2562, %v4292, %v3853
      %v4325 = vsel %vm2562, %v4293, %v3855
      %v4326 = vsel %vm2562, %v4294, %v3857
      %v4327 = vsel %vm2562, %v4295, %v3859
      %v4328 = vsel %vm2562, %v4296, %v3861
      %v4329 = vsel %vm2562, %v4297, %v3863
      %v4330 = vsel %vm2562, %v4298, %v3865
      %v4331 = vsel %vm2562, %v4299, %v3867
      %v4332 = vsel %vm2562, %v4300, %v3869
      %v4333 = vsel %vm2562, %v4301, %v3871
      %v4334 = vsel %vm2562, %v4302, %v3873
      %v4335 = vsel %vm2562, %v4303, %v3875
      %v4336 = vsel %vm2562, %v4304, %v3877
      %v4337 = vsel %vm2562, %v4305, %v3879
      %v4338 = vsel %vm2562, %v4306, %v3881
      %v4339 = vsel %vm2562, %v4307, %v3883
      %v4340 = vsel %vm2562, %v4308, %v3885
      %v4341 = vsel %vm2562, %v4309, %v3887
      %v4342 = vsel %vm2562, %v4310, %v3889
      %v4343 = vsel %vm2562, %v4311, %v3891
      %v4344 = vsel %vm2562, %v4312, %v3893
      %v4345 = vsel %vm2562, %v4313, %v3895
      %v4346 = vsel %vm2562, %v4314, %v3897
      %vm4347 = vcmask 654336
      %v4348 = vsel %vm4347, %v4315, %v3931
      %v4349 = vsel %vm4347, %v4316, %v3933
      %v4350 = vsel %vm4347, %v4317, %v3935
      %v4351 = vsel %vm4347, %v4318, %v3937
      %v4352 = vsel %vm4347, %v4319, %v3939
      %v4353 = vsel %vm4347, %v4320, %v3941
      %v4354 = vsel %vm4347, %v4321, %v3943
      %v4355 = vsel %vm4347, %v4322, %v3945
      %v4356 = vsel %vm4347, %v4323, %v3947
      %v4357 = vsel %vm4347, %v4324, %v3949
      %v4358 = vsel %vm4347, %v4325, %v3951
      %v4359 = vsel %vm4347, %v4326, %v3953
      %v4360 = vsel %vm4347, %v4327, %v3955
      %v4361 = vsel %vm4347, %v4328, %v3957
      %v4362 = vsel %vm4347, %v4329, %v3959
      %v4363 = vsel %vm4347, %v4330, %v3961
      %v4364 = vsel %vm4347, %v4331, %v3963
      %v4365 = vsel %vm4347, %v4332, %v3965
      %v4366 = vsel %vm4347, %v4333, %v3967
      %v4367 = vsel %vm4347, %v4334, %v3969
      %v4368 = vsel %vm4347, %v4335, %v3971
      %v4369 = vsel %vm4347, %v4336, %v3973
      %v4370 = vsel %vm4347, %v4337, %v3975
      %v4371 = vsel %vm4347, %v4338, %v3977
      %v4372 = vsel %vm4347, %v4339, %v3979
      %v4373 = vsel %vm4347, %v4340, %v3981
      %v4374 = vsel %vm4347, %v4341, %v3983
      %v4375 = vsel %vm4347, %v4342, %v3985
      %v4376 = vsel %vm4347, %v4343, %v3987
      %v4377 = vsel %vm4347, %v4344, %v3989
      %v4378 = vsel %vm4347, %v4345, %v3991
      %v4379 = vsel %vm4347, %v4346, %v3993
      %v4380 = vsel %vm2431, %v4348, %v4027
      %v4381 = vsel %vm2431, %v4349, %v4029
      %v4382 = vsel %vm2431, %v4350, %v4031
      %v4383 = vsel %vm2431, %v4351, %v4033
      %v4384 = vsel %vm2431, %v4352, %v4035
      %v4385 = vsel %vm2431, %v4353, %v4037
      %v4386 = vsel %vm2431, %v4354, %v4039
      %v4387 = vsel %vm2431, %v4355, %v4041
      %v4388 = vsel %vm2431, %v4356, %v4043
      %v4389 = vsel %vm2431, %v4357, %v4045
      %v4390 = vsel %vm2431, %v4358, %v4047
      %v4391 = vsel %vm2431, %v4359, %v4049
      %v4392 = vsel %vm2431, %v4360, %v4051
      %v4393 = vsel %vm2431, %v4361, %v4053
      %v4394 = vsel %vm2431, %v4362, %v4055
      %v4395 = vsel %vm2431, %v4363, %v4057
      %v4396 = vsel %vm2431, %v4364, %v4059
      %v4397 = vsel %vm2431, %v4365, %v4061
      %v4398 = vsel %vm2431, %v4366, %v4063
      %v4399 = vsel %vm2431, %v4367, %v4065
      %v4400 = vsel %vm2431, %v4368, %v4067
      %v4401 = vsel %vm2431, %v4369, %v4069
      %v4402 = vsel %vm2431, %v4370, %v4071
      %v4403 = vsel %vm2431, %v4371, %v4073
      %v4404 = vsel %vm2431, %v4372, %v4075
      %v4405 = vsel %vm2431, %v4373, %v4077
      %v4406 = vsel %vm2431, %v4374, %v4079
      %v4407 = vsel %vm2431, %v4375, %v4081
      %v4408 = vsel %vm2431, %v4376, %v4083
      %v4409 = vsel %vm2431, %v4377, %v4085
      %v4410 = vsel %vm2431, %v4378, %v4087
      %v4411 = vsel %vm2431, %v4379, %v4089
      %vm4412 = vcmask 916480
      %v4413 = vsel %vm4412, %v4380, %v4123
      %v4414 = vsel %vm4412, %v4381, %v4125
      %v4415 = vsel %vm4412, %v4382, %v4127
      %v4416 = vsel %vm4412, %v4383, %v4129
      %v4417 = vsel %vm4412, %v4384, %v4131
      %v4418 = vsel %vm4412, %v4385, %v4133
      %v4419 = vsel %vm4412, %v4386, %v4135
      %v4420 = vsel %vm4412, %v4387, %v4137
      %v4421 = vsel %vm4412, %v4388, %v4139
      %v4422 = vsel %vm4412, %v4389, %v4141
      %v4423 = vsel %vm4412, %v4390, %v4143
      %v4424 = vsel %vm4412, %v4391, %v4145
      %v4425 = vsel %vm4412, %v4392, %v4147
      %v4426 = vsel %vm4412, %v4393, %v4149
      %v4427 = vsel %vm4412, %v4394, %v4151
      %v4428 = vsel %vm4412, %v4395, %v4153
      %v4429 = vsel %vm4412, %v4396, %v4155
      %v4430 = vsel %vm4412, %v4397, %v4157
      %v4431 = vsel %vm4412, %v4398, %v4159
      %v4432 = vsel %vm4412, %v4399, %v4161
      %v4433 = vsel %vm4412, %v4400, %v4163
      %v4434 = vsel %vm4412, %v4401, %v4165
      %v4435 = vsel %vm4412, %v4402, %v4167
      %v4436 = vsel %vm4412, %v4403, %v4169
      %v4437 = vsel %vm4412, %v4404, %v4171
      %v4438 = vsel %vm4412, %v4405, %v4173
      %v4439 = vsel %vm4412, %v4406, %v4175
      %v4440 = vsel %vm4412, %v4407, %v4177
      %v4441 = vsel %vm4412, %v4408, %v4179
      %v4442 = vsel %vm4412, %v4409, %v4181
      %v4443 = vsel %vm4412, %v4410, %v4183
      %v4444 = vsel %vm4412, %v4411, %v4185
      %v4445 = vpack.c.bf16 %v4414, %v4413
      %v4446 = vpack.c.bf16 %v3436, %v3434
      %v4447 = vpack.c.bf16 %v4416, %v4415
      %v4448 = vpack.c.bf16 %v3441, %v3439
      %v4449 = vpack.c.bf16 %v4418, %v4417
      %v4450 = vpack.c.bf16 %v3446, %v3444
      %v4451 = vpack.c.bf16 %v4420, %v4419
      %v4452 = vpack.c.bf16 %v3451, %v3449
      %v4453 = vpack.c.bf16 %v4422, %v4421
      %v4454 = vpack.c.bf16 %v3456, %v3454
      %v4455 = vpack.c.bf16 %v4424, %v4423
      %v4456 = vpack.c.bf16 %v3461, %v3459
      %v4457 = vpack.c.bf16 %v4426, %v4425
      %v4458 = vpack.c.bf16 %v3466, %v3464
      %v4459 = vpack.c.bf16 %v4428, %v4427
      %v4460 = vpack.c.bf16 %v3471, %v3469
      %v4461 = vpack.c.bf16 %v4430, %v4429
      %v4462 = vpack.c.bf16 %v3476, %v3474
      %v4463 = vpack.c.bf16 %v4432, %v4431
      %v4464 = vpack.c.bf16 %v3481, %v3479
      %v4465 = vpack.c.bf16 %v4434, %v4433
      %v4466 = vpack.c.bf16 %v3486, %v3484
      %v4467 = vpack.c.bf16 %v4436, %v4435
      %v4468 = vpack.c.bf16 %v3491, %v3489
      %v4469 = vpack.c.bf16 %v4438, %v4437
      %v4470 = vpack.c.bf16 %v3496, %v3494
      %v4471 = vpack.c.bf16 %v4440, %v4439
      %v4472 = vpack.c.bf16 %v3501, %v3499
      %v4473 = vpack.c.bf16 %v4442, %v4441
      %v4474 = vpack.c.bf16 %v3513, %v3511
      %v4475 = vpack.c.bf16 %v4444, %v4443
      %v4476 = vpack.c.bf16 %v1476, %v1474
      %v4495 = vunpack.c.l.b16 %v3145
      %v4496 = vunpack.c.l.b16 %v3146
      %v4497 = vunpack.c.l.b16 %v3147
      %v4498 = vunpack.c.l.b16 %v3148
      %v4499 = vunpack.c.l.b16 %v3149
      %v4500 = vunpack.c.l.b16 %v3150
      %v4501 = vunpack.c.l.b16 %v3151
      %v4502 = vunpack.c.l.b16 %v3152
      %v4503 = vunpack.c.l.b16 %v3153
      %v4504 = vunpack.c.l.b16 %v3154
      %v4505 = vunpack.c.l.b16 %v3155
      %v4506 = vunpack.c.l.b16 %v3156
      %v4507 = vunpack.c.l.b16 %v3157
      %v4508 = vunpack.c.l.b16 %v3158
      %v4509 = vunpack.c.l.b16 %v3159
      %v4510 = vunpack.c.l.b16 %v3160
      %v4511 = vunpack.c.l.b16 %v3161
      %v4512 = vunpack.c.l.b16 %v3162
      %v4513 = vpack.c.b16 %v4496, %v4495
      %v4514 = vpack.c.b16 %v4498, %v4497
      %v4515 = vpack.c.b16 %v4500, %v4499
      %v4516 = vpack.c.b16 %v4502, %v4501
      %v4517 = vpack.c.b16 %v4504, %v4503
      %v4518 = vpack.c.b16 %v4506, %v4505
      %v4519 = vpack.c.b16 %v4508, %v4507
      %v4520 = vpack.c.b16 %v4510, %v4509
      %v4521 = vpack.c.b16 %v4512, %v4511
      %v4532 = vsel %vm646, %v4446, 0
      %v4535 = vsel %vm646, %v4448, 0
      %v4538 = vsel %vm646, %v4450, 0
      %v4541 = vsel %vm646, %v4452, 0
      %v4544 = vsel %vm646, %v4454, 0
      %v4547 = vsel %vm646, %v4456, 0
      %v4550 = vsel %vm646, %v4458, 0
      %v4553 = vsel %vm646, %v4460, 0
      %v4556 = vsel %vm646, %v4462, 0
      %v4559 = vsel %vm646, %v4464, 0
      %v4562 = vsel %vm646, %v4466, 0
      %v4565 = vsel %vm646, %v4468, 0
      %v4568 = vsel %vm646, %v4470, 0
      %v4571 = vsel %vm646, %v4472, 0
      %v4574 = vsel %vm646, %v4474, 0
      %v4577 = vsel %vm646, %v4476, 0
      %4579 = vmatprep.subr.bf16.mxu0 0
      %4580 = vmatpush1.bf16.msra.mxu0 %v4520
      %4581 = vmatprep.subr.bf16.mxu0 0
      %4582 = vmatpush1.bf16.msra.mxu0 %v4519
      %4583 = vmatprep.subr.bf16.mxu0 0
      %4584 = vmatpush1.bf16.msra.mxu0 %v4518
      %4585 = vmatprep.subr.bf16.mxu0 0
      %4586 = vmatpush1.bf16.msra.mxu0 %v4517
      %4587 = vmatprep.subr.bf16.mxu0 0
      %4588 = vmatpush1.bf16.msra.mxu0 %v4516
      %4589 = vmatprep.subr.bf16.mxu0 0
      %4590 = vmatpush1.bf16.msra.mxu0 %v4515
      %4591 = vmatprep.subr.bf16.mxu0 0
      %4592 = vmatpush1.bf16.msra.mxu0 %v4514
      %4593 = vmatprep.subr.bf16.mxu0 0
      %4594 = vmatpush1.bf16.msra.mxu0 %v4513
      %4595 = vmatprep.subr.bf16.mxu0 0
      %4596 = vmatpush2.bf16.msra.mxu0 0
      %4597 = vmatprep.subr.bf16.mxu0 0
      %4598 = vmatpush2.bf16.msra.mxu0 0
      %4599 = vmatprep.subr.bf16.mxu0 0
      %4600 = vmatpush2.bf16.msra.mxu0 0
      %4601 = vmatprep.subr.bf16.mxu0 0
      %4602 = vmatpush2.bf16.msra.mxu0 0
      %4603 = vmatprep.subr.bf16.mxu0 0
      %4604 = vmatpush2.bf16.msra.mxu0 0
      %4605 = vmatprep.subr.bf16.mxu0 0
      %4606 = vmatpush2.bf16.msra.mxu0 0
      %4607 = vmatprep.subr.bf16.mxu0 0
      %4608 = vmatpush2.bf16.msra.mxu0 0
      %4609 = vmatprep.subr.bf16.mxu0 0
      %4610 = vmatpush2.bf16.msra.mxu0 %v4521
      %4611 = vmatprep.mubr.bf16.mxu0 %v4532
      %4612 = vmatmul.mubr.bf16.gmra.mxu0 %v4445
      %v4613 = vpop.f32.mrf.mxu0
      %v4614 = vadd.f32 %v730, %v4613
      %v4615 = vpop.f32.mrf.mxu0
      %v4616 = vpop.f32.mrf.mxu0
      %v4617 = vadd.f32 %v733, %v4616
      %v4618 = vpop.f32.mrf.mxu0
      %4619 = vmatprep.mubr.bf16.mxu0 %v4535
      %4620 = vmatmul.mubr.bf16.gmra.mxu0 %v4447
      %v4621 = vpop.f32.mrf.mxu0
      %v4622 = vadd.f32 %v738, %v4621
      %v4623 = vpop.f32.mrf.mxu0
      %v4624 = vpop.f32.mrf.mxu0
      %v4625 = vadd.f32 %v741, %v4624
      %v4626 = vpop.f32.mrf.mxu0
      %4627 = vmatprep.mubr.bf16.mxu0 %v4538
      %4628 = vmatmul.mubr.bf16.gmra.mxu0 %v4449
      %v4629 = vpop.f32.mrf.mxu0
      %v4630 = vadd.f32 %v746, %v4629
      %v4631 = vpop.f32.mrf.mxu0
      %v4632 = vpop.f32.mrf.mxu0
      %v4633 = vadd.f32 %v749, %v4632
      %v4634 = vpop.f32.mrf.mxu0
      %4635 = vmatprep.mubr.bf16.mxu0 %v4541
      %4636 = vmatmul.mubr.bf16.gmra.mxu0 %v4451
      %v4637 = vpop.f32.mrf.mxu0
      %v4638 = vadd.f32 %v754, %v4637
      %v4639 = vpop.f32.mrf.mxu0
      %v4640 = vpop.f32.mrf.mxu0
      %v4641 = vadd.f32 %v757, %v4640
      %v4642 = vpop.f32.mrf.mxu0
      %4643 = vmatprep.mubr.bf16.mxu0 %v4544
      %4644 = vmatmul.mubr.bf16.gmra.mxu0 %v4453
      %v4645 = vpop.f32.mrf.mxu0
      %v4646 = vadd.f32 %v762, %v4645
      %v4647 = vpop.f32.mrf.mxu0
      %v4648 = vpop.f32.mrf.mxu0
      %v4649 = vadd.f32 %v765, %v4648
      %v4650 = vpop.f32.mrf.mxu0
      %4651 = vmatprep.mubr.bf16.mxu0 %v4547
      %4652 = vmatmul.mubr.bf16.gmra.mxu0 %v4455
      %v4653 = vpop.f32.mrf.mxu0
      %v4654 = vadd.f32 %v770, %v4653
      %v4655 = vpop.f32.mrf.mxu0
      %v4656 = vpop.f32.mrf.mxu0
      %v4657 = vadd.f32 %v773, %v4656
      %v4658 = vpop.f32.mrf.mxu0
      %4659 = vmatprep.mubr.bf16.mxu0 %v4550
      %4660 = vmatmul.mubr.bf16.gmra.mxu0 %v4457
      %v4661 = vpop.f32.mrf.mxu0
      %v4662 = vadd.f32 %v778, %v4661
      %v4663 = vpop.f32.mrf.mxu0
      %v4664 = vpop.f32.mrf.mxu0
      %v4665 = vadd.f32 %v781, %v4664
      %v4666 = vpop.f32.mrf.mxu0
      %4667 = vmatprep.mubr.bf16.mxu0 %v4553
      %4668 = vmatmul.mubr.bf16.gmra.mxu0 %v4459
      %v4669 = vpop.f32.mrf.mxu0
      %v4670 = vadd.f32 %v786, %v4669
      %v4671 = vpop.f32.mrf.mxu0
      %v4672 = vpop.f32.mrf.mxu0
      %v4673 = vadd.f32 %v789, %v4672
      %v4674 = vpop.f32.mrf.mxu0
      %4675 = vmatprep.mubr.bf16.mxu0 %v4556
      %4676 = vmatmul.mubr.bf16.gmra.mxu0 %v4461
      %v4677 = vpop.f32.mrf.mxu0
      %v4678 = vadd.f32 %v794, %v4677
      %v4679 = vpop.f32.mrf.mxu0
      %v4680 = vpop.f32.mrf.mxu0
      %v4681 = vadd.f32 %v797, %v4680
      %v4682 = vpop.f32.mrf.mxu0
      %4683 = vmatprep.mubr.bf16.mxu0 %v4559
      %4684 = vmatmul.mubr.bf16.gmra.mxu0 %v4463
      %v4685 = vpop.f32.mrf.mxu0
      %v4686 = vadd.f32 %v802, %v4685
      %v4687 = vpop.f32.mrf.mxu0
      %v4688 = vpop.f32.mrf.mxu0
      %v4689 = vadd.f32 %v805, %v4688
      %v4690 = vpop.f32.mrf.mxu0
      %4691 = vmatprep.mubr.bf16.mxu0 %v4562
      %4692 = vmatmul.mubr.bf16.gmra.mxu0 %v4465
      %v4693 = vpop.f32.mrf.mxu0
      %v4694 = vadd.f32 %v810, %v4693
      %v4695 = vpop.f32.mrf.mxu0
      %v4696 = vpop.f32.mrf.mxu0
      %v4697 = vadd.f32 %v813, %v4696
      %v4698 = vpop.f32.mrf.mxu0
      %4699 = vmatprep.mubr.bf16.mxu0 %v4565
      %4700 = vmatmul.mubr.bf16.gmra.mxu0 %v4467
      %v4701 = vpop.f32.mrf.mxu0
      %v4702 = vadd.f32 %v818, %v4701
      %v4703 = vpop.f32.mrf.mxu0
      %v4704 = vpop.f32.mrf.mxu0
      %v4705 = vadd.f32 %v821, %v4704
      %v4706 = vpop.f32.mrf.mxu0
      %4707 = vmatprep.mubr.bf16.mxu0 %v4568
      %4708 = vmatmul.mubr.bf16.gmra.mxu0 %v4469
      %v4709 = vpop.f32.mrf.mxu0
      %v4710 = vadd.f32 %v826, %v4709
      %v4711 = vpop.f32.mrf.mxu0
      %v4712 = vpop.f32.mrf.mxu0
      %v4713 = vadd.f32 %v829, %v4712
      %v4714 = vpop.f32.mrf.mxu0
      %4715 = vmatprep.mubr.bf16.mxu0 %v4571
      %4716 = vmatmul.mubr.bf16.gmra.mxu0 %v4471
      %v4717 = vpop.f32.mrf.mxu0
      %v4718 = vadd.f32 %v834, %v4717
      %v4719 = vpop.f32.mrf.mxu0
      %v4720 = vpop.f32.mrf.mxu0
      %v4721 = vadd.f32 %v837, %v4720
      %v4722 = vpop.f32.mrf.mxu0
      %4723 = vmatprep.mubr.bf16.mxu0 %v4574
      %4724 = vmatmul.mubr.bf16.gmra.mxu0 %v4473
      %v4725 = vpop.f32.mrf.mxu0
      %v4726 = vadd.f32 %v842, %v4725
      %v4727 = vpop.f32.mrf.mxu0
      %v4728 = vpop.f32.mrf.mxu0
      %v4729 = vadd.f32 %v845, %v4728
      %v4730 = vpop.f32.mrf.mxu0
      %4731 = vmatprep.mubr.bf16.mxu0 %v4577
      %4732 = vmatmul.mubr.bf16.gmra.mxu0 %v4475
      %v4733 = vpop.f32.mrf.mxu0
      %v4734 = vadd.f32 %v850, %v4733
      %v4735 = vpop.f32.mrf.mxu0
      %v4736 = vpop.f32.mrf.mxu0
      %v4737 = vadd.f32 %v853, %v4736
      %v4738 = vpop.f32.mrf.mxu0
      %4739 = vdwg.mxu0
      %4740 = vst.msk [vmem:[%s325] sm:$0xff] %vm646, %v4614
      %4741 = vst.msk [vmem:[%s325 + $0x8] sm:$0xff] %vm646, %v4617
      %4742 = vst.msk [vmem:[%s325 + $0x10] sm:$0xff] %vm646, %v4622
      %4743 = vst.msk [vmem:[%s325 + $0x18] sm:$0xff] %vm646, %v4625
      %4744 = vst.msk [vmem:[%s325 + $0x20] sm:$0xff] %vm646, %v4630
      %4745 = vst.msk [vmem:[%s325 + $0x28] sm:$0xff] %vm646, %v4633
      %4746 = vst.msk [vmem:[%s325 + $0x30] sm:$0xff] %vm646, %v4638
      %4747 = vst.msk [vmem:[%s325 + $0x38] sm:$0xff] %vm646, %v4641
      %4748 = vst.msk [vmem:[%s325 + $0x40] sm:$0xff] %vm646, %v4646
      %4749 = vst.msk [vmem:[%s325 + $0x48] sm:$0xff] %vm646, %v4649
      %4750 = vst.msk [vmem:[%s325 + $0x50] sm:$0xff] %vm646, %v4654
      %4751 = vst.msk [vmem:[%s325 + $0x58] sm:$0xff] %vm646, %v4657
      %4752 = vst.msk [vmem:[%s325 + $0x60] sm:$0xff] %vm646, %v4662
      %4753 = vst.msk [vmem:[%s325 + $0x68] sm:$0xff] %vm646, %v4665
      %4754 = vst.msk [vmem:[%s325 + $0x70] sm:$0xff] %vm646, %v4670
      %4755 = vst.msk [vmem:[%s325 + $0x78] sm:$0xff] %vm646, %v4673
      %4756 = vst.msk [vmem:[%s325 + $0x80] sm:$0xff] %vm646, %v4678
      %4757 = vst.msk [vmem:[%s325 + $0x88] sm:$0xff] %vm646, %v4681
      %4758 = vst.msk [vmem:[%s325 + $0x90] sm:$0xff] %vm646, %v4686
      %4759 = vst.msk [vmem:[%s325 + $0x98] sm:$0xff] %vm646, %v4689
      %4760 = vst.msk [vmem:[%s325 + $0xa0] sm:$0xff] %vm646, %v4694
      %4761 = vst.msk [vmem:[%s325 + $0xa8] sm:$0xff] %vm646, %v4697
      %4762 = vst.msk [vmem:[%s325 + $0xb0] sm:$0xff] %vm646, %v4702
      %4763 = vst.msk [vmem:[%s325 + $0xb8] sm:$0xff] %vm646, %v4705
      %4764 = vst.msk [vmem:[%s325 + $0xc0] sm:$0xff] %vm646, %v4710
      %4765 = vst.msk [vmem:[%s325 + $0xc8] sm:$0xff] %vm646, %v4713
      %4766 = vst.msk [vmem:[%s325 + $0xd0] sm:$0xff] %vm646, %v4718
      %4767 = vst.msk [vmem:[%s325 + $0xd8] sm:$0xff] %vm646, %v4721
      %4768 = vst.msk [vmem:[%s325 + $0xe0] sm:$0xff] %vm646, %v4726
      %4769 = vst.msk [vmem:[%s325 + $0xe8] sm:$0xff] %vm646, %v4729
      %4770 = vst.msk [vmem:[%s325 + $0xf0] sm:$0xff] %vm646, %v4734
      %4771 = vst.msk [vmem:[%s325 + $0xf8] sm:$0xff] %vm646, %v4737
      %p4772 = scmp.lt.s32.totalorder %s19, 1
      %s4773 = scalar_select %p4772, %s19, 1
      %s4774 = smul.addr %s4773, 32
      %s4775 = smul.addr %s4774, 8
      %s4776 = scalar_lea.vmem %s8, %s4775
      // Predicated region
      $region53: #{up_block_apply.7} parent=51 // pred_check
        %p4777 = pneg %p215
      $region54: #{up_block_apply.7} parent=51 // pred_check_branch
        %4779 = sbr.rel (%p4777) target = $region56
      $region55: #{up_block_apply.7} parent=51 // pred_region
        _
      $region56: #{up_block_apply.7} parent=51 // pred_fallthru
        _
    $region52: #{up_block_apply.7} parent=5 // pred_fallthru
      _
    %p4780 = scmp.le.s32.totalorder 2, %s14
    // Predicated region
    $region57: #{up_block_apply.7} parent=5 // pred_check
      %p4781 = pneg %p4780
    $region58: #{up_block_apply.7} parent=5 // pred_check_branch
      %4783 = sbr.rel (%p4781) target = $region60
    $region59: #{up_block_apply.7} parent=5 // pred_region
      %s4784 = ssub.s32 %s14, 2
      // Predicated region
      $region61: #{up_block_apply.7} parent=59 // pred_check
        %p4785 = pneg %p221
      $region62: #{up_block_apply.7} parent=59 // pred_check_branch
        %4787 = sbr.rel (%p4785) target = $region64
      $region63: #{up_block_apply.7} parent=59 // pred_region
        %p4788 = scmp.lt.s32.totalorder %s20, 1
        %s4789 = scalar_select %p4788, %s20, 1
        %s4790 = smul.addr %s4789, 32
        %s4791 = smul.addr %s4790, 8
        %s4792 = scalar_lea.vmem %s8, %s4791
      $region64: #{up_block_apply.7} parent=59 // pred_fallthru
        _
    $region60: #{up_block_apply.7} parent=5 // pred_fallthru
      _
  $region6: #{up_block_apply.7} parent=0 // loop_footer
    %s18 = sadd.s32 1, %s14
  $region7: #{up_block_apply.7} parent=0 // loop_footer_branch
    %13 = sbr.rel target = $region3
  $region8: #{up_block_apply.7} parent=0 // loop_exit
    _

// kernel: up_block_apply.9
$region0: #{up_block_apply.9}
  #allocation0 [shape = 'u32[]', space=smem, size = 0x4, offset = 0x4, fixed_abs, tag = 'smem constant byte address 0x4 - core index']
  #allocation1 [shape = 'u32[144,128]{1,0:T(1,128)}', space=vmem, size = 0x12000, scoped, tag = 'internal scratch']
  %s0 = inlined_call_operand.vmem [shape: f32[2,16,16,16], index: 0, kind: input, shape index: {}]
  %s1 = inlined_call_operand.vmem [shape: f32[2,16,16,8], index: 1, kind: input, shape index: {}]
  %s2 = inlined_call_operand.vmem [shape: f32[2,16], index: 2, kind: input, shape index: {}]
  %s3 = inlined_call_operand.vmem [shape: f32[2,8], index: 3, kind: input, shape index: {}]
  %s4 = inlined_call_operand.vmem [shape: bf16[16,16], index: 4, kind: input, shape index: {}]
  %s5 = inlined_call_operand.vmem [shape: bf16[8,16], index: 5, kind: input, shape index: {}]
  %s6 = inlined_call_operand.vmem [shape: bf16[216,16], index: 6, kind: input, shape index: {}]
  %s7 = inlined_call_operand.vmem [shape: bf16[144,16], index: 7, kind: input, shape index: {}]
  %s8 = inlined_call_operand.hbm [shape: f32[2,16,16,16], index: 8, kind: output, shape index: {}]
  %s9 = sld [smem:[#allocation0]]
  $region65: #{up_block_apply.9} parent=0
    _
  %s11 = ssub.s32 1, %s9
  %s12 = scalar_select 0, %s11, %s9
  $region1: #{up_block_apply.9} parent=0
    #allocation2 [shape = 'u8[262144]{0}', space=vmem, size = 0x40000, scoped, tag = 'output window, operand 0']
    #allocation3 [shape = 's32[2]{0}', space=sflag, size = 0x8, scoped, tag = 'scoped memory for up_block_apply.9']
    %13 = vsyncpa [#allocation3], 0
    %s14 = scalar_lea.sflag [#allocation3], 1
    %15 = vsyncpa %s14, 0
    loop: start=0, step=1, limit=4
    $region2: #{up_block_apply.9} parent=1 // loop_pre_header
      _
    $region3: #{up_block_apply.9} parent=1 // loop_header
      %s17 = sphi 0, %s21
      %p18 = scmp.ge.s32.totalorder %s17, 4
      %s27 = sphi 0, %s29
      %s30 = sphi 0, %s27
      %s31 = sphi 0, %s30
      %s47 = sphi 0, %s31
      %s53 = sphi 0, %s55
      %s56 = sphi 0, %s53
      %s57 = sphi 0, %s56
      %s73 = sphi 0, %s57
      %s77 = sphi 0, %s77
      %s79 = sphi 0, %s77
      %s80 = sphi 0, %s79
      %s94 = sphi 0, %s80
      %s98 = sphi 0, %s98
      %s100 = sphi 0, %s98
      %s101 = sphi 0, %s100
      %s115 = sphi 0, %s101
      %s119 = sphi 0, %s119
      %s121 = sphi 0, %s119
      %s122 = sphi 0, %s121
      %s136 = sphi 0, %s122
      %s140 = sphi 0, %s140
      %s142 = sphi 0, %s140
      %s143 = sphi 0, %s142
      %s157 = sphi 0, %s143
      %s161 = sphi 0, %s161
      %s163 = sphi 0, %s161
      %s164 = sphi 0, %s163
      %s178 = sphi 0, %s164
      %s182 = sphi 0, %s182
      %s184 = sphi 0, %s182
      %s185 = sphi 0, %s184
      %s199 = sphi 0, %s185
      %s205 = sphi 0, %s207
      %s208 = sphi 0, %s205
      %s209 = sphi 0, %s208
      %s225 = sphi 0, %s209
    $region4: #{up_block_apply.9} parent=1 // loop_header_branch
      %20 = sbr.rel (%p18) target = $region8
    $region5: #{up_block_apply.9} parent=1 // loop_body
      %s22 = ssub.s32 %s17, 1
      %s23 = ssub.s32 %s17, 2
      %s24 = sadd.s32 %s17, 1
      %s25 = ssub.s32 %s17, %s24
      %p26 = scmp.eq.s32.totalorder %s25, 0
      %s28 = sadd.s32 %s27, 1
      %s29 = scalar_select %p26, %s27, %s28
      %p32 = pneg %p26
      %p33 = scmp.eq.s32.totalorder %s17, 1
      %p34 = por %p32, %p33
      %p35 = scmp.ne.s32.totalorder %s27, %s30
      %p36 = scmp.eq.s32.totalorder %s17, 0
      %p37 = por %p35, %p36
      %p38 = scmp.ne.s32.totalorder %s27, %s30
      %p39 = scmp.eq.s32.totalorder %s22, 1
      %p40 = por %p38, %p39
      %p41 = scmp.ne.s32.totalorder %s30, %s31
      %p42 = scmp.eq.s32.totalorder %s22, 0
      %p43 = por %p41, %p42
      %p44 = scmp.ne.s32.totalorder %s30, %s31
      %p45 = scmp.eq.s32.totalorder %s23, 1
      %p46 = por %p44, %p45
      %p48 = scmp.ne.s32.totalorder %s31, %s47
      %p49 = scmp.eq.s32.totalorder %s23, 0
      %p50 = por %p48, %p49
      %s51 = ssub.s32 %s17, %s24
      %p52 = scmp.eq.s32.totalorder %s51, 0
      %s54 = sadd.s32 %s53, 1
      %s55 = scalar_select %p52, %s53, %s54
      %p58 = pneg %p52
      %p59 = scmp.eq.s32.totalorder %s17, 1
      %p60 = por %p58, %p59
      %p61 = scmp.ne.s32.totalorder %s53, %s56
      %p62 = scmp.eq.s32.totalorder %s17, 0
      %p63 = por %p61, %p62
      %p64 = scmp.ne.s32.totalorder %s53, %s56
      %p65 = scmp.eq.s32.totalorder %s22, 1
      %p66 = por %p64, %p65
      %p67 = scmp.ne.s32.totalorder %s56, %s57
      %p68 = scmp.eq.s32.totalorder %s22, 0
      %p69 = por %p67, %p68
      %p70 = scmp.ne.s32.totalorder %s56, %s57
      %p71 = scmp.eq.s32.totalorder %s23, 1
      %p72 = por %p70, %p71
      %p74 = scmp.ne.s32.totalorder %s57, %s73
      %p75 = scmp.eq.s32.totalorder %s23, 0
      %p76 = por %p74, %p75
      %s78 = sadd.s32 %s77, 1
      %p81 = scmp.eq.s32.totalorder %s17, 1
      %p82 = scmp.ne.s32.totalorder %s77, %s79
      %p83 = scmp.eq.s32.totalorder %s17, 0
      %p84 = por %p82, %p83
      %p85 = scmp.ne.s32.totalorder %s77, %s79
      %p86 = scmp.eq.s32.totalorder %s22, 1
      %p87 = por %p85, %p86
      %p88 = scmp.ne.s32.totalorder %s79, %s80
      %p89 = scmp.eq.s32.totalorder %s22, 0
      %p90 = por %p88, %p89
      %p91 = scmp.ne.s32.totalorder %s79, %s80
      %p92 = scmp.eq.s32.totalorder %s23, 1
      %p93 = por %p91, %p92
      %p95 = scmp.ne.s32.totalorder %s80, %s94
      %p96 = scmp.eq.s32.totalorder %s23, 0
      %p97 = por %p95, %p96
      %s99 = sadd.s32 %s98, 1
      %p102 = scmp.eq.s32.totalorder %s17, 1
      %p103 = scmp.ne.s32.totalorder %s98, %s100
      %p104 = scmp.eq.s32.totalorder %s17, 0
      %p105 = por %p103, %p104
      %p106 = scmp.ne.s32.totalorder %s98, %s100
      %p107 = scmp.eq.s32.totalorder %s22, 1
      %p108 = por %p106, %p107
      %p109 = scmp.ne.s32.totalorder %s100, %s101
      %p110 = scmp.eq.s32.totalorder %s22, 0
      %p111 = por %p109, %p110
      %p112 = scmp.ne.s32.totalorder %s100, %s101
      %p113 = scmp.eq.s32.totalorder %s23, 1
      %p114 = por %p112, %p113
      %p116 = scmp.ne.s32.totalorder %s101, %s115
      %p117 = scmp.eq.s32.totalorder %s23, 0
      %p118 = por %p116, %p117
      %s120 = sadd.s32 %s119, 1
      %p123 = scmp.eq.s32.totalorder %s17, 1
      %p124 = scmp.ne.s32.totalorder %s119, %s121
      %p125 = scmp.eq.s32.totalorder %s17, 0
      %p126 = por %p124, %p125
      %p127 = scmp.ne.s32.totalorder %s119, %s121
      %p128 = scmp.eq.s32.totalorder %s22, 1
      %p129 = por %p127, %p128
      %p130 = scmp.ne.s32.totalorder %s121, %s122
      %p131 = scmp.eq.s32.totalorder %s22, 0
      %p132 = por %p130, %p131
      %p133 = scmp.ne.s32.totalorder %s121, %s122
      %p134 = scmp.eq.s32.totalorder %s23, 1
      %p135 = por %p133, %p134
      %p137 = scmp.ne.s32.totalorder %s122, %s136
      %p138 = scmp.eq.s32.totalorder %s23, 0
      %p139 = por %p137, %p138
      %s141 = sadd.s32 %s140, 1
      %p144 = scmp.eq.s32.totalorder %s17, 1
      %p145 = scmp.ne.s32.totalorder %s140, %s142
      %p146 = scmp.eq.s32.totalorder %s17, 0
      %p147 = por %p145, %p146
      %p148 = scmp.ne.s32.totalorder %s140, %s142
      %p149 = scmp.eq.s32.totalorder %s22, 1
      %p150 = por %p148, %p149
      %p151 = scmp.ne.s32.totalorder %s142, %s143
      %p152 = scmp.eq.s32.totalorder %s22, 0
      %p153 = por %p151, %p152
      %p154 = scmp.ne.s32.totalorder %s142, %s143
      %p155 = scmp.eq.s32.totalorder %s23, 1
      %p156 = por %p154, %p155
      %p158 = scmp.ne.s32.totalorder %s143, %s157
      %p159 = scmp.eq.s32.totalorder %s23, 0
      %p160 = por %p158, %p159
      %s162 = sadd.s32 %s161, 1
      %p165 = scmp.eq.s32.totalorder %s17, 1
      %p166 = scmp.ne.s32.totalorder %s161, %s163
      %p167 = scmp.eq.s32.totalorder %s17, 0
      %p168 = por %p166, %p167
      %p169 = scmp.ne.s32.totalorder %s161, %s163
      %p170 = scmp.eq.s32.totalorder %s22, 1
      %p171 = por %p169, %p170
      %p172 = scmp.ne.s32.totalorder %s163, %s164
      %p173 = scmp.eq.s32.totalorder %s22, 0
      %p174 = por %p172, %p173
      %p175 = scmp.ne.s32.totalorder %s163, %s164
      %p176 = scmp.eq.s32.totalorder %s23, 1
      %p177 = por %p175, %p176
      %p179 = scmp.ne.s32.totalorder %s164, %s178
      %p180 = scmp.eq.s32.totalorder %s23, 0
      %p181 = por %p179, %p180
      %s183 = sadd.s32 %s182, 1
      %p186 = scmp.eq.s32.totalorder %s17, 1
      %p187 = scmp.ne.s32.totalorder %s182, %s184
      %p188 = scmp.eq.s32.totalorder %s17, 0
      %p189 = por %p187, %p188
      %p190 = scmp.ne.s32.totalorder %s182, %s184
      %p191 = scmp.eq.s32.totalorder %s22, 1
      %p192 = por %p190, %p191
      %p193 = scmp.ne.s32.totalorder %s184, %s185
      %p194 = scmp.eq.s32.totalorder %s22, 0
      %p195 = por %p193, %p194
      %p196 = scmp.ne.s32.totalorder %s184, %s185
      %p197 = scmp.eq.s32.totalorder %s23, 1
      %p198 = por %p196, %p197
      %p200 = scmp.ne.s32.totalorder %s185, %s199
      %p201 = scmp.eq.s32.totalorder %s23, 0
      %p202 = por %p200, %p201
      %s203 = ssub.s32 %s17, %s24
      %p204 = scmp.eq.s32.totalorder %s203, 0
      %s206 = sadd.s32 %s205, 1
      %s207 = scalar_select %p204, %s205, %s206
      %p210 = pneg %p204
      %p211 = scmp.eq.s32.totalorder %s17, 1
      %p212 = por %p210, %p211
      %p213 = scmp.ne.s32.totalorder %s205, %s208
      %p214 = scmp.eq.s32.totalorder %s17, 0
      %p215 = por %p213, %p214
      %p216 = scmp.ne.s32.totalorder %s205, %s208
      %p217 = scmp.eq.s32.totalorder %s22, 1
      %p218 = por %p216, %p217
      %p219 = scmp.ne.s32.totalorder %s208, %s209
      %p220 = scmp.eq.s32.totalorder %s22, 0
      %p221 = por %p219, %p220
      %p222 = scmp.ne.s32.totalorder %s208, %s209
      %p223 = scmp.eq.s32.totalorder %s23, 1
      %p224 = por %p222, %p223
      %p226 = scmp.ne.s32.totalorder %s209, %s225
      %p227 = scmp.eq.s32.totalorder %s23, 0
      %p228 = por %p226, %p227
      %p229 = scmp.le.s32.totalorder 1, %s17
      %p230 = scmp.lt.s32.totalorder %s17, 3
      %p231 = pnand %p229, %p230
      %p232 = pneg %p231
      // Predicated region
      $region9: #{up_block_apply.9} parent=5 // pred_check
        _
      $region10: #{up_block_apply.9} parent=5 // pred_check_branch
        %234 = sbr.rel (%p231) target = $region12
      $region11: #{up_block_apply.9} parent=5 // pred_region
        %s235 = ssub.s32 %s17, 1
        // Predicated region
        $region13: #{up_block_apply.9} parent=11 // pred_check
          %p236 = pneg %p90
        $region14: #{up_block_apply.9} parent=11 // pred_check_branch
          %238 = sbr.rel (%p236) target = $region16
        $region15: #{up_block_apply.9} parent=11 // pred_region
          _
        $region16: #{up_block_apply.9} parent=11 // pred_fallthru
          _
        // Predicated region
        $region17: #{up_block_apply.9} parent=11 // pred_check
          %p239 = pneg %p111
        $region18: #{up_block_apply.9} parent=11 // pred_check_branch
          %241 = sbr.rel (%p239) target = $region20
        $region19: #{up_block_apply.9} parent=11 // pred_region
          _
        $region20: #{up_block_apply.9} parent=11 // pred_fallthru
          _
        // Predicated region
        $region21: #{up_block_apply.9} parent=11 // pred_check
          %p242 = pneg %p132
        $region22: #{up_block_apply.9} parent=11 // pred_check_branch
          %244 = sbr.rel (%p242) target = $region24
        $region23: #{up_block_apply.9} parent=11 // pred_region
          _
        $region24: #{up_block_apply.9} parent=11 // pred_fallthru
          _
        // Predicated region
        $region25: #{up_block_apply.9} parent=11 // pred_check
          %p245 = pneg %p153
        $region26: #{up_block_apply.9} parent=11 // pred_check_branch
          %247 = sbr.rel (%p245) target = $region28
        $region27: #{up_block_apply.9} parent=11 // pred_region
          _
        $region28: #{up_block_apply.9} parent=11 // pred_fallthru
          _
        // Predicated region
        $region29: #{up_block_apply.9} parent=11 // pred_check
          %p248 = pneg %p174
        $region30: #{up_block_apply.9} parent=11 // pred_check_branch
          %250 = sbr.rel (%p248) target = $region32
        $region31: #{up_block_apply.9} parent=11 // pred_region
          _
        $region32: #{up_block_apply.9} parent=11 // pred_fallthru
          _
        // Predicated region
        $region33: #{up_block_apply.9} parent=11 // pred_check
          %p251 = pneg %p195
        $region34: #{up_block_apply.9} parent=11 // pred_check_branch
          %253 = sbr.rel (%p251) target = $region36
        $region35: #{up_block_apply.9} parent=11 // pred_region
          _
        $region36: #{up_block_apply.9} parent=11 // pred_fallthru
          _
      $region12: #{up_block_apply.9} parent=5 // pred_fallthru
        _
      %p254 = scmp.lt.s32.totalorder %s17, 2
      // Predicated region
      $region37: #{up_block_apply.9} parent=5 // pred_check
        %p255 = pneg %p254
      $region38: #{up_block_apply.9} parent=5 // pred_check_branch
        %257 = sbr.rel (%p255) target = $region40
      $region39: #{up_block_apply.9} parent=5 // pred_region
        // Predicated region
        $region41: #{up_block_apply.9} parent=39 // pred_check
          %p258 = pneg %p37
        $region42: #{up_block_apply.9} parent=39 // pred_check_branch
          %260 = sbr.rel (%p258) target = $region44
        $region43: #{up_block_apply.9} parent=39 // pred_region
          %p261 = scmp.lt.s32.totalorder %s17, 1
          %s262 = scalar_select %p261, %s17, 1
          %s263 = smul.addr %s262, 32
          %s264 = smul.addr %s263, 8
          %s265 = scalar_lea.vmem %s0, %s264
        $region44: #{up_block_apply.9} parent=39 // pred_fallthru
          _
        // Predicated region
        $region45: #{up_block_apply.9} parent=39 // pred_check
          %p266 = pneg %p63
        $region46: #{up_block_apply.9} parent=39 // pred_check_branch
          %268 = sbr.rel (%p266) target = $region48
        $region47: #{up_block_apply.9} parent=39 // pred_region
          %p269 = scmp.lt.s32.totalorder %s17, 1
          %s270 = scalar_select %p269, %s17, 1
          %s271 = smul.addr %s270, 32
          %s272 = smul.addr %s271, 8
          %s273 = scalar_lea.vmem %s1, %s272
        $region48: #{up_block_apply.9} parent=39 // pred_fallthru
          _
      $region40: #{up_block_apply.9} parent=5 // pred_fallthru
        _
      %p274 = scmp.le.s32.totalorder 1, %s17
      %p275 = scmp.lt.s32.totalorder %s17, 3
      %p276 = pnand %p274, %p275
      %p277 = pneg %p276
      // Predicated region
      $region49: #{up_block_apply.9} parent=5 // pred_check
        _
      $region50: #{up_block_apply.9} parent=5 // pred_check_branch
        %279 = sbr.rel (%p276) target = $region52
      $region51: #{up_block_apply.9} parent=5 // pred_region
        %s280 = ssub.s32 %s17, 1
        %p281 = scmp.lt.s32.totalorder %s22, 1
        %s282 = scalar_select %p281, %s22, 1
        %s283 = smul.addr %s282, 32
        %s284 = smul.addr %s283, 8
        %s285 = scalar_lea.vmem %s0, %s284
        %p286 = pneg %p43
        %p287 = pneg %p40
        %p288 = scmp.lt.s32.totalorder %s22, 1
        %s289 = scalar_select %p288, %s22, 1
        %s290 = smul.addr %s289, 32
        %s291 = smul.addr %s290, 8
        %s292 = scalar_lea.vmem %s1, %s291
        %p293 = pneg %p69
        %p294 = pneg %p66
        %p295 = pneg %p90
        %p296 = pneg %p87
        %p297 = pneg %p111
        %p298 = pneg %p108
        %p299 = pneg %p132
        %p300 = pneg %p129
        %p301 = pneg %p153
        %p302 = pneg %p150
        %p303 = pneg %p174
        %p304 = pneg %p171
        %p305 = pneg %p195
        %p306 = pneg %p192
        %p307 = pneg %p221
        %p308 = pneg %p218
        %s309 = sand.u32 %s208, 1
        %s310 = scalar_lea.sflag [#allocation3], %s309
        %s311 = sand.u32 %s208, 1
        %s312 = smul.addr %s311, 256
        %s313 = scalar_lea.vmem [#allocation2], %s312
        %p314 = scmp.lt.s32.totalorder %s22, 1
        %s315 = scalar_select %p314, %s22, 1
        %s316 = smul.addr %s315, 32
        %s317 = smul.addr %s316, 8
        %s318 = scalar_lea.vmem %s0, %s317
        %p319 = scmp.lt.s32.totalorder %s22, 1
        %s320 = scalar_select %p319, %s22, 1
        %s321 = smul.addr %s320, 32
        %s322 = smul.addr %s321, 8
        %s323 = scalar_lea.vmem %s1, %s322
        %v325 = vld [vmem:[%s318] sm:$0xff]
        %v326 = vld [vmem:[%s318 + $0x8] sm:$0xff]
        %v327 = vld [vmem:[%s318 + $0x10] sm:$0xff]
        %v328 = vld [vmem:[%s318 + $0x18] sm:$0xff]
        %v329 = vld [vmem:[%s318 + $0x20] sm:$0xff]
        %v330 = vld [vmem:[%s318 + $0x28] sm:$0xff]
        %v331 = vld [vmem:[%s318 + $0x30] sm:$0xff]
        %v332 = vld [vmem:[%s318 + $0x38] sm:$0xff]
        %v333 = vld [vmem:[%s318 + $0x40] sm:$0xff]
        %v334 = vld [vmem:[%s318 + $0x48] sm:$0xff]
        %v335 = vld [vmem:[%s318 + $0x50] sm:$0xff]
        %v336 = vld [vmem:[%s318 + $0x58] sm:$0xff]
        %v337 = vld [vmem:[%s318 + $0x60] sm:$0xff]
        %v338 = vld [vmem:[%s318 + $0x68] sm:$0xff]
        %v339 = vld [vmem:[%s318 + $0x70] sm:$0xff]
        %v340 = vld [vmem:[%s318 + $0x78] sm:$0xff]
        %v341 = vld [vmem:[%s318 + $0x80] sm:$0xff]
        %v342 = vld [vmem:[%s318 + $0x88] sm:$0xff]
        %v343 = vld [vmem:[%s318 + $0x90] sm:$0xff]
        %v344 = vld [vmem:[%s318 + $0x98] sm:$0xff]
        %v345 = vld [vmem:[%s318 + $0xa0] sm:$0xff]
        %v346 = vld [vmem:[%s318 + $0xa8] sm:$0xff]
        %v347 = vld [vmem:[%s318 + $0xb0] sm:$0xff]
        %v348 = vld [vmem:[%s318 + $0xb8] sm:$0xff]
        %v349 = vld [vmem:[%s318 + $0xc0] sm:$0xff]
        %v350 = vld [vmem:[%s318 + $0xc8] sm:$0xff]
        %v351 = vld [vmem:[%s318 + $0xd0] sm:$0xff]
        %v352 = vld [vmem:[%s318 + $0xd8] sm:$0xff]
        %v353 = vld [vmem:[%s318 + $0xe0] sm:$0xff]
        %v354 = vld [vmem:[%s318 + $0xe8] sm:$0xff]
        %v355 = vld [vmem:[%s318 + $0xf0] sm:$0xff]
        %v356 = vld [vmem:[%s318 + $0xf8] sm:$0xff]
        %v357 = vld [vmem:[%s323] sm:$0xff]
        %v358 = vld [vmem:[%s323 + $0x8] sm:$0xff]
        %v359 = vld [vmem:[%s323 + $0x10] sm:$0xff]
        %v360 = vld [vmem:[%s323 + $0x18] sm:$0xff]
        %v361 = vld [vmem:[%s323 + $0x20] sm:$0xff]
        %v362 = vld [vmem:[%s323 + $0x28] sm:$0xff]
        %v363 = vld [vmem:[%s323 + $0x30] sm:$0xff]
        %v364 = vld [vmem:[%s323 + $0x38] sm:$0xff]
        %v365 = vld [vmem:[%s323 + $0x40] sm:$0xff]
        %v366 = vld [vmem:[%s323 + $0x48] sm:$0xff]
        %v367 = vld [vmem:[%s323 + $0x50] sm:$0xff]
        %v368 = vld [vmem:[%s323 + $0x58] sm:$0xff]
        %v369 = vld [vmem:[%s323 + $0x60] sm:$0xff]
        %v370 = vld [vmem:[%s323 + $0x68] sm:$0xff]
        %v371 = vld [vmem:[%s323 + $0x70] sm:$0xff]
        %v372 = vld [vmem:[%s323 + $0x78] sm:$0xff]
        %v373 = vld [vmem:[%s323 + $0x80] sm:$0xff]
        %v374 = vld [vmem:[%s323 + $0x88] sm:$0xff]
        %v375 = vld [vmem:[%s323 + $0x90] sm:$0xff]
        %v376 = vld [vmem:[%s323 + $0x98] sm:$0xff]
        %v377 = vld [vmem:[%s323 + $0xa0] sm:$0xff]
        %v378 = vld [vmem:[%s323 + $0xa8] sm:$0xff]
        %v379 = vld [vmem:[%s323 + $0xb0] sm:$0xff]
        %v380 = vld [vmem:[%s323 + $0xb8] sm:$0xff]
        %v381 = vld [vmem:[%s323 + $0xc0] sm:$0xff]
        %v382 = vld [vmem:[%s323 + $0xc8] sm:$0xff]
        %v383 = vld [vmem:[%s323 + $0xd0] sm:$0xff]
        %v384 = vld [vmem:[%s323 + $0xd8] sm:$0xff]
        %v385 = vld [vmem:[%s323 + $0xe0] sm:$0xff]
        %v386 = vld [vmem:[%s323 + $0xe8] sm:$0xff]
        %v387 = vld [vmem:[%s323 + $0xf0] sm:$0xff]
        %v388 = vld [vmem:[%s323 + $0xf8] sm:$0xff]
        %v389 = vpack.c.bf16 %v326, %v325
        %v390 = vpack.c.bf16 %v328, %v327
        %v391 = vpack.c.bf16 %v330, %v329
        %v392 = vpack.c.bf16 %v332, %v331
        %v393 = vpack.c.bf16 %v334, %v333
        %v394 = vpack.c.bf16 %v336, %v335
        %v395 = vpack.c.bf16 %v338, %v337
        %v396 = vpack.c.bf16 %v340, %v339
        %v397 = vpack.c.bf16 %v342, %v341
        %v398 = vpack.c.bf16 %v344, %v343
        %v399 = vpack.c.bf16 %v346, %v345
        %v400 = vpack.c.bf16 %v348, %v347
        %v401 = vpack.c.bf16 %v350, %v349
        %v402 = vpack.c.bf16 %v352, %v351
        %v403 = vpack.c.bf16 %v354, %v353
        %v404 = vpack.c.bf16 %v356, %v355
        %v405 = vld [vmem:[%s4] sm:$0xf]
        %v406 = vld [vmem:[%s4 + $0x4] sm:$0xf]
        %v407 = vpack.c.bf16 %v358, %v357
        %v408 = vpack.c.bf16 %v360, %v359
        %v409 = vpack.c.bf16 %v362, %v361
        %v410 = vpack.c.bf16 %v364, %v363
        %v411 = vpack.c.bf16 %v366, %v365
        %v412 = vpack.c.bf16 %v368, %v367
        %v413 = vpack.c.bf16 %v370, %v369
        %v414 = vpack.c.bf16 %v372, %v371
        %v415 = vpack.c.bf16 %v374, %v373
        %v416 = vpack.c.bf16 %v376, %v375
        %v417 = vpack.c.bf16 %v378, %v377
        %v418 = vpack.c.bf16 %v380, %v379
        %v419 = vpack.c.bf16 %v382, %v381
        %v420 = vpack.c.bf16 %v384, %v383
        %v421 = vpack.c.bf16 %v386, %v385
        %v422 = vpack.c.bf16 %v388, %v387
        %v423 = vld [vmem:[%s5] sm:$0xf]
        %vm424 = vcmask 64512
        %v426 = vsel %vm424, %v407, 0
        %v429 = vsel %vm424, %v408, 0
        %v432 = vsel %vm424, %v409, 0
        %v435 = vsel %vm424, %v410, 0
        %v438 = vsel %vm424, %v411, 0
        %v441 = vsel %vm424, %v412, 0
        %v444 = vsel %vm424, %v413, 0
        %v447 = vsel %vm424, %v414, 0
        %v450 = vsel %vm424, %v415, 0
        %v453 = vsel %vm424, %v416, 0
        %v456 = vsel %vm424, %v417, 0
        %v459 = vsel %vm424, %v418, 0
        %v462 = vsel %vm424, %v419, 0
        %v465 = vsel %vm424, %v420, 0
        %v468 = vsel %vm424, %v421, 0
        %v471 = vsel %vm424, %v422, 0
        %vm473 = vcmask 1043456
        %v475 = vsel %vm473, %v423, 0
        %477 = vmatprep.subr.bf16.mxu0 0
        %478 = vmatpush1.bf16.msra.mxu0 0
        %479 = vmatprep.subr.bf16.mxu0 0
        %480 = vmatpush1.bf16.msra.mxu0 0
        %481 = vmatprep.subr.bf16.mxu0 0
        %482 = vmatpush1.bf16.msra.mxu0 0
        %483 = vmatprep.subr.bf16.mxu0 0
        %484 = vmatpush1.bf16.msra.mxu0 0
        %485 = vmatprep.subr.bf16.mxu0 0
        %486 = vmatpush1.bf16.msra.mxu0 0
        %487 = vmatprep.subr.bf16.mxu0 0
        %488 = vmatpush1.bf16.msra.mxu0 0
        %489 = vmatprep.subr.bf16.mxu0 0
        %490 = vmatpush1.bf16.msra.mxu0 0
        %491 = vmatprep.subr.bf16.mxu0 0
        %492 = vmatpush1.bf16.msra.mxu0 %v475
        %493 = vmatprep.subr.bf16.mxu0 0
        %494 = vmatpush2.bf16.msra.mxu0 0
        %495 = vmatprep.subr.bf16.mxu0 0
        %496 = vmatpush2.bf16.msra.mxu0 0
        %497 = vmatprep.subr.bf16.mxu0 0
        %498 = vmatpush2.bf16.msra.mxu0 0
        %499 = vmatprep.subr.bf16.mxu0 0
        %500 = vmatpush2.bf16.msra.mxu0 0
        %501 = vmatprep.subr.bf16.mxu0 0
        %502 = vmatpush2.bf16.msra.mxu0 0
        %503 = vmatprep.subr.bf16.mxu0 0
        %504 = vmatpush2.bf16.msra.mxu0 0
        %505 = vmatprep.subr.bf16.mxu0 0
        %506 = vmatpush2.bf16.msra.mxu0 0
        %507 = vmatprep.subr.bf16.mxu0 0
        %508 = vmatpush2.bf16.msra.mxu0 0
        %509 = vmatprep.mubr.bf16.mxu0 0
        %510 = vmatmul.mubr.bf16.gmra.mxu0 %v426
        %v511 = vpop.f32.mrf.mxu0
        %v512 = vadd.f32 0.0, %v511
        %v513 = vpop.f32.mrf.mxu0
        %v514 = vpop.f32.mrf.mxu0
        %v515 = vadd.f32 0.0, %v514
        %v516 = vpop.f32.mrf.mxu0
        %517 = vmatprep.mubr.bf16.mxu0 0
        %518 = vmatmul.mubr.bf16.gmra.mxu0 %v429
        %v519 = vpop.f32.mrf.mxu0
        %v520 = vadd.f32 0.0, %v519
        %v521 = vpop.f32.mrf.mxu0
        %v522 = vpop.f32.mrf.mxu0
        %v523 = vadd.f32 0.0, %v522
        %v524 = vpop.f32.mrf.mxu0
        %525 = vmatprep.mubr.bf16.mxu0 0
        %526 = vmatmul.mubr.bf16.gmra.mxu0 %v432
        %v527 = vpop.f32.mrf.mxu0
        %v528 = vadd.f32 0.0, %v527
        %v529 = vpop.f32.mrf.mxu0
        %v530 = vpop.f32.mrf.mxu0
        %v531 = vadd.f32 0.0, %v530
        %v532 = vpop.f32.mrf.mxu0
        %533 = vmatprep.mubr.bf16.mxu0 0
        %534 = vmatmul.mubr.bf16.gmra.mxu0 %v435
        %v535 = vpop.f32.mrf.mxu0
        %v536 = vadd.f32 0.0, %v535
        %v537 = vpop.f32.mrf.mxu0
        %v538 = vpop.f32.mrf.mxu0
        %v539 = vadd.f32 0.0, %v538
        %v540 = vpop.f32.mrf.mxu0
        %541 = vmatprep.mubr.bf16.mxu0 0
        %542 = vmatmul.mubr.bf16.gmra.mxu0 %v438
        %v543 = vpop.f32.mrf.mxu0
        %v544 = vadd.f32 0.0, %v543
        %v545 = vpop.f32.mrf.mxu0
        %v546 = vpop.f32.mrf.mxu0
        %v547 = vadd.f32 0.0, %v546
        %v548 = vpop.f32.mrf.mxu0
        %549 = vmatprep.mubr.bf16.mxu0 0
        %550 = vmatmul.mubr.bf16.gmra.mxu0 %v441
        %v551 = vpop.f32.mrf.mxu0
        %v552 = vadd.f32 0.0, %v551
        %v553 = vpop.f32.mrf.mxu0
        %v554 = vpop.f32.mrf.mxu0
        %v555 = vadd.f32 0.0, %v554
        %v556 = vpop.f32.mrf.mxu0
        %557 = vmatprep.mubr.bf16.mxu0 0
        %558 = vmatmul.mubr.bf16.gmra.mxu0 %v444
        %v559 = vpop.f32.mrf.mxu0
        %v560 = vadd.f32 0.0, %v559
        %v561 = vpop.f32.mrf.mxu0
        %v562 = vpop.f32.mrf.mxu0
        %v563 = vadd.f32 0.0, %v562
        %v564 = vpop.f32.mrf.mxu0
        %565 = vmatprep.mubr.bf16.mxu0 0
        %566 = vmatmul.mubr.bf16.gmra.mxu0 %v447
        %v567 = vpop.f32.mrf.mxu0
        %v568 = vadd.f32 0.0, %v567
        %v569 = vpop.f32.mrf.mxu0
        %v570 = vpop.f32.mrf.mxu0
        %v571 = vadd.f32 0.0, %v570
        %v572 = vpop.f32.mrf.mxu0
        %573 = vmatprep.mubr.bf16.mxu0 0
        %574 = vmatmul.mubr.bf16.gmra.mxu0 %v450
        %v575 = vpop.f32.mrf.mxu0
        %v576 = vadd.f32 0.0, %v575
        %v577 = vpop.f32.mrf.mxu0
        %v578 = vpop.f32.mrf.mxu0
        %v579 = vadd.f32 0.0, %v578
        %v580 = vpop.f32.mrf.mxu0
        %581 = vmatprep.mubr.bf16.mxu0 0
        %582 = vmatmul.mubr.bf16.gmra.mxu0 %v453
        %v583 = vpop.f32.mrf.mxu0
        %v584 = vadd.f32 0.0, %v583
        %v585 = vpop.f32.mrf.mxu0
        %v586 = vpop.f32.mrf.mxu0
        %v587 = vadd.f32 0.0, %v586
        %v588 = vpop.f32.mrf.mxu0
        %589 = vmatprep.mubr.bf16.mxu0 0
        %590 = vmatmul.mubr.bf16.gmra.mxu0 %v456
        %v591 = vpop.f32.mrf.mxu0
        %v592 = vadd.f32 0.0, %v591
        %v593 = vpop.f32.mrf.mxu0
        %v594 = vpop.f32.mrf.mxu0
        %v595 = vadd.f32 0.0, %v594
        %v596 = vpop.f32.mrf.mxu0
        %597 = vmatprep.mubr.bf16.mxu0 0
        %598 = vmatmul.mubr.bf16.gmra.mxu0 %v459
        %v599 = vpop.f32.mrf.mxu0
        %v600 = vadd.f32 0.0, %v599
        %v601 = vpop.f32.mrf.mxu0
        %v602 = vpop.f32.mrf.mxu0
        %v603 = vadd.f32 0.0, %v602
        %v604 = vpop.f32.mrf.mxu0
        %605 = vmatprep.mubr.bf16.mxu0 0
        %606 = vmatmul.mubr.bf16.gmra.mxu0 %v462
        %v607 = vpop.f32.mrf.mxu0
        %v608 = vadd.f32 0.0, %v607
        %v609 = vpop.f32.mrf.mxu0
        %v610 = vpop.f32.mrf.mxu0
        %v611 = vadd.f32 0.0, %v610
        %v612 = vpop.f32.mrf.mxu0
        %613 = vmatprep.mubr.bf16.mxu0 0
        %614 = vmatmul.mubr.bf16.gmra.mxu0 %v465
        %v615 = vpop.f32.mrf.mxu0
        %v616 = vadd.f32 0.0, %v615
        %v617 = vpop.f32.mrf.mxu0
        %v618 = vpop.f32.mrf.mxu0
        %v619 = vadd.f32 0.0, %v618
        %v620 = vpop.f32.mrf.mxu0
        %621 = vmatprep.mubr.bf16.mxu0 0
        %622 = vmatmul.mubr.bf16.gmra.mxu0 %v468
        %v623 = vpop.f32.mrf.mxu0
        %v624 = vadd.f32 0.0, %v623
        %v625 = vpop.f32.mrf.mxu0
        %v626 = vpop.f32.mrf.mxu0
        %v627 = vadd.f32 0.0, %v626
        %v628 = vpop.f32.mrf.mxu0
        %629 = vmatprep.mubr.bf16.mxu0 0
        %630 = vmatmul.mubr.bf16.gmra.mxu0 %v471
        %v631 = vpop.f32.mrf.mxu0
        %v632 = vadd.f32 0.0, %v631
        %v633 = vpop.f32.mrf.mxu0
        %v634 = vpop.f32.mrf.mxu0
        %v635 = vadd.f32 0.0, %v634
        %v636 = vpop.f32.mrf.mxu0
        %637 = vdwg.mxu0
        %v640 = vunpack.c.l.b16 %v405
        %v641 = vunpack.c.l.b16 %v406
        %v642 = vpack.c.b16 %v641, %v640
        %vm644 = vcmask 130048
        %v646 = vsel %vm644, %v389, 0
        %v649 = vsel %vm644, %v390, 0
        %v652 = vsel %vm644, %v391, 0
        %v655 = vsel %vm644, %v392, 0
        %v658 = vsel %vm644, %v393, 0
        %v661 = vsel %vm644, %v394, 0
        %v664 = vsel %vm644, %v395, 0
        %v667 = vsel %vm644, %v396, 0
        %v670 = vsel %vm644, %v397, 0
        %v673 = vsel %vm644, %v398, 0
        %v676 = vsel %vm644, %v399, 0
        %v679 = vsel %vm644, %v400, 0
        %v682 = vsel %vm644, %v401, 0
        %v685 = vsel %vm644, %v402, 0
        %v688 = vsel %vm644, %v403, 0
        %v691 = vsel %vm644, %v404, 0
        %693 = vmatprep.subr.bf16.mxu0 0
        %694 = vmatpush1.bf16.msra.mxu0 0
        %695 = vmatprep.subr.bf16.mxu0 0
        %696 = vmatpush1.bf16.msra.mxu0 0
        %697 = vmatprep.subr.bf16.mxu0 0
        %698 = vmatpush1.bf16.msra.mxu0 0
        %699 = vmatprep.subr.bf16.mxu0 0
        %700 = vmatpush1.bf16.msra.mxu0 0
        %701 = vmatprep.subr.bf16.mxu0 0
        %702 = vmatpush1.bf16.msra.mxu0 0
        %703 = vmatprep.subr.bf16.mxu0 0
        %704 = vmatpush1.bf16.msra.mxu0 0
        %705 = vmatprep.subr.bf16.mxu0 0
        %706 = vmatpush1.bf16.msra.mxu0 0
        %707 = vmatprep.subr.bf16.mxu0 0
        %708 = vmatpush1.bf16.msra.mxu0 %v642
        %709 = vmatprep.subr.bf16.mxu0 0
        %710 = vmatpush2.bf16.msra.mxu0 0
        %711 = vmatprep.subr.bf16.mxu0 0
        %712 = vmatpush2.bf16.msra.mxu0 0
        %713 = vmatprep.subr.bf16.mxu0 0
        %714 = vmatpush2.bf16.msra.mxu0 0
        %715 = vmatprep.subr.bf16.mxu0 0
        %716 = vmatpush2.bf16.msra.mxu0 0
        %717 = vmatprep.subr.bf16.mxu0 0
        %718 = vmatpush2.bf16.msra.mxu0 0
        %719 = vmatprep.subr.bf16.mxu0 0
        %720 = vmatpush2.bf16.msra.mxu0 0
        %721 = vmatprep.subr.bf16.mxu0 0
        %722 = vmatpush2.bf16.msra.mxu0 0
        %723 = vmatprep.subr.bf16.mxu0 0
        %724 = vmatpush2.bf16.msra.mxu0 0
        %725 = vmatprep.mubr.bf16.mxu0 0
        %726 = vmatmul.mubr.bf16.gmra.mxu0 %v646
        %v727 = vpop.f32.mrf.mxu0
        %v728 = vadd.f32 %v512, %v727
        %v729 = vpop.f32.mrf.mxu0
        %v730 = vpop.f32.mrf.mxu0
        %v731 = vadd.f32 %v515, %v730
        %v732 = vpop.f32.mrf.mxu0
        %733 = vmatprep.mubr.bf16.mxu0 0
        %734 = vmatmul.mubr.bf16.gmra.mxu0 %v649
        %v735 = vpop.f32.mrf.mxu0
        %v736 = vadd.f32 %v520, %v735
        %v737 = vpop.f32.mrf.mxu0
        %v738 = vpop.f32.mrf.mxu0
        %v739 = vadd.f32 %v523, %v738
        %v740 = vpop.f32.mrf.mxu0
        %741 = vmatprep.mubr.bf16.mxu0 0
        %742 = vmatmul.mubr.bf16.gmra.mxu0 %v652
        %v743 = vpop.f32.mrf.mxu0
        %v744 = vadd.f32 %v528, %v743
        %v745 = vpop.f32.mrf.mxu0
        %v746 = vpop.f32.mrf.mxu0
        %v747 = vadd.f32 %v531, %v746
        %v748 = vpop.f32.mrf.mxu0
        %749 = vmatprep.mubr.bf16.mxu0 0
        %750 = vmatmul.mubr.bf16.gmra.mxu0 %v655
        %v751 = vpop.f32.mrf.mxu0
        %v752 = vadd.f32 %v536, %v751
        %v753 = vpop.f32.mrf.mxu0
        %v754 = vpop.f32.mrf.mxu0
        %v755 = vadd.f32 %v539, %v754
        %v756 = vpop.f32.mrf.mxu0
        %757 = vmatprep.mubr.bf16.mxu0 0
        %758 = vmatmul.mubr.bf16.gmra.mxu0 %v658
        %v759 = vpop.f32.mrf.mxu0
        %v760 = vadd.f32 %v544, %v759
        %v761 = vpop.f32.mrf.mxu0
        %v762 = vpop.f32.mrf.mxu0
        %v763 = vadd.f32 %v547, %v762
        %v764 = vpop.f32.mrf.mxu0
        %765 = vmatprep.mubr.bf16.mxu0 0
        %766 = vmatmul.mubr.bf16.gmra.mxu0 %v661
        %v767 = vpop.f32.mrf.mxu0
        %v768 = vadd.f32 %v552, %v767
        %v769 = vpop.f32.mrf.mxu0
        %v770 = vpop.f32.mrf.mxu0
        %v771 = vadd.f32 %v555, %v770
        %v772 = vpop.f32.mrf.mxu0
        %773 = vmatprep.mubr.bf16.mxu0 0
        %774 = vmatmul.mubr.bf16.gmra.mxu0 %v664
        %v775 = vpop.f32.mrf.mxu0
        %v776 = vadd.f32 %v560, %v775
        %v777 = vpop.f32.mrf.mxu0
        %v778 = vpop.f32.mrf.mxu0
        %v779 = vadd.f32 %v563, %v778
        %v780 = vpop.f32.mrf.mxu0
        %781 = vmatprep.mubr.bf16.mxu0 0
        %782 = vmatmul.mubr.bf16.gmra.mxu0 %v667
        %v783 = vpop.f32.mrf.mxu0
        %v784 = vadd.f32 %v568, %v783
        %v785 = vpop.f32.mrf.mxu0
        %v786 = vpop.f32.mrf.mxu0
        %v787 = vadd.f32 %v571, %v786
        %v788 = vpop.f32.mrf.mxu0
        %789 = vmatprep.mubr.bf16.mxu0 0
        %790 = vmatmul.mubr.bf16.gmra.mxu0 %v670
        %v791 = vpop.f32.mrf.mxu0
        %v792 = vadd.f32 %v576, %v791
        %v793 = vpop.f32.mrf.mxu0
        %v794 = vpop.f32.mrf.mxu0
        %v795 = vadd.f32 %v579, %v794
        %v796 = vpop.f32.mrf.mxu0
        %797 = vmatprep.mubr.bf16.mxu0 0
        %798 = vmatmul.mubr.bf16.gmra.mxu0 %v673
        %v799 = vpop.f32.mrf.mxu0
        %v800 = vadd.f32 %v584, %v799
        %v801 = vpop.f32.mrf.mxu0
        %v802 = vpop.f32.mrf.mxu0
        %v803 = vadd.f32 %v587, %v802
        %v804 = vpop.f32.mrf.mxu0
        %805 = vmatprep.mubr.bf16.mxu0 0
        %806 = vmatmul.mubr.bf16.gmra.mxu0 %v676
        %v807 = vpop.f32.mrf.mxu0
        %v808 = vadd.f32 %v592, %v807
        %v809 = vpop.f32.mrf.mxu0
        %v810 = vpop.f32.mrf.mxu0
        %v811 = vadd.f32 %v595, %v810
        %v812 = vpop.f32.mrf.mxu0
        %813 = vmatprep.mubr.bf16.mxu0 0
        %814 = vmatmul.mubr.bf16.gmra.mxu0 %v679
        %v815 = vpop.f32.mrf.mxu0
        %v816 = vadd.f32 %v600, %v815
        %v817 = vpop.f32.mrf.mxu0
        %v818 = vpop.f32.mrf.mxu0
        %v819 = vadd.f32 %v603, %v818
        %v820 = vpop.f32.mrf.mxu0
        %821 = vmatprep.mubr.bf16.mxu0 0
        %822 = vmatmul.mubr.bf16.gmra.mxu0 %v682
        %v823 = vpop.f32.mrf.mxu0
        %v824 = vadd.f32 %v608, %v823
        %v825 = vpop.f32.mrf.mxu0
        %v826 = vpop.f32.mrf.mxu0
        %v827 = vadd.f32 %v611, %v826
        %v828 = vpop.f32.mrf.mxu0
        %829 = vmatprep.mubr.bf16.mxu0 0
        %830 = vmatmul.mubr.bf16.gmra.mxu0 %v685
        %v831 = vpop.f32.mrf.mxu0
        %v832 = vadd.f32 %v616, %v831
        %v833 = vpop.f32.mrf.mxu0
        %v834 = vpop.f32.mrf.mxu0
        %v835 = vadd.f32 %v619, %v834
        %v836 = vpop.f32.mrf.mxu0
        %837 = vmatprep.mubr.bf16.mxu0 0
        %838 = vmatmul.mubr.bf16.gmra.mxu0 %v688
        %v839 = vpop.f32.mrf.mxu0
        %v840 = vadd.f32 %v624, %v839
        %v841 = vpop.f32.mrf.mxu0
        %v842 = vpop.f32.mrf.mxu0
        %v843 = vadd.f32 %v627, %v842
        %v844 = vpop.f32.mrf.mxu0
        %845 = vmatprep.mubr.bf16.mxu0 0
        %846 = vmatmul.mubr.bf16.gmra.mxu0 %v691
        %v847 = vpop.f32.mrf.mxu0
        %v848 = vadd.f32 %v632, %v847
        %v849 = vpop.f32.mrf.mxu0
        %v850 = vpop.f32.mrf.mxu0
        %v851 = vadd.f32 %v635, %v850
        %v852 = vpop.f32.mrf.mxu0
        %853 = vdwg.mxu0
        %v854 = vld [vmem:[%s2] sm:$0x1]
        %v855 = vlaneseq
        %v856 = vshrl.u32 %v855, 7
        %v857 = vsub.s32 0, %v856
        %v858 = vrot.slane %v854, %v857
        %v859 = vmul.f32 %v325, %v858
        %v860 = vmul.f32 %v326, %v858
        %v861 = vmul.f32 %v327, %v858
        %v862 = vmul.f32 %v328, %v858
        %v863 = vmul.f32 %v329, %v858
        %v864 = vmul.f32 %v330, %v858
        %v865 = vmul.f32 %v331, %v858
        %v866 = vmul.f32 %v332, %v858
        %v867 = vmul.f32 %v333, %v858
        %v868 = vmul.f32 %v334, %v858
        %v869 = vmul.f32 %v335, %v858
        %v870 = vmul.f32 %v336, %v858
        %v871 = vmul.f32 %v337, %v858
        %v872 = vmul.f32 %v338, %v858
        %v873 = vmul.f32 %v339, %v858
        %v874 = vmul.f32 %v340, %v858
        %v875 = vmul.f32 %v341, %v858
        %v876 = vmul.f32 %v342, %v858
        %v877 = vmul.f32 %v343, %v858
        %v878 = vmul.f32 %v344, %v858
        %v879 = vmul.f32 %v345, %v858
        %v880 = vmul.f32 %v346, %v858
        %v881 = vmul.f32 %v347, %v858
        %v882 = vmul.f32 %v348, %v858
        %v883 = vmul.f32 %v349, %v858
        %v884 = vmul.f32 %v350, %v858
        %v885 = vmul.f32 %v351, %v858
        %v886 = vmul.f32 %v352, %v858
        %v887 = vmul.f32 %v353, %v858
        %v888 = vmul.f32 %v354, %v858
        %v889 = vmul.f32 %v355, %v858
        %v890 = vmul.f32 %v356, %v858
        %v891 = vld [vmem:[%s2 + $0x1] sm:$0x1]
        %v892 = vlaneseq
        %v893 = vshrl.u32 %v892, 7
        %v894 = vsub.s32 0, %v893
        %v895 = vrot.slane %v891, %v894
        %v896 = vadd.f32 %v859, %v895
        %v897 = vadd.f32 %v860, %v895
        %v898 = vadd.f32 %v861, %v895
        %v899 = vadd.f32 %v862, %v895
        %v900 = vadd.f32 %v863, %v895
        %v901 = vadd.f32 %v864, %v895
        %v902 = vadd.f32 %v865, %v895
        %v903 = vadd.f32 %v866, %v895
        %v904 = vadd.f32 %v867, %v895
        %v905 = vadd.f32 %v868, %v895
        %v906 = vadd.f32 %v869, %v895
        %v907 = vadd.f32 %v870, %v895
        %v908 = vadd.f32 %v871, %v895
        %v909 = vadd.f32 %v872, %v895
        %v910 = vadd.f32 %v873, %v895
        %v911 = vadd.f32 %v874, %v895
        %v912 = vadd.f32 %v875, %v895
        %v913 = vadd.f32 %v876, %v895
        %v914 = vadd.f32 %v877, %v895
        %v915 = vadd.f32 %v878, %v895
        %v916 = vadd.f32 %v879, %v895
        %v917 = vadd.f32 %v880, %v895
        %v918 = vadd.f32 %v881, %v895
        %v919 = vadd.f32 %v882, %v895
        %v920 = vadd.f32 %v883, %v895
        %v921 = vadd.f32 %v884, %v895
        %v922 = vadd.f32 %v885, %v895
        %v923 = vadd.f32 %v886, %v895
        %v924 = vadd.f32 %v887, %v895
        %v925 = vadd.f32 %v888, %v895
        %v926 = vadd.f32 %v889, %v895
        %v927 = vadd.f32 %v890, %v895
        %v928 = vld [vmem:[%s3] sm:$0x1]
        %v929 = vlaneseq
        %v930 = vshrl.u32 %v929, 7
        %v931 = vsub.s32 0, %v930
        %v932 = vrot.slane %v928, %v931
        %v933 = vmul.f32 %v357, %v932
        %v934 = vmul.f32 %v358, %v932
        %v935 = vmul.f32 %v359, %v932
        %v936 = vmul.f32 %v360, %v932
        %v937 = vmul.f32 %v361, %v932
        %v938 = vmul.f32 %v362, %v932
        %v939 = vmul.f32 %v363, %v932
        %v940 = vmul.f32 %v364, %v932
        %v941 = vmul.f32 %v365, %v932
        %v942 = vmul.f32 %v366, %v932
        %v943 = vmul.f32 %v367, %v932
        %v944 = vmul.f32 %v368, %v932
        %v945 = vmul.f32 %v369, %v932
        %v946 = vmul.f32 %v370, %v932
        %v947 = vmul.f32 %v371, %v932
        %v948 = vmul.f32 %v372, %v932
        %v949 = vmul.f32 %v373, %v932
        %v950 = vmul.f32 %v374, %v932
        %v951 = vmul.f32 %v375, %v932
        %v952 = vmul.f32 %v376, %v932
        %v953 = vmul.f32 %v377, %v932
        %v954 = vmul.f32 %v378, %v932
        %v955 = vmul.f32 %v379, %v932
        %v956 = vmul.f32 %v380, %v932
        %v957 = vmul.f32 %v381, %v932
        %v958 = vmul.f32 %v382, %v932
        %v959 = vmul.f32 %v383, %v932
        %v960 = vmul.f32 %v384, %v932
        %v961 = vmul.f32 %v385, %v932
        %v962 = vmul.f32 %v386, %v932
        %v963 = vmul.f32 %v387, %v932
        %v964 = vmul.f32 %v388, %v932
        %v965 = vld [vmem:[%s3 + $0x1] sm:$0x1]
        %v966 = vlaneseq
        %v967 = vshrl.u32 %v966, 7
        %v968 = vsub.s32 0, %v967
        %v969 = vrot.slane %v965, %v968
        %v970 = vadd.f32 %v933, %v969
        %v971 = vadd.f32 %v934, %v969
        %v972 = vadd.f32 %v935, %v969
        %v973 = vadd.f32 %v936, %v969
        %v974 = vadd.f32 %v937, %v969
        %v975 = vadd.f32 %v938, %v969
        %v976 = vadd.f32 %v939, %v969
        %v977 = vadd.f32 %v940, %v969
        %v978 = vadd.f32 %v941, %v969
        %v979 = vadd.f32 %v942, %v969
        %v980 = vadd.f32 %v943, %v969
        %v981 = vadd.f32 %v944, %v969
        %v982 = vadd.f32 %v945, %v969
        %v983 = vadd.f32 %v946, %v969
        %v984 = vadd.f32 %v947, %v969
        %v985 = vadd.f32 %v948, %v969
        %v986 = vadd.f32 %v949, %v969
        %v987 = vadd.f32 %v950, %v969
        %v988 = vadd.f32 %v951, %v969
        %v989 = vadd.f32 %v952, %v969
        %v990 = vadd.f32 %v953, %v969
        %v991 = vadd.f32 %v954, %v969
        %v992 = vadd.f32 %v955, %v969
        %v993 = vadd.f32 %v956, %v969
        %v994 = vadd.f32 %v957, %v969
        %v995 = vadd.f32 %v958, %v969
        %v996 = vadd.f32 %v959, %v969
        %v997 = vadd.f32 %v960, %v969
        %v998 = vadd.f32 %v961, %v969
        %v999 = vadd.f32 %v962, %v969
        %v1000 = vadd.f32 %v963, %v969
        %v1001 = vadd.f32 %v964, %v969
        %1034 = vrot.lane.b32.xlu0 %v970, 16
        %v1035 = vpop.permute.xlu0 %1034
        %1036 = vrot.lane.b32.xlu0 %v971, 16
        %v1037 = vpop.permute.xlu0 %1036
        %1038 = vrot.lane.b32.xlu0 %v972, 16
        %v1039 = vpop.permute.xlu0 %1038
        %1040 = vrot.lane.b32.xlu0 %v973, 16
        %v1041 = vpop.permute.xlu0 %1040
        %1042 = vrot.lane.b32.xlu0 %v974, 16
        %v1043 = vpop.permute.xlu0 %1042
        %1044 = vrot.lane.b32.xlu0 %v975, 16
        %v1045 = vpop.permute.xlu0 %1044
        %1046 = vrot.lane.b32.xlu0 %v976, 16
        %v1047 = vpop.permute.xlu0 %1046
        %1048 = vrot.lane.b32.xlu0 %v977, 16
        %v1049 = vpop.permute.xlu0 %1048
        %1050 = vrot.lane.b32.xlu0 %v978, 16
        %v1051 = vpop.permute.xlu0 %1050
        %1052 = vrot.lane.b32.xlu0 %v979, 16
        %v1053 = vpop.permute.xlu0 %1052
        %1054 = vrot.lane.b32.xlu0 %v980, 16
        %v1055 = vpop.permute.xlu0 %1054
        %1056 = vrot.lane.b32.xlu0 %v981, 16
        %v1057 = vpop.permute.xlu0 %1056
        %1058 = vrot.lane.b32.xlu0 %v982, 16
        %v1059 = vpop.permute.xlu0 %1058
        %1060 = vrot.lane.b32.xlu0 %v983, 16
        %v1061 = vpop.permute.xlu0 %1060
        %1062 = vrot.lane.b32.xlu0 %v984, 16
        %v1063 = vpop.permute.xlu0 %1062
        %1064 = vrot.lane.b32.xlu0 %v985, 16
        %v1065 = vpop.permute.xlu0 %1064
        %1066 = vrot.lane.b32.xlu0 %v986, 16
        %v1067 = vpop.permute.xlu0 %1066
        %1068 = vrot.lane.b32.xlu0 %v987, 16
        %v1069 = vpop.permute.xlu0 %1068
        %1070 = vrot.lane.b32.xlu0 %v988, 16
        %v1071 = vpop.permute.xlu0 %1070
        %1072 = vrot.lane.b32.xlu0 %v989, 16
        %v1073 = vpop.permute.xlu0 %1072
        %1074 = vrot.lane.b32.xlu0 %v990, 16
        %v1075 = vpop.permute.xlu0 %1074
        %1076 = vrot.lane.b32.xlu0 %v991, 16
        %v1077 = vpop.permute.xlu0 %1076
        %1078 = vrot.lane.b32.xlu0 %v992, 16
        %v1079 = vpop.permute.xlu0 %1078
        %1080 = vrot.lane.b32.xlu0 %v993, 16
        %v1081 = vpop.permute.xlu0 %1080
        %1082 = vrot.lane.b32.xlu0 %v994, 16
        %v1083 = vpop.permute.xlu0 %1082
        %1084 = vrot.lane.b32.xlu0 %v995, 16
        %v1085 = vpop.permute.xlu0 %1084
        %1086 = vrot.lane.b32.xlu0 %v996, 16
        %v1087 = vpop.permute.xlu0 %1086
        %1088 = vrot.lane.b32.xlu0 %v997, 16
        %v1089 = vpop.permute.xlu0 %1088
        %1090 = vrot.lane.b32.xlu0 %v998, 16
        %v1091 = vpop.permute.xlu0 %1090
        %1092 = vrot.lane.b32.xlu0 %v999, 16
        %v1093 = vpop.permute.xlu0 %1092
        %1094 = vrot.lane.b32.xlu0 %v1000, 16
        %v1095 = vpop.permute.xlu0 %1094
        %1096 = vrot.lane.b32.xlu0 %v1001, 16
        %v1097 = vpop.permute.xlu0 %1096
        %v1130 = vsel %vm644, %v896, %v1035
        %v1131 = vsel %vm644, %v897, %v1037
        %v1132 = vsel %vm644, %v898, %v1039
        %v1133 = vsel %vm644, %v899, %v1041
        %v1134 = vsel %vm644, %v900, %v1043
        %v1135 = vsel %vm644, %v901, %v1045
        %v1136 = vsel %vm644, %v902, %v1047
        %v1137 = vsel %vm644, %v903, %v1049
        %v1138 = vsel %vm644, %v904, %v1051
        %v1139 = vsel %vm644, %v905, %v1053
        %v1140 = vsel %vm644, %v906, %v1055
        %v1141 = vsel %vm644, %v907, %v1057
        %v1142 = vsel %vm644, %v908, %v1059
        %v1143 = vsel %vm644, %v909, %v1061
        %v1144 = vsel %vm644, %v910, %v1063
        %v1145 = vsel %vm644, %v911, %v1065
        %v1146 = vsel %vm644, %v912, %v1067
        %v1147 = vsel %vm644, %v913, %v1069
        %v1148 = vsel %vm644, %v914, %v1071
        %v1149 = vsel %vm644, %v915, %v1073
        %v1150 = vsel %vm644, %v916, %v1075
        %v1151 = vsel %vm644, %v917, %v1077
        %v1152 = vsel %vm644, %v918, %v1079
        %v1153 = vsel %vm644, %v919, %v1081
        %v1154 = vsel %vm644, %v920, %v1083
        %v1155 = vsel %vm644, %v921, %v1085
        %v1156 = vsel %vm644, %v922, %v1087
        %v1157 = vsel %vm644, %v923, %v1089
        %v1158 = vsel %vm644, %v924, %v1091
        %v1159 = vsel %vm644, %v925, %v1093
        %v1160 = vsel %vm644, %v926, %v1095
        %v1161 = vsel %vm644, %v927, %v1097
        %v1162 = vld [vmem:[%s6] sm:$0xf]
        %v1163 = vld [vmem:[%s6 + $0x4] sm:$0xf]
        %v1164 = vld [vmem:[%s6 + $0x8] sm:$0xf]
        %v1165 = vld [vmem:[%s6 + $0xc] sm:$0xf]
        %v1166 = vld [vmem:[%s6 + $0x10] sm:$0xf]
        %v1167 = vld [vmem:[%s6 + $0x14] sm:$0xf]
        %v1168 = vld [vmem:[%s6 + $0x18] sm:$0xf]
        %v1169 = vld [vmem:[%s6 + $0x1c] sm:$0xf]
        %v1170 = vld [vmem:[%s6 + $0x20] sm:$0xf]
        %v1171 = vld [vmem:[%s6 + $0x24] sm:$0xf]
        %v1172 = vld [vmem:[%s6 + $0x28] sm:$0xf]
        %v1173 = vld [vmem:[%s6 + $0x2c] sm:$0xf]
        %v1174 = vld [vmem:[%s6 + $0x30] sm:$0xf]
        %v1175 = vld [vmem:[%s6 + $0x34] sm:$0xf]
        %v1176 = vld [vmem:[%s6 + $0x38] sm:$0xf]
        %v1177 = vld [vmem:[%s6 + $0x3c] sm:$0xf]
        %v1178 = vld [vmem:[%s6 + $0x40] sm:$0xf]
        %v1179 = vld [vmem:[%s6 + $0x44] sm:$0xf]
        %v1180 = vld [vmem:[%s6 + $0x48] sm:$0xf]
        %v1181 = vld [vmem:[%s6 + $0x4c] sm:$0xf]
        %v1182 = vld [vmem:[%s6 + $0x50] sm:$0xf]
        %v1183 = vld [vmem:[%s6 + $0x54] sm:$0xf]
        %v1184 = vld [vmem:[%s6 + $0x58] sm:$0xf]
        %v1185 = vld [vmem:[%s6 + $0x5c] sm:$0xf]
        %v1186 = vld [vmem:[%s6 + $0x60] sm:$0xf]
        %v1187 = vld [vmem:[%s6 + $0x64] sm:$0xf]
        %v1188 = vld [vmem:[%s6 + $0x68] sm:$0xf]
        %vm1222 = vcmask 1040384
        %v1223 = vrot.slane 0.0, 7
        %v1224 = vsel %vm1222, %v1223, %v1223
        %v1225 = vrot.slane %v1130, 7
        %v1226 = vrot.slane %v1131, 7
        %v1227 = vsel %vm1222, %v1225, %v1226
        %v1228 = vrot.slane %v1132, 7
        %v1229 = vrot.slane %v1133, 7
        %v1230 = vsel %vm1222, %v1228, %v1229
        %v1231 = vrot.slane %v1134, 7
        %v1232 = vrot.slane %v1135, 7
        %v1233 = vsel %vm1222, %v1231, %v1232
        %v1234 = vrot.slane %v1136, 7
        %v1235 = vrot.slane %v1137, 7
        %v1236 = vsel %vm1222, %v1234, %v1235
        %v1237 = vrot.slane %v1138, 7
        %v1238 = vrot.slane %v1139, 7
        %v1239 = vsel %vm1222, %v1237, %v1238
        %v1240 = vrot.slane %v1140, 7
        %v1241 = vrot.slane %v1141, 7
        %v1242 = vsel %vm1222, %v1240, %v1241
        %v1243 = vrot.slane %v1142, 7
        %v1244 = vrot.slane %v1143, 7
        %v1245 = vsel %vm1222, %v1243, %v1244
        %v1246 = vrot.slane %v1144, 7
        %v1247 = vrot.slane %v1145, 7
        %v1248 = vsel %vm1222, %v1246, %v1247
        %v1249 = vrot.slane %v1146, 7
        %v1250 = vrot.slane %v1147, 7
        %v1251 = vsel %vm1222, %v1249, %v1250
        %v1252 = vrot.slane %v1148, 7
        %v1253 = vrot.slane %v1149, 7
        %v1254 = vsel %vm1222, %v1252, %v1253
        %v1255 = vrot.slane %v1150, 7
        %v1256 = vrot.slane %v1151, 7
        %v1257 = vsel %vm1222, %v1255, %v1256
        %v1258 = vrot.slane %v1152, 7
        %v1259 = vrot.slane %v1153, 7
        %v1260 = vsel %vm1222, %v1258, %v1259
        %v1261 = vrot.slane %v1154, 7
        %v1262 = vrot.slane %v1155, 7
        %v1263 = vsel %vm1222, %v1261, %v1262
        %v1264 = vrot.slane %v1156, 7
        %v1265 = vrot.slane %v1157, 7
        %v1266 = vsel %vm1222, %v1264, %v1265
        %v1267 = vrot.slane %v1158, 7
        %v1268 = vrot.slane %v1159, 7
        %v1269 = vsel %vm1222, %v1267, %v1268
        %v1270 = vrot.slane %v1160, 7
        %v1271 = vrot.slane %v1161, 7
        %v1272 = vsel %vm1222, %v1270, %v1271
        %v1322 = vsel %vm1222, 0.0, %v1223
        %v1323 = vsel %vm1222, 0.0, %v1225
        %v1324 = vsel %vm1222, 0.0, %v1228
        %v1325 = vsel %vm1222, 0.0, %v1231
        %v1326 = vsel %vm1222, 0.0, %v1234
        %v1327 = vsel %vm1222, 0.0, %v1237
        %v1328 = vsel %vm1222, 0.0, %v1240
        %v1329 = vsel %vm1222, 0.0, %v1243
        %v1330 = vsel %vm1222, 0.0, %v1246
        %v1331 = vsel %vm1222, 0.0, %v1249
        %v1332 = vsel %vm1222, 0.0, %v1252
        %v1333 = vsel %vm1222, 0.0, %v1255
        %v1334 = vsel %vm1222, 0.0, %v1258
        %v1335 = vsel %vm1222, 0.0, %v1261
        %v1336 = vsel %vm1222, 0.0, %v1264
        %v1337 = vsel %vm1222, 0.0, %v1267
        %v1338 = vsel %vm1222, 0.0, %v1270
        %v1339 = vsel %vm1222, %v1223, 0.0
        %v1340 = vsel %vm1222, %v1226, 0.0
        %v1341 = vsel %vm1222, %v1229, 0.0
        %v1342 = vsel %vm1222, %v1232, 0.0
        %v1343 = vsel %vm1222, %v1235, 0.0
        %v1344 = vsel %vm1222, %v1238, 0.0
        %v1345 = vsel %vm1222, %v1241, 0.0
        %v1346 = vsel %vm1222, %v1244, 0.0
        %v1347 = vsel %vm1222, %v1247, 0.0
        %v1348 = vsel %vm1222, %v1250, 0.0
        %v1349 = vsel %vm1222, %v1253, 0.0
        %v1350 = vsel %vm1222, %v1256, 0.0
        %v1351 = vsel %vm1222, %v1259, 0.0
        %v1352 = vsel %vm1222, %v1262, 0.0
        %v1353 = vsel %vm1222, %v1265, 0.0
        %v1354 = vsel %vm1222, %v1268, 0.0
        %v1355 = vsel %vm1222, %v1271, 0.0
        %vm1388 = vcmask 1046528
        %v1389 = vrot.slane %v1322, 1
        %v1390 = vrot.slane %v1224, 1
        %v1391 = vsel %vm1388, %v1389, %v1390
        %v1392 = vrot.slane %v1339, 1
        %v1393 = vsel %vm1388, %v1390, %v1392
        %v1394 = vrot.slane %v1323, 1
        %v1395 = vrot.slane %v1227, 1
        %v1396 = vsel %vm1388, %v1394, %v1395
        %v1397 = vrot.slane %v1340, 1
        %v1398 = vsel %vm1388, %v1395, %v1397
        %v1399 = vrot.slane %v1324, 1
        %v1400 = vrot.slane %v1230, 1
        %v1401 = vsel %vm1388, %v1399, %v1400
        %v1402 = vrot.slane %v1341, 1
        %v1403 = vsel %vm1388, %v1400, %v1402
        %v1404 = vrot.slane %v1325, 1
        %v1405 = vrot.slane %v1233, 1
        %v1406 = vsel %vm1388, %v1404, %v1405
        %v1407 = vrot.slane %v1342, 1
        %v1408 = vsel %vm1388, %v1405, %v1407
        %v1409 = vrot.slane %v1326, 1
        %v1410 = vrot.slane %v1236, 1
        %v1411 = vsel %vm1388, %v1409, %v1410
        %v1412 = vrot.slane %v1343, 1
        %v1413 = vsel %vm1388, %v1410, %v1412
        %v1414 = vrot.slane %v1327, 1
        %v1415 = vrot.slane %v1239, 1
        %v1416 = vsel %vm1388, %v1414, %v1415
        %v1417 = vrot.slane %v1344, 1
        %v1418 = vsel %vm1388, %v1415, %v1417
        %v1419 = vrot.slane %v1328, 1
        %v1420 = vrot.slane %v1242, 1
        %v1421 = vsel %vm1388, %v1419, %v1420
        %v1422 = vrot.slane %v1345, 1
        %v1423 = vsel %vm1388, %v1420, %v1422
        %v1424 = vrot.slane %v1329, 1
        %v1425 = vrot.slane %v1245, 1
        %v1426 = vsel %vm1388, %v1424, %v1425
        %v1427 = vrot.slane %v1346, 1
        %v1428 = vsel %vm1388, %v1425, %v1427
        %v1429 = vrot.slane %v1330, 1
        %v1430 = vrot.slane %v1248, 1
        %v1431 = vsel %vm1388, %v1429, %v1430
        %v1432 = vrot.slane %v1347, 1
        %v1433 = vsel %vm1388, %v1430, %v1432
        %v1434 = vrot.slane %v1331, 1
        %v1435 = vrot.slane %v1251, 1
        %v1436 = vsel %vm1388, %v1434, %v1435
        %v1437 = vrot.slane %v1348, 1
        %v1438 = vsel %vm1388, %v1435, %v1437
        %v1439 = vrot.slane %v1332, 1
        %v1440 = vrot.slane %v1254, 1
        %v1441 = vsel %vm1388, %v1439, %v1440
        %v1442 = vrot.slane %v1349, 1
        %v1443 = vsel %vm1388, %v1440, %v1442
        %v1444 = vrot.slane %v1333, 1
        %v1445 = vrot.slane %v1257, 1
        %v1446 = vsel %vm1388, %v1444, %v1445
        %v1447 = vrot.slane %v1350, 1
        %v1448 = vsel %vm1388, %v1445, %v1447
        %v1449 = vrot.slane %v1334, 1
        %v1450 = vrot.slane %v1260, 1
        %v1451 = vsel %vm1388, %v1449, %v1450
        %v1452 = vrot.slane %v1351, 1
        %v1453 = vsel %vm1388, %v1450, %v1452
        %v1454 = vrot.slane %v1335, 1
        %v1455 = vrot.slane %v1263, 1
        %v1456 = vsel %vm1388, %v1454, %v1455
        %v1457 = vrot.slane %v1352, 1
        %v1458 = vsel %vm1388, %v1455, %v1457
        %v1459 = vrot.slane %v1336, 1
        %v1460 = vrot.slane %v1266, 1
        %v1461 = vsel %vm1388, %v1459, %v1460
        %v1462 = vrot.slane %v1353, 1
        %v1463 = vsel %vm1388, %v1460, %v1462
        %v1464 = vrot.slane %v1337, 1
        %v1465 = vrot.slane %v1269, 1
        %v1466 = vsel %vm1388, %v1464, %v1465
        %v1467 = vrot.slane %v1354, 1
        %v1468 = vsel %vm1388, %v1465, %v1467
        %vm1469 = vcmask 1045504
        %v1470 = vrot.slane %v1322, 2
        %v1471 = vrot.slane %v1224, 2
        %v1472 = vsel %vm1469, %v1470, %v1471
        %v1473 = vrot.slane %v1339, 2
        %v1474 = vsel %vm1469, %v1471, %v1473
        %v1475 = vrot.slane %v1323, 2
        %v1476 = vrot.slane %v1227, 2
        %v1477 = vsel %vm1469, %v1475, %v1476
        %v1478 = vrot.slane %v1340, 2
        %v1479 = vsel %vm1469, %v1476, %v1478
        %v1480 = vrot.slane %v1324, 2
        %v1481 = vrot.slane %v1230, 2
        %v1482 = vsel %vm1469, %v1480, %v1481
        %v1483 = vrot.slane %v1341, 2
        %v1484 = vsel %vm1469, %v1481, %v1483
        %v1485 = vrot.slane %v1325, 2
        %v1486 = vrot.slane %v1233, 2
        %v1487 = vsel %vm1469, %v1485, %v1486
        %v1488 = vrot.slane %v1342, 2
        %v1489 = vsel %vm1469, %v1486, %v1488
        %v1490 = vrot.slane %v1326, 2
        %v1491 = vrot.slane %v1236, 2
        %v1492 = vsel %vm1469, %v1490, %v1491
        %v1493 = vrot.slane %v1343, 2
        %v1494 = vsel %vm1469, %v1491, %v1493
        %v1495 = vrot.slane %v1327, 2
        %v1496 = vrot.slane %v1239, 2
        %v1497 = vsel %vm1469, %v1495, %v1496
        %v1498 = vrot.slane %v1344, 2
        %v1499 = vsel %vm1469, %v1496, %v1498
        %v1500 = vrot.slane %v1328, 2
        %v1501 = vrot.slane %v1242, 2
        %v1502 = vsel %vm1469, %v1500, %v1501
        %v1503 = vrot.slane %v1345, 2
        %v1504 = vsel %vm1469, %v1501, %v1503
        %v1505 = vrot.slane %v1329, 2
        %v1506 = vrot.slane %v1245, 2
        %v1507 = vsel %vm1469, %v1505, %v1506
        %v1508 = vrot.slane %v1346, 2
        %v1509 = vsel %vm1469, %v1506, %v1508
        %v1510 = vrot.slane %v1330, 2
        %v1511 = vrot.slane %v1248, 2
        %v1512 = vsel %vm1469, %v1510, %v1511
        %v1513 = vrot.slane %v1347, 2
        %v1514 = vsel %vm1469, %v1511, %v1513
        %v1515 = vrot.slane %v1331, 2
        %v1516 = vrot.slane %v1251, 2
        %v1517 = vsel %vm1469, %v1515, %v1516
        %v1518 = vrot.slane %v1348, 2
        %v1519 = vsel %vm1469, %v1516, %v1518
        %v1520 = vrot.slane %v1332, 2
        %v1521 = vrot.slane %v1254, 2
        %v1522 = vsel %vm1469, %v1520, %v1521
        %v1523 = vrot.slane %v1349, 2
        %v1524 = vsel %vm1469, %v1521, %v1523
        %v1525 = vrot.slane %v1333, 2
        %v1526 = vrot.slane %v1257, 2
        %v1527 = vsel %vm1469, %v1525, %v1526
        %v1528 = vrot.slane %v1350, 2
        %v1529 = vsel %vm1469, %v1526, %v1528
        %v1530 = vrot.slane %v1334, 2
        %v1531 = vrot.slane %v1260, 2
        %v1532 = vsel %vm1469, %v1530, %v1531
        %v1533 = vrot.slane %v1351, 2
        %v1534 = vsel %vm1469, %v1531, %v1533
        %v1535 = vrot.slane %v1335, 2
        %v1536 = vrot.slane %v1263, 2
        %v1537 = vsel %vm1469, %v1535, %v1536
        %v1538 = vrot.slane %v1352, 2
        %v1539 = vsel %vm1469, %v1536, %v1538
        %v1540 = vrot.slane %v1336, 2
        %v1541 = vrot.slane %v1266, 2
        %v1542 = vsel %vm1469, %v1540, %v1541
        %v1543 = vrot.slane %v1353, 2
        %v1544 = vsel %vm1469, %v1541, %v1543
        %v1545 = vrot.slane %v1337, 2
        %v1546 = vrot.slane %v1269, 2
        %v1547 = vsel %vm1469, %v1545, %v1546
        %v1548 = vrot.slane %v1354, 2
        %v1549 = vsel %vm1469, %v1546, %v1548
        %v1552 = vrot.slane %v1338, 1
        %v1553 = vrot.slane %v1272, 1
        %v1554 = vsel %vm1388, %v1552, %v1553
        %v1555 = vrot.slane %v1355, 1
        %v1556 = vsel %vm1388, %v1553, %v1555
        %v1557 = vrot.slane %v1338, 2
        %v1558 = vrot.slane %v1272, 2
        %v1559 = vsel %vm1469, %v1557, %v1558
        %v1560 = vrot.slane %v1355, 2
        %v1561 = vsel %vm1469, %v1558, %v1560
        %1562 = vrot.lane.b32.xlu0 %v1391, 24
        %v1563 = vpop.permute.xlu0 %1562
        %1564 = vrot.lane.b32.xlu0 %v1393, 24
        %v1565 = vpop.permute.xlu0 %1564
        %1566 = vrot.lane.b32.xlu0 %v1396, 24
        %v1567 = vpop.permute.xlu0 %1566
        %1568 = vrot.lane.b32.xlu0 %v1398, 24
        %v1569 = vpop.permute.xlu0 %1568
        %1570 = vrot.lane.b32.xlu0 %v1401, 24
        %v1571 = vpop.permute.xlu0 %1570
        %1572 = vrot.lane.b32.xlu0 %v1403, 24
        %v1573 = vpop.permute.xlu0 %1572
        %1574 = vrot.lane.b32.xlu0 %v1406, 24
        %v1575 = vpop.permute.xlu0 %1574
        %1576 = vrot.lane.b32.xlu0 %v1408, 24
        %v1577 = vpop.permute.xlu0 %1576
        %1578 = vrot.lane.b32.xlu0 %v1411, 24
        %v1579 = vpop.permute.xlu0 %1578
        %1580 = vrot.lane.b32.xlu0 %v1413, 24
        %v1581 = vpop.permute.xlu0 %1580
        %1582 = vrot.lane.b32.xlu0 %v1416, 24
        %v1583 = vpop.permute.xlu0 %1582
        %1584 = vrot.lane.b32.xlu0 %v1418, 24
        %v1585 = vpop.permute.xlu0 %1584
        %1586 = vrot.lane.b32.xlu0 %v1421, 24
        %v1587 = vpop.permute.xlu0 %1586
        %1588 = vrot.lane.b32.xlu0 %v1423, 24
        %v1589 = vpop.permute.xlu0 %1588
        %1590 = vrot.lane.b32.xlu0 %v1426, 24
        %v1591 = vpop.permute.xlu0 %1590
        %1592 = vrot.lane.b32.xlu0 %v1428, 24
        %v1593 = vpop.permute.xlu0 %1592
        %1594 = vrot.lane.b32.xlu0 %v1431, 24
        %v1595 = vpop.permute.xlu0 %1594
        %1596 = vrot.lane.b32.xlu0 %v1433, 24
        %v1597 = vpop.permute.xlu0 %1596
        %1598 = vrot.lane.b32.xlu0 %v1436, 24
        %v1599 = vpop.permute.xlu0 %1598
        %1600 = vrot.lane.b32.xlu0 %v1438, 24
        %v1601 = vpop.permute.xlu0 %1600
        %1602 = vrot.lane.b32.xlu0 %v1441, 24
        %v1603 = vpop.permute.xlu0 %1602
        %1604 = vrot.lane.b32.xlu0 %v1443, 24
        %v1605 = vpop.permute.xlu0 %1604
        %1606 = vrot.lane.b32.xlu0 %v1446, 24
        %v1607 = vpop.permute.xlu0 %1606
        %1608 = vrot.lane.b32.xlu0 %v1448, 24
        %v1609 = vpop.permute.xlu0 %1608
        %1610 = vrot.lane.b32.xlu0 %v1451, 24
        %v1611 = vpop.permute.xlu0 %1610
        %1612 = vrot.lane.b32.xlu0 %v1453, 24
        %v1613 = vpop.permute.xlu0 %1612
        %1614 = vrot.lane.b32.xlu0 %v1456, 24
        %v1615 = vpop.permute.xlu0 %1614
        %1616 = vrot.lane.b32.xlu0 %v1458, 24
        %v1617 = vpop.permute.xlu0 %1616
        %1618 = vrot.lane.b32.xlu0 %v1461, 24
        %v1619 = vpop.permute.xlu0 %1618
        %1620 = vrot.lane.b32.xlu0 %v1463, 24
        %v1621 = vpop.permute.xlu0 %1620
        %1622 = vrot.lane.b32.xlu0 %v1466, 24
        %v1623 = vpop.permute.xlu0 %1622
        %1624 = vrot.lane.b32.xlu0 %v1468, 24
        %v1625 = vpop.permute.xlu0 %1624
        %1658 = vrot.lane.b32.xlu0 %v1472, 48
        %v1659 = vpop.permute.xlu0 %1658
        %1660 = vrot.lane.b32.xlu0 %v1474, 48
        %v1661 = vpop.permute.xlu0 %1660
        %1662 = vrot.lane.b32.xlu0 %v1477, 48
        %v1663 = vpop.permute.xlu0 %1662
        %1664 = vrot.lane.b32.xlu0 %v1479, 48
        %v1665 = vpop.permute.xlu0 %1664
        %1666 = vrot.lane.b32.xlu0 %v1482, 48
        %v1667 = vpop.permute.xlu0 %1666
        %1668 = vrot.lane.b32.xlu0 %v1484, 48
        %v1669 = vpop.permute.xlu0 %1668
        %1670 = vrot.lane.b32.xlu0 %v1487, 48
        %v1671 = vpop.permute.xlu0 %1670
        %1672 = vrot.lane.b32.xlu0 %v1489, 48
        %v1673 = vpop.permute.xlu0 %1672
        %1674 = vrot.lane.b32.xlu0 %v1492, 48
        %v1675 = vpop.permute.xlu0 %1674
        %1676 = vrot.lane.b32.xlu0 %v1494, 48
        %v1677 = vpop.permute.xlu0 %1676
        %1678 = vrot.lane.b32.xlu0 %v1497, 48
        %v1679 = vpop.permute.xlu0 %1678
        %1680 = vrot.lane.b32.xlu0 %v1499, 48
        %v1681 = vpop.permute.xlu0 %1680
        %1682 = vrot.lane.b32.xlu0 %v1502, 48
        %v1683 = vpop.permute.xlu0 %1682
        %1684 = vrot.lane.b32.xlu0 %v1504, 48
        %v1685 = vpop.permute.xlu0 %1684
        %1686 = vrot.lane.b32.xlu0 %v1507, 48
        %v1687 = vpop.permute.xlu0 %1686
        %1688 = vrot.lane.b32.xlu0 %v1509, 48
        %v1689 = vpop.permute.xlu0 %1688
        %1690 = vrot.lane.b32.xlu0 %v1512, 48
        %v1691 = vpop.permute.xlu0 %1690
        %1692 = vrot.lane.b32.xlu0 %v1514, 48
        %v1693 = vpop.permute.xlu0 %1692
        %1694 = vrot.lane.b32.xlu0 %v1517, 48
        %v1695 = vpop.permute.xlu0 %1694
        %1696 = vrot.lane.b32.xlu0 %v1519, 48
        %v1697 = vpop.permute.xlu0 %1696
        %1698 = vrot.lane.b32.xlu0 %v1522, 48
        %v1699 = vpop.permute.xlu0 %1698
        %1700 = vrot.lane.b32.xlu0 %v1524, 48
        %v1701 = vpop.permute.xlu0 %1700
        %1702 = vrot.lane.b32.xlu0 %v1527, 48
        %v1703 = vpop.permute.xlu0 %1702
        %1704 = vrot.lane.b32.xlu0 %v1529, 48
        %v1705 = vpop.permute.xlu0 %1704
        %1706 = vrot.lane.b32.xlu0 %v1532, 48
        %v1707 = vpop.permute.xlu0 %1706
        %1708 = vrot.lane.b32.xlu0 %v1534, 48
        %v1709 = vpop.permute.xlu0 %1708
        %1710 = vrot.lane.b32.xlu0 %v1537, 48
        %v1711 = vpop.permute.xlu0 %1710
        %1712 = vrot.lane.b32.xlu0 %v1539, 48
        %v1713 = vpop.permute.xlu0 %1712
        %1714 = vrot.lane.b32.xlu0 %v1542, 48
        %v1715 = vpop.permute.xlu0 %1714
        %1716 = vrot.lane.b32.xlu0 %v1544, 48
        %v1717 = vpop.permute.xlu0 %1716
        %1718 = vrot.lane.b32.xlu0 %v1547, 48
        %v1719 = vpop.permute.xlu0 %1718
        %1720 = vrot.lane.b32.xlu0 %v1549, 48
        %v1721 = vpop.permute.xlu0 %1720
        %1754 = vrot.lane.b32.xlu0 %v1323, 72
        %v1755 = vpop.permute.xlu0 %1754
        %1756 = vrot.lane.b32.xlu0 %v1227, 72
        %v1757 = vpop.permute.xlu0 %1756
        %1758 = vrot.lane.b32.xlu0 %v1324, 72
        %v1759 = vpop.permute.xlu0 %1758
        %1760 = vrot.lane.b32.xlu0 %v1230, 72
        %v1761 = vpop.permute.xlu0 %1760
        %1762 = vrot.lane.b32.xlu0 %v1325, 72
        %v1763 = vpop.permute.xlu0 %1762
        %1764 = vrot.lane.b32.xlu0 %v1233, 72
        %v1765 = vpop.permute.xlu0 %1764
        %1766 = vrot.lane.b32.xlu0 %v1326, 72
        %v1767 = vpop.permute.xlu0 %1766
        %1768 = vrot.lane.b32.xlu0 %v1236, 72
        %v1769 = vpop.permute.xlu0 %1768
        %1770 = vrot.lane.b32.xlu0 %v1327, 72
        %v1771 = vpop.permute.xlu0 %1770
        %1772 = vrot.lane.b32.xlu0 %v1239, 72
        %v1773 = vpop.permute.xlu0 %1772
        %1774 = vrot.lane.b32.xlu0 %v1328, 72
        %v1775 = vpop.permute.xlu0 %1774
        %1776 = vrot.lane.b32.xlu0 %v1242, 72
        %v1777 = vpop.permute.xlu0 %1776
        %1778 = vrot.lane.b32.xlu0 %v1329, 72
        %v1779 = vpop.permute.xlu0 %1778
        %1780 = vrot.lane.b32.xlu0 %v1245, 72
        %v1781 = vpop.permute.xlu0 %1780
        %1782 = vrot.lane.b32.xlu0 %v1330, 72
        %v1783 = vpop.permute.xlu0 %1782
        %1784 = vrot.lane.b32.xlu0 %v1248, 72
        %v1785 = vpop.permute.xlu0 %1784
        %1786 = vrot.lane.b32.xlu0 %v1331, 72
        %v1787 = vpop.permute.xlu0 %1786
        %1788 = vrot.lane.b32.xlu0 %v1251, 72
        %v1789 = vpop.permute.xlu0 %1788
        %1790 = vrot.lane.b32.xlu0 %v1332, 72
        %v1791 = vpop.permute.xlu0 %1790
        %1792 = vrot.lane.b32.xlu0 %v1254, 72
        %v1793 = vpop.permute.xlu0 %1792
        %1794 = vrot.lane.b32.xlu0 %v1333, 72
        %v1795 = vpop.permute.xlu0 %1794
        %1796 = vrot.lane.b32.xlu0 %v1257, 72
        %v1797 = vpop.permute.xlu0 %1796
        %1798 = vrot.lane.b32.xlu0 %v1334, 72
        %v1799 = vpop.permute.xlu0 %1798
        %1800 = vrot.lane.b32.xlu0 %v1260, 72
        %v1801 = vpop.permute.xlu0 %1800
        %1802 = vrot.lane.b32.xlu0 %v1335, 72
        %v1803 = vpop.permute.xlu0 %1802
        %1804 = vrot.lane.b32.xlu0 %v1263, 72
        %v1805 = vpop.permute.xlu0 %1804
        %1806 = vrot.lane.b32.xlu0 %v1336, 72
        %v1807 = vpop.permute.xlu0 %1806
        %1808 = vrot.lane.b32.xlu0 %v1266, 72
        %v1809 = vpop.permute.xlu0 %1808
        %1810 = vrot.lane.b32.xlu0 %v1337, 72
        %v1811 = vpop.permute.xlu0 %1810
        %1812 = vrot.lane.b32.xlu0 %v1269, 72
        %v1813 = vpop.permute.xlu0 %1812
        %1814 = vrot.lane.b32.xlu0 %v1338, 72
        %v1815 = vpop.permute.xlu0 %1814
        %1816 = vrot.lane.b32.xlu0 %v1272, 72
        %v1817 = vpop.permute.xlu0 %1816
        %1850 = vrot.lane.b32.xlu0 %v1396, 96
        %v1851 = vpop.permute.xlu0 %1850
        %1852 = vrot.lane.b32.xlu0 %v1398, 96
        %v1853 = vpop.permute.xlu0 %1852
        %1854 = vrot.lane.b32.xlu0 %v1401, 96
        %v1855 = vpop.permute.xlu0 %1854
        %1856 = vrot.lane.b32.xlu0 %v1403, 96
        %v1857 = vpop.permute.xlu0 %1856
        %1858 = vrot.lane.b32.xlu0 %v1406, 96
        %v1859 = vpop.permute.xlu0 %1858
        %1860 = vrot.lane.b32.xlu0 %v1408, 96
        %v1861 = vpop.permute.xlu0 %1860
        %1862 = vrot.lane.b32.xlu0 %v1411, 96
        %v1863 = vpop.permute.xlu0 %1862
        %1864 = vrot.lane.b32.xlu0 %v1413, 96
        %v1865 = vpop.permute.xlu0 %1864
        %1866 = vrot.lane.b32.xlu0 %v1416, 96
        %v1867 = vpop.permute.xlu0 %1866
        %1868 = vrot.lane.b32.xlu0 %v1418, 96
        %v1869 = vpop.permute.xlu0 %1868
        %1870 = vrot.lane.b32.xlu0 %v1421, 96
        %v1871 = vpop.permute.xlu0 %1870
        %1872 = vrot.lane.b32.xlu0 %v1423, 96
        %v1873 = vpop.permute.xlu0 %1872
        %1874 = vrot.lane.b32.xlu0 %v1426, 96
        %v1875 = vpop.permute.xlu0 %1874
        %1876 = vrot.lane.b32.xlu0 %v1428, 96
        %v1877 = vpop.permute.xlu0 %1876
        %1878 = vrot.lane.b32.xlu0 %v1431, 96
        %v1879 = vpop.permute.xlu0 %1878
        %1880 = vrot.lane.b32.xlu0 %v1433, 96
        %v1881 = vpop.permute.xlu0 %1880
        %1882 = vrot.lane.b32.xlu0 %v1436, 96
        %v1883 = vpop.permute.xlu0 %1882
        %1884 = vrot.lane.b32.xlu0 %v1438, 96
        %v1885 = vpop.permute.xlu0 %1884
        %1886 = vrot.lane.b32.xlu0 %v1441, 96
        %v1887 = vpop.permute.xlu0 %1886
        %1888 = vrot.lane.b32.xlu0 %v1443, 96
        %v1889 = vpop.permute.xlu0 %1888
        %1890 = vrot.lane.b32.xlu0 %v1446, 96
        %v1891 = vpop.permute.xlu0 %1890
        %1892 = vrot.lane.b32.xlu0 %v1448, 96
        %v1893 = vpop.permute.xlu0 %1892
        %1894 = vrot.lane.b32.xlu0 %v1451, 96
        %v1895 = vpop.permute.xlu0 %1894
        %1896 = vrot.lane.b32.xlu0 %v1453, 96
        %v1897 = vpop.permute.xlu0 %1896
        %1898 = vrot.lane.b32.xlu0 %v1456, 96
        %v1899 = vpop.permute.xlu0 %1898
        %1900 = vrot.lane.b32.xlu0 %v1458, 96
        %v1901 = vpop.permute.xlu0 %1900
        %1902 = vrot.lane.b32.xlu0 %v1461, 96
        %v1903 = vpop.permute.xlu0 %1902
        %1904 = vrot.lane.b32.xlu0 %v1463, 96
        %v1905 = vpop.permute.xlu0 %1904
        %1906 = vrot.lane.b32.xlu0 %v1466, 96
        %v1907 = vpop.permute.xlu0 %1906
        %1908 = vrot.lane.b32.xlu0 %v1468, 96
        %v1909 = vpop.permute.xlu0 %1908
        %1910 = vrot.lane.b32.xlu0 %v1554, 96
        %v1911 = vpop.permute.xlu0 %1910
        %1912 = vrot.lane.b32.xlu0 %v1556, 96
        %v1913 = vpop.permute.xlu0 %1912
        %1946 = vrot.lane.b32.xlu0 %v1477, 120
        %v1947 = vpop.permute.xlu0 %1946
        %1948 = vrot.lane.b32.xlu0 %v1479, 120
        %v1949 = vpop.permute.xlu0 %1948
        %1950 = vrot.lane.b32.xlu0 %v1482, 120
        %v1951 = vpop.permute.xlu0 %1950
        %1952 = vrot.lane.b32.xlu0 %v1484, 120
        %v1953 = vpop.permute.xlu0 %1952
        %1954 = vrot.lane.b32.xlu0 %v1487, 120
        %v1955 = vpop.permute.xlu0 %1954
        %1956 = vrot.lane.b32.xlu0 %v1489, 120
        %v1957 = vpop.permute.xlu0 %1956
        %1958 = vrot.lane.b32.xlu0 %v1492, 120
        %v1959 = vpop.permute.xlu0 %1958
        %1960 = vrot.lane.b32.xlu0 %v1494, 120
        %v1961 = vpop.permute.xlu0 %1960
        %1962 = vrot.lane.b32.xlu0 %v1497, 120
        %v1963 = vpop.permute.xlu0 %1962
        %1964 = vrot.lane.b32.xlu0 %v1499, 120
        %v1965 = vpop.permute.xlu0 %1964
        %1966 = vrot.lane.b32.xlu0 %v1502, 120
        %v1967 = vpop.permute.xlu0 %1966
        %1968 = vrot.lane.b32.xlu0 %v1504, 120
        %v1969 = vpop.permute.xlu0 %1968
        %1970 = vrot.lane.b32.xlu0 %v1507, 120
        %v1971 = vpop.permute.xlu0 %1970
        %1972 = vrot.lane.b32.xlu0 %v1509, 120
        %v1973 = vpop.permute.xlu0 %1972
        %1974 = vrot.lane.b32.xlu0 %v1512, 120
        %v1975 = vpop.permute.xlu0 %1974
        %1976 = vrot.lane.b32.xlu0 %v1514, 120
        %v1977 = vpop.permute.xlu0 %1976
        %1978 = vrot.lane.b32.xlu0 %v1517, 120
        %v1979 = vpop.permute.xlu0 %1978
        %1980 = vrot.lane.b32.xlu0 %v1519, 120
        %v1981 = vpop.permute.xlu0 %1980
        %1982 = vrot.lane.b32.xlu0 %v1522, 120
        %v1983 = vpop.permute.xlu0 %1982
        %1984 = vrot.lane.b32.xlu0 %v1524, 120
        %v1985 = vpop.permute.xlu0 %1984
        %1986 = vrot.lane.b32.xlu0 %v1527, 120
        %v1987 = vpop.permute.xlu0 %1986
        %1988 = vrot.lane.b32.xlu0 %v1529, 120
        %v1989 = vpop.permute.xlu0 %1988
        %1990 = vrot.lane.b32.xlu0 %v1532, 120
        %v1991 = vpop.permute.xlu0 %1990
        %1992 = vrot.lane.b32.xlu0 %v1534, 120
        %v1993 = vpop.permute.xlu0 %1992
        %1994 = vrot.lane.b32.xlu0 %v1537, 120
        %v1995 = vpop.permute.xlu0 %1994
        %1996 = vrot.lane.b32.xlu0 %v1539, 120
        %v1997 = vpop.permute.xlu0 %1996
        %1998 = vrot.lane.b32.xlu0 %v1542, 120
        %v1999 = vpop.permute.xlu0 %1998
        %2000 = vrot.lane.b32.xlu0 %v1544, 120
        %v2001 = vpop.permute.xlu0 %2000
        %2002 = vrot.lane.b32.xlu0 %v1547, 120
        %v2003 = vpop.permute.xlu0 %2002
        %2004 = vrot.lane.b32.xlu0 %v1549, 120
        %v2005 = vpop.permute.xlu0 %2004
        %2006 = vrot.lane.b32.xlu0 %v1559, 120
        %v2007 = vpop.permute.xlu0 %2006
        %2008 = vrot.lane.b32.xlu0 %v1561, 120
        %v2009 = vpop.permute.xlu0 %2008
        %2042 = vrot.lane.b32.xlu0 %v1324, 16
        %v2043 = vpop.permute.xlu0 %2042
        %2044 = vrot.lane.b32.xlu0 %v1230, 16
        %v2045 = vpop.permute.xlu0 %2044
        %2046 = vrot.lane.b32.xlu0 %v1325, 16
        %v2047 = vpop.permute.xlu0 %2046
        %2048 = vrot.lane.b32.xlu0 %v1233, 16
        %v2049 = vpop.permute.xlu0 %2048
        %2050 = vrot.lane.b32.xlu0 %v1326, 16
        %v2051 = vpop.permute.xlu0 %2050
        %2052 = vrot.lane.b32.xlu0 %v1236, 16
        %v2053 = vpop.permute.xlu0 %2052
        %2054 = vrot.lane.b32.xlu0 %v1327, 16
        %v2055 = vpop.permute.xlu0 %2054
        %2056 = vrot.lane.b32.xlu0 %v1239, 16
        %v2057 = vpop.permute.xlu0 %2056
        %2058 = vrot.lane.b32.xlu0 %v1328, 16
        %v2059 = vpop.permute.xlu0 %2058
        %2060 = vrot.lane.b32.xlu0 %v1242, 16
        %v2061 = vpop.permute.xlu0 %2060
        %2062 = vrot.lane.b32.xlu0 %v1329, 16
        %v2063 = vpop.permute.xlu0 %2062
        %2064 = vrot.lane.b32.xlu0 %v1245, 16
        %v2065 = vpop.permute.xlu0 %2064
        %2066 = vrot.lane.b32.xlu0 %v1330, 16
        %v2067 = vpop.permute.xlu0 %2066
        %2068 = vrot.lane.b32.xlu0 %v1248, 16
        %v2069 = vpop.permute.xlu0 %2068
        %2070 = vrot.lane.b32.xlu0 %v1331, 16
        %v2071 = vpop.permute.xlu0 %2070
        %2072 = vrot.lane.b32.xlu0 %v1251, 16
        %v2073 = vpop.permute.xlu0 %2072
        %2074 = vrot.lane.b32.xlu0 %v1332, 16
        %v2075 = vpop.permute.xlu0 %2074
        %2076 = vrot.lane.b32.xlu0 %v1254, 16
        %v2077 = vpop.permute.xlu0 %2076
        %2078 = vrot.lane.b32.xlu0 %v1333, 16
        %v2079 = vpop.permute.xlu0 %2078
        %2080 = vrot.lane.b32.xlu0 %v1257, 16
        %v2081 = vpop.permute.xlu0 %2080
        %2082 = vrot.lane.b32.xlu0 %v1334, 16
        %v2083 = vpop.permute.xlu0 %2082
        %2084 = vrot.lane.b32.xlu0 %v1260, 16
        %v2085 = vpop.permute.xlu0 %2084
        %2086 = vrot.lane.b32.xlu0 %v1335, 16
        %v2087 = vpop.permute.xlu0 %2086
        %2088 = vrot.lane.b32.xlu0 %v1263, 16
        %v2089 = vpop.permute.xlu0 %2088
        %2090 = vrot.lane.b32.xlu0 %v1336, 16
        %v2091 = vpop.permute.xlu0 %2090
        %2092 = vrot.lane.b32.xlu0 %v1266, 16
        %v2093 = vpop.permute.xlu0 %2092
        %2094 = vrot.lane.b32.xlu0 %v1337, 16
        %v2095 = vpop.permute.xlu0 %2094
        %2096 = vrot.lane.b32.xlu0 %v1269, 16
        %v2097 = vpop.permute.xlu0 %2096
        %2098 = vrot.lane.b32.xlu0 %v1338, 16
        %v2099 = vpop.permute.xlu0 %2098
        %2100 = vrot.lane.b32.xlu0 %v1272, 16
        %v2101 = vpop.permute.xlu0 %2100
        %2102 = vrot.lane.b32.xlu0 %v1322, 16
        %v2103 = vpop.permute.xlu0 %2102
        %2104 = vrot.lane.b32.xlu0 %v1224, 16
        %v2105 = vpop.permute.xlu0 %2104
        %2138 = vrot.lane.b32.xlu0 %v1401, 40
        %v2139 = vpop.permute.xlu0 %2138
        %2140 = vrot.lane.b32.xlu0 %v1403, 40
        %v2141 = vpop.permute.xlu0 %2140
        %2142 = vrot.lane.b32.xlu0 %v1406, 40
        %v2143 = vpop.permute.xlu0 %2142
        %2144 = vrot.lane.b32.xlu0 %v1408, 40
        %v2145 = vpop.permute.xlu0 %2144
        %2146 = vrot.lane.b32.xlu0 %v1411, 40
        %v2147 = vpop.permute.xlu0 %2146
        %2148 = vrot.lane.b32.xlu0 %v1413, 40
        %v2149 = vpop.permute.xlu0 %2148
        %2150 = vrot.lane.b32.xlu0 %v1416, 40
        %v2151 = vpop.permute.xlu0 %2150
        %2152 = vrot.lane.b32.xlu0 %v1418, 40
        %v2153 = vpop.permute.xlu0 %2152
        %2154 = vrot.lane.b32.xlu0 %v1421, 40
        %v2155 = vpop.permute.xlu0 %2154
        %2156 = vrot.lane.b32.xlu0 %v1423, 40
        %v2157 = vpop.permute.xlu0 %2156
        %2158 = vrot.lane.b32.xlu0 %v1426, 40
        %v2159 = vpop.permute.xlu0 %2158
        %2160 = vrot.lane.b32.xlu0 %v1428, 40
        %v2161 = vpop.permute.xlu0 %2160
        %2162 = vrot.lane.b32.xlu0 %v1431, 40
        %v2163 = vpop.permute.xlu0 %2162
        %2164 = vrot.lane.b32.xlu0 %v1433, 40
        %v2165 = vpop.permute.xlu0 %2164
        %2166 = vrot.lane.b32.xlu0 %v1436, 40
        %v2167 = vpop.permute.xlu0 %2166
        %2168 = vrot.lane.b32.xlu0 %v1438, 40
        %v2169 = vpop.permute.xlu0 %2168
        %2170 = vrot.lane.b32.xlu0 %v1441, 40
        %v2171 = vpop.permute.xlu0 %2170
        %2172 = vrot.lane.b32.xlu0 %v1443, 40
        %v2173 = vpop.permute.xlu0 %2172
        %2174 = vrot.lane.b32.xlu0 %v1446, 40
        %v2175 = vpop.permute.xlu0 %2174
        %2176 = vrot.lane.b32.xlu0 %v1448, 40
        %v2177 = vpop.permute.xlu0 %2176
        %2178 = vrot.lane.b32.xlu0 %v1451, 40
        %v2179 = vpop.permute.xlu0 %2178
        %2180 = vrot.lane.b32.xlu0 %v1453, 40
        %v2181 = vpop.permute.xlu0 %2180
        %2182 = vrot.lane.b32.xlu0 %v1456, 40
        %v2183 = vpop.permute.xlu0 %2182
        %2184 = vrot.lane.b32.xlu0 %v1458, 40
        %v2185 = vpop.permute.xlu0 %2184
        %2186 = vrot.lane.b32.xlu0 %v1461, 40
        %v2187 = vpop.permute.xlu0 %2186
        %2188 = vrot.lane.b32.xlu0 %v1463, 40
        %v2189 = vpop.permute.xlu0 %2188
        %2190 = vrot.lane.b32.xlu0 %v1466, 40
        %v2191 = vpop.permute.xlu0 %2190
        %2192 = vrot.lane.b32.xlu0 %v1468, 40
        %v2193 = vpop.permute.xlu0 %2192
        %2194 = vrot.lane.b32.xlu0 %v1554, 40
        %v2195 = vpop.permute.xlu0 %2194
        %2196 = vrot.lane.b32.xlu0 %v1556, 40
        %v2197 = vpop.permute.xlu0 %2196
        %2198 = vrot.lane.b32.xlu0 %v1391, 40
        %v2199 = vpop.permute.xlu0 %2198
        %2200 = vrot.lane.b32.xlu0 %v1393, 40
        %v2201 = vpop.permute.xlu0 %2200
        %2234 = vrot.lane.b32.xlu0 %v1482, 64
        %v2235 = vpop.permute.xlu0 %2234
        %2236 = vrot.lane.b32.xlu0 %v1484, 64
        %v2237 = vpop.permute.xlu0 %2236
        %2238 = vrot.lane.b32.xlu0 %v1487, 64
        %v2239 = vpop.permute.xlu0 %2238
        %2240 = vrot.lane.b32.xlu0 %v1489, 64
        %v2241 = vpop.permute.xlu0 %2240
        %2242 = vrot.lane.b32.xlu0 %v1492, 64
        %v2243 = vpop.permute.xlu0 %2242
        %2244 = vrot.lane.b32.xlu0 %v1494, 64
        %v2245 = vpop.permute.xlu0 %2244
        %2246 = vrot.lane.b32.xlu0 %v1497, 64
        %v2247 = vpop.permute.xlu0 %2246
        %2248 = vrot.lane.b32.xlu0 %v1499, 64
        %v2249 = vpop.permute.xlu0 %2248
        %2250 = vrot.lane.b32.xlu0 %v1502, 64
        %v2251 = vpop.permute.xlu0 %2250
        %2252 = vrot.lane.b32.xlu0 %v1504, 64
        %v2253 = vpop.permute.xlu0 %2252
        %2254 = vrot.lane.b32.xlu0 %v1507, 64
        %v2255 = vpop.permute.xlu0 %2254
        %2256 = vrot.lane.b32.xlu0 %v1509, 64
        %v2257 = vpop.permute.xlu0 %2256
        %2258 = vrot.lane.b32.xlu0 %v1512, 64
        %v2259 = vpop.permute.xlu0 %2258
        %2260 = vrot.lane.b32.xlu0 %v1514, 64
        %v2261 = vpop.permute.xlu0 %2260
        %2262 = vrot.lane.b32.xlu0 %v1517, 64
        %v2263 = vpop.permute.xlu0 %2262
        %2264 = vrot.lane.b32.xlu0 %v1519, 64
        %v2265 = vpop.permute.xlu0 %2264
        %2266 = vrot.lane.b32.xlu0 %v1522, 64
        %v2267 = vpop.permute.xlu0 %2266
        %2268 = vrot.lane.b32.xlu0 %v1524, 64
        %v2269 = vpop.permute.xlu0 %2268
        %2270 = vrot.lane.b32.xlu0 %v1527, 64
        %v2271 = vpop.permute.xlu0 %2270
        %2272 = vrot.lane.b32.xlu0 %v1529, 64
        %v2273 = vpop.permute.xlu0 %2272
        %2274 = vrot.lane.b32.xlu0 %v1532, 64
        %v2275 = vpop.permute.xlu0 %2274
        %2276 = vrot.lane.b32.xlu0 %v1534, 64
        %v2277 = vpop.permute.xlu0 %2276
        %2278 = vrot.lane.b32.xlu0 %v1537, 64
        %v2279 = vpop.permute.xlu0 %2278
        %2280 = vrot.lane.b32.xlu0 %v1539, 64
        %v2281 = vpop.permute.xlu0 %2280
        %2282 = vrot.lane.b32.xlu0 %v1542, 64
        %v2283 = vpop.permute.xlu0 %2282
        %2284 = vrot.lane.b32.xlu0 %v1544, 64
        %v2285 = vpop.permute.xlu0 %2284
        %2286 = vrot.lane.b32.xlu0 %v1547, 64
        %v2287 = vpop.permute.xlu0 %2286
        %2288 = vrot.lane.b32.xlu0 %v1549, 64
        %v2289 = vpop.permute.xlu0 %2288
        %2290 = vrot.lane.b32.xlu0 %v1559, 64
        %v2291 = vpop.permute.xlu0 %2290
        %2292 = vrot.lane.b32.xlu0 %v1561, 64
        %v2293 = vpop.permute.xlu0 %2292
        %2294 = vrot.lane.b32.xlu0 %v1472, 64
        %v2295 = vpop.permute.xlu0 %2294
        %2296 = vrot.lane.b32.xlu0 %v1474, 64
        %v2297 = vpop.permute.xlu0 %2296
        %vm2330 = vcmask 195584
        %v2331 = vsel %vm2330, %v1322, %v1563
        %v2332 = vsel %vm2330, %v1224, %v1565
        %v2333 = vsel %vm2330, %v1323, %v1567
        %v2334 = vsel %vm2330, %v1227, %v1569
        %v2335 = vsel %vm2330, %v1324, %v1571
        %v2336 = vsel %vm2330, %v1230, %v1573
        %v2337 = vsel %vm2330, %v1325, %v1575
        %v2338 = vsel %vm2330, %v1233, %v1577
        %v2339 = vsel %vm2330, %v1326, %v1579
        %v2340 = vsel %vm2330, %v1236, %v1581
        %v2341 = vsel %vm2330, %v1327, %v1583
        %v2342 = vsel %vm2330, %v1239, %v1585
        %v2343 = vsel %vm2330, %v1328, %v1587
        %v2344 = vsel %vm2330, %v1242, %v1589
        %v2345 = vsel %vm2330, %v1329, %v1591
        %v2346 = vsel %vm2330, %v1245, %v1593
        %v2347 = vsel %vm2330, %v1330, %v1595
        %v2348 = vsel %vm2330, %v1248, %v1597
        %v2349 = vsel %vm2330, %v1331, %v1599
        %v2350 = vsel %vm2330, %v1251, %v1601
        %v2351 = vsel %vm2330, %v1332, %v1603
        %v2352 = vsel %vm2330, %v1254, %v1605
        %v2353 = vsel %vm2330, %v1333, %v1607
        %v2354 = vsel %vm2330, %v1257, %v1609
        %v2355 = vsel %vm2330, %v1334, %v1611
        %v2356 = vsel %vm2330, %v1260, %v1613
        %v2357 = vsel %vm2330, %v1335, %v1615
        %v2358 = vsel %vm2330, %v1263, %v1617
        %v2359 = vsel %vm2330, %v1336, %v1619
        %v2360 = vsel %vm2330, %v1266, %v1621
        %v2361 = vsel %vm2330, %v1337, %v1623
        %v2362 = vsel %vm2330, %v1269, %v1625
        %vm2363 = vcmask 392192
        %v2364 = vsel %vm2363, %v2331, %v1659
        %v2365 = vsel %vm2363, %v2332, %v1661
        %v2366 = vsel %vm2363, %v2333, %v1663
        %v2367 = vsel %vm2363, %v2334, %v1665
        %v2368 = vsel %vm2363, %v2335, %v1667
        %v2369 = vsel %vm2363, %v2336, %v1669
        %v2370 = vsel %vm2363, %v2337, %v1671
        %v2371 = vsel %vm2363, %v2338, %v1673
        %v2372 = vsel %vm2363, %v2339, %v1675
        %v2373 = vsel %vm2363, %v2340, %v1677
        %v2374 = vsel %vm2363, %v2341, %v1679
        %v2375 = vsel %vm2363, %v2342, %v1681
        %v2376 = vsel %vm2363, %v2343, %v1683
        %v2377 = vsel %vm2363, %v2344, %v1685
        %v2378 = vsel %vm2363, %v2345, %v1687
        %v2379 = vsel %vm2363, %v2346, %v1689
        %v2380 = vsel %vm2363, %v2347, %v1691
        %v2381 = vsel %vm2363, %v2348, %v1693
        %v2382 = vsel %vm2363, %v2349, %v1695
        %v2383 = vsel %vm2363, %v2350, %v1697
        %v2384 = vsel %vm2363, %v2351, %v1699
        %v2385 = vsel %vm2363, %v2352, %v1701
        %v2386 = vsel %vm2363, %v2353, %v1703
        %v2387 = vsel %vm2363, %v2354, %v1705
        %v2388 = vsel %vm2363, %v2355, %v1707
        %v2389 = vsel %vm2363, %v2356, %v1709
        %v2390 = vsel %vm2363, %v2357, %v1711
        %v2391 = vsel %vm2363, %v2358, %v1713
        %v2392 = vsel %vm2363, %v2359, %v1715
        %v2393 = vsel %vm2363, %v2360, %v1717
        %v2394 = vsel %vm2363, %v2361, %v1719
        %v2395 = vsel %vm2363, %v2362, %v1721
        %vm2396 = vcmask 588800
        %v2397 = vsel %vm2396, %v2364, %v1755
        %v2398 = vsel %vm2396, %v2365, %v1757
        %v2399 = vsel %vm2396, %v2366, %v1759
        %v2400 = vsel %vm2396, %v2367, %v1761
        %v2401 = vsel %vm2396, %v2368, %v1763
        %v2402 = vsel %vm2396, %v2369, %v1765
        %v2403 = vsel %vm2396, %v2370, %v1767
        %v2404 = vsel %vm2396, %v2371, %v1769
        %v2405 = vsel %vm2396, %v2372, %v1771
        %v2406 = vsel %vm2396, %v2373, %v1773
        %v2407 = vsel %vm2396, %v2374, %v1775
        %v2408 = vsel %vm2396, %v2375, %v1777
        %v2409 = vsel %vm2396, %v2376, %v1779
        %v2410 = vsel %vm2396, %v2377, %v1781
        %v2411 = vsel %vm2396, %v2378, %v1783
        %v2412 = vsel %vm2396, %v2379, %v1785
        %v2413 = vsel %vm2396, %v2380, %v1787
        %v2414 = vsel %vm2396, %v2381, %v1789
        %v2415 = vsel %vm2396, %v2382, %v1791
        %v2416 = vsel %vm2396, %v2383, %v1793
        %v2417 = vsel %vm2396, %v2384, %v1795
        %v2418 = vsel %vm2396, %v2385, %v1797
        %v2419 = vsel %vm2396, %v2386, %v1799
        %v2420 = vsel %vm2396, %v2387, %v1801
        %v2421 = vsel %vm2396, %v2388, %v1803
        %v2422 = vsel %vm2396, %v2389, %v1805
        %v2423 = vsel %vm2396, %v2390, %v1807
        %v2424 = vsel %vm2396, %v2391, %v1809
        %v2425 = vsel %vm2396, %v2392, %v1811
        %v2426 = vsel %vm2396, %v2393, %v1813
        %v2427 = vsel %vm2396, %v2394, %v1815
        %v2428 = vsel %vm2396, %v2395, %v1817
        %vm2429 = vcmask 785408
        %v2430 = vsel %vm2429, %v2397, %v1851
        %v2431 = vsel %vm2429, %v2398, %v1853
        %v2432 = vsel %vm2429, %v2399, %v1855
        %v2433 = vsel %vm2429, %v2400, %v1857
        %v2434 = vsel %vm2429, %v2401, %v1859
        %v2435 = vsel %vm2429, %v2402, %v1861
        %v2436 = vsel %vm2429, %v2403, %v1863
        %v2437 = vsel %vm2429, %v2404, %v1865
        %v2438 = vsel %vm2429, %v2405, %v1867
        %v2439 = vsel %vm2429, %v2406, %v1869
        %v2440 = vsel %vm2429, %v2407, %v1871
        %v2441 = vsel %vm2429, %v2408, %v1873
        %v2442 = vsel %vm2429, %v2409, %v1875
        %v2443 = vsel %vm2429, %v2410, %v1877
        %v2444 = vsel %vm2429, %v2411, %v1879
        %v2445 = vsel %vm2429, %v2412, %v1881
        %v2446 = vsel %vm2429, %v2413, %v1883
        %v2447 = vsel %vm2429, %v2414, %v1885
        %v2448 = vsel %vm2429, %v2415, %v1887
        %v2449 = vsel %vm2429, %v2416, %v1889
        %v2450 = vsel %vm2429, %v2417, %v1891
        %v2451 = vsel %vm2429, %v2418, %v1893
        %v2452 = vsel %vm2429, %v2419, %v1895
        %v2453 = vsel %vm2429, %v2420, %v1897
        %v2454 = vsel %vm2429, %v2421, %v1899
        %v2455 = vsel %vm2429, %v2422, %v1901
        %v2456 = vsel %vm2429, %v2423, %v1903
        %v2457 = vsel %vm2429, %v2424, %v1905
        %v2458 = vsel %vm2429, %v2425, %v1907
        %v2459 = vsel %vm2429, %v2426, %v1909
        %v2460 = vsel %vm2429, %v2427, %v1911
        %v2461 = vsel %vm2429, %v2428, %v1913
        %vm2462 = vcmask 982016
        %v2463 = vsel %vm2462, %v2430, %v1947
        %v2464 = vsel %vm2462, %v2431, %v1949
        %v2465 = vsel %vm2462, %v2432, %v1951
        %v2466 = vsel %vm2462, %v2433, %v1953
        %v2467 = vsel %vm2462, %v2434, %v1955
        %v2468 = vsel %vm2462, %v2435, %v1957
        %v2469 = vsel %vm2462, %v2436, %v1959
        %v2470 = vsel %vm2462, %v2437, %v1961
        %v2471 = vsel %vm2462, %v2438, %v1963
        %v2472 = vsel %vm2462, %v2439, %v1965
        %v2473 = vsel %vm2462, %v2440, %v1967
        %v2474 = vsel %vm2462, %v2441, %v1969
        %v2475 = vsel %vm2462, %v2442, %v1971
        %v2476 = vsel %vm2462, %v2443, %v1973
        %v2477 = vsel %vm2462, %v2444, %v1975
        %v2478 = vsel %vm2462, %v2445, %v1977
        %v2479 = vsel %vm2462, %v2446, %v1979
        %v2480 = vsel %vm2462, %v2447, %v1981
        %v2481 = vsel %vm2462, %v2448, %v1983
        %v2482 = vsel %vm2462, %v2449, %v1985
        %v2483 = vsel %vm2462, %v2450, %v1987
        %v2484 = vsel %vm2462, %v2451, %v1989
        %v2485 = vsel %vm2462, %v2452, %v1991
        %v2486 = vsel %vm2462, %v2453, %v1993
        %v2487 = vsel %vm2462, %v2454, %v1995
        %v2488 = vsel %vm2462, %v2455, %v1997
        %v2489 = vsel %vm2462, %v2456, %v1999
        %v2490 = vsel %vm2462, %v2457, %v2001
        %v2491 = vsel %vm2462, %v2458, %v2003
        %v2492 = vsel %vm2462, %v2459, %v2005
        %v2493 = vsel %vm2462, %v2460, %v2007
        %v2494 = vsel %vm2462, %v2461, %v2009
        %v2495 = vsel %vm644, %v1947, %v2043
        %v2496 = vsel %vm644, %v1949, %v2045
        %v2497 = vsel %vm644, %v1951, %v2047
        %v2498 = vsel %vm644, %v1953, %v2049
        %v2499 = vsel %vm644, %v1955, %v2051
        %v2500 = vsel %vm644, %v1957, %v2053
        %v2501 = vsel %vm644, %v1959, %v2055
        %v2502 = vsel %vm644, %v1961, %v2057
        %v2503 = vsel %vm644, %v1963, %v2059
        %v2504 = vsel %vm644, %v1965, %v2061
        %v2505 = vsel %vm644, %v1967, %v2063
        %v2506 = vsel %vm644, %v1969, %v2065
        %v2507 = vsel %vm644, %v1971, %v2067
        %v2508 = vsel %vm644, %v1973, %v2069
        %v2509 = vsel %vm644, %v1975, %v2071
        %v2510 = vsel %vm644, %v1977, %v2073
        %v2511 = vsel %vm644, %v1979, %v2075
        %v2512 = vsel %vm644, %v1981, %v2077
        %v2513 = vsel %vm644, %v1983, %v2079
        %v2514 = vsel %vm644, %v1985, %v2081
        %v2515 = vsel %vm644, %v1987, %v2083
        %v2516 = vsel %vm644, %v1989, %v2085
        %v2517 = vsel %vm644, %v1991, %v2087
        %v2518 = vsel %vm644, %v1993, %v2089
        %v2519 = vsel %vm644, %v1995, %v2091
        %v2520 = vsel %vm644, %v1997, %v2093
        %v2521 = vsel %vm644, %v1999, %v2095
        %v2522 = vsel %vm644, %v2001, %v2097
        %v2523 = vsel %vm644, %v2003, %v2099
        %v2524 = vsel %vm644, %v2005, %v2101
        %v2525 = vsel %vm644, %v2007, %v2103
        %v2526 = vsel %vm644, %v2009, %v2105
        %vm2527 = vcmask 326656
        %v2528 = vsel %vm2527, %v2495, %v2139
        %v2529 = vsel %vm2527, %v2496, %v2141
        %v2530 = vsel %vm2527, %v2497, %v2143
        %v2531 = vsel %vm2527, %v2498, %v2145
        %v2532 = vsel %vm2527, %v2499, %v2147
        %v2533 = vsel %vm2527, %v2500, %v2149
        %v2534 = vsel %vm2527, %v2501, %v2151
        %v2535 = vsel %vm2527, %v2502, %v2153
        %v2536 = vsel %vm2527, %v2503, %v2155
        %v2537 = vsel %vm2527, %v2504, %v2157
        %v2538 = vsel %vm2527, %v2505, %v2159
        %v2539 = vsel %vm2527, %v2506, %v2161
        %v2540 = vsel %vm2527, %v2507, %v2163
        %v2541 = vsel %vm2527, %v2508, %v2165
        %v2542 = vsel %vm2527, %v2509, %v2167
        %v2543 = vsel %vm2527, %v2510, %v2169
        %v2544 = vsel %vm2527, %v2511, %v2171
        %v2545 = vsel %vm2527, %v2512, %v2173
        %v2546 = vsel %vm2527, %v2513, %v2175
        %v2547 = vsel %vm2527, %v2514, %v2177
        %v2548 = vsel %vm2527, %v2515, %v2179
        %v2549 = vsel %vm2527, %v2516, %v2181
        %v2550 = vsel %vm2527, %v2517, %v2183
        %v2551 = vsel %vm2527, %v2518, %v2185
        %v2552 = vsel %vm2527, %v2519, %v2187
        %v2553 = vsel %vm2527, %v2520, %v2189
        %v2554 = vsel %vm2527, %v2521, %v2191
        %v2555 = vsel %vm2527, %v2522, %v2193
        %v2556 = vsel %vm2527, %v2523, %v2195
        %v2557 = vsel %vm2527, %v2524, %v2197
        %v2558 = vsel %vm2527, %v2525, %v2199
        %v2559 = vsel %vm2527, %v2526, %v2201
        %vm2560 = vcmask 523264
        %v2561 = vsel %vm2560, %v2528, %v2235
        %v2562 = vsel %vm2560, %v2529, %v2237
        %v2563 = vsel %vm2560, %v2530, %v2239
        %v2564 = vsel %vm2560, %v2531, %v2241
        %v2565 = vsel %vm2560, %v2532, %v2243
        %v2566 = vsel %vm2560, %v2533, %v2245
        %v2567 = vsel %vm2560, %v2534, %v2247
        %v2568 = vsel %vm2560, %v2535, %v2249
        %v2569 = vsel %vm2560, %v2536, %v2251
        %v2570 = vsel %vm2560, %v2537, %v2253
        %v2571 = vsel %vm2560, %v2538, %v2255
        %v2572 = vsel %vm2560, %v2539, %v2257
        %v2573 = vsel %vm2560, %v2540, %v2259
        %v2574 = vsel %vm2560, %v2541, %v2261
        %v2575 = vsel %vm2560, %v2542, %v2263
        %v2576 = vsel %vm2560, %v2543, %v2265
        %v2577 = vsel %vm2560, %v2544, %v2267
        %v2578 = vsel %vm2560, %v2545, %v2269
        %v2579 = vsel %vm2560, %v2546, %v2271
        %v2580 = vsel %vm2560, %v2547, %v2273
        %v2581 = vsel %vm2560, %v2548, %v2275
        %v2582 = vsel %vm2560, %v2549, %v2277
        %v2583 = vsel %vm2560, %v2550, %v2279
        %v2584 = vsel %vm2560, %v2551, %v2281
        %v2585 = vsel %vm2560, %v2552, %v2283
        %v2586 = vsel %vm2560, %v2553, %v2285
        %v2587 = vsel %vm2560, %v2554, %v2287
        %v2588 = vsel %vm2560, %v2555, %v2289
        %v2589 = vsel %vm2560, %v2556, %v2291
        %v2590 = vsel %vm2560, %v2557, %v2293
        %v2591 = vsel %vm2560, %v2558, %v2295
        %v2592 = vsel %vm2560, %v2559, %v2297
        %v2593 = vpack.c.bf16 %v2464, %v2463
        %v2594 = vpack.c.bf16 %v2562, %v2561
        %v2595 = vpack.c.bf16 %v2466, %v2465
        %v2596 = vpack.c.bf16 %v2564, %v2563
        %v2597 = vpack.c.bf16 %v2468, %v2467
        %v2598 = vpack.c.bf16 %v2566, %v2565
        %v2599 = vpack.c.bf16 %v2470, %v2469
        %v2600 = vpack.c.bf16 %v2568, %v2567
        %v2601 = vpack.c.bf16 %v2472, %v2471
        %v2602 = vpack.c.bf16 %v2570, %v2569
        %v2603 = vpack.c.bf16 %v2474, %v2473
        %v2604 = vpack.c.bf16 %v2572, %v2571
        %v2605 = vpack.c.bf16 %v2476, %v2475
        %v2606 = vpack.c.bf16 %v2574, %v2573
        %v2607 = vpack.c.bf16 %v2478, %v2477
        %v2608 = vpack.c.bf16 %v2576, %v2575
        %v2609 = vpack.c.bf16 %v2480, %v2479
        %v2610 = vpack.c.bf16 %v2578, %v2577
        %v2611 = vpack.c.bf16 %v2482, %v2481
        %v2612 = vpack.c.bf16 %v2580, %v2579
        %v2613 = vpack.c.bf16 %v2484, %v2483
        %v2614 = vpack.c.bf16 %v2582, %v2581
        %v2615 = vpack.c.bf16 %v2486, %v2485
        %v2616 = vpack.c.bf16 %v2584, %v2583
        %v2617 = vpack.c.bf16 %v2488, %v2487
        %v2618 = vpack.c.bf16 %v2586, %v2585
        %v2619 = vpack.c.bf16 %v2490, %v2489
        %v2620 = vpack.c.bf16 %v2588, %v2587
        %v2621 = vpack.c.bf16 %v2492, %v2491
        %v2622 = vpack.c.bf16 %v2590, %v2589
        %v2623 = vpack.c.bf16 %v2494, %v2493
        %v2624 = vpack.c.bf16 %v2592, %v2591
        %v2652 = vunpack.c.l.b16 %v1162
        %v2653 = vunpack.c.l.b16 %v1163
        %v2654 = vunpack.c.l.b16 %v1164
        %v2655 = vunpack.c.l.b16 %v1165
        %v2656 = vunpack.c.l.b16 %v1166
        %v2657 = vunpack.c.l.b16 %v1167
        %v2658 = vunpack.c.l.b16 %v1168
        %v2659 = vunpack.c.l.b16 %v1169
        %v2660 = vunpack.c.l.b16 %v1170
        %v2661 = vunpack.c.l.b16 %v1171
        %v2662 = vunpack.c.l.b16 %v1172
        %v2663 = vunpack.c.l.b16 %v1173
        %v2664 = vunpack.c.l.b16 %v1174
        %v2665 = vunpack.c.l.b16 %v1175
        %v2666 = vunpack.c.l.b16 %v1176
        %v2667 = vunpack.c.l.b16 %v1177
        %v2668 = vunpack.c.l.b16 %v1178
        %v2669 = vunpack.c.l.b16 %v1179
        %v2670 = vunpack.c.l.b16 %v1180
        %v2671 = vunpack.c.l.b16 %v1181
        %v2672 = vunpack.c.l.b16 %v1182
        %v2673 = vunpack.c.l.b16 %v1183
        %v2674 = vunpack.c.l.b16 %v1184
        %v2675 = vunpack.c.l.b16 %v1185
        %v2676 = vunpack.c.l.b16 %v1186
        %v2677 = vunpack.c.l.b16 %v1187
        %v2678 = vunpack.c.l.b16 %v1188
        %v2679 = vpack.c.b16 %v2653, %v2652
        %v2680 = vpack.c.b16 %v2655, %v2654
        %v2681 = vpack.c.b16 %v2657, %v2656
        %v2682 = vpack.c.b16 %v2659, %v2658
        %v2683 = vpack.c.b16 %v2661, %v2660
        %v2684 = vpack.c.b16 %v2663, %v2662
        %v2685 = vpack.c.b16 %v2665, %v2664
        %v2686 = vpack.c.b16 %v2667, %v2666
        %v2687 = vpack.c.b16 %v2669, %v2668
        %v2688 = vpack.c.b16 %v2671, %v2670
        %v2689 = vpack.c.b16 %v2673, %v2672
        %v2690 = vpack.c.b16 %v2675, %v2674
        %v2691 = vpack.c.b16 %v2677, %v2676
        %v2692 = vpack.c.b16 %v2678, %v2678
        %vm2706 = vcmask 719872
        %v2708 = vsel %vm2706, %v2594, 0
        %v2711 = vsel %vm2706, %v2596, 0
        %v2714 = vsel %vm2706, %v2598, 0
        %v2717 = vsel %vm2706, %v2600, 0
        %v2720 = vsel %vm2706, %v2602, 0
        %v2723 = vsel %vm2706, %v2604, 0
        %v2726 = vsel %vm2706, %v2606, 0
        %v2729 = vsel %vm2706, %v2608, 0
        %v2732 = vsel %vm2706, %v2610, 0
        %v2735 = vsel %vm2706, %v2612, 0
        %v2738 = vsel %vm2706, %v2614, 0
        %v2741 = vsel %vm2706, %v2616, 0
        %v2744 = vsel %vm2706, %v2618, 0
        %v2747 = vsel %vm2706, %v2620, 0
        %v2750 = vsel %vm2706, %v2622, 0
        %v2753 = vsel %vm2706, %v2624, 0
        %v2756 = vsel %vm473, %v2692, 0
        %2758 = vmatprep.subr.bf16.mxu0 0
        %2759 = vmatpush1.bf16.msra.mxu0 %v2686
        %2760 = vmatprep.subr.bf16.mxu0 0
        %2761 = vmatpush1.bf16.msra.mxu0 %v2685
        %2762 = vmatprep.subr.bf16.mxu0 0
        %2763 = vmatpush1.bf16.msra.mxu0 %v2684
        %2764 = vmatprep.subr.bf16.mxu0 0
        %2765 = vmatpush1.bf16.msra.mxu0 %v2683
        %2766 = vmatprep.subr.bf16.mxu0 0
        %2767 = vmatpush1.bf16.msra.mxu0 %v2682
        %2768 = vmatprep.subr.bf16.mxu0 0
        %2769 = vmatpush1.bf16.msra.mxu0 %v2681
        %2770 = vmatprep.subr.bf16.mxu0 0
        %2771 = vmatpush1.bf16.msra.mxu0 %v2680
        %2772 = vmatprep.subr.bf16.mxu0 0
        %2773 = vmatpush1.bf16.msra.mxu0 %v2679
        %2774 = vmatprep.subr.bf16.mxu0 0
        %2775 = vmatpush2.bf16.msra.mxu0 0
        %2776 = vmatprep.subr.bf16.mxu0 0
        %2777 = vmatpush2.bf16.msra.mxu0 0
        %2778 = vmatprep.subr.bf16.mxu0 0
        %2779 = vmatpush2.bf16.msra.mxu0 %v2756
        %2780 = vmatprep.subr.bf16.mxu0 0
        %2781 = vmatpush2.bf16.msra.mxu0 %v2691
        %2782 = vmatprep.subr.bf16.mxu0 0
        %2783 = vmatpush2.bf16.msra.mxu0 %v2690
        %2784 = vmatprep.subr.bf16.mxu0 0
        %2785 = vmatpush2.bf16.msra.mxu0 %v2689
        %2786 = vmatprep.subr.bf16.mxu0 0
        %2787 = vmatpush2.bf16.msra.mxu0 %v2688
        %2788 = vmatprep.subr.bf16.mxu0 0
        %2789 = vmatpush2.bf16.msra.mxu0 %v2687
        %2790 = vmatprep.mubr.bf16.mxu0 %v2708
        %2791 = vmatmul.mubr.bf16.gmra.mxu0 %v2593
        %v2792 = vpop.f32.mrf.mxu0
        %v2793 = vadd.f32 0.0, %v2792
        %v2794 = vpop.f32.mrf.mxu0
        %v2795 = vpop.f32.mrf.mxu0
        %v2796 = vadd.f32 0.0, %v2795
        %v2797 = vpop.f32.mrf.mxu0
        %2798 = vmatprep.mubr.bf16.mxu0 %v2711
        %2799 = vmatmul.mubr.bf16.gmra.mxu0 %v2595
        %v2800 = vpop.f32.mrf.mxu0
        %v2801 = vadd.f32 0.0, %v2800
        %v2802 = vpop.f32.mrf.mxu0
        %v2803 = vpop.f32.mrf.mxu0
        %v2804 = vadd.f32 0.0, %v2803
        %v2805 = vpop.f32.mrf.mxu0
        %2806 = vmatprep.mubr.bf16.mxu0 %v2714
        %2807 = vmatmul.mubr.bf16.gmra.mxu0 %v2597
        %v2808 = vpop.f32.mrf.mxu0
        %v2809 = vadd.f32 0.0, %v2808
        %v2810 = vpop.f32.mrf.mxu0
        %v2811 = vpop.f32.mrf.mxu0
        %v2812 = vadd.f32 0.0, %v2811
        %v2813 = vpop.f32.mrf.mxu0
        %2814 = vmatprep.mubr.bf16.mxu0 %v2717
        %2815 = vmatmul.mubr.bf16.gmra.mxu0 %v2599
        %v2816 = vpop.f32.mrf.mxu0
        %v2817 = vadd.f32 0.0, %v2816
        %v2818 = vpop.f32.mrf.mxu0
        %v2819 = vpop.f32.mrf.mxu0
        %v2820 = vadd.f32 0.0, %v2819
        %v2821 = vpop.f32.mrf.mxu0
        %2822 = vmatprep.mubr.bf16.mxu0 %v2720
        %2823 = vmatmul.mubr.bf16.gmra.mxu0 %v2601
        %v2824 = vpop.f32.mrf.mxu0
        %v2825 = vadd.f32 0.0, %v2824
        %v2826 = vpop.f32.mrf.mxu0
        %v2827 = vpop.f32.mrf.mxu0
        %v2828 = vadd.f32 0.0, %v2827
        %v2829 = vpop.f32.mrf.mxu0
        %2830 = vmatprep.mubr.bf16.mxu0 %v2723
        %2831 = vmatmul.mubr.bf16.gmra.mxu0 %v2603
        %v2832 = vpop.f32.mrf.mxu0
        %v2833 = vadd.f32 0.0, %v2832
        %v2834 = vpop.f32.mrf.mxu0
        %v2835 = vpop.f32.mrf.mxu0
        %v2836 = vadd.f32 0.0, %v2835
        %v2837 = vpop.f32.mrf.mxu0
        %2838 = vmatprep.mubr.bf16.mxu0 %v2726
        %2839 = vmatmul.mubr.bf16.gmra.mxu0 %v2605
        %v2840 = vpop.f32.mrf.mxu0
        %v2841 = vadd.f32 0.0, %v2840
        %v2842 = vpop.f32.mrf.mxu0
        %v2843 = vpop.f32.mrf.mxu0
        %v2844 = vadd.f32 0.0, %v2843
        %v2845 = vpop.f32.mrf.mxu0
        %2846 = vmatprep.mubr.bf16.mxu0 %v2729
        %2847 = vmatmul.mubr.bf16.gmra.mxu0 %v2607
        %v2848 = vpop.f32.mrf.mxu0
        %v2849 = vadd.f32 0.0, %v2848
        %v2850 = vpop.f32.mrf.mxu0
        %v2851 = vpop.f32.mrf.mxu0
        %v2852 = vadd.f32 0.0, %v2851
        %v2853 = vpop.f32.mrf.mxu0
        %2854 = vmatprep.mubr.bf16.mxu0 %v2732
        %2855 = vmatmul.mubr.bf16.gmra.mxu0 %v2609
        %v2856 = vpop.f32.mrf.mxu0
        %v2857 = vadd.f32 0.0, %v2856
        %v2858 = vpop.f32.mrf.mxu0
        %v2859 = vpop.f32.mrf.mxu0
        %v2860 = vadd.f32 0.0, %v2859
        %v2861 = vpop.f32.mrf.mxu0
        %2862 = vmatprep.mubr.bf16.mxu0 %v2735
        %2863 = vmatmul.mubr.bf16.gmra.mxu0 %v2611
        %v2864 = vpop.f32.mrf.mxu0
        %v2865 = vadd.f32 0.0, %v2864
        %v2866 = vpop.f32.mrf.mxu0
        %v2867 = vpop.f32.mrf.mxu0
        %v2868 = vadd.f32 0.0, %v2867
        %v2869 = vpop.f32.mrf.mxu0
        %2870 = vmatprep.mubr.bf16.mxu0 %v2738
        %2871 = vmatmul.mubr.bf16.gmra.mxu0 %v2613
        %v2872 = vpop.f32.mrf.mxu0
        %v2873 = vadd.f32 0.0, %v2872
        %v2874 = vpop.f32.mrf.mxu0
        %v2875 = vpop.f32.mrf.mxu0
        %v2876 = vadd.f32 0.0, %v2875
        %v2877 = vpop.f32.mrf.mxu0
        %2878 = vmatprep.mubr.bf16.mxu0 %v2741
        %2879 = vmatmul.mubr.bf16.gmra.mxu0 %v2615
        %v2880 = vpop.f32.mrf.mxu0
        %v2881 = vadd.f32 0.0, %v2880
        %v2882 = vpop.f32.mrf.mxu0
        %v2883 = vpop.f32.mrf.mxu0
        %v2884 = vadd.f32 0.0, %v2883
        %v2885 = vpop.f32.mrf.mxu0
        %2886 = vmatprep.mubr.bf16.mxu0 %v2744
        %2887 = vmatmul.mubr.bf16.gmra.mxu0 %v2617
        %v2888 = vpop.f32.mrf.mxu0
        %v2889 = vadd.f32 0.0, %v2888
        %v2890 = vpop.f32.mrf.mxu0
        %v2891 = vpop.f32.mrf.mxu0
        %v2892 = vadd.f32 0.0, %v2891
        %v2893 = vpop.f32.mrf.mxu0
        %2894 = vmatprep.mubr.bf16.mxu0 %v2747
        %2895 = vmatmul.mubr.bf16.gmra.mxu0 %v2619
        %v2896 = vpop.f32.mrf.mxu0
        %v2897 = vadd.f32 0.0, %v2896
        %v2898 = vpop.f32.mrf.mxu0
        %v2899 = vpop.f32.mrf.mxu0
        %v2900 = vadd.f32 0.0, %v2899
        %v2901 = vpop.f32.mrf.mxu0
        %2902 = vmatprep.mubr.bf16.mxu0 %v2750
        %2903 = vmatmul.mubr.bf16.gmra.mxu0 %v2621
        %v2904 = vpop.f32.mrf.mxu0
        %v2905 = vadd.f32 0.0, %v2904
        %v2906 = vpop.f32.mrf.mxu0
        %v2907 = vpop.f32.mrf.mxu0
        %v2908 = vadd.f32 0.0, %v2907
        %v2909 = vpop.f32.mrf.mxu0
        %2910 = vmatprep.mubr.bf16.mxu0 %v2753
        %2911 = vmatmul.mubr.bf16.gmra.mxu0 %v2623
        %v2912 = vpop.f32.mrf.mxu0
        %v2913 = vadd.f32 0.0, %v2912
        %v2914 = vpop.f32.mrf.mxu0
        %v2915 = vpop.f32.mrf.mxu0
        %v2916 = vadd.f32 0.0, %v2915
        %v2917 = vpop.f32.mrf.mxu0
        %2918 = vdwg.mxu0
        %v2919 = vxor.u32 %v2793, 2147483648
        %v2920 = vxor.u32 %v2796, 2147483648
        %v2921 = vxor.u32 %v2801, 2147483648
        %v2922 = vxor.u32 %v2804, 2147483648
        %v2923 = vxor.u32 %v2809, 2147483648
        %v2924 = vxor.u32 %v2812, 2147483648
        %v2925 = vxor.u32 %v2817, 2147483648
        %v2926 = vxor.u32 %v2820, 2147483648
        %v2927 = vxor.u32 %v2825, 2147483648
        %v2928 = vxor.u32 %v2828, 2147483648
        %v2929 = vxor.u32 %v2833, 2147483648
        %v2930 = vxor.u32 %v2836, 2147483648
        %v2931 = vxor.u32 %v2841, 2147483648
        %v2932 = vxor.u32 %v2844, 2147483648
        %v2933 = vxor.u32 %v2849, 2147483648
        %v2934 = vxor.u32 %v2852, 2147483648
        %v2935 = vxor.u32 %v2857, 2147483648
        %v2936 = vxor.u32 %v2860, 2147483648
        %v2937 = vxor.u32 %v2865, 2147483648
        %v2938 = vxor.u32 %v2868, 2147483648
        %v2939 = vxor.u32 %v2873, 2147483648
        %v2940 = vxor.u32 %v2876, 2147483648
        %v2941 = vxor.u32 %v2881, 2147483648
        %v2942 = vxor.u32 %v2884, 2147483648
        %v2943 = vxor.u32 %v2889, 2147483648
        %v2944 = vxor.u32 %v2892, 2147483648
        %v2945 = vxor.u32 %v2897, 2147483648
        %v2946 = vxor.u32 %v2900, 2147483648
        %v2947 = vxor.u32 %v2905, 2147483648
        %v2948 = vxor.u32 %v2908, 2147483648
        %v2949 = vxor.u32 %v2913, 2147483648
        %v2950 = vxor.u32 %v2916, 2147483648
        %v2951 = vmul.f32 %v2919, 1.442695
        %v2952 = vpow.pop %v2951
        %v2953 = vmul.f32 %v2920, 1.442695
        %v2954 = vpow.pop %v2953
        %v2955 = vmul.f32 %v2921, 1.442695
        %v2956 = vpow.pop %v2955
        %v2957 = vmul.f32 %v2922, 1.442695
        %v2958 = vpow.pop %v2957
        %v2959 = vmul.f32 %v2923, 1.442695
        %v2960 = vpow.pop %v2959
        %v2961 = vmul.f32 %v2924, 1.442695
        %v2962 = vpow.pop %v2961
        %v2963 = vmul.f32 %v2925, 1.442695
        %v2964 = vpow.pop %v2963
        %v2965 = vmul.f32 %v2926, 1.442695
        %v2966 = vpow.pop %v2965
        %v2967 = vmul.f32 %v2927, 1.442695
        %v2968 = vpow.pop %v2967
        %v2969 = vmul.f32 %v2928, 1.442695
        %v2970 = vpow.pop %v2969
        %v2971 = vmul.f32 %v2929, 1.442695
        %v2972 = vpow.pop %v2971
        %v2973 = vmul.f32 %v2930, 1.442695
        %v2974 = vpow.pop %v2973
        %v2975 = vmul.f32 %v2931, 1.442695
        %v2976 = vpow.pop %v2975
        %v2977 = vmul.f32 %v2932, 1.442695
        %v2978 = vpow.pop %v2977
        %v2979 = vmul.f32 %v2933, 1.442695
        %v2980 = vpow.pop %v2979
        %v2981 = vmul.f32 %v2934, 1.442695
        %v2982 = vpow.pop %v2981
        %v2983 = vmul.f32 %v2935, 1.442695
        %v2984 = vpow.pop %v2983
        %v2985 = vmul.f32 %v2936, 1.442695
        %v2986 = vpow.pop %v2985
        %v2987 = vmul.f32 %v2937, 1.442695
        %v2988 = vpow.pop %v2987
        %v2989 = vmul.f32 %v2938, 1.442695
        %v2990 = vpow.pop %v2989
        %v2991 = vmul.f32 %v2939, 1.442695
        %v2992 = vpow.pop %v2991
        %v2993 = vmul.f32 %v2940, 1.442695
        %v2994 = vpow.pop %v2993
        %v2995 = vmul.f32 %v2941, 1.442695
        %v2996 = vpow.pop %v2995
        %v2997 = vmul.f32 %v2942, 1.442695
        %v2998 = vpow.pop %v2997
        %v2999 = vmul.f32 %v2943, 1.442695
        %v3000 = vpow.pop %v2999
        %v3001 = vmul.f32 %v2944, 1.442695
        %v3002 = vpow.pop %v3001
        %v3003 = vmul.f32 %v2945, 1.442695
        %v3004 = vpow.pop %v3003
        %v3005 = vmul.f32 %v2946, 1.442695
        %v3006 = vpow.pop %v3005
        %v3007 = vmul.f32 %v2947, 1.442695
        %v3008 = vpow.pop %v3007
        %v3009 = vmul.f32 %v2948, 1.442695
        %v3010 = vpow.pop %v3009
        %v3011 = vmul.f32 %v2949, 1.442695
        %v3012 = vpow.pop %v3011
        %v3013 = vmul.f32 %v2950, 1.442695
        %v3014 = vpow.pop %v3013
        %v3015 = vadd.f32 %v2952, 1.0
        %v3016 = vadd.f32 %v2954, 1.0
        %v3017 = vadd.f32 %v2956, 1.0
        %v3018 = vadd.f32 %v2958, 1.0
        %v3019 = vadd.f32 %v2960, 1.0
        %v3020 = vadd.f32 %v2962, 1.0
        %v3021 = vadd.f32 %v2964, 1.0
        %v3022 = vadd.f32 %v2966, 1.0
        %v3023 = vadd.f32 %v2968, 1.0
        %v3024 = vadd.f32 %v2970, 1.0
        %v3025 = vadd.f32 %v2972, 1.0
        %v3026 = vadd.f32 %v2974, 1.0
        %v3027 = vadd.f32 %v2976, 1.0
        %v3028 = vadd.f32 %v2978, 1.0
        %v3029 = vadd.f32 %v2980, 1.0
        %v3030 = vadd.f32 %v2982, 1.0
        %v3031 = vadd.f32 %v2984, 1.0
        %v3032 = vadd.f32 %v2986, 1.0
        %v3033 = vadd.f32 %v2988, 1.0
        %v3034 = vadd.f32 %v2990, 1.0
        %v3035 = vadd.f32 %v2992, 1.0
        %v3036 = vadd.f32 %v2994, 1.0
        %v3037 = vadd.f32 %v2996, 1.0
        %v3038 = vadd.f32 %v2998, 1.0
        %v3039 = vadd.f32 %v3000, 1.0
        %v3040 = vadd.f32 %v3002, 1.0
        %v3041 = vadd.f32 %v3004, 1.0
        %v3042 = vadd.f32 %v3006, 1.0
        %v3043 = vadd.f32 %v3008, 1.0
        %v3044 = vadd.f32 %v3010, 1.0
        %v3045 = vadd.f32 %v3012, 1.0
        %v3046 = vadd.f32 %v3014, 1.0
        %v3047 = vrcp.pop %v3015
        %v3048 = vmul.f32 1.0, %v3047
        %v3049 = vrcp.pop %v3016
        %v3050 = vmul.f32 1.0, %v3049
        %v3051 = vrcp.pop %v3017
        %v3052 = vmul.f32 1.0, %v3051
        %v3053 = vrcp.pop %v3018
        %v3054 = vmul.f32 1.0, %v3053
        %v3055 = vrcp.pop %v3019
        %v3056 = vmul.f32 1.0, %v3055
        %v3057 = vrcp.pop %v3020
        %v3058 = vmul.f32 1.0, %v3057
        %v3059 = vrcp.pop %v3021
        %v3060 = vmul.f32 1.0, %v3059
        %v3061 = vrcp.pop %v3022
        %v3062 = vmul.f32 1.0, %v3061
        %v3063 = vrcp.pop %v3023
        %v3064 = vmul.f32 1.0, %v3063
        %v3065 = vrcp.pop %v3024
        %v3066 = vmul.f32 1.0, %v3065
        %v3067 = vrcp.pop %v3025
        %v3068 = vmul.f32 1.0, %v3067
        %v3069 = vrcp.pop %v3026
        %v3070 = vmul.f32 1.0, %v3069
        %v3071 = vrcp.pop %v3027
        %v3072 = vmul.f32 1.0, %v3071
        %v3073 = vrcp.pop %v3028
        %v3074 = vmul.f32 1.0, %v3073
        %v3075 = vrcp.pop %v3029
        %v3076 = vmul.f32 1.0, %v3075
        %v3077 = vrcp.pop %v3030
        %v3078 = vmul.f32 1.0, %v3077
        %v3079 = vrcp.pop %v3031
        %v3080 = vmul.f32 1.0, %v3079
        %v3081 = vrcp.pop %v3032
        %v3082 = vmul.f32 1.0, %v3081
        %v3083 = vrcp.pop %v3033
        %v3084 = vmul.f32 1.0, %v3083
        %v3085 = vrcp.pop %v3034
        %v3086 = vmul.f32 1.0, %v3085
        %v3087 = vrcp.pop %v3035
        %v3088 = vmul.f32 1.0, %v3087
        %v3089 = vrcp.pop %v3036
        %v3090 = vmul.f32 1.0, %v3089
        %v3091 = vrcp.pop %v3037
        %v3092 = vmul.f32 1.0, %v3091
        %v3093 = vrcp.pop %v3038
        %v3094 = vmul.f32 1.0, %v3093
        %v3095 = vrcp.pop %v3039
        %v3096 = vmul.f32 1.0, %v3095
        %v3097 = vrcp.pop %v3040
        %v3098 = vmul.f32 1.0, %v3097
        %v3099 = vrcp.pop %v3041
        %v3100 = vmul.f32 1.0, %v3099
        %v3101 = vrcp.pop %v3042
        %v3102 = vmul.f32 1.0, %v3101
        %v3103 = vrcp.pop %v3043
        %v3104 = vmul.f32 1.0, %v3103
        %v3105 = vrcp.pop %v3044
        %v3106 = vmul.f32 1.0, %v3105
        %v3107 = vrcp.pop %v3045
        %v3108 = vmul.f32 1.0, %v3107
        %v3109 = vrcp.pop %v3046
        %v3110 = vmul.f32 1.0, %v3109
        %v3111 = vmul.f32 %v2793, %v3048
        %v3112 = vmul.f32 %v2796, %v3050
        %v3113 = vmul.f32 %v2801, %v3052
        %v3114 = vmul.f32 %v2804, %v3054
        %v3115 = vmul.f32 %v2809, %v3056
        %v3116 = vmul.f32 %v2812, %v3058
        %v3117 = vmul.f32 %v2817, %v3060
        %v3118 = vmul.f32 %v2820, %v3062
        %v3119 = vmul.f32 %v2825, %v3064
        %v3120 = vmul.f32 %v2828, %v3066
        %v3121 = vmul.f32 %v2833, %v3068
        %v3122 = vmul.f32 %v2836, %v3070
        %v3123 = vmul.f32 %v2841, %v3072
        %v3124 = vmul.f32 %v2844, %v3074
        %v3125 = vmul.f32 %v2849, %v3076
        %v3126 = vmul.f32 %v2852, %v3078
        %v3127 = vmul.f32 %v2857, %v3080
        %v3128 = vmul.f32 %v2860, %v3082
        %v3129 = vmul.f32 %v2865, %v3084
        %v3130 = vmul.f32 %v2868, %v3086
        %v3131 = vmul.f32 %v2873, %v3088
        %v3132 = vmul.f32 %v2876, %v3090
        %v3133 = vmul.f32 %v2881, %v3092
        %v3134 = vmul.f32 %v2884, %v3094
        %v3135 = vmul.f32 %v2889, %v3096
        %v3136 = vmul.f32 %v2892, %v3098
        %v3137 = vmul.f32 %v2897, %v3100
        %v3138 = vmul.f32 %v2900, %v3102
        %v3139 = vmul.f32 %v2905, %v3104
        %v3140 = vmul.f32 %v2908, %v3106
        %v3141 = vmul.f32 %v2913, %v3108
        %v3142 = vmul.f32 %v2916, %v3110
        %v3143 = vld [vmem:[%s7] sm:$0xf]
        %v3144 = vld [vmem:[%s7 + $0x4] sm:$0xf]
        %v3145 = vld [vmem:[%s7 + $0x8] sm:$0xf]
        %v3146 = vld [vmem:[%s7 + $0xc] sm:$0xf]
        %v3147 = vld [vmem:[%s7 + $0x10] sm:$0xf]
        %v3148 = vld [vmem:[%s7 + $0x14] sm:$0xf]
        %v3149 = vld [vmem:[%s7 + $0x18] sm:$0xf]
        %v3150 = vld [vmem:[%s7 + $0x1c] sm:$0xf]
        %v3151 = vld [vmem:[%s7 + $0x20] sm:$0xf]
        %v3152 = vld [vmem:[%s7 + $0x24] sm:$0xf]
        %v3153 = vld [vmem:[%s7 + $0x28] sm:$0xf]
        %v3154 = vld [vmem:[%s7 + $0x2c] sm:$0xf]
        %v3155 = vld [vmem:[%s7 + $0x30] sm:$0xf]
        %v3156 = vld [vmem:[%s7 + $0x34] sm:$0xf]
        %v3157 = vld [vmem:[%s7 + $0x38] sm:$0xf]
        %v3158 = vld [vmem:[%s7 + $0x3c] sm:$0xf]
        %v3159 = vld [vmem:[%s7 + $0x40] sm:$0xf]
        %v3160 = vld [vmem:[%s7 + $0x44] sm:$0xf]
        %v3193 = vrot.slane %v3111, 7
        %v3194 = vrot.slane %v3112, 7
        %v3195 = vsel %vm1222, %v3193, %v3194
        %v3196 = vrot.slane %v3113, 7
        %v3197 = vrot.slane %v3114, 7
        %v3198 = vsel %vm1222, %v3196, %v3197
        %v3199 = vrot.slane %v3115, 7
        %v3200 = vrot.slane %v3116, 7
        %v3201 = vsel %vm1222, %v3199, %v3200
        %v3202 = vrot.slane %v3117, 7
        %v3203 = vrot.slane %v3118, 7
        %v3204 = vsel %vm1222, %v3202, %v3203
        %v3205 = vrot.slane %v3119, 7
        %v3206 = vrot.slane %v3120, 7
        %v3207 = vsel %vm1222, %v3205, %v3206
        %v3208 = vrot.slane %v3121, 7
        %v3209 = vrot.slane %v3122, 7
        %v3210 = vsel %vm1222, %v3208, %v3209
        %v3211 = vrot.slane %v3123, 7
        %v3212 = vrot.slane %v3124, 7
        %v3213 = vsel %vm1222, %v3211, %v3212
        %v3214 = vrot.slane %v3125, 7
        %v3215 = vrot.slane %v3126, 7
        %v3216 = vsel %vm1222, %v3214, %v3215
        %v3217 = vrot.slane %v3127, 7
        %v3218 = vrot.slane %v3128, 7
        %v3219 = vsel %vm1222, %v3217, %v3218
        %v3220 = vrot.slane %v3129, 7
        %v3221 = vrot.slane %v3130, 7
        %v3222 = vsel %vm1222, %v3220, %v3221
        %v3223 = vrot.slane %v3131, 7
        %v3224 = vrot.slane %v3132, 7
        %v3225 = vsel %vm1222, %v3223, %v3224
        %v3226 = vrot.slane %v3133, 7
        %v3227 = vrot.slane %v3134, 7
        %v3228 = vsel %vm1222, %v3226, %v3227
        %v3229 = vrot.slane %v3135, 7
        %v3230 = vrot.slane %v3136, 7
        %v3231 = vsel %vm1222, %v3229, %v3230
        %v3232 = vrot.slane %v3137, 7
        %v3233 = vrot.slane %v3138, 7
        %v3234 = vsel %vm1222, %v3232, %v3233
        %v3235 = vrot.slane %v3139, 7
        %v3236 = vrot.slane %v3140, 7
        %v3237 = vsel %vm1222, %v3235, %v3236
        %v3238 = vrot.slane %v3141, 7
        %v3239 = vrot.slane %v3142, 7
        %v3240 = vsel %vm1222, %v3238, %v3239
        %v3288 = vsel %vm1222, 0.0, %v3193
        %v3289 = vsel %vm1222, 0.0, %v3196
        %v3290 = vsel %vm1222, 0.0, %v3199
        %v3291 = vsel %vm1222, 0.0, %v3202
        %v3292 = vsel %vm1222, 0.0, %v3205
        %v3293 = vsel %vm1222, 0.0, %v3208
        %v3294 = vsel %vm1222, 0.0, %v3211
        %v3295 = vsel %vm1222, 0.0, %v3214
        %v3296 = vsel %vm1222, 0.0, %v3217
        %v3297 = vsel %vm1222, 0.0, %v3220
        %v3298 = vsel %vm1222, 0.0, %v3223
        %v3299 = vsel %vm1222, 0.0, %v3226
        %v3300 = vsel %vm1222, 0.0, %v3229
        %v3301 = vsel %vm1222, 0.0, %v3232
        %v3302 = vsel %vm1222, 0.0, %v3235
        %v3303 = vsel %vm1222, 0.0, %v3238
        %v3304 = vsel %vm1222, %v3194, 0.0
        %v3305 = vsel %vm1222, %v3197, 0.0
        %v3306 = vsel %vm1222, %v3200, 0.0
        %v3307 = vsel %vm1222, %v3203, 0.0
        %v3308 = vsel %vm1222, %v3206, 0.0
        %v3309 = vsel %vm1222, %v3209, 0.0
        %v3310 = vsel %vm1222, %v3212, 0.0
        %v3311 = vsel %vm1222, %v3215, 0.0
        %v3312 = vsel %vm1222, %v3218, 0.0
        %v3313 = vsel %vm1222, %v3221, 0.0
        %v3314 = vsel %vm1222, %v3224, 0.0
        %v3315 = vsel %vm1222, %v3227, 0.0
        %v3316 = vsel %vm1222, %v3230, 0.0
        %v3317 = vsel %vm1222, %v3233, 0.0
        %v3318 = vsel %vm1222, %v3236, 0.0
        %v3319 = vsel %vm1222, %v3239, 0.0
        %v3350 = vrot.slane %v3288, 1
        %v3351 = vrot.slane %v3195, 1
        %v3352 = vsel %vm1388, %v3350, %v3351
        %v3353 = vrot.slane %v3304, 1
        %v3354 = vsel %vm1388, %v3351, %v3353
        %v3355 = vrot.slane %v3289, 1
        %v3356 = vrot.slane %v3198, 1
        %v3357 = vsel %vm1388, %v3355, %v3356
        %v3358 = vrot.slane %v3305, 1
        %v3359 = vsel %vm1388, %v3356, %v3358
        %v3360 = vrot.slane %v3290, 1
        %v3361 = vrot.slane %v3201, 1
        %v3362 = vsel %vm1388, %v3360, %v3361
        %v3363 = vrot.slane %v3306, 1
        %v3364 = vsel %vm1388, %v3361, %v3363
        %v3365 = vrot.slane %v3291, 1
        %v3366 = vrot.slane %v3204, 1
        %v3367 = vsel %vm1388, %v3365, %v3366
        %v3368 = vrot.slane %v3307, 1
        %v3369 = vsel %vm1388, %v3366, %v3368
        %v3370 = vrot.slane %v3292, 1
        %v3371 = vrot.slane %v3207, 1
        %v3372 = vsel %vm1388, %v3370, %v3371
        %v3373 = vrot.slane %v3308, 1
        %v3374 = vsel %vm1388, %v3371, %v3373
        %v3375 = vrot.slane %v3293, 1
        %v3376 = vrot.slane %v3210, 1
        %v3377 = vsel %vm1388, %v3375, %v3376
        %v3378 = vrot.slane %v3309, 1
        %v3379 = vsel %vm1388, %v3376, %v3378
        %v3380 = vrot.slane %v3294, 1
        %v3381 = vrot.slane %v3213, 1
        %v3382 = vsel %vm1388, %v3380, %v3381
        %v3383 = vrot.slane %v3310, 1
        %v3384 = vsel %vm1388, %v3381, %v3383
        %v3385 = vrot.slane %v3295, 1
        %v3386 = vrot.slane %v3216, 1
        %v3387 = vsel %vm1388, %v3385, %v3386
        %v3388 = vrot.slane %v3311, 1
        %v3389 = vsel %vm1388, %v3386, %v3388
        %v3390 = vrot.slane %v3296, 1
        %v3391 = vrot.slane %v3219, 1
        %v3392 = vsel %vm1388, %v3390, %v3391
        %v3393 = vrot.slane %v3312, 1
        %v3394 = vsel %vm1388, %v3391, %v3393
        %v3395 = vrot.slane %v3297, 1
        %v3396 = vrot.slane %v3222, 1
        %v3397 = vsel %vm1388, %v3395, %v3396
        %v3398 = vrot.slane %v3313, 1
        %v3399 = vsel %vm1388, %v3396, %v3398
        %v3400 = vrot.slane %v3298, 1
        %v3401 = vrot.slane %v3225, 1
        %v3402 = vsel %vm1388, %v3400, %v3401
        %v3403 = vrot.slane %v3314, 1
        %v3404 = vsel %vm1388, %v3401, %v3403
        %v3405 = vrot.slane %v3299, 1
        %v3406 = vrot.slane %v3228, 1
        %v3407 = vsel %vm1388, %v3405, %v3406
        %v3408 = vrot.slane %v3315, 1
        %v3409 = vsel %vm1388, %v3406, %v3408
        %v3410 = vrot.slane %v3300, 1
        %v3411 = vrot.slane %v3231, 1
        %v3412 = vsel %vm1388, %v3410, %v3411
        %v3413 = vrot.slane %v3316, 1
        %v3414 = vsel %vm1388, %v3411, %v3413
        %v3415 = vrot.slane %v3301, 1
        %v3416 = vrot.slane %v3234, 1
        %v3417 = vsel %vm1388, %v3415, %v3416
        %v3418 = vrot.slane %v3317, 1
        %v3419 = vsel %vm1388, %v3416, %v3418
        %v3420 = vrot.slane %v3302, 1
        %v3421 = vrot.slane %v3237, 1
        %v3422 = vsel %vm1388, %v3420, %v3421
        %v3423 = vrot.slane %v3318, 1
        %v3424 = vsel %vm1388, %v3421, %v3423
        %v3425 = vrot.slane %v3288, 2
        %v3426 = vrot.slane %v3195, 2
        %v3427 = vsel %vm1469, %v3425, %v3426
        %v3428 = vrot.slane %v3304, 2
        %v3429 = vsel %vm1469, %v3426, %v3428
        %v3430 = vrot.slane %v3289, 2
        %v3431 = vrot.slane %v3198, 2
        %v3432 = vsel %vm1469, %v3430, %v3431
        %v3433 = vrot.slane %v3305, 2
        %v3434 = vsel %vm1469, %v3431, %v3433
        %v3435 = vrot.slane %v3290, 2
        %v3436 = vrot.slane %v3201, 2
        %v3437 = vsel %vm1469, %v3435, %v3436
        %v3438 = vrot.slane %v3306, 2
        %v3439 = vsel %vm1469, %v3436, %v3438
        %v3440 = vrot.slane %v3291, 2
        %v3441 = vrot.slane %v3204, 2
        %v3442 = vsel %vm1469, %v3440, %v3441
        %v3443 = vrot.slane %v3307, 2
        %v3444 = vsel %vm1469, %v3441, %v3443
        %v3445 = vrot.slane %v3292, 2
        %v3446 = vrot.slane %v3207, 2
        %v3447 = vsel %vm1469, %v3445, %v3446
        %v3448 = vrot.slane %v3308, 2
        %v3449 = vsel %vm1469, %v3446, %v3448
        %v3450 = vrot.slane %v3293, 2
        %v3451 = vrot.slane %v3210, 2
        %v3452 = vsel %vm1469, %v3450, %v3451
        %v3453 = vrot.slane %v3309, 2
        %v3454 = vsel %vm1469, %v3451, %v3453
        %v3455 = vrot.slane %v3294, 2
        %v3456 = vrot.slane %v3213, 2
        %v3457 = vsel %vm1469, %v3455, %v3456
        %v3458 = vrot.slane %v3310, 2
        %v3459 = vsel %vm1469, %v3456, %v3458
        %v3460 = vrot.slane %v3295, 2
        %v3461 = vrot.slane %v3216, 2
        %v3462 = vsel %vm1469, %v3460, %v3461
        %v3463 = vrot.slane %v3311, 2
        %v3464 = vsel %vm1469, %v3461, %v3463
        %v3465 = vrot.slane %v3296, 2
        %v3466 = vrot.slane %v3219, 2
        %v3467 = vsel %vm1469, %v3465, %v3466
        %v3468 = vrot.slane %v3312, 2
        %v3469 = vsel %vm1469, %v3466, %v3468
        %v3470 = vrot.slane %v3297, 2
        %v3471 = vrot.slane %v3222, 2
        %v3472 = vsel %vm1469, %v3470, %v3471
        %v3473 = vrot.slane %v3313, 2
        %v3474 = vsel %vm1469, %v3471, %v3473
        %v3475 = vrot.slane %v3298, 2
        %v3476 = vrot.slane %v3225, 2
        %v3477 = vsel %vm1469, %v3475, %v3476
        %v3478 = vrot.slane %v3314, 2
        %v3479 = vsel %vm1469, %v3476, %v3478
        %v3480 = vrot.slane %v3299, 2
        %v3481 = vrot.slane %v3228, 2
        %v3482 = vsel %vm1469, %v3480, %v3481
        %v3483 = vrot.slane %v3315, 2
        %v3484 = vsel %vm1469, %v3481, %v3483
        %v3485 = vrot.slane %v3300, 2
        %v3486 = vrot.slane %v3231, 2
        %v3487 = vsel %vm1469, %v3485, %v3486
        %v3488 = vrot.slane %v3316, 2
        %v3489 = vsel %vm1469, %v3486, %v3488
        %v3490 = vrot.slane %v3301, 2
        %v3491 = vrot.slane %v3234, 2
        %v3492 = vsel %vm1469, %v3490, %v3491
        %v3493 = vrot.slane %v3317, 2
        %v3494 = vsel %vm1469, %v3491, %v3493
        %v3495 = vrot.slane %v3302, 2
        %v3496 = vrot.slane %v3237, 2
        %v3497 = vsel %vm1469, %v3495, %v3496
        %v3498 = vrot.slane %v3318, 2
        %v3499 = vsel %vm1469, %v3496, %v3498
        %v3502 = vrot.slane %v3303, 1
        %v3503 = vrot.slane %v3240, 1
        %v3504 = vsel %vm1388, %v3502, %v3503
        %v3505 = vrot.slane %v3319, 1
        %v3506 = vsel %vm1388, %v3503, %v3505
        %v3507 = vrot.slane %v3303, 2
        %v3508 = vrot.slane %v3240, 2
        %v3509 = vsel %vm1469, %v3507, %v3508
        %v3510 = vrot.slane %v3319, 2
        %v3511 = vsel %vm1469, %v3508, %v3510
        %3544 = vrot.lane.b32.xlu0 %v1391, 16
        %v3545 = vpop.permute.xlu0 %3544
        %3546 = vrot.lane.b32.xlu0 %v1393, 16
        %v3547 = vpop.permute.xlu0 %3546
        %3548 = vrot.lane.b32.xlu0 %v3352, 16
        %v3549 = vpop.permute.xlu0 %3548
        %3550 = vrot.lane.b32.xlu0 %v3354, 16
        %v3551 = vpop.permute.xlu0 %3550
        %3552 = vrot.lane.b32.xlu0 %v3357, 16
        %v3553 = vpop.permute.xlu0 %3552
        %3554 = vrot.lane.b32.xlu0 %v3359, 16
        %v3555 = vpop.permute.xlu0 %3554
        %3556 = vrot.lane.b32.xlu0 %v3362, 16
        %v3557 = vpop.permute.xlu0 %3556
        %3558 = vrot.lane.b32.xlu0 %v3364, 16
        %v3559 = vpop.permute.xlu0 %3558
        %3560 = vrot.lane.b32.xlu0 %v3367, 16
        %v3561 = vpop.permute.xlu0 %3560
        %3562 = vrot.lane.b32.xlu0 %v3369, 16
        %v3563 = vpop.permute.xlu0 %3562
        %3564 = vrot.lane.b32.xlu0 %v3372, 16
        %v3565 = vpop.permute.xlu0 %3564
        %3566 = vrot.lane.b32.xlu0 %v3374, 16
        %v3567 = vpop.permute.xlu0 %3566
        %3568 = vrot.lane.b32.xlu0 %v3377, 16
        %v3569 = vpop.permute.xlu0 %3568
        %3570 = vrot.lane.b32.xlu0 %v3379, 16
        %v3571 = vpop.permute.xlu0 %3570
        %3572 = vrot.lane.b32.xlu0 %v3382, 16
        %v3573 = vpop.permute.xlu0 %3572
        %3574 = vrot.lane.b32.xlu0 %v3384, 16
        %v3575 = vpop.permute.xlu0 %3574
        %3576 = vrot.lane.b32.xlu0 %v3387, 16
        %v3577 = vpop.permute.xlu0 %3576
        %3578 = vrot.lane.b32.xlu0 %v3389, 16
        %v3579 = vpop.permute.xlu0 %3578
        %3580 = vrot.lane.b32.xlu0 %v3392, 16
        %v3581 = vpop.permute.xlu0 %3580
        %3582 = vrot.lane.b32.xlu0 %v3394, 16
        %v3583 = vpop.permute.xlu0 %3582
        %3584 = vrot.lane.b32.xlu0 %v3397, 16
        %v3585 = vpop.permute.xlu0 %3584
        %3586 = vrot.lane.b32.xlu0 %v3399, 16
        %v3587 = vpop.permute.xlu0 %3586
        %3588 = vrot.lane.b32.xlu0 %v3402, 16
        %v3589 = vpop.permute.xlu0 %3588
        %3590 = vrot.lane.b32.xlu0 %v3404, 16
        %v3591 = vpop.permute.xlu0 %3590
        %3592 = vrot.lane.b32.xlu0 %v3407, 16
        %v3593 = vpop.permute.xlu0 %3592
        %3594 = vrot.lane.b32.xlu0 %v3409, 16
        %v3595 = vpop.permute.xlu0 %3594
        %3596 = vrot.lane.b32.xlu0 %v3412, 16
        %v3597 = vpop.permute.xlu0 %3596
        %3598 = vrot.lane.b32.xlu0 %v3414, 16
        %v3599 = vpop.permute.xlu0 %3598
        %3600 = vrot.lane.b32.xlu0 %v3417, 16
        %v3601 = vpop.permute.xlu0 %3600
        %3602 = vrot.lane.b32.xlu0 %v3419, 16
        %v3603 = vpop.permute.xlu0 %3602
        %3604 = vrot.lane.b32.xlu0 %v3422, 16
        %v3605 = vpop.permute.xlu0 %3604
        %3606 = vrot.lane.b32.xlu0 %v3424, 16
        %v3607 = vpop.permute.xlu0 %3606
        %3640 = vrot.lane.b32.xlu0 %v1472, 32
        %v3641 = vpop.permute.xlu0 %3640
        %3642 = vrot.lane.b32.xlu0 %v1474, 32
        %v3643 = vpop.permute.xlu0 %3642
        %3644 = vrot.lane.b32.xlu0 %v3427, 32
        %v3645 = vpop.permute.xlu0 %3644
        %3646 = vrot.lane.b32.xlu0 %v3429, 32
        %v3647 = vpop.permute.xlu0 %3646
        %3648 = vrot.lane.b32.xlu0 %v3432, 32
        %v3649 = vpop.permute.xlu0 %3648
        %3650 = vrot.lane.b32.xlu0 %v3434, 32
        %v3651 = vpop.permute.xlu0 %3650
        %3652 = vrot.lane.b32.xlu0 %v3437, 32
        %v3653 = vpop.permute.xlu0 %3652
        %3654 = vrot.lane.b32.xlu0 %v3439, 32
        %v3655 = vpop.permute.xlu0 %3654
        %3656 = vrot.lane.b32.xlu0 %v3442, 32
        %v3657 = vpop.permute.xlu0 %3656
        %3658 = vrot.lane.b32.xlu0 %v3444, 32
        %v3659 = vpop.permute.xlu0 %3658
        %3660 = vrot.lane.b32.xlu0 %v3447, 32
        %v3661 = vpop.permute.xlu0 %3660
        %3662 = vrot.lane.b32.xlu0 %v3449, 32
        %v3663 = vpop.permute.xlu0 %3662
        %3664 = vrot.lane.b32.xlu0 %v3452, 32
        %v3665 = vpop.permute.xlu0 %3664
        %3666 = vrot.lane.b32.xlu0 %v3454, 32
        %v3667 = vpop.permute.xlu0 %3666
        %3668 = vrot.lane.b32.xlu0 %v3457, 32
        %v3669 = vpop.permute.xlu0 %3668
        %3670 = vrot.lane.b32.xlu0 %v3459, 32
        %v3671 = vpop.permute.xlu0 %3670
        %3672 = vrot.lane.b32.xlu0 %v3462, 32
        %v3673 = vpop.permute.xlu0 %3672
        %3674 = vrot.lane.b32.xlu0 %v3464, 32
        %v3675 = vpop.permute.xlu0 %3674
        %3676 = vrot.lane.b32.xlu0 %v3467, 32
        %v3677 = vpop.permute.xlu0 %3676
        %3678 = vrot.lane.b32.xlu0 %v3469, 32
        %v3679 = vpop.permute.xlu0 %3678
        %3680 = vrot.lane.b32.xlu0 %v3472, 32
        %v3681 = vpop.permute.xlu0 %3680
        %3682 = vrot.lane.b32.xlu0 %v3474, 32
        %v3683 = vpop.permute.xlu0 %3682
        %3684 = vrot.lane.b32.xlu0 %v3477, 32
        %v3685 = vpop.permute.xlu0 %3684
        %3686 = vrot.lane.b32.xlu0 %v3479, 32
        %v3687 = vpop.permute.xlu0 %3686
        %3688 = vrot.lane.b32.xlu0 %v3482, 32
        %v3689 = vpop.permute.xlu0 %3688
        %3690 = vrot.lane.b32.xlu0 %v3484, 32
        %v3691 = vpop.permute.xlu0 %3690
        %3692 = vrot.lane.b32.xlu0 %v3487, 32
        %v3693 = vpop.permute.xlu0 %3692
        %3694 = vrot.lane.b32.xlu0 %v3489, 32
        %v3695 = vpop.permute.xlu0 %3694
        %3696 = vrot.lane.b32.xlu0 %v3492, 32
        %v3697 = vpop.permute.xlu0 %3696
        %3698 = vrot.lane.b32.xlu0 %v3494, 32
        %v3699 = vpop.permute.xlu0 %3698
        %3700 = vrot.lane.b32.xlu0 %v3497, 32
        %v3701 = vpop.permute.xlu0 %3700
        %3702 = vrot.lane.b32.xlu0 %v3499, 32
        %v3703 = vpop.permute.xlu0 %3702
        %3736 = vrot.lane.b32.xlu0 %v3288, 48
        %v3737 = vpop.permute.xlu0 %3736
        %3738 = vrot.lane.b32.xlu0 %v3195, 48
        %v3739 = vpop.permute.xlu0 %3738
        %3740 = vrot.lane.b32.xlu0 %v3289, 48
        %v3741 = vpop.permute.xlu0 %3740
        %3742 = vrot.lane.b32.xlu0 %v3198, 48
        %v3743 = vpop.permute.xlu0 %3742
        %3744 = vrot.lane.b32.xlu0 %v3290, 48
        %v3745 = vpop.permute.xlu0 %3744
        %3746 = vrot.lane.b32.xlu0 %v3201, 48
        %v3747 = vpop.permute.xlu0 %3746
        %3748 = vrot.lane.b32.xlu0 %v3291, 48
        %v3749 = vpop.permute.xlu0 %3748
        %3750 = vrot.lane.b32.xlu0 %v3204, 48
        %v3751 = vpop.permute.xlu0 %3750
        %3752 = vrot.lane.b32.xlu0 %v3292, 48
        %v3753 = vpop.permute.xlu0 %3752
        %3754 = vrot.lane.b32.xlu0 %v3207, 48
        %v3755 = vpop.permute.xlu0 %3754
        %3756 = vrot.lane.b32.xlu0 %v3293, 48
        %v3757 = vpop.permute.xlu0 %3756
        %3758 = vrot.lane.b32.xlu0 %v3210, 48
        %v3759 = vpop.permute.xlu0 %3758
        %3760 = vrot.lane.b32.xlu0 %v3294, 48
        %v3761 = vpop.permute.xlu0 %3760
        %3762 = vrot.lane.b32.xlu0 %v3213, 48
        %v3763 = vpop.permute.xlu0 %3762
        %3764 = vrot.lane.b32.xlu0 %v3295, 48
        %v3765 = vpop.permute.xlu0 %3764
        %3766 = vrot.lane.b32.xlu0 %v3216, 48
        %v3767 = vpop.permute.xlu0 %3766
        %3768 = vrot.lane.b32.xlu0 %v3296, 48
        %v3769 = vpop.permute.xlu0 %3768
        %3770 = vrot.lane.b32.xlu0 %v3219, 48
        %v3771 = vpop.permute.xlu0 %3770
        %3772 = vrot.lane.b32.xlu0 %v3297, 48
        %v3773 = vpop.permute.xlu0 %3772
        %3774 = vrot.lane.b32.xlu0 %v3222, 48
        %v3775 = vpop.permute.xlu0 %3774
        %3776 = vrot.lane.b32.xlu0 %v3298, 48
        %v3777 = vpop.permute.xlu0 %3776
        %3778 = vrot.lane.b32.xlu0 %v3225, 48
        %v3779 = vpop.permute.xlu0 %3778
        %3780 = vrot.lane.b32.xlu0 %v3299, 48
        %v3781 = vpop.permute.xlu0 %3780
        %3782 = vrot.lane.b32.xlu0 %v3228, 48
        %v3783 = vpop.permute.xlu0 %3782
        %3784 = vrot.lane.b32.xlu0 %v3300, 48
        %v3785 = vpop.permute.xlu0 %3784
        %3786 = vrot.lane.b32.xlu0 %v3231, 48
        %v3787 = vpop.permute.xlu0 %3786
        %3788 = vrot.lane.b32.xlu0 %v3301, 48
        %v3789 = vpop.permute.xlu0 %3788
        %3790 = vrot.lane.b32.xlu0 %v3234, 48
        %v3791 = vpop.permute.xlu0 %3790
        %3792 = vrot.lane.b32.xlu0 %v3302, 48
        %v3793 = vpop.permute.xlu0 %3792
        %3794 = vrot.lane.b32.xlu0 %v3237, 48
        %v3795 = vpop.permute.xlu0 %3794
        %3796 = vrot.lane.b32.xlu0 %v3303, 48
        %v3797 = vpop.permute.xlu0 %3796
        %3798 = vrot.lane.b32.xlu0 %v3240, 48
        %v3799 = vpop.permute.xlu0 %3798
        %3832 = vrot.lane.b32.xlu0 %v3352, 64
        %v3833 = vpop.permute.xlu0 %3832
        %3834 = vrot.lane.b32.xlu0 %v3354, 64
        %v3835 = vpop.permute.xlu0 %3834
        %3836 = vrot.lane.b32.xlu0 %v3357, 64
        %v3837 = vpop.permute.xlu0 %3836
        %3838 = vrot.lane.b32.xlu0 %v3359, 64
        %v3839 = vpop.permute.xlu0 %3838
        %3840 = vrot.lane.b32.xlu0 %v3362, 64
        %v3841 = vpop.permute.xlu0 %3840
        %3842 = vrot.lane.b32.xlu0 %v3364, 64
        %v3843 = vpop.permute.xlu0 %3842
        %3844 = vrot.lane.b32.xlu0 %v3367, 64
        %v3845 = vpop.permute.xlu0 %3844
        %3846 = vrot.lane.b32.xlu0 %v3369, 64
        %v3847 = vpop.permute.xlu0 %3846
        %3848 = vrot.lane.b32.xlu0 %v3372, 64
        %v3849 = vpop.permute.xlu0 %3848
        %3850 = vrot.lane.b32.xlu0 %v3374, 64
        %v3851 = vpop.permute.xlu0 %3850
        %3852 = vrot.lane.b32.xlu0 %v3377, 64
        %v3853 = vpop.permute.xlu0 %3852
        %3854 = vrot.lane.b32.xlu0 %v3379, 64
        %v3855 = vpop.permute.xlu0 %3854
        %3856 = vrot.lane.b32.xlu0 %v3382, 64
        %v3857 = vpop.permute.xlu0 %3856
        %3858 = vrot.lane.b32.xlu0 %v3384, 64
        %v3859 = vpop.permute.xlu0 %3858
        %3860 = vrot.lane.b32.xlu0 %v3387, 64
        %v3861 = vpop.permute.xlu0 %3860
        %3862 = vrot.lane.b32.xlu0 %v3389, 64
        %v3863 = vpop.permute.xlu0 %3862
        %3864 = vrot.lane.b32.xlu0 %v3392, 64
        %v3865 = vpop.permute.xlu0 %3864
        %3866 = vrot.lane.b32.xlu0 %v3394, 64
        %v3867 = vpop.permute.xlu0 %3866
        %3868 = vrot.lane.b32.xlu0 %v3397, 64
        %v3869 = vpop.permute.xlu0 %3868
        %3870 = vrot.lane.b32.xlu0 %v3399, 64
        %v3871 = vpop.permute.xlu0 %3870
        %3872 = vrot.lane.b32.xlu0 %v3402, 64
        %v3873 = vpop.permute.xlu0 %3872
        %3874 = vrot.lane.b32.xlu0 %v3404, 64
        %v3875 = vpop.permute.xlu0 %3874
        %3876 = vrot.lane.b32.xlu0 %v3407, 64
        %v3877 = vpop.permute.xlu0 %3876
        %3878 = vrot.lane.b32.xlu0 %v3409, 64
        %v3879 = vpop.permute.xlu0 %3878
        %3880 = vrot.lane.b32.xlu0 %v3412, 64
        %v3881 = vpop.permute.xlu0 %3880
        %3882 = vrot.lane.b32.xlu0 %v3414, 64
        %v3883 = vpop.permute.xlu0 %3882
        %3884 = vrot.lane.b32.xlu0 %v3417, 64
        %v3885 = vpop.permute.xlu0 %3884
        %3886 = vrot.lane.b32.xlu0 %v3419, 64
        %v3887 = vpop.permute.xlu0 %3886
        %3888 = vrot.lane.b32.xlu0 %v3422, 64
        %v3889 = vpop.permute.xlu0 %3888
        %3890 = vrot.lane.b32.xlu0 %v3424, 64
        %v3891 = vpop.permute.xlu0 %3890
        %3892 = vrot.lane.b32.xlu0 %v3504, 64
        %v3893 = vpop.permute.xlu0 %3892
        %3894 = vrot.lane.b32.xlu0 %v3506, 64
        %v3895 = vpop.permute.xlu0 %3894
        %3928 = vrot.lane.b32.xlu0 %v3427, 80
        %v3929 = vpop.permute.xlu0 %3928
        %3930 = vrot.lane.b32.xlu0 %v3429, 80
        %v3931 = vpop.permute.xlu0 %3930
        %3932 = vrot.lane.b32.xlu0 %v3432, 80
        %v3933 = vpop.permute.xlu0 %3932
        %3934 = vrot.lane.b32.xlu0 %v3434, 80
        %v3935 = vpop.permute.xlu0 %3934
        %3936 = vrot.lane.b32.xlu0 %v3437, 80
        %v3937 = vpop.permute.xlu0 %3936
        %3938 = vrot.lane.b32.xlu0 %v3439, 80
        %v3939 = vpop.permute.xlu0 %3938
        %3940 = vrot.lane.b32.xlu0 %v3442, 80
        %v3941 = vpop.permute.xlu0 %3940
        %3942 = vrot.lane.b32.xlu0 %v3444, 80
        %v3943 = vpop.permute.xlu0 %3942
        %3944 = vrot.lane.b32.xlu0 %v3447, 80
        %v3945 = vpop.permute.xlu0 %3944
        %3946 = vrot.lane.b32.xlu0 %v3449, 80
        %v3947 = vpop.permute.xlu0 %3946
        %3948 = vrot.lane.b32.xlu0 %v3452, 80
        %v3949 = vpop.permute.xlu0 %3948
        %3950 = vrot.lane.b32.xlu0 %v3454, 80
        %v3951 = vpop.permute.xlu0 %3950
        %3952 = vrot.lane.b32.xlu0 %v3457, 80
        %v3953 = vpop.permute.xlu0 %3952
        %3954 = vrot.lane.b32.xlu0 %v3459, 80
        %v3955 = vpop.permute.xlu0 %3954
        %3956 = vrot.lane.b32.xlu0 %v3462, 80
        %v3957 = vpop.permute.xlu0 %3956
        %3958 = vrot.lane.b32.xlu0 %v3464, 80
        %v3959 = vpop.permute.xlu0 %3958
        %3960 = vrot.lane.b32.xlu0 %v3467, 80
        %v3961 = vpop.permute.xlu0 %3960
        %3962 = vrot.lane.b32.xlu0 %v3469, 80
        %v3963 = vpop.permute.xlu0 %3962
        %3964 = vrot.lane.b32.xlu0 %v3472, 80
        %v3965 = vpop.permute.xlu0 %3964
        %3966 = vrot.lane.b32.xlu0 %v3474, 80
        %v3967 = vpop.permute.xlu0 %3966
        %3968 = vrot.lane.b32.xlu0 %v3477, 80
        %v3969 = vpop.permute.xlu0 %3968
        %3970 = vrot.lane.b32.xlu0 %v3479, 80
        %v3971 = vpop.permute.xlu0 %3970
        %3972 = vrot.lane.b32.xlu0 %v3482, 80
        %v3973 = vpop.permute.xlu0 %3972
        %3974 = vrot.lane.b32.xlu0 %v3484, 80
        %v3975 = vpop.permute.xlu0 %3974
        %3976 = vrot.lane.b32.xlu0 %v3487, 80
        %v3977 = vpop.permute.xlu0 %3976
        %3978 = vrot.lane.b32.xlu0 %v3489, 80
        %v3979 = vpop.permute.xlu0 %3978
        %3980 = vrot.lane.b32.xlu0 %v3492, 80
        %v3981 = vpop.permute.xlu0 %3980
        %3982 = vrot.lane.b32.xlu0 %v3494, 80
        %v3983 = vpop.permute.xlu0 %3982
        %3984 = vrot.lane.b32.xlu0 %v3497, 80
        %v3985 = vpop.permute.xlu0 %3984
        %3986 = vrot.lane.b32.xlu0 %v3499, 80
        %v3987 = vpop.permute.xlu0 %3986
        %3988 = vrot.lane.b32.xlu0 %v3509, 80
        %v3989 = vpop.permute.xlu0 %3988
        %3990 = vrot.lane.b32.xlu0 %v3511, 80
        %v3991 = vpop.permute.xlu0 %3990
        %4024 = vrot.lane.b32.xlu0 %v3289, 96
        %v4025 = vpop.permute.xlu0 %4024
        %4026 = vrot.lane.b32.xlu0 %v3198, 96
        %v4027 = vpop.permute.xlu0 %4026
        %4028 = vrot.lane.b32.xlu0 %v3290, 96
        %v4029 = vpop.permute.xlu0 %4028
        %4030 = vrot.lane.b32.xlu0 %v3201, 96
        %v4031 = vpop.permute.xlu0 %4030
        %4032 = vrot.lane.b32.xlu0 %v3291, 96
        %v4033 = vpop.permute.xlu0 %4032
        %4034 = vrot.lane.b32.xlu0 %v3204, 96
        %v4035 = vpop.permute.xlu0 %4034
        %4036 = vrot.lane.b32.xlu0 %v3292, 96
        %v4037 = vpop.permute.xlu0 %4036
        %4038 = vrot.lane.b32.xlu0 %v3207, 96
        %v4039 = vpop.permute.xlu0 %4038
        %4040 = vrot.lane.b32.xlu0 %v3293, 96
        %v4041 = vpop.permute.xlu0 %4040
        %4042 = vrot.lane.b32.xlu0 %v3210, 96
        %v4043 = vpop.permute.xlu0 %4042
        %4044 = vrot.lane.b32.xlu0 %v3294, 96
        %v4045 = vpop.permute.xlu0 %4044
        %4046 = vrot.lane.b32.xlu0 %v3213, 96
        %v4047 = vpop.permute.xlu0 %4046
        %4048 = vrot.lane.b32.xlu0 %v3295, 96
        %v4049 = vpop.permute.xlu0 %4048
        %4050 = vrot.lane.b32.xlu0 %v3216, 96
        %v4051 = vpop.permute.xlu0 %4050
        %4052 = vrot.lane.b32.xlu0 %v3296, 96
        %v4053 = vpop.permute.xlu0 %4052
        %4054 = vrot.lane.b32.xlu0 %v3219, 96
        %v4055 = vpop.permute.xlu0 %4054
        %4056 = vrot.lane.b32.xlu0 %v3297, 96
        %v4057 = vpop.permute.xlu0 %4056
        %4058 = vrot.lane.b32.xlu0 %v3222, 96
        %v4059 = vpop.permute.xlu0 %4058
        %4060 = vrot.lane.b32.xlu0 %v3298, 96
        %v4061 = vpop.permute.xlu0 %4060
        %4062 = vrot.lane.b32.xlu0 %v3225, 96
        %v4063 = vpop.permute.xlu0 %4062
        %4064 = vrot.lane.b32.xlu0 %v3299, 96
        %v4065 = vpop.permute.xlu0 %4064
        %4066 = vrot.lane.b32.xlu0 %v3228, 96
        %v4067 = vpop.permute.xlu0 %4066
        %4068 = vrot.lane.b32.xlu0 %v3300, 96
        %v4069 = vpop.permute.xlu0 %4068
        %4070 = vrot.lane.b32.xlu0 %v3231, 96
        %v4071 = vpop.permute.xlu0 %4070
        %4072 = vrot.lane.b32.xlu0 %v3301, 96
        %v4073 = vpop.permute.xlu0 %4072
        %4074 = vrot.lane.b32.xlu0 %v3234, 96
        %v4075 = vpop.permute.xlu0 %4074
        %4076 = vrot.lane.b32.xlu0 %v3302, 96
        %v4077 = vpop.permute.xlu0 %4076
        %4078 = vrot.lane.b32.xlu0 %v3237, 96
        %v4079 = vpop.permute.xlu0 %4078
        %4080 = vrot.lane.b32.xlu0 %v3303, 96
        %v4081 = vpop.permute.xlu0 %4080
        %4082 = vrot.lane.b32.xlu0 %v3240, 96
        %v4083 = vpop.permute.xlu0 %4082
        %4084 = vrot.lane.b32.xlu0 %v1322, 96
        %v4085 = vpop.permute.xlu0 %4084
        %4086 = vrot.lane.b32.xlu0 %v1224, 96
        %v4087 = vpop.permute.xlu0 %4086
        %4120 = vrot.lane.b32.xlu0 %v3357, 112
        %v4121 = vpop.permute.xlu0 %4120
        %4122 = vrot.lane.b32.xlu0 %v3359, 112
        %v4123 = vpop.permute.xlu0 %4122
        %4124 = vrot.lane.b32.xlu0 %v3362, 112
        %v4125 = vpop.permute.xlu0 %4124
        %4126 = vrot.lane.b32.xlu0 %v3364, 112
        %v4127 = vpop.permute.xlu0 %4126
        %4128 = vrot.lane.b32.xlu0 %v3367, 112
        %v4129 = vpop.permute.xlu0 %4128
        %4130 = vrot.lane.b32.xlu0 %v3369, 112
        %v4131 = vpop.permute.xlu0 %4130
        %4132 = vrot.lane.b32.xlu0 %v3372, 112
        %v4133 = vpop.permute.xlu0 %4132
        %4134 = vrot.lane.b32.xlu0 %v3374, 112
        %v4135 = vpop.permute.xlu0 %4134
        %4136 = vrot.lane.b32.xlu0 %v3377, 112
        %v4137 = vpop.permute.xlu0 %4136
        %4138 = vrot.lane.b32.xlu0 %v3379, 112
        %v4139 = vpop.permute.xlu0 %4138
        %4140 = vrot.lane.b32.xlu0 %v3382, 112
        %v4141 = vpop.permute.xlu0 %4140
        %4142 = vrot.lane.b32.xlu0 %v3384, 112
        %v4143 = vpop.permute.xlu0 %4142
        %4144 = vrot.lane.b32.xlu0 %v3387, 112
        %v4145 = vpop.permute.xlu0 %4144
        %4146 = vrot.lane.b32.xlu0 %v3389, 112
        %v4147 = vpop.permute.xlu0 %4146
        %4148 = vrot.lane.b32.xlu0 %v3392, 112
        %v4149 = vpop.permute.xlu0 %4148
        %4150 = vrot.lane.b32.xlu0 %v3394, 112
        %v4151 = vpop.permute.xlu0 %4150
        %4152 = vrot.lane.b32.xlu0 %v3397, 112
        %v4153 = vpop.permute.xlu0 %4152
        %4154 = vrot.lane.b32.xlu0 %v3399, 112
        %v4155 = vpop.permute.xlu0 %4154
        %4156 = vrot.lane.b32.xlu0 %v3402, 112
        %v4157 = vpop.permute.xlu0 %4156
        %4158 = vrot.lane.b32.xlu0 %v3404, 112
        %v4159 = vpop.permute.xlu0 %4158
        %4160 = vrot.lane.b32.xlu0 %v3407, 112
        %v4161 = vpop.permute.xlu0 %4160
        %4162 = vrot.lane.b32.xlu0 %v3409, 112
        %v4163 = vpop.permute.xlu0 %4162
        %4164 = vrot.lane.b32.xlu0 %v3412, 112
        %v4165 = vpop.permute.xlu0 %4164
        %4166 = vrot.lane.b32.xlu0 %v3414, 112
        %v4167 = vpop.permute.xlu0 %4166
        %4168 = vrot.lane.b32.xlu0 %v3417, 112
        %v4169 = vpop.permute.xlu0 %4168
        %4170 = vrot.lane.b32.xlu0 %v3419, 112
        %v4171 = vpop.permute.xlu0 %4170
        %4172 = vrot.lane.b32.xlu0 %v3422, 112
        %v4173 = vpop.permute.xlu0 %4172
        %4174 = vrot.lane.b32.xlu0 %v3424, 112
        %v4175 = vpop.permute.xlu0 %4174
        %4176 = vrot.lane.b32.xlu0 %v3504, 112
        %v4177 = vpop.permute.xlu0 %4176
        %4178 = vrot.lane.b32.xlu0 %v3506, 112
        %v4179 = vpop.permute.xlu0 %4178
        %4180 = vrot.lane.b32.xlu0 %v1391, 112
        %v4181 = vpop.permute.xlu0 %4180
        %4182 = vrot.lane.b32.xlu0 %v1393, 112
        %v4183 = vpop.permute.xlu0 %4182
        %v4216 = vsel %vm644, %v1322, %v3545
        %v4217 = vsel %vm644, %v1224, %v3547
        %v4218 = vsel %vm644, %v3288, %v3549
        %v4219 = vsel %vm644, %v3195, %v3551
        %v4220 = vsel %vm644, %v3289, %v3553
        %v4221 = vsel %vm644, %v3198, %v3555
        %v4222 = vsel %vm644, %v3290, %v3557
        %v4223 = vsel %vm644, %v3201, %v3559
        %v4224 = vsel %vm644, %v3291, %v3561
        %v4225 = vsel %vm644, %v3204, %v3563
        %v4226 = vsel %vm644, %v3292, %v3565
        %v4227 = vsel %vm644, %v3207, %v3567
        %v4228 = vsel %vm644, %v3293, %v3569
        %v4229 = vsel %vm644, %v3210, %v3571
        %v4230 = vsel %vm644, %v3294, %v3573
        %v4231 = vsel %vm644, %v3213, %v3575
        %v4232 = vsel %vm644, %v3295, %v3577
        %v4233 = vsel %vm644, %v3216, %v3579
        %v4234 = vsel %vm644, %v3296, %v3581
        %v4235 = vsel %vm644, %v3219, %v3583
        %v4236 = vsel %vm644, %v3297, %v3585
        %v4237 = vsel %vm644, %v3222, %v3587
        %v4238 = vsel %vm644, %v3298, %v3589
        %v4239 = vsel %vm644, %v3225, %v3591
        %v4240 = vsel %vm644, %v3299, %v3593
        %v4241 = vsel %vm644, %v3228, %v3595
        %v4242 = vsel %vm644, %v3300, %v3597
        %v4243 = vsel %vm644, %v3231, %v3599
        %v4244 = vsel %vm644, %v3301, %v3601
        %v4245 = vsel %vm644, %v3234, %v3603
        %v4246 = vsel %vm644, %v3302, %v3605
        %v4247 = vsel %vm644, %v3237, %v3607
        %vm4248 = vcmask 261120
        %v4249 = vsel %vm4248, %v4216, %v3641
        %v4250 = vsel %vm4248, %v4217, %v3643
        %v4251 = vsel %vm4248, %v4218, %v3645
        %v4252 = vsel %vm4248, %v4219, %v3647
        %v4253 = vsel %vm4248, %v4220, %v3649
        %v4254 = vsel %vm4248, %v4221, %v3651
        %v4255 = vsel %vm4248, %v4222, %v3653
        %v4256 = vsel %vm4248, %v4223, %v3655
        %v4257 = vsel %vm4248, %v4224, %v3657
        %v4258 = vsel %vm4248, %v4225, %v3659
        %v4259 = vsel %vm4248, %v4226, %v3661
        %v4260 = vsel %vm4248, %v4227, %v3663
        %v4261 = vsel %vm4248, %v4228, %v3665
        %v4262 = vsel %vm4248, %v4229, %v3667
        %v4263 = vsel %vm4248, %v4230, %v3669
        %v4264 = vsel %vm4248, %v4231, %v3671
        %v4265 = vsel %vm4248, %v4232, %v3673
        %v4266 = vsel %vm4248, %v4233, %v3675
        %v4267 = vsel %vm4248, %v4234, %v3677
        %v4268 = vsel %vm4248, %v4235, %v3679
        %v4269 = vsel %vm4248, %v4236, %v3681
        %v4270 = vsel %vm4248, %v4237, %v3683
        %v4271 = vsel %vm4248, %v4238, %v3685
        %v4272 = vsel %vm4248, %v4239, %v3687
        %v4273 = vsel %vm4248, %v4240, %v3689
        %v4274 = vsel %vm4248, %v4241, %v3691
        %v4275 = vsel %vm4248, %v4242, %v3693
        %v4276 = vsel %vm4248, %v4243, %v3695
        %v4277 = vsel %vm4248, %v4244, %v3697
        %v4278 = vsel %vm4248, %v4245, %v3699
        %v4279 = vsel %vm4248, %v4246, %v3701
        %v4280 = vsel %vm4248, %v4247, %v3703
        %v4281 = vsel %vm2363, %v4249, %v3737
        %v4282 = vsel %vm2363, %v4250, %v3739
        %v4283 = vsel %vm2363, %v4251, %v3741
        %v4284 = vsel %vm2363, %v4252, %v3743
        %v4285 = vsel %vm2363, %v4253, %v3745
        %v4286 = vsel %vm2363, %v4254, %v3747
        %v4287 = vsel %vm2363, %v4255, %v3749
        %v4288 = vsel %vm2363, %v4256, %v3751
        %v4289 = vsel %vm2363, %v4257, %v3753
        %v4290 = vsel %vm2363, %v4258, %v3755
        %v4291 = vsel %vm2363, %v4259, %v3757
        %v4292 = vsel %vm2363, %v4260, %v3759
        %v4293 = vsel %vm2363, %v4261, %v3761
        %v4294 = vsel %vm2363, %v4262, %v3763
        %v4295 = vsel %vm2363, %v4263, %v3765
        %v4296 = vsel %vm2363, %v4264, %v3767
        %v4297 = vsel %vm2363, %v4265, %v3769
        %v4298 = vsel %vm2363, %v4266, %v3771
        %v4299 = vsel %vm2363, %v4267, %v3773
        %v4300 = vsel %vm2363, %v4268, %v3775
        %v4301 = vsel %vm2363, %v4269, %v3777
        %v4302 = vsel %vm2363, %v4270, %v3779
        %v4303 = vsel %vm2363, %v4271, %v3781
        %v4304 = vsel %vm2363, %v4272, %v3783
        %v4305 = vsel %vm2363, %v4273, %v3785
        %v4306 = vsel %vm2363, %v4274, %v3787
        %v4307 = vsel %vm2363, %v4275, %v3789
        %v4308 = vsel %vm2363, %v4276, %v3791
        %v4309 = vsel %vm2363, %v4277, %v3793
        %v4310 = vsel %vm2363, %v4278, %v3795
        %v4311 = vsel %vm2363, %v4279, %v3797
        %v4312 = vsel %vm2363, %v4280, %v3799
        %v4313 = vsel %vm2560, %v4281, %v3833
        %v4314 = vsel %vm2560, %v4282, %v3835
        %v4315 = vsel %vm2560, %v4283, %v3837
        %v4316 = vsel %vm2560, %v4284, %v3839
        %v4317 = vsel %vm2560, %v4285, %v3841
        %v4318 = vsel %vm2560, %v4286, %v3843
        %v4319 = vsel %vm2560, %v4287, %v3845
        %v4320 = vsel %vm2560, %v4288, %v3847
        %v4321 = vsel %vm2560, %v4289, %v3849
        %v4322 = vsel %vm2560, %v4290, %v3851
        %v4323 = vsel %vm2560, %v4291, %v3853
        %v4324 = vsel %vm2560, %v4292, %v3855
        %v4325 = vsel %vm2560, %v4293, %v3857
        %v4326 = vsel %vm2560, %v4294, %v3859
        %v4327 = vsel %vm2560, %v4295, %v3861
        %v4328 = vsel %vm2560, %v4296, %v3863
        %v4329 = vsel %vm2560, %v4297, %v3865
        %v4330 = vsel %vm2560, %v4298, %v3867
        %v4331 = vsel %vm2560, %v4299, %v3869
        %v4332 = vsel %vm2560, %v4300, %v3871
        %v4333 = vsel %vm2560, %v4301, %v3873
        %v4334 = vsel %vm2560, %v4302, %v3875
        %v4335 = vsel %vm2560, %v4303, %v3877
        %v4336 = vsel %vm2560, %v4304, %v3879
        %v4337 = vsel %vm2560, %v4305, %v3881
        %v4338 = vsel %vm2560, %v4306, %v3883
        %v4339 = vsel %vm2560, %v4307, %v3885
        %v4340 = vsel %vm2560, %v4308, %v3887
        %v4341 = vsel %vm2560, %v4309, %v3889
        %v4342 = vsel %vm2560, %v4310, %v3891
        %v4343 = vsel %vm2560, %v4311, %v3893
        %v4344 = vsel %vm2560, %v4312, %v3895
        %vm4345 = vcmask 654336
        %v4346 = vsel %vm4345, %v4313, %v3929
        %v4347 = vsel %vm4345, %v4314, %v3931
        %v4348 = vsel %vm4345, %v4315, %v3933
        %v4349 = vsel %vm4345, %v4316, %v3935
        %v4350 = vsel %vm4345, %v4317, %v3937
        %v4351 = vsel %vm4345, %v4318, %v3939
        %v4352 = vsel %vm4345, %v4319, %v3941
        %v4353 = vsel %vm4345, %v4320, %v3943
        %v4354 = vsel %vm4345, %v4321, %v3945
        %v4355 = vsel %vm4345, %v4322, %v3947
        %v4356 = vsel %vm4345, %v4323, %v3949
        %v4357 = vsel %vm4345, %v4324, %v3951
        %v4358 = vsel %vm4345, %v4325, %v3953
        %v4359 = vsel %vm4345, %v4326, %v3955
        %v4360 = vsel %vm4345, %v4327, %v3957
        %v4361 = vsel %vm4345, %v4328, %v3959
        %v4362 = vsel %vm4345, %v4329, %v3961
        %v4363 = vsel %vm4345, %v4330, %v3963
        %v4364 = vsel %vm4345, %v4331, %v3965
        %v4365 = vsel %vm4345, %v4332, %v3967
        %v4366 = vsel %vm4345, %v4333, %v3969
        %v4367 = vsel %vm4345, %v4334, %v3971
        %v4368 = vsel %vm4345, %v4335, %v3973
        %v4369 = vsel %vm4345, %v4336, %v3975
        %v4370 = vsel %vm4345, %v4337, %v3977
        %v4371 = vsel %vm4345, %v4338, %v3979
        %v4372 = vsel %vm4345, %v4339, %v3981
        %v4373 = vsel %vm4345, %v4340, %v3983
        %v4374 = vsel %vm4345, %v4341, %v3985
        %v4375 = vsel %vm4345, %v4342, %v3987
        %v4376 = vsel %vm4345, %v4343, %v3989
        %v4377 = vsel %vm4345, %v4344, %v3991
        %v4378 = vsel %vm2429, %v4346, %v4025
        %v4379 = vsel %vm2429, %v4347, %v4027
        %v4380 = vsel %vm2429, %v4348, %v4029
        %v4381 = vsel %vm2429, %v4349, %v4031
        %v4382 = vsel %vm2429, %v4350, %v4033
        %v4383 = vsel %vm2429, %v4351, %v4035
        %v4384 = vsel %vm2429, %v4352, %v4037
        %v4385 = vsel %vm2429, %v4353, %v4039
        %v4386 = vsel %vm2429, %v4354, %v4041
        %v4387 = vsel %vm2429, %v4355, %v4043
        %v4388 = vsel %vm2429, %v4356, %v4045
        %v4389 = vsel %vm2429, %v4357, %v4047
        %v4390 = vsel %vm2429, %v4358, %v4049
        %v4391 = vsel %vm2429, %v4359, %v4051
        %v4392 = vsel %vm2429, %v4360, %v4053
        %v4393 = vsel %vm2429, %v4361, %v4055
        %v4394 = vsel %vm2429, %v4362, %v4057
        %v4395 = vsel %vm2429, %v4363, %v4059
        %v4396 = vsel %vm2429, %v4364, %v4061
        %v4397 = vsel %vm2429, %v4365, %v4063
        %v4398 = vsel %vm2429, %v4366, %v4065
        %v4399 = vsel %vm2429, %v4367, %v4067
        %v4400 = vsel %vm2429, %v4368, %v4069
        %v4401 = vsel %vm2429, %v4369, %v4071
        %v4402 = vsel %vm2429, %v4370, %v4073
        %v4403 = vsel %vm2429, %v4371, %v4075
        %v4404 = vsel %vm2429, %v4372, %v4077
        %v4405 = vsel %vm2429, %v4373, %v4079
        %v4406 = vsel %vm2429, %v4374, %v4081
        %v4407 = vsel %vm2429, %v4375, %v4083
        %v4408 = vsel %vm2429, %v4376, %v4085
        %v4409 = vsel %vm2429, %v4377, %v4087
        %vm4410 = vcmask 916480
        %v4411 = vsel %vm4410, %v4378, %v4121
        %v4412 = vsel %vm4410, %v4379, %v4123
        %v4413 = vsel %vm4410, %v4380, %v4125
        %v4414 = vsel %vm4410, %v4381, %v4127
        %v4415 = vsel %vm4410, %v4382, %v4129
        %v4416 = vsel %vm4410, %v4383, %v4131
        %v4417 = vsel %vm4410, %v4384, %v4133
        %v4418 = vsel %vm4410, %v4385, %v4135
        %v4419 = vsel %vm4410, %v4386, %v4137
        %v4420 = vsel %vm4410, %v4387, %v4139
        %v4421 = vsel %vm4410, %v4388, %v4141
        %v4422 = vsel %vm4410, %v4389, %v4143
        %v4423 = vsel %vm4410, %v4390, %v4145
        %v4424 = vsel %vm4410, %v4391, %v4147
        %v4425 = vsel %vm4410, %v4392, %v4149
        %v4426 = vsel %vm4410, %v4393, %v4151
        %v4427 = vsel %vm4410, %v4394, %v4153
        %v4428 = vsel %vm4410, %v4395, %v4155
        %v4429 = vsel %vm4410, %v4396, %v4157
        %v4430 = vsel %vm4410, %v4397, %v4159
        %v4431 = vsel %vm4410, %v4398, %v4161
        %v4432 = vsel %vm4410, %v4399, %v4163
        %v4433 = vsel %vm4410, %v4400, %v4165
        %v4434 = vsel %vm4410, %v4401, %v4167
        %v4435 = vsel %vm4410, %v4402, %v4169
        %v4436 = vsel %vm4410, %v4403, %v4171
        %v4437 = vsel %vm4410, %v4404, %v4173
        %v4438 = vsel %vm4410, %v4405, %v4175
        %v4439 = vsel %vm4410, %v4406, %v4177
        %v4440 = vsel %vm4410, %v4407, %v4179
        %v4441 = vsel %vm4410, %v4408, %v4181
        %v4442 = vsel %vm4410, %v4409, %v4183
        %v4443 = vpack.c.bf16 %v4412, %v4411
        %v4444 = vpack.c.bf16 %v3434, %v3432
        %v4445 = vpack.c.bf16 %v4414, %v4413
        %v4446 = vpack.c.bf16 %v3439, %v3437
        %v4447 = vpack.c.bf16 %v4416, %v4415
        %v4448 = vpack.c.bf16 %v3444, %v3442
        %v4449 = vpack.c.bf16 %v4418, %v4417
        %v4450 = vpack.c.bf16 %v3449, %v3447
        %v4451 = vpack.c.bf16 %v4420, %v4419
        %v4452 = vpack.c.bf16 %v3454, %v3452
        %v4453 = vpack.c.bf16 %v4422, %v4421
        %v4454 = vpack.c.bf16 %v3459, %v3457
        %v4455 = vpack.c.bf16 %v4424, %v4423
        %v4456 = vpack.c.bf16 %v3464, %v3462
        %v4457 = vpack.c.bf16 %v4426, %v4425
        %v4458 = vpack.c.bf16 %v3469, %v3467
        %v4459 = vpack.c.bf16 %v4428, %v4427
        %v4460 = vpack.c.bf16 %v3474, %v3472
        %v4461 = vpack.c.bf16 %v4430, %v4429
        %v4462 = vpack.c.bf16 %v3479, %v3477
        %v4463 = vpack.c.bf16 %v4432, %v4431
        %v4464 = vpack.c.bf16 %v3484, %v3482
        %v4465 = vpack.c.bf16 %v4434, %v4433
        %v4466 = vpack.c.bf16 %v3489, %v3487
        %v4467 = vpack.c.bf16 %v4436, %v4435
        %v4468 = vpack.c.bf16 %v3494, %v3492
        %v4469 = vpack.c.bf16 %v4438, %v4437
        %v4470 = vpack.c.bf16 %v3499, %v3497
        %v4471 = vpack.c.bf16 %v4440, %v4439
        %v4472 = vpack.c.bf16 %v3511, %v3509
        %v4473 = vpack.c.bf16 %v4442, %v4441
        %v4474 = vpack.c.bf16 %v1474, %v1472
        %v4493 = vunpack.c.l.b16 %v3143
        %v4494 = vunpack.c.l.b16 %v3144
        %v4495 = vunpack.c.l.b16 %v3145
        %v4496 = vunpack.c.l.b16 %v3146
        %v4497 = vunpack.c.l.b16 %v3147
        %v4498 = vunpack.c.l.b16 %v3148
        %v4499 = vunpack.c.l.b16 %v3149
        %v4500 = vunpack.c.l.b16 %v3150
        %v4501 = vunpack.c.l.b16 %v3151
        %v4502 = vunpack.c.l.b16 %v3152
        %v4503 = vunpack.c.l.b16 %v3153
        %v4504 = vunpack.c.l.b16 %v3154
        %v4505 = vunpack.c.l.b16 %v3155
        %v4506 = vunpack.c.l.b16 %v3156
        %v4507 = vunpack.c.l.b16 %v3157
        %v4508 = vunpack.c.l.b16 %v3158
        %v4509 = vunpack.c.l.b16 %v3159
        %v4510 = vunpack.c.l.b16 %v3160
        %v4511 = vpack.c.b16 %v4494, %v4493
        %v4512 = vpack.c.b16 %v4496, %v4495
        %v4513 = vpack.c.b16 %v4498, %v4497
        %v4514 = vpack.c.b16 %v4500, %v4499
        %v4515 = vpack.c.b16 %v4502, %v4501
        %v4516 = vpack.c.b16 %v4504, %v4503
        %v4517 = vpack.c.b16 %v4506, %v4505
        %v4518 = vpack.c.b16 %v4508, %v4507
        %v4519 = vpack.c.b16 %v4510, %v4509
        %v4530 = vsel %vm644, %v4444, 0
        %v4533 = vsel %vm644, %v4446, 0
        %v4536 = vsel %vm644, %v4448, 0
        %v4539 = vsel %vm644, %v4450, 0
        %v4542 = vsel %vm644, %v4452, 0
        %v4545 = vsel %vm644, %v4454, 0
        %v4548 = vsel %vm644, %v4456, 0
        %v4551 = vsel %vm644, %v4458, 0
        %v4554 = vsel %vm644, %v4460, 0
        %v4557 = vsel %vm644, %v4462, 0
        %v4560 = vsel %vm644, %v4464, 0
        %v4563 = vsel %vm644, %v4466, 0
        %v4566 = vsel %vm644, %v4468, 0
        %v4569 = vsel %vm644, %v4470, 0
        %v4572 = vsel %vm644, %v4472, 0
        %v4575 = vsel %vm644, %v4474, 0
        %4577 = vmatprep.subr.bf16.mxu0 0
        %4578 = vmatpush1.bf16.msra.mxu0 %v4518
        %4579 = vmatprep.subr.bf16.mxu0 0
        %4580 = vmatpush1.bf16.msra.mxu0 %v4517
        %4581 = vmatprep.subr.bf16.mxu0 0
        %4582 = vmatpush1.bf16.msra.mxu0 %v4516
        %4583 = vmatprep.subr.bf16.mxu0 0
        %4584 = vmatpush1.bf16.msra.mxu0 %v4515
        %4585 = vmatprep.subr.bf16.mxu0 0
        %4586 = vmatpush1.bf16.msra.mxu0 %v4514
        %4587 = vmatprep.subr.bf16.mxu0 0
        %4588 = vmatpush1.bf16.msra.mxu0 %v4513
        %4589 = vmatprep.subr.bf16.mxu0 0
        %4590 = vmatpush1.bf16.msra.mxu0 %v4512
        %4591 = vmatprep.subr.bf16.mxu0 0
        %4592 = vmatpush1.bf16.msra.mxu0 %v4511
        %4593 = vmatprep.subr.bf16.mxu0 0
        %4594 = vmatpush2.bf16.msra.mxu0 0
        %4595 = vmatprep.subr.bf16.mxu0 0
        %4596 = vmatpush2.bf16.msra.mxu0 0
        %4597 = vmatprep.subr.bf16.mxu0 0
        %4598 = vmatpush2.bf16.msra.mxu0 0
        %4599 = vmatprep.subr.bf16.mxu0 0
        %4600 = vmatpush2.bf16.msra.mxu0 0
        %4601 = vmatprep.subr.bf16.mxu0 0
        %4602 = vmatpush2.bf16.msra.mxu0 0
        %4603 = vmatprep.subr.bf16.mxu0 0
        %4604 = vmatpush2.bf16.msra.mxu0 0
        %4605 = vmatprep.subr.bf16.mxu0 0
        %4606 = vmatpush2.bf16.msra.mxu0 0
        %4607 = vmatprep.subr.bf16.mxu0 0
        %4608 = vmatpush2.bf16.msra.mxu0 %v4519
        %4609 = vmatprep.mubr.bf16.mxu0 %v4530
        %4610 = vmatmul.mubr.bf16.gmra.mxu0 %v4443
        %v4611 = vpop.f32.mrf.mxu0
        %v4612 = vadd.f32 %v728, %v4611
        %v4613 = vpop.f32.mrf.mxu0
        %v4614 = vpop.f32.mrf.mxu0
        %v4615 = vadd.f32 %v731, %v4614
        %v4616 = vpop.f32.mrf.mxu0
        %4617 = vmatprep.mubr.bf16.mxu0 %v4533
        %4618 = vmatmul.mubr.bf16.gmra.mxu0 %v4445
        %v4619 = vpop.f32.mrf.mxu0
        %v4620 = vadd.f32 %v736, %v4619
        %v4621 = vpop.f32.mrf.mxu0
        %v4622 = vpop.f32.mrf.mxu0
        %v4623 = vadd.f32 %v739, %v4622
        %v4624 = vpop.f32.mrf.mxu0
        %4625 = vmatprep.mubr.bf16.mxu0 %v4536
        %4626 = vmatmul.mubr.bf16.gmra.mxu0 %v4447
        %v4627 = vpop.f32.mrf.mxu0
        %v4628 = vadd.f32 %v744, %v4627
        %v4629 = vpop.f32.mrf.mxu0
        %v4630 = vpop.f32.mrf.mxu0
        %v4631 = vadd.f32 %v747, %v4630
        %v4632 = vpop.f32.mrf.mxu0
        %4633 = vmatprep.mubr.bf16.mxu0 %v4539
        %4634 = vmatmul.mubr.bf16.gmra.mxu0 %v4449
        %v4635 = vpop.f32.mrf.mxu0
        %v4636 = vadd.f32 %v752, %v4635
        %v4637 = vpop.f32.mrf.mxu0
        %v4638 = vpop.f32.mrf.mxu0
        %v4639 = vadd.f32 %v755, %v4638
        %v4640 = vpop.f32.mrf.mxu0
        %4641 = vmatprep.mubr.bf16.mxu0 %v4542
        %4642 = vmatmul.mubr.bf16.gmra.mxu0 %v4451
        %v4643 = vpop.f32.mrf.mxu0
        %v4644 = vadd.f32 %v760, %v4643
        %v4645 = vpop.f32.mrf.mxu0
        %v4646 = vpop.f32.mrf.mxu0
        %v4647 = vadd.f32 %v763, %v4646
        %v4648 = vpop.f32.mrf.mxu0
        %4649 = vmatprep.mubr.bf16.mxu0 %v4545
        %4650 = vmatmul.mubr.bf16.gmra.mxu0 %v4453
        %v4651 = vpop.f32.mrf.mxu0
        %v4652 = vadd.f32 %v768, %v4651
        %v4653 = vpop.f32.mrf.mxu0
        %v4654 = vpop.f32.mrf.mxu0
        %v4655 = vadd.f32 %v771, %v4654
        %v4656 = vpop.f32.mrf.mxu0
        %4657 = vmatprep.mubr.bf16.mxu0 %v4548
        %4658 = vmatmul.mubr.bf16.gmra.mxu0 %v4455
        %v4659 = vpop.f32.mrf.mxu0
        %v4660 = vadd.f32 %v776, %v4659
        %v4661 = vpop.f32.mrf.mxu0
        %v4662 = vpop.f32.mrf.mxu0
        %v4663 = vadd.f32 %v779, %v4662
        %v4664 = vpop.f32.mrf.mxu0
        %4665 = vmatprep.mubr.bf16.mxu0 %v4551
        %4666 = vmatmul.mubr.bf16.gmra.mxu0 %v4457
        %v4667 = vpop.f32.mrf.mxu0
        %v4668 = vadd.f32 %v784, %v4667
        %v4669 = vpop.f32.mrf.mxu0
        %v4670 = vpop.f32.mrf.mxu0
        %v4671 = vadd.f32 %v787, %v4670
        %v4672 = vpop.f32.mrf.mxu0
        %4673 = vmatprep.mubr.bf16.mxu0 %v4554
        %4674 = vmatmul.mubr.bf16.gmra.mxu0 %v4459
        %v4675 = vpop.f32.mrf.mxu0
        %v4676 = vadd.f32 %v792, %v4675
        %v4677 = vpop.f32.mrf.mxu0
        %v4678 = vpop.f32.mrf.mxu0
        %v4679 = vadd.f32 %v795, %v4678
        %v4680 = vpop.f32.mrf.mxu0
        %4681 = vmatprep.mubr.bf16.mxu0 %v4557
        %4682 = vmatmul.mubr.bf16.gmra.mxu0 %v4461
        %v4683 = vpop.f32.mrf.mxu0
        %v4684 = vadd.f32 %v800, %v4683
        %v4685 = vpop.f32.mrf.mxu0
        %v4686 = vpop.f32.mrf.mxu0
        %v4687 = vadd.f32 %v803, %v4686
        %v4688 = vpop.f32.mrf.mxu0
        %4689 = vmatprep.mubr.bf16.mxu0 %v4560
        %4690 = vmatmul.mubr.bf16.gmra.mxu0 %v4463
        %v4691 = vpop.f32.mrf.mxu0
        %v4692 = vadd.f32 %v808, %v4691
        %v4693 = vpop.f32.mrf.mxu0
        %v4694 = vpop.f32.mrf.mxu0
        %v4695 = vadd.f32 %v811, %v4694
        %v4696 = vpop.f32.mrf.mxu0
        %4697 = vmatprep.mubr.bf16.mxu0 %v4563
        %4698 = vmatmul.mubr.bf16.gmra.mxu0 %v4465
        %v4699 = vpop.f32.mrf.mxu0
        %v4700 = vadd.f32 %v816, %v4699
        %v4701 = vpop.f32.mrf.mxu0
        %v4702 = vpop.f32.mrf.mxu0
        %v4703 = vadd.f32 %v819, %v4702
        %v4704 = vpop.f32.mrf.mxu0
        %4705 = vmatprep.mubr.bf16.mxu0 %v4566
        %4706 = vmatmul.mubr.bf16.gmra.mxu0 %v4467
        %v4707 = vpop.f32.mrf.mxu0
        %v4708 = vadd.f32 %v824, %v4707
        %v4709 = vpop.f32.mrf.mxu0
        %v4710 = vpop.f32.mrf.mxu0
        %v4711 = vadd.f32 %v827, %v4710
        %v4712 = vpop.f32.mrf.mxu0
        %4713 = vmatprep.mubr.bf16.mxu0 %v4569
        %4714 = vmatmul.mubr.bf16.gmra.mxu0 %v4469
        %v4715 = vpop.f32.mrf.mxu0
        %v4716 = vadd.f32 %v832, %v4715
        %v4717 = vpop.f32.mrf.mxu0
        %v4718 = vpop.f32.mrf.mxu0
        %v4719 = vadd.f32 %v835, %v4718
        %v4720 = vpop.f32.mrf.mxu0
        %4721 = vmatprep.mubr.bf16.mxu0 %v4572
        %4722 = vmatmul.mubr.bf16.gmra.mxu0 %v4471
        %v4723 = vpop.f32.mrf.mxu0
        %v4724 = vadd.f32 %v840, %v4723
        %v4725 = vpop.f32.mrf.mxu0
        %v4726 = vpop.f32.mrf.mxu0
        %v4727 = vadd.f32 %v843, %v4726
        %v4728 = vpop.f32.mrf.mxu0
        %4729 = vmatprep.mubr.bf16.mxu0 %v4575
        %4730 = vmatmul.mubr.bf16.gmra.mxu0 %v4473
        %v4731 = vpop.f32.mrf.mxu0
        %v4732 = vadd.f32 %v848, %v4731
        %v4733 = vpop.f32.mrf.mxu0
        %v4734 = vpop.f32.mrf.mxu0
        %v4735 = vadd.f32 %v851, %v4734
        %v4736 = vpop.f32.mrf.mxu0
        %4737 = vdwg.mxu0
        %4738 = vst.msk [vmem:[%s313] sm:$0xff] %vm644, %v4612
        %4739 = vst.msk [vmem:[%s313 + $0x8] sm:$0xff] %vm644, %v4615
        %4740 = vst.msk [vmem:[%s313 + $0x10] sm:$0xff] %vm644, %v4620
        %4741 = vst.msk [vmem:[%s313 + $0x18] sm:$0xff] %vm644, %v4623
        %4742 = vst.msk [vmem:[%s313 + $0x20] sm:$0xff] %vm644, %v4628
        %4743 = vst.msk [vmem:[%s313 + $0x28] sm:$0xff] %vm644, %v4631
        %4744 = vst.msk [vmem:[%s313 + $0x30] sm:$0xff] %vm644, %v4636
        %4745 = vst.msk [vmem:[%s313 + $0x38] sm:$0xff] %vm644, %v4639
        %4746 = vst.msk [vmem:[%s313 + $0x40] sm:$0xff] %vm644, %v4644
        %4747 = vst.msk [vmem:[%s313 + $0x48] sm:$0xff] %vm644, %v4647
        %4748 = vst.msk [vmem:[%s313 + $0x50] sm:$0xff] %vm644, %v4652
        %4749 = vst.msk [vmem:[%s313 + $0x58] sm:$0xff] %vm644, %v4655
        %4750 = vst.msk [vmem:[%s313 + $0x60] sm:$0xff] %vm644, %v4660
        %4751 = vst.msk [vmem:[%s313 + $0x68] sm:$0xff] %vm644, %v4663
        %4752 = vst.msk [vmem:[%s313 + $0x70] sm:$0xff] %vm644, %v4668
        %4753 = vst.msk [vmem:[%s313 + $0x78] sm:$0xff] %vm644, %v4671
        %4754 = vst.msk [vmem:[%s313 + $0x80] sm:$0xff] %vm644, %v4676
        %4755 = vst.msk [vmem:[%s313 + $0x88] sm:$0xff] %vm644, %v4679
        %4756 = vst.msk [vmem:[%s313 + $0x90] sm:$0xff] %vm644, %v4684
        %4757 = vst.msk [vmem:[%s313 + $0x98] sm:$0xff] %vm644, %v4687
        %4758 = vst.msk [vmem:[%s313 + $0xa0] sm:$0xff] %vm644, %v4692
        %4759 = vst.msk [vmem:[%s313 + $0xa8] sm:$0xff] %vm644, %v4695
        %4760 = vst.msk [vmem:[%s313 + $0xb0] sm:$0xff] %vm644, %v4700
        %4761 = vst.msk [vmem:[%s313 + $0xb8] sm:$0xff] %vm644, %v4703
        %4762 = vst.msk [vmem:[%s313 + $0xc0] sm:$0xff] %vm644, %v4708
        %4763 = vst.msk [vmem:[%s313 + $0xc8] sm:$0xff] %vm644, %v4711
        %4764 = vst.msk [vmem:[%s313 + $0xd0] sm:$0xff] %vm644, %v4716
        %4765 = vst.msk [vmem:[%s313 + $0xd8] sm:$0xff] %vm644, %v4719
        %4766 = vst.msk [vmem:[%s313 + $0xe0] sm:$0xff] %vm644, %v4724
        %4767 = vst.msk [vmem:[%s313 + $0xe8] sm:$0xff] %vm644, %v4727
        %4768 = vst.msk [vmem:[%s313 + $0xf0] sm:$0xff] %vm644, %v4732
        %4769 = vst.msk [vmem:[%s313 + $0xf8] sm:$0xff] %vm644, %v4735
        %s4770 = sand.u32 %s208, 1
        %s4771 = scalar_lea.sflag [#allocation3], %s4770
        %s4772 = sand.u32 %s208, 1
        %s4773 = smul.addr %s4772, 256
        %s4774 = scalar_lea.vmem [#allocation2], %s4773
        // Predicated region
        $region53: #{up_block_apply.9} parent=51 // pred_check
          %p4775 = pneg %p218
        $region54: #{up_block_apply.9} parent=51 // pred_check_branch
          %4777 = sbr.rel (%p4775) target = $region56
        $region55: #{up_block_apply.9} parent=51 // pred_region
          %s4779 = ssub.s32 4096, 4096
          %4780 = vsyncadd %s4771, %s4779
          %s4781 = smul.addr %s22, 32
          %s4782 = smul.addr %s4781, 128
          %s4783 = scalar_lea.hbm %s8, %s4782
          %s4784 = sshll.u32 %s4774, 4
          %s4785 = int_to_ptr.vmem [resolvable:$true] %s4784
          %4790 = dma.vmem_to_hbm [thread:$0]  %s4785, 4096, %s4783, %s4771, 128, 128, 8
        $region56: #{up_block_apply.9} parent=51 // pred_fallthru
          _
      $region52: #{up_block_apply.9} parent=5 // pred_fallthru
        _
      %p4791 = scmp.le.s32.totalorder 2, %s17
      // Predicated region
      $region57: #{up_block_apply.9} parent=5 // pred_check
        %p4792 = pneg %p4791
      $region58: #{up_block_apply.9} parent=5 // pred_check_branch
        %4794 = sbr.rel (%p4792) target = $region60
      $region59: #{up_block_apply.9} parent=5 // pred_region
        %s4795 = ssub.s32 %s17, 2
        // Predicated region
        $region61: #{up_block_apply.9} parent=59 // pred_check
          %p4796 = pneg %p224
        $region62: #{up_block_apply.9} parent=59 // pred_check_branch
          %4798 = sbr.rel (%p4796) target = $region64
        $region63: #{up_block_apply.9} parent=59 // pred_region
          %s4799 = sand.u32 %s209, 1
          %s4800 = scalar_lea.sflag [#allocation3], %s4799
          %s4801 = sand.u32 %s209, 1
          %s4802 = smul.addr %s4801, 256
          %s4803 = scalar_lea.vmem [#allocation2], %s4802
          %4804 = dma.done %s4800, 4096
        $region64: #{up_block_apply.9} parent=59 // pred_fallthru
          _
      $region60: #{up_block_apply.9} parent=5 // pred_fallthru
        _
    $region6: #{up_block_apply.9} parent=1 // loop_footer
      %s21 = sadd.s32 1, %s17
    $region7: #{up_block_apply.9} parent=1 // loop_footer_branch
      %16 = sbr.rel target = $region3
    $region8: #{up_block_apply.9} parent=1 // loop_exit
      _
    %4805 = vsyncpa [#allocation3], 1
    %s4806 = scalar_lea.sflag [#allocation3], 1
    %4807 = vsyncpa %s4806, 1

</llo_original>
